<compile_context>
chip_gen: v5e
topology: v5e:2x2
jax: 0.10.0
libtpu: 0.0.40
codegen_flags: <defaults>
</compile_context>

<pallas_src>
import math
from functools import partial

import numpy as np
import jax
import jax.numpy as jnp
from jax import lax
from jax.experimental import pallas as pl
from jax.experimental.pallas import tpu as pltpu


# ----------------------------------------------------------------------------
# Relative position bias helpers (identical math to Swin's WindowAttention)
# ----------------------------------------------------------------------------
def _relative_position_index(wh, ww):
    coords_h = np.arange(wh)
    coords_w = np.arange(ww)
    coords = np.stack(np.meshgrid(coords_h, coords_w, indexing="ij"))     # (2, Wh, Ww)
    coords_flat = coords.reshape(2, -1)                                   # (2, N)
    rel = coords_flat[:, :, None] - coords_flat[:, None, :]               # (2, N, N)
    rel = rel.transpose(1, 2, 0).astype(np.int64)                         # (N, N, 2)
    rel[:, :, 0] += wh - 1
    rel[:, :, 1] += ww - 1
    rel[:, :, 0] *= 2 * ww - 1
    return rel.sum(-1).astype(np.int32)                                   # (N, N)


def _relative_position_bias(table, wh, ww, num_heads):
    n = wh * ww
    idx = _relative_position_index(wh, ww).reshape(-1)                    # static numpy
    bias = jnp.take(table, jnp.asarray(idx), axis=0)                      # (N*N, nh)
    return bias.reshape(n, n, num_heads).transpose(2, 0, 1)               # (nh, N, N)


# ----------------------------------------------------------------------------
# Window partition / reverse (boundary layout glue, done once per call)
# ----------------------------------------------------------------------------
def _window_partition(x_nhwc, wh, ww):
    b, h, w, c = x_nhwc.shape
    x = x_nhwc.reshape(b, h // wh, wh, w // ww, ww, c)
    x = x.transpose(0, 1, 3, 2, 4, 5)
    return x.reshape(-1, wh * ww, c)                                       # (nW, N, C)


def _window_reverse(wins, wh, ww, b, h, w):
    c = wins.shape[-1]
    x = wins.reshape(b, h // wh, w // ww, wh, ww, c)
    x = x.transpose(0, 1, 3, 2, 4, 5)
    return x.reshape(b, h, w, c)                                           # (B, H, W, C)


# ----------------------------------------------------------------------------
# Fused window-attention Pallas kernel
# ----------------------------------------------------------------------------
def _window_attn_kernel(x_ref, wq_ref, wk_ref, wv_ref, bq_ref, bk_ref, bv_ref,
                        rb_ref, wp_ref, bp_ref, o_ref, *, scale):
    """Per grid step: WB windows, fully fused qkv -> attention -> proj."""
    wb, n, c = x_ref.shape
    num_heads = wq_ref.shape[0]

    for wi in range(wb):                       # static unroll over windows in tile
        xw = x_ref[wi]                         # (N, C)
        acc = jnp.zeros((n, c), jnp.float32)   # output-proj accumulator (per window)
        for h in range(num_heads):             # static unroll over heads
            q = jnp.dot(xw, wq_ref[h], preferred_element_type=jnp.float32) + bq_ref[h]
            k = jnp.dot(xw, wk_ref[h], preferred_element_type=jnp.float32) + bk_ref[h]
            v = jnp.dot(xw, wv_ref[h], preferred_element_type=jnp.float32) + bv_ref[h]
            # scores = (q * scale) @ k^T  + relative position bias  -> (N, N)
            s = lax.dot_general(q * scale, k, (((1,), (1,)), ((), ())),
                                preferred_element_type=jnp.float32)
            s = s + rb_ref[h]
            # numerically stable softmax along the key axis
            s = s - jnp.max(s, axis=-1, keepdims=True)
            p = jnp.exp(s)
            p = p / jnp.sum(p, axis=-1, keepdims=True)
            # attention output for this head, folded straight into the output
            # projection:  out += (p @ v_h) @ Wproj_h   (no head concat needed)
            o_h = jnp.dot(p, v, preferred_element_type=jnp.float32)            # (N, d)
            acc = acc + jnp.dot(o_h, wp_ref[h], preferred_element_type=jnp.float32)
        o_ref[wi] = (acc + bp_ref[...]).astype(o_ref.dtype)


def _largest_divisor_leq(n, target):
    wb = max(1, min(target, n))
    while n % wb != 0:
        wb -= 1
    return wb


# ----------------------------------------------------------------------------
# swin_attn_block forward:  x (B, C, H, W)  ->  y (B, C, H, W)
# ----------------------------------------------------------------------------
def swin_attn_block_forward(params, x_nchw, *, num_heads, window_size,
                            qk_scale=None, windows_per_block=4):
    b, c, h, w = x_nchw.shape
    wh, ww = window_size
    assert wh > 0 and ww > 0 and h % wh == 0 and w % ww == 0, "window must tile (H, W)"
    assert c % num_heads == 0
    n = wh * ww
    d = c // num_heads
    scale = qk_scale if qk_scale is not None else d ** -0.5

    # rearrange 'b c h w -> b h w c' and partition into windows
    x = jnp.transpose(x_nchw, (0, 2, 3, 1)).astype(jnp.float32)
    xw = _window_partition(x, wh, ww)                       # (nW, N, C)
    n_windows = xw.shape[0]

    # --- trace-time weight preparation: per-head slabs, no in-kernel transposes
    qkv_w_t = params["qkv_w"].T                             # (C, 3C)   (y = x @ W^T + b)
    wq = qkv_w_t[:, 0 * c:1 * c].reshape(c, num_heads, d).transpose(1, 0, 2)  # (nh, C, d)
    wk = qkv_w_t[:, 1 * c:2 * c].reshape(c, num_heads, d).transpose(1, 0, 2)
    wv = qkv_w_t[:, 2 * c:3 * c].reshape(c, num_heads, d).transpose(1, 0, 2)
    bq = params["qkv_b"][0 * c:1 * c].reshape(num_heads, 1, d)
    bk = params["qkv_b"][1 * c:2 * c].reshape(num_heads, 1, d)
    bv = params["qkv_b"][2 * c:3 * c].reshape(num_heads, 1, d)
    wp = params["proj_w"].T.reshape(num_heads, d, c)        # (nh, d, C)
    bp = params["proj_b"].reshape(1, c)
    rb = _relative_position_bias(params["rpb_table"], wh, ww, num_heads)       # (nh, N, N)

    wb = _largest_divisor_leq(n_windows, windows_per_block)
    grid = (n_windows // wb,)

    const = lambda shape: pl.BlockSpec(shape, lambda i: (0,) * len(shape))

    out = pl.pallas_call(
        partial(_window_attn_kernel, scale=scale),
        out_shape=jax.ShapeDtypeStruct((n_windows, n, c), jnp.float32),
        grid_spec=pltpu.PrefetchScalarGridSpec(
            num_scalar_prefetch=0,
            grid=grid,
            in_specs=[
                pl.BlockSpec((wb, n, c), lambda i: (i, 0, 0)),   # window tile
                const(wq.shape), const(wk.shape), const(wv.shape),
                const(bq.shape), const(bk.shape), const(bv.shape),
                const(rb.shape), const(wp.shape), const(bp.shape),
            ],
            out_specs=pl.BlockSpec((wb, n, c), lambda i: (i, 0, 0)),
        ),
        compiler_params=pltpu.CompilerParams(
            dimension_semantics=("parallel",),
        ),
    )(xw, wq, wk, wv, bq, bk, bv, rb, wp, bp)

    # reverse windows and rearrange 'b h w c -> b c h w'
    y = _window_reverse(out, wh, ww, b, h, w)
    return jnp.transpose(y, (0, 3, 1, 2))


# ----------------------------------------------------------------------------
# Pure-JAX reference (direct port of the PyTorch WindowAttention, mask=None)
# ----------------------------------------------------------------------------
def swin_attn_block_reference(params, x_nchw, *, num_heads, window_size, qk_scale=None):
    b, c, h, w = x_nchw.shape
    wh, ww = window_size
    n = wh * ww
    d = c // num_heads
    scale = qk_scale if qk_scale is not None else d ** -0.5

    x = jnp.transpose(x_nchw, (0, 2, 3, 1)).astype(jnp.float32)
    xw = _window_partition(x, wh, ww)                                   # (nW, N, C)
    qkv = xw @ params["qkv_w"].T + params["qkv_b"]                      # (nW, N, 3C)
    qkv = qkv.reshape(-1, n, 3, num_heads, d).transpose(2, 0, 3, 1, 4)  # (3, nW, nh, N, d)
    q, k, v = qkv[0], qkv[1], qkv[2]
    attn = (q * scale) @ jnp.swapaxes(k, -2, -1)                        # (nW, nh, N, N)
    attn = attn + _relative_position_bias(params["rpb_table"], wh, ww, num_heads)[None]
    attn = jax.nn.softmax(attn, axis=-1)
    o = (attn @ v).transpose(0, 2, 1, 3).reshape(-1, n, c)              # (nW, N, C)
    o = o @ params["proj_w"].T + params["proj_b"]
    y = _window_reverse(o, wh, ww, b, h, w)
    return jnp.transpose(y, (0, 3, 1, 2))


# ----------------------------------------------------------------------------
# Deterministic parameter init (PyTorch layouts: Linear weight = (out, in))
# ----------------------------------------------------------------------------
def init_params(key, dim, num_heads, window_size, qkv_bias=True):
    wh, ww = window_size
    k1, k2, k3, k4, k5 = jax.random.split(key, 5)
    bound = 1.0 / math.sqrt(dim)
    qkv_w = jax.random.uniform(k1, (3 * dim, dim), jnp.float32, -bound, bound)
    qkv_b = (jax.random.uniform(k2, (3 * dim,), jnp.float32, -bound, bound)
             if qkv_bias else jnp.zeros((3 * dim,), jnp.float32))
    proj_w = jax.random.uniform(k3, (dim, dim), jnp.float32, -bound, bound)
    proj_b = jax.random.uniform(k4, (dim,), jnp.float32, -bound, bound)
    rpb_table = 0.02 * jax.random.normal(
        k5, ((2 * wh - 1) * (2 * ww - 1), num_heads), jnp.float32)
    return dict(qkv_w=qkv_w, qkv_b=qkv_b, proj_w=proj_w, proj_b=proj_b,
                rpb_table=rpb_table)


if __name__ == "__main__":
    key = jax.random.PRNGKey(0)
    pkey, xkey = jax.random.split(key)

    # Lane-dense small test config: dim=128 (full 128-lane stores), 4 heads,
    # 8x8 windows over a 16x16 feature map, batch 2  ->  8 windows of 64 tokens.
    dim, num_heads, window = 128, 4, (8, 8)
    batch, height, width = 2, 16, 16

    params = init_params(pkey, dim, num_heads, window)
    x = jax.random.normal(xkey, (batch, dim, height, width), jnp.float32)

    fwd = jax.jit(partial(swin_attn_block_forward,
                          num_heads=num_heads, window_size=window,
                          windows_per_block=4))
    y = jax.block_until_ready(fwd(params, x))

    assert y.shape == (batch, dim, height, width), y.shape
    assert bool(jnp.all(jnp.isfinite(y)))

    # Cross-check against the pure-JAX reference implementation.
    y_ref = jax.block_until_ready(
        swin_attn_block_reference(params, x, num_heads=num_heads, window_size=window))
    max_err = float(jnp.max(jnp.abs(y - y_ref)))
    assert max_err < 5e-2, f"max abs error vs reference: {max_err}"

    print("KERNEL_OK")
</pallas_src>

<mosaic_0001>
module attributes {stable_mosaic.version = 11 : i64} {
  func.func @_window_attn_kernel(%arg0: i32, %arg1: memref<4x64x128xf32, #tpu.memory_space<vmem>>, %arg2: memref<4x128x32xf32, #tpu.memory_space<vmem>>, %arg3: memref<4x128x32xf32, #tpu.memory_space<vmem>>, %arg4: memref<4x128x32xf32, #tpu.memory_space<vmem>>, %arg5: memref<4x1x32xf32, #tpu.memory_space<vmem>>, %arg6: memref<4x1x32xf32, #tpu.memory_space<vmem>>, %arg7: memref<4x1x32xf32, #tpu.memory_space<vmem>>, %arg8: memref<4x64x64xf32, #tpu.memory_space<vmem>>, %arg9: memref<4x32x128xf32, #tpu.memory_space<vmem>>, %arg10: memref<1x128xf32, #tpu.memory_space<vmem>>, %arg11: memref<4x64x128xf32, #tpu.memory_space<vmem>>) attributes {dimension_semantics = [#tpu.dimension_semantics<parallel>], iteration_bounds = array<i64: 2>, scalar_prefetch = 0 : i64, scratch_operands = 0 : i64, tpu.core_type = #tpu.core_type<tc>, window_params = [{transform_indices = @transform_0, window_bounds = array<i64: 4, 64, 128>}, {pipeline_mode = #tpu.pipeline_mode<synchronous>, transform_indices = @transform_1, window_bounds = array<i64: 4, 128, 32>}, {pipeline_mode = #tpu.pipeline_mode<synchronous>, transform_indices = @transform_2, window_bounds = array<i64: 4, 128, 32>}, {pipeline_mode = #tpu.pipeline_mode<synchronous>, transform_indices = @transform_3, window_bounds = array<i64: 4, 128, 32>}, {pipeline_mode = #tpu.pipeline_mode<synchronous>, transform_indices = @transform_4, window_bounds = array<i64: 4, 1, 32>}, {pipeline_mode = #tpu.pipeline_mode<synchronous>, transform_indices = @transform_5, window_bounds = array<i64: 4, 1, 32>}, {pipeline_mode = #tpu.pipeline_mode<synchronous>, transform_indices = @transform_6, window_bounds = array<i64: 4, 1, 32>}, {pipeline_mode = #tpu.pipeline_mode<synchronous>, transform_indices = @transform_7, window_bounds = array<i64: 4, 64, 64>}, {pipeline_mode = #tpu.pipeline_mode<synchronous>, transform_indices = @transform_8, window_bounds = array<i64: 4, 32, 128>}, {pipeline_mode = #tpu.pipeline_mode<synchronous>, transform_indices = @transform_9, window_bounds = array<i64: 1, 128>}, {transform_indices = @transform_10, window_bounds = array<i64: 4, 64, 128>}]} {
    %c0 = arith.constant 0 : index
    %c0_0 = arith.constant 0 : index
    %c0_1 = arith.constant 0 : index
    %0 = vector.load %arg1[%c0, %c0_0, %c0_1] : memref<4x64x128xf32, #tpu.memory_space<vmem>>, vector<1x64x128xf32>
    %1 = vector.shape_cast %0 : vector<1x64x128xf32> to vector<64x128xf32>
    %cst = arith.constant 0.000000e+00 : f32
    %2 = vector.broadcast %cst : f32 to vector<64x128xf32>
    %c0_2 = arith.constant 0 : index
    %c0_3 = arith.constant 0 : index
    %c0_4 = arith.constant 0 : index
    %3 = vector.load %arg2[%c0_2, %c0_3, %c0_4] : memref<4x128x32xf32, #tpu.memory_space<vmem>>, vector<1x128x32xf32>
    %4 = vector.shape_cast %3 : vector<1x128x32xf32> to vector<128x32xf32>
    %cst_5 = arith.constant dense<0.000000e+00> : vector<64x32xf32>
    %5 = tpu.matmul %1, %4, %cst_5 {dimension_numbers = #tpu.dot_dimension_numbers<[1], [0], [0], [1], [0, 0, 1, 1], [], []>} : vector<64x128xf32>, vector<128x32xf32>, vector<64x32xf32> -> vector<64x32xf32>
    %c0_6 = arith.constant 0 : index
    %c0_7 = arith.constant 0 : index
    %c0_8 = arith.constant 0 : index
    %6 = vector.load %arg5[%c0_6, %c0_7, %c0_8] : memref<4x1x32xf32, #tpu.memory_space<vmem>>, vector<1x1x32xf32>
    %7 = vector.shape_cast %6 : vector<1x1x32xf32> to vector<1x32xf32>
    %8 = vector.broadcast %7 : vector<1x32xf32> to vector<64x32xf32>
    %9 = arith.addf %5, %8 : vector<64x32xf32>
    %c0_9 = arith.constant 0 : index
    %c0_10 = arith.constant 0 : index
    %c0_11 = arith.constant 0 : index
    %10 = vector.load %arg3[%c0_9, %c0_10, %c0_11] : memref<4x128x32xf32, #tpu.memory_space<vmem>>, vector<1x128x32xf32>
    %11 = vector.shape_cast %10 : vector<1x128x32xf32> to vector<128x32xf32>
    %cst_12 = arith.constant dense<0.000000e+00> : vector<64x32xf32>
    %12 = tpu.matmul %1, %11, %cst_12 {dimension_numbers = #tpu.dot_dimension_numbers<[1], [0], [0], [1], [0, 0, 1, 1], [], []>} : vector<64x128xf32>, vector<128x32xf32>, vector<64x32xf32> -> vector<64x32xf32>
    %c0_13 = arith.constant 0 : index
    %c0_14 = arith.constant 0 : index
    %c0_15 = arith.constant 0 : index
    %13 = vector.load %arg6[%c0_13, %c0_14, %c0_15] : memref<4x1x32xf32, #tpu.memory_space<vmem>>, vector<1x1x32xf32>
    %14 = vector.shape_cast %13 : vector<1x1x32xf32> to vector<1x32xf32>
    %15 = vector.broadcast %14 : vector<1x32xf32> to vector<64x32xf32>
    %16 = arith.addf %12, %15 : vector<64x32xf32>
    %c0_16 = arith.constant 0 : index
    %c0_17 = arith.constant 0 : index
    %c0_18 = arith.constant 0 : index
    %17 = vector.load %arg4[%c0_16, %c0_17, %c0_18] : memref<4x128x32xf32, #tpu.memory_space<vmem>>, vector<1x128x32xf32>
    %18 = vector.shape_cast %17 : vector<1x128x32xf32> to vector<128x32xf32>
    %cst_19 = arith.constant dense<0.000000e+00> : vector<64x32xf32>
    %19 = tpu.matmul %1, %18, %cst_19 {dimension_numbers = #tpu.dot_dimension_numbers<[1], [0], [0], [1], [0, 0, 1, 1], [], []>} : vector<64x128xf32>, vector<128x32xf32>, vector<64x32xf32> -> vector<64x32xf32>
    %c0_20 = arith.constant 0 : index
    %c0_21 = arith.constant 0 : index
    %c0_22 = arith.constant 0 : index
    %20 = vector.load %arg7[%c0_20, %c0_21, %c0_22] : memref<4x1x32xf32, #tpu.memory_space<vmem>>, vector<1x1x32xf32>
    %21 = vector.shape_cast %20 : vector<1x1x32xf32> to vector<1x32xf32>
    %22 = vector.broadcast %21 : vector<1x32xf32> to vector<64x32xf32>
    %23 = arith.addf %19, %22 : vector<64x32xf32>
    %cst_23 = arith.constant 0.176776692 : f32
    %24 = vector.broadcast %cst_23 : f32 to vector<64x32xf32>
    %25 = arith.mulf %9, %24 : vector<64x32xf32>
    %cst_24 = arith.constant dense<0.000000e+00> : vector<64x64xf32>
    %26 = tpu.matmul %25, %16, %cst_24 {dimension_numbers = #tpu.dot_dimension_numbers<[1], [1], [0], [0], [0, 0, 1, 0], [], []>} : vector<64x32xf32>, vector<64x32xf32>, vector<64x64xf32> -> vector<64x64xf32>
    %c0_25 = arith.constant 0 : index
    %c0_26 = arith.constant 0 : index
    %c0_27 = arith.constant 0 : index
    %27 = vector.load %arg8[%c0_25, %c0_26, %c0_27] : memref<4x64x64xf32, #tpu.memory_space<vmem>>, vector<1x64x64xf32>
    %28 = vector.shape_cast %27 : vector<1x64x64xf32> to vector<64x64xf32>
    %29 = arith.addf %26, %28 : vector<64x64xf32>
    %cst_28 = arith.constant dense<0xFF800000> : vector<64xf32>
    %30 = vector.multi_reduction <maximumf>, %29, %cst_28 [1] : vector<64x64xf32> to vector<64xf32>
    %31 = vector.shape_cast %30 : vector<64xf32> to vector<64x1xf32>
    %32 = vector.broadcast %31 : vector<64x1xf32> to vector<64x64xf32>
    %33 = arith.subf %29, %32 : vector<64x64xf32>
    %34 = math.exp %33 : vector<64x64xf32>
    %cst_29 = arith.constant dense<0.000000e+00> : vector<64xf32>
    %35 = vector.multi_reduction <add>, %34, %cst_29 [1] : vector<64x64xf32> to vector<64xf32>
    %36 = vector.shape_cast %35 : vector<64xf32> to vector<64x1xf32>
    %37 = vector.broadcast %36 : vector<64x1xf32> to vector<64x64xf32>
    %38 = arith.divf %34, %37 : vector<64x64xf32>
    %cst_30 = arith.constant dense<0.000000e+00> : vector<64x32xf32>
    %39 = tpu.matmul %38, %23, %cst_30 {dimension_numbers = #tpu.dot_dimension_numbers<[1], [0], [0], [1], [0, 0, 1, 1], [], []>} : vector<64x64xf32>, vector<64x32xf32>, vector<64x32xf32> -> vector<64x32xf32>
    %c0_31 = arith.constant 0 : index
    %c0_32 = arith.constant 0 : index
    %c0_33 = arith.constant 0 : index
    %40 = vector.load %arg9[%c0_31, %c0_32, %c0_33] : memref<4x32x128xf32, #tpu.memory_space<vmem>>, vector<1x32x128xf32>
    %41 = vector.shape_cast %40 : vector<1x32x128xf32> to vector<32x128xf32>
    %cst_34 = arith.constant dense<0.000000e+00> : vector<64x128xf32>
    %42 = tpu.matmul %39, %41, %cst_34 {dimension_numbers = #tpu.dot_dimension_numbers<[1], [0], [0], [1], [0, 0, 1, 1], [], []>} : vector<64x32xf32>, vector<32x128xf32>, vector<64x128xf32> -> vector<64x128xf32>
    %43 = arith.addf %2, %42 : vector<64x128xf32>
    %c1 = arith.constant 1 : index
    %c0_35 = arith.constant 0 : index
    %c0_36 = arith.constant 0 : index
    %44 = vector.load %arg2[%c1, %c0_35, %c0_36] : memref<4x128x32xf32, #tpu.memory_space<vmem>>, vector<1x128x32xf32>
    %45 = vector.shape_cast %44 : vector<1x128x32xf32> to vector<128x32xf32>
    %cst_37 = arith.constant dense<0.000000e+00> : vector<64x32xf32>
    %46 = tpu.matmul %1, %45, %cst_37 {dimension_numbers = #tpu.dot_dimension_numbers<[1], [0], [0], [1], [0, 0, 1, 1], [], []>} : vector<64x128xf32>, vector<128x32xf32>, vector<64x32xf32> -> vector<64x32xf32>
    %c1_38 = arith.constant 1 : index
    %c0_39 = arith.constant 0 : index
    %c0_40 = arith.constant 0 : index
    %47 = vector.load %arg5[%c1_38, %c0_39, %c0_40] : memref<4x1x32xf32, #tpu.memory_space<vmem>>, vector<1x1x32xf32>
    %48 = vector.shape_cast %47 : vector<1x1x32xf32> to vector<1x32xf32>
    %49 = vector.broadcast %48 : vector<1x32xf32> to vector<64x32xf32>
    %50 = arith.addf %46, %49 : vector<64x32xf32>
    %c1_41 = arith.constant 1 : index
    %c0_42 = arith.constant 0 : index
    %c0_43 = arith.constant 0 : index
    %51 = vector.load %arg3[%c1_41, %c0_42, %c0_43] : memref<4x128x32xf32, #tpu.memory_space<vmem>>, vector<1x128x32xf32>
    %52 = vector.shape_cast %51 : vector<1x128x32xf32> to vector<128x32xf32>
    %cst_44 = arith.constant dense<0.000000e+00> : vector<64x32xf32>
    %53 = tpu.matmul %1, %52, %cst_44 {dimension_numbers = #tpu.dot_dimension_numbers<[1], [0], [0], [1], [0, 0, 1, 1], [], []>} : vector<64x128xf32>, vector<128x32xf32>, vector<64x32xf32> -> vector<64x32xf32>
    %c1_45 = arith.constant 1 : index
    %c0_46 = arith.constant 0 : index
    %c0_47 = arith.constant 0 : index
    %54 = vector.load %arg6[%c1_45, %c0_46, %c0_47] : memref<4x1x32xf32, #tpu.memory_space<vmem>>, vector<1x1x32xf32>
    %55 = vector.shape_cast %54 : vector<1x1x32xf32> to vector<1x32xf32>
    %56 = vector.broadcast %55 : vector<1x32xf32> to vector<64x32xf32>
    %57 = arith.addf %53, %56 : vector<64x32xf32>
    %c1_48 = arith.constant 1 : index
    %c0_49 = arith.constant 0 : index
    %c0_50 = arith.constant 0 : index
    %58 = vector.load %arg4[%c1_48, %c0_49, %c0_50] : memref<4x128x32xf32, #tpu.memory_space<vmem>>, vector<1x128x32xf32>
    %59 = vector.shape_cast %58 : vector<1x128x32xf32> to vector<128x32xf32>
    %cst_51 = arith.constant dense<0.000000e+00> : vector<64x32xf32>
    %60 = tpu.matmul %1, %59, %cst_51 {dimension_numbers = #tpu.dot_dimension_numbers<[1], [0], [0], [1], [0, 0, 1, 1], [], []>} : vector<64x128xf32>, vector<128x32xf32>, vector<64x32xf32> -> vector<64x32xf32>
    %c1_52 = arith.constant 1 : index
    %c0_53 = arith.constant 0 : index
    %c0_54 = arith.constant 0 : index
    %61 = vector.load %arg7[%c1_52, %c0_53, %c0_54] : memref<4x1x32xf32, #tpu.memory_space<vmem>>, vector<1x1x32xf32>
    %62 = vector.shape_cast %61 : vector<1x1x32xf32> to vector<1x32xf32>
    %63 = vector.broadcast %62 : vector<1x32xf32> to vector<64x32xf32>
    %64 = arith.addf %60, %63 : vector<64x32xf32>
    %cst_55 = arith.constant 0.176776692 : f32
    %65 = vector.broadcast %cst_55 : f32 to vector<64x32xf32>
    %66 = arith.mulf %50, %65 : vector<64x32xf32>
    %cst_56 = arith.constant dense<0.000000e+00> : vector<64x64xf32>
    %67 = tpu.matmul %66, %57, %cst_56 {dimension_numbers = #tpu.dot_dimension_numbers<[1], [1], [0], [0], [0, 0, 1, 0], [], []>} : vector<64x32xf32>, vector<64x32xf32>, vector<64x64xf32> -> vector<64x64xf32>
    %c1_57 = arith.constant 1 : index
    %c0_58 = arith.constant 0 : index
    %c0_59 = arith.constant 0 : index
    %68 = vector.load %arg8[%c1_57, %c0_58, %c0_59] : memref<4x64x64xf32, #tpu.memory_space<vmem>>, vector<1x64x64xf32>
    %69 = vector.shape_cast %68 : vector<1x64x64xf32> to vector<64x64xf32>
    %70 = arith.addf %67, %69 : vector<64x64xf32>
    %cst_60 = arith.constant dense<0xFF800000> : vector<64xf32>
    %71 = vector.multi_reduction <maximumf>, %70, %cst_60 [1] : vector<64x64xf32> to vector<64xf32>
    %72 = vector.shape_cast %71 : vector<64xf32> to vector<64x1xf32>
    %73 = vector.broadcast %72 : vector<64x1xf32> to vector<64x64xf32>
    %74 = arith.subf %70, %73 : vector<64x64xf32>
    %75 = math.exp %74 : vector<64x64xf32>
    %cst_61 = arith.constant dense<0.000000e+00> : vector<64xf32>
    %76 = vector.multi_reduction <add>, %75, %cst_61 [1] : vector<64x64xf32> to vector<64xf32>
    %77 = vector.shape_cast %76 : vector<64xf32> to vector<64x1xf32>
    %78 = vector.broadcast %77 : vector<64x1xf32> to vector<64x64xf32>
    %79 = arith.divf %75, %78 : vector<64x64xf32>
    %cst_62 = arith.constant dense<0.000000e+00> : vector<64x32xf32>
    %80 = tpu.matmul %79, %64, %cst_62 {dimension_numbers = #tpu.dot_dimension_numbers<[1], [0], [0], [1], [0, 0, 1, 1], [], []>} : vector<64x64xf32>, vector<64x32xf32>, vector<64x32xf32> -> vector<64x32xf32>
    %c1_63 = arith.constant 1 : index
    %c0_64 = arith.constant 0 : index
    %c0_65 = arith.constant 0 : index
    %81 = vector.load %arg9[%c1_63, %c0_64, %c0_65] : memref<4x32x128xf32, #tpu.memory_space<vmem>>, vector<1x32x128xf32>
    %82 = vector.shape_cast %81 : vector<1x32x128xf32> to vector<32x128xf32>
    %cst_66 = arith.constant dense<0.000000e+00> : vector<64x128xf32>
    %83 = tpu.matmul %80, %82, %cst_66 {dimension_numbers = #tpu.dot_dimension_numbers<[1], [0], [0], [1], [0, 0, 1, 1], [], []>} : vector<64x32xf32>, vector<32x128xf32>, vector<64x128xf32> -> vector<64x128xf32>
    %84 = arith.addf %43, %83 : vector<64x128xf32>
    %c2 = arith.constant 2 : index
    %c0_67 = arith.constant 0 : index
    %c0_68 = arith.constant 0 : index
    %85 = vector.load %arg2[%c2, %c0_67, %c0_68] : memref<4x128x32xf32, #tpu.memory_space<vmem>>, vector<1x128x32xf32>
    %86 = vector.shape_cast %85 : vector<1x128x32xf32> to vector<128x32xf32>
    %cst_69 = arith.constant dense<0.000000e+00> : vector<64x32xf32>
    %87 = tpu.matmul %1, %86, %cst_69 {dimension_numbers = #tpu.dot_dimension_numbers<[1], [0], [0], [1], [0, 0, 1, 1], [], []>} : vector<64x128xf32>, vector<128x32xf32>, vector<64x32xf32> -> vector<64x32xf32>
    %c2_70 = arith.constant 2 : index
    %c0_71 = arith.constant 0 : index
    %c0_72 = arith.constant 0 : index
    %88 = vector.load %arg5[%c2_70, %c0_71, %c0_72] : memref<4x1x32xf32, #tpu.memory_space<vmem>>, vector<1x1x32xf32>
    %89 = vector.shape_cast %88 : vector<1x1x32xf32> to vector<1x32xf32>
    %90 = vector.broadcast %89 : vector<1x32xf32> to vector<64x32xf32>
    %91 = arith.addf %87, %90 : vector<64x32xf32>
    %c2_73 = arith.constant 2 : index
    %c0_74 = arith.constant 0 : index
    %c0_75 = arith.constant 0 : index
    %92 = vector.load %arg3[%c2_73, %c0_74, %c0_75] : memref<4x128x32xf32, #tpu.memory_space<vmem>>, vector<1x128x32xf32>
    %93 = vector.shape_cast %92 : vector<1x128x32xf32> to vector<128x32xf32>
    %cst_76 = arith.constant dense<0.000000e+00> : vector<64x32xf32>
    %94 = tpu.matmul %1, %93, %cst_76 {dimension_numbers = #tpu.dot_dimension_numbers<[1], [0], [0], [1], [0, 0, 1, 1], [], []>} : vector<64x128xf32>, vector<128x32xf32>, vector<64x32xf32> -> vector<64x32xf32>
    %c2_77 = arith.constant 2 : index
    %c0_78 = arith.constant 0 : index
    %c0_79 = arith.constant 0 : index
    %95 = vector.load %arg6[%c2_77, %c0_78, %c0_79] : memref<4x1x32xf32, #tpu.memory_space<vmem>>, vector<1x1x32xf32>
    %96 = vector.shape_cast %95 : vector<1x1x32xf32> to vector<1x32xf32>
    %97 = vector.broadcast %96 : vector<1x32xf32> to vector<64x32xf32>
    %98 = arith.addf %94, %97 : vector<64x32xf32>
    %c2_80 = arith.constant 2 : index
    %c0_81 = arith.constant 0 : index
    %c0_82 = arith.constant 0 : index
    %99 = vector.load %arg4[%c2_80, %c0_81, %c0_82] : memref<4x128x32xf32, #tpu.memory_space<vmem>>, vector<1x128x32xf32>
    %100 = vector.shape_cast %99 : vector<1x128x32xf32> to vector<128x32xf32>
    %cst_83 = arith.constant dense<0.000000e+00> : vector<64x32xf32>
    %101 = tpu.matmul %1, %100, %cst_83 {dimension_numbers = #tpu.dot_dimension_numbers<[1], [0], [0], [1], [0, 0, 1, 1], [], []>} : vector<64x128xf32>, vector<128x32xf32>, vector<64x32xf32> -> vector<64x32xf32>
    %c2_84 = arith.constant 2 : index
    %c0_85 = arith.constant 0 : index
    %c0_86 = arith.constant 0 : index
    %102 = vector.load %arg7[%c2_84, %c0_85, %c0_86] : memref<4x1x32xf32, #tpu.memory_space<vmem>>, vector<1x1x32xf32>
    %103 = vector.shape_cast %102 : vector<1x1x32xf32> to vector<1x32xf32>
    %104 = vector.broadcast %103 : vector<1x32xf32> to vector<64x32xf32>
    %105 = arith.addf %101, %104 : vector<64x32xf32>
    %cst_87 = arith.constant 0.176776692 : f32
    %106 = vector.broadcast %cst_87 : f32 to vector<64x32xf32>
    %107 = arith.mulf %91, %106 : vector<64x32xf32>
    %cst_88 = arith.constant dense<0.000000e+00> : vector<64x64xf32>
    %108 = tpu.matmul %107, %98, %cst_88 {dimension_numbers = #tpu.dot_dimension_numbers<[1], [1], [0], [0], [0, 0, 1, 0], [], []>} : vector<64x32xf32>, vector<64x32xf32>, vector<64x64xf32> -> vector<64x64xf32>
    %c2_89 = arith.constant 2 : index
    %c0_90 = arith.constant 0 : index
    %c0_91 = arith.constant 0 : index
    %109 = vector.load %arg8[%c2_89, %c0_90, %c0_91] : memref<4x64x64xf32, #tpu.memory_space<vmem>>, vector<1x64x64xf32>
    %110 = vector.shape_cast %109 : vector<1x64x64xf32> to vector<64x64xf32>
    %111 = arith.addf %108, %110 : vector<64x64xf32>
    %cst_92 = arith.constant dense<0xFF800000> : vector<64xf32>
    %112 = vector.multi_reduction <maximumf>, %111, %cst_92 [1] : vector<64x64xf32> to vector<64xf32>
    %113 = vector.shape_cast %112 : vector<64xf32> to vector<64x1xf32>
    %114 = vector.broadcast %113 : vector<64x1xf32> to vector<64x64xf32>
    %115 = arith.subf %111, %114 : vector<64x64xf32>
    %116 = math.exp %115 : vector<64x64xf32>
    %cst_93 = arith.constant dense<0.000000e+00> : vector<64xf32>
    %117 = vector.multi_reduction <add>, %116, %cst_93 [1] : vector<64x64xf32> to vector<64xf32>
    %118 = vector.shape_cast %117 : vector<64xf32> to vector<64x1xf32>
    %119 = vector.broadcast %118 : vector<64x1xf32> to vector<64x64xf32>
    %120 = arith.divf %116, %119 : vector<64x64xf32>
    %cst_94 = arith.constant dense<0.000000e+00> : vector<64x32xf32>
    %121 = tpu.matmul %120, %105, %cst_94 {dimension_numbers = #tpu.dot_dimension_numbers<[1], [0], [0], [1], [0, 0, 1, 1], [], []>} : vector<64x64xf32>, vector<64x32xf32>, vector<64x32xf32> -> vector<64x32xf32>
    %c2_95 = arith.constant 2 : index
    %c0_96 = arith.constant 0 : index
    %c0_97 = arith.constant 0 : index
    %122 = vector.load %arg9[%c2_95, %c0_96, %c0_97] : memref<4x32x128xf32, #tpu.memory_space<vmem>>, vector<1x32x128xf32>
    %123 = vector.shape_cast %122 : vector<1x32x128xf32> to vector<32x128xf32>
    %cst_98 = arith.constant dense<0.000000e+00> : vector<64x128xf32>
    %124 = tpu.matmul %121, %123, %cst_98 {dimension_numbers = #tpu.dot_dimension_numbers<[1], [0], [0], [1], [0, 0, 1, 1], [], []>} : vector<64x32xf32>, vector<32x128xf32>, vector<64x128xf32> -> vector<64x128xf32>
    %125 = arith.addf %84, %124 : vector<64x128xf32>
    %c3 = arith.constant 3 : index
    %c0_99 = arith.constant 0 : index
    %c0_100 = arith.constant 0 : index
    %126 = vector.load %arg2[%c3, %c0_99, %c0_100] : memref<4x128x32xf32, #tpu.memory_space<vmem>>, vector<1x128x32xf32>
    %127 = vector.shape_cast %126 : vector<1x128x32xf32> to vector<128x32xf32>
    %cst_101 = arith.constant dense<0.000000e+00> : vector<64x32xf32>
    %128 = tpu.matmul %1, %127, %cst_101 {dimension_numbers = #tpu.dot_dimension_numbers<[1], [0], [0], [1], [0, 0, 1, 1], [], []>} : vector<64x128xf32>, vector<128x32xf32>, vector<64x32xf32> -> vector<64x32xf32>
    %c3_102 = arith.constant 3 : index
    %c0_103 = arith.constant 0 : index
    %c0_104 = arith.constant 0 : index
    %129 = vector.load %arg5[%c3_102, %c0_103, %c0_104] : memref<4x1x32xf32, #tpu.memory_space<vmem>>, vector<1x1x32xf32>
    %130 = vector.shape_cast %129 : vector<1x1x32xf32> to vector<1x32xf32>
    %131 = vector.broadcast %130 : vector<1x32xf32> to vector<64x32xf32>
    %132 = arith.addf %128, %131 : vector<64x32xf32>
    %c3_105 = arith.constant 3 : index
    %c0_106 = arith.constant 0 : index
    %c0_107 = arith.constant 0 : index
    %133 = vector.load %arg3[%c3_105, %c0_106, %c0_107] : memref<4x128x32xf32, #tpu.memory_space<vmem>>, vector<1x128x32xf32>
    %134 = vector.shape_cast %133 : vector<1x128x32xf32> to vector<128x32xf32>
    %cst_108 = arith.constant dense<0.000000e+00> : vector<64x32xf32>
    %135 = tpu.matmul %1, %134, %cst_108 {dimension_numbers = #tpu.dot_dimension_numbers<[1], [0], [0], [1], [0, 0, 1, 1], [], []>} : vector<64x128xf32>, vector<128x32xf32>, vector<64x32xf32> -> vector<64x32xf32>
    %c3_109 = arith.constant 3 : index
    %c0_110 = arith.constant 0 : index
    %c0_111 = arith.constant 0 : index
    %136 = vector.load %arg6[%c3_109, %c0_110, %c0_111] : memref<4x1x32xf32, #tpu.memory_space<vmem>>, vector<1x1x32xf32>
    %137 = vector.shape_cast %136 : vector<1x1x32xf32> to vector<1x32xf32>
    %138 = vector.broadcast %137 : vector<1x32xf32> to vector<64x32xf32>
    %139 = arith.addf %135, %138 : vector<64x32xf32>
    %c3_112 = arith.constant 3 : index
    %c0_113 = arith.constant 0 : index
    %c0_114 = arith.constant 0 : index
    %140 = vector.load %arg4[%c3_112, %c0_113, %c0_114] : memref<4x128x32xf32, #tpu.memory_space<vmem>>, vector<1x128x32xf32>
    %141 = vector.shape_cast %140 : vector<1x128x32xf32> to vector<128x32xf32>
    %cst_115 = arith.constant dense<0.000000e+00> : vector<64x32xf32>
    %142 = tpu.matmul %1, %141, %cst_115 {dimension_numbers = #tpu.dot_dimension_numbers<[1], [0], [0], [1], [0, 0, 1, 1], [], []>} : vector<64x128xf32>, vector<128x32xf32>, vector<64x32xf32> -> vector<64x32xf32>
    %c3_116 = arith.constant 3 : index
    %c0_117 = arith.constant 0 : index
    %c0_118 = arith.constant 0 : index
    %143 = vector.load %arg7[%c3_116, %c0_117, %c0_118] : memref<4x1x32xf32, #tpu.memory_space<vmem>>, vector<1x1x32xf32>
    %144 = vector.shape_cast %143 : vector<1x1x32xf32> to vector<1x32xf32>
    %145 = vector.broadcast %144 : vector<1x32xf32> to vector<64x32xf32>
    %146 = arith.addf %142, %145 : vector<64x32xf32>
    %cst_119 = arith.constant 0.176776692 : f32
    %147 = vector.broadcast %cst_119 : f32 to vector<64x32xf32>
    %148 = arith.mulf %132, %147 : vector<64x32xf32>
    %cst_120 = arith.constant dense<0.000000e+00> : vector<64x64xf32>
    %149 = tpu.matmul %148, %139, %cst_120 {dimension_numbers = #tpu.dot_dimension_numbers<[1], [1], [0], [0], [0, 0, 1, 0], [], []>} : vector<64x32xf32>, vector<64x32xf32>, vector<64x64xf32> -> vector<64x64xf32>
    %c3_121 = arith.constant 3 : index
    %c0_122 = arith.constant 0 : index
    %c0_123 = arith.constant 0 : index
    %150 = vector.load %arg8[%c3_121, %c0_122, %c0_123] : memref<4x64x64xf32, #tpu.memory_space<vmem>>, vector<1x64x64xf32>
    %151 = vector.shape_cast %150 : vector<1x64x64xf32> to vector<64x64xf32>
    %152 = arith.addf %149, %151 : vector<64x64xf32>
    %cst_124 = arith.constant dense<0xFF800000> : vector<64xf32>
    %153 = vector.multi_reduction <maximumf>, %152, %cst_124 [1] : vector<64x64xf32> to vector<64xf32>
    %154 = vector.shape_cast %153 : vector<64xf32> to vector<64x1xf32>
    %155 = vector.broadcast %154 : vector<64x1xf32> to vector<64x64xf32>
    %156 = arith.subf %152, %155 : vector<64x64xf32>
    %157 = math.exp %156 : vector<64x64xf32>
    %cst_125 = arith.constant dense<0.000000e+00> : vector<64xf32>
    %158 = vector.multi_reduction <add>, %157, %cst_125 [1] : vector<64x64xf32> to vector<64xf32>
    %159 = vector.shape_cast %158 : vector<64xf32> to vector<64x1xf32>
    %160 = vector.broadcast %159 : vector<64x1xf32> to vector<64x64xf32>
    %161 = arith.divf %157, %160 : vector<64x64xf32>
    %cst_126 = arith.constant dense<0.000000e+00> : vector<64x32xf32>
    %162 = tpu.matmul %161, %146, %cst_126 {dimension_numbers = #tpu.dot_dimension_numbers<[1], [0], [0], [1], [0, 0, 1, 1], [], []>} : vector<64x64xf32>, vector<64x32xf32>, vector<64x32xf32> -> vector<64x32xf32>
    %c3_127 = arith.constant 3 : index
    %c0_128 = arith.constant 0 : index
    %c0_129 = arith.constant 0 : index
    %163 = vector.load %arg9[%c3_127, %c0_128, %c0_129] : memref<4x32x128xf32, #tpu.memory_space<vmem>>, vector<1x32x128xf32>
    %164 = vector.shape_cast %163 : vector<1x32x128xf32> to vector<32x128xf32>
    %cst_130 = arith.constant dense<0.000000e+00> : vector<64x128xf32>
    %165 = tpu.matmul %162, %164, %cst_130 {dimension_numbers = #tpu.dot_dimension_numbers<[1], [0], [0], [1], [0, 0, 1, 1], [], []>} : vector<64x32xf32>, vector<32x128xf32>, vector<64x128xf32> -> vector<64x128xf32>
    %166 = arith.addf %125, %165 : vector<64x128xf32>
    %c0_131 = arith.constant 0 : index
    %c0_132 = arith.constant 0 : index
    %167 = vector.load %arg10[%c0_131, %c0_132] : memref<1x128xf32, #tpu.memory_space<vmem>>, vector<1x128xf32>
    %168 = vector.broadcast %167 : vector<1x128xf32> to vector<64x128xf32>
    %169 = arith.addf %166, %168 : vector<64x128xf32>
    %c0_133 = arith.constant 0 : index
    %c0_134 = arith.constant 0 : index
    %c0_135 = arith.constant 0 : index
    %170 = vector.load %arg11[%c0_133, %c0_134, %c0_135] : memref<4x64x128xf32, #tpu.memory_space<vmem>>, vector<1x64x128xf32>
    %171 = vector.shape_cast %170 : vector<1x64x128xf32> to vector<64x128xf32>
    %172 = vector.shape_cast %169 : vector<64x128xf32> to vector<1x64x128xf32>
    tpu.vector_store %arg11[%c0_133, %c0_134, %c0_135], %172 {strides = array<i32>} : memref<4x64x128xf32, #tpu.memory_space<vmem>>, vector<1x64x128xf32>,
    %c1_136 = arith.constant 1 : index
    %c0_137 = arith.constant 0 : index
    %c0_138 = arith.constant 0 : index
    %173 = vector.load %arg1[%c1_136, %c0_137, %c0_138] : memref<4x64x128xf32, #tpu.memory_space<vmem>>, vector<1x64x128xf32>
    %174 = vector.shape_cast %173 : vector<1x64x128xf32> to vector<64x128xf32>
    %cst_139 = arith.constant 0.000000e+00 : f32
    %175 = vector.broadcast %cst_139 : f32 to vector<64x128xf32>
    %c0_140 = arith.constant 0 : index
    %c0_141 = arith.constant 0 : index
    %c0_142 = arith.constant 0 : index
    %176 = vector.load %arg2[%c0_140, %c0_141, %c0_142] : memref<4x128x32xf32, #tpu.memory_space<vmem>>, vector<1x128x32xf32>
    %177 = vector.shape_cast %176 : vector<1x128x32xf32> to vector<128x32xf32>
    %cst_143 = arith.constant dense<0.000000e+00> : vector<64x32xf32>
    %178 = tpu.matmul %174, %177, %cst_143 {dimension_numbers = #tpu.dot_dimension_numbers<[1], [0], [0], [1], [0, 0, 1, 1], [], []>} : vector<64x128xf32>, vector<128x32xf32>, vector<64x32xf32> -> vector<64x32xf32>
    %c0_144 = arith.constant 0 : index
    %c0_145 = arith.constant 0 : index
    %c0_146 = arith.constant 0 : index
    %179 = vector.load %arg5[%c0_144, %c0_145, %c0_146] : memref<4x1x32xf32, #tpu.memory_space<vmem>>, vector<1x1x32xf32>
    %180 = vector.shape_cast %179 : vector<1x1x32xf32> to vector<1x32xf32>
    %181 = vector.broadcast %180 : vector<1x32xf32> to vector<64x32xf32>
    %182 = arith.addf %178, %181 : vector<64x32xf32>
    %c0_147 = arith.constant 0 : index
    %c0_148 = arith.constant 0 : index
    %c0_149 = arith.constant 0 : index
    %183 = vector.load %arg3[%c0_147, %c0_148, %c0_149] : memref<4x128x32xf32, #tpu.memory_space<vmem>>, vector<1x128x32xf32>
    %184 = vector.shape_cast %183 : vector<1x128x32xf32> to vector<128x32xf32>
    %cst_150 = arith.constant dense<0.000000e+00> : vector<64x32xf32>
    %185 = tpu.matmul %174, %184, %cst_150 {dimension_numbers = #tpu.dot_dimension_numbers<[1], [0], [0], [1], [0, 0, 1, 1], [], []>} : vector<64x128xf32>, vector<128x32xf32>, vector<64x32xf32> -> vector<64x32xf32>
    %c0_151 = arith.constant 0 : index
    %c0_152 = arith.constant 0 : index
    %c0_153 = arith.constant 0 : index
    %186 = vector.load %arg6[%c0_151, %c0_152, %c0_153] : memref<4x1x32xf32, #tpu.memory_space<vmem>>, vector<1x1x32xf32>
    %187 = vector.shape_cast %186 : vector<1x1x32xf32> to vector<1x32xf32>
    %188 = vector.broadcast %187 : vector<1x32xf32> to vector<64x32xf32>
    %189 = arith.addf %185, %188 : vector<64x32xf32>
    %c0_154 = arith.constant 0 : index
    %c0_155 = arith.constant 0 : index
    %c0_156 = arith.constant 0 : index
    %190 = vector.load %arg4[%c0_154, %c0_155, %c0_156] : memref<4x128x32xf32, #tpu.memory_space<vmem>>, vector<1x128x32xf32>
    %191 = vector.shape_cast %190 : vector<1x128x32xf32> to vector<128x32xf32>
    %cst_157 = arith.constant dense<0.000000e+00> : vector<64x32xf32>
    %192 = tpu.matmul %174, %191, %cst_157 {dimension_numbers = #tpu.dot_dimension_numbers<[1], [0], [0], [1], [0, 0, 1, 1], [], []>} : vector<64x128xf32>, vector<128x32xf32>, vector<64x32xf32> -> vector<64x32xf32>
    %c0_158 = arith.constant 0 : index
    %c0_159 = arith.constant 0 : index
    %c0_160 = arith.constant 0 : index
    %193 = vector.load %arg7[%c0_158, %c0_159, %c0_160] : memref<4x1x32xf32, #tpu.memory_space<vmem>>, vector<1x1x32xf32>
    %194 = vector.shape_cast %193 : vector<1x1x32xf32> to vector<1x32xf32>
    %195 = vector.broadcast %194 : vector<1x32xf32> to vector<64x32xf32>
    %196 = arith.addf %192, %195 : vector<64x32xf32>
    %cst_161 = arith.constant 0.176776692 : f32
    %197 = vector.broadcast %cst_161 : f32 to vector<64x32xf32>
    %198 = arith.mulf %182, %197 : vector<64x32xf32>
    %cst_162 = arith.constant dense<0.000000e+00> : vector<64x64xf32>
    %199 = tpu.matmul %198, %189, %cst_162 {dimension_numbers = #tpu.dot_dimension_numbers<[1], [1], [0], [0], [0, 0, 1, 0], [], []>} : vector<64x32xf32>, vector<64x32xf32>, vector<64x64xf32> -> vector<64x64xf32>
    %c0_163 = arith.constant 0 : index
    %c0_164 = arith.constant 0 : index
    %c0_165 = arith.constant 0 : index
    %200 = vector.load %arg8[%c0_163, %c0_164, %c0_165] : memref<4x64x64xf32, #tpu.memory_space<vmem>>, vector<1x64x64xf32>
    %201 = vector.shape_cast %200 : vector<1x64x64xf32> to vector<64x64xf32>
    %202 = arith.addf %199, %201 : vector<64x64xf32>
    %cst_166 = arith.constant dense<0xFF800000> : vector<64xf32>
    %203 = vector.multi_reduction <maximumf>, %202, %cst_166 [1] : vector<64x64xf32> to vector<64xf32>
    %204 = vector.shape_cast %203 : vector<64xf32> to vector<64x1xf32>
    %205 = vector.broadcast %204 : vector<64x1xf32> to vector<64x64xf32>
    %206 = arith.subf %202, %205 : vector<64x64xf32>
    %207 = math.exp %206 : vector<64x64xf32>
    %cst_167 = arith.constant dense<0.000000e+00> : vector<64xf32>
    %208 = vector.multi_reduction <add>, %207, %cst_167 [1] : vector<64x64xf32> to vector<64xf32>
    %209 = vector.shape_cast %208 : vector<64xf32> to vector<64x1xf32>
    %210 = vector.broadcast %209 : vector<64x1xf32> to vector<64x64xf32>
    %211 = arith.divf %207, %210 : vector<64x64xf32>
    %cst_168 = arith.constant dense<0.000000e+00> : vector<64x32xf32>
    %212 = tpu.matmul %211, %196, %cst_168 {dimension_numbers = #tpu.dot_dimension_numbers<[1], [0], [0], [1], [0, 0, 1, 1], [], []>} : vector<64x64xf32>, vector<64x32xf32>, vector<64x32xf32> -> vector<64x32xf32>
    %c0_169 = arith.constant 0 : index
    %c0_170 = arith.constant 0 : index
    %c0_171 = arith.constant 0 : index
    %213 = vector.load %arg9[%c0_169, %c0_170, %c0_171] : memref<4x32x128xf32, #tpu.memory_space<vmem>>, vector<1x32x128xf32>
    %214 = vector.shape_cast %213 : vector<1x32x128xf32> to vector<32x128xf32>
    %cst_172 = arith.constant dense<0.000000e+00> : vector<64x128xf32>
    %215 = tpu.matmul %212, %214, %cst_172 {dimension_numbers = #tpu.dot_dimension_numbers<[1], [0], [0], [1], [0, 0, 1, 1], [], []>} : vector<64x32xf32>, vector<32x128xf32>, vector<64x128xf32> -> vector<64x128xf32>
    %216 = arith.addf %175, %215 : vector<64x128xf32>
    %c1_173 = arith.constant 1 : index
    %c0_174 = arith.constant 0 : index
    %c0_175 = arith.constant 0 : index
    %217 = vector.load %arg2[%c1_173, %c0_174, %c0_175] : memref<4x128x32xf32, #tpu.memory_space<vmem>>, vector<1x128x32xf32>
    %218 = vector.shape_cast %217 : vector<1x128x32xf32> to vector<128x32xf32>
    %cst_176 = arith.constant dense<0.000000e+00> : vector<64x32xf32>
    %219 = tpu.matmul %174, %218, %cst_176 {dimension_numbers = #tpu.dot_dimension_numbers<[1], [0], [0], [1], [0, 0, 1, 1], [], []>} : vector<64x128xf32>, vector<128x32xf32>, vector<64x32xf32> -> vector<64x32xf32>
    %c1_177 = arith.constant 1 : index
    %c0_178 = arith.constant 0 : index
    %c0_179 = arith.constant 0 : index
    %220 = vector.load %arg5[%c1_177, %c0_178, %c0_179] : memref<4x1x32xf32, #tpu.memory_space<vmem>>, vector<1x1x32xf32>
    %221 = vector.shape_cast %220 : vector<1x1x32xf32> to vector<1x32xf32>
    %222 = vector.broadcast %221 : vector<1x32xf32> to vector<64x32xf32>
    %223 = arith.addf %219, %222 : vector<64x32xf32>
    %c1_180 = arith.constant 1 : index
    %c0_181 = arith.constant 0 : index
    %c0_182 = arith.constant 0 : index
    %224 = vector.load %arg3[%c1_180, %c0_181, %c0_182] : memref<4x128x32xf32, #tpu.memory_space<vmem>>, vector<1x128x32xf32>
    %225 = vector.shape_cast %224 : vector<1x128x32xf32> to vector<128x32xf32>
    %cst_183 = arith.constant dense<0.000000e+00> : vector<64x32xf32>
    %226 = tpu.matmul %174, %225, %cst_183 {dimension_numbers = #tpu.dot_dimension_numbers<[1], [0], [0], [1], [0, 0, 1, 1], [], []>} : vector<64x128xf32>, vector<128x32xf32>, vector<64x32xf32> -> vector<64x32xf32>
    %c1_184 = arith.constant 1 : index
    %c0_185 = arith.constant 0 : index
    %c0_186 = arith.constant 0 : index
    %227 = vector.load %arg6[%c1_184, %c0_185, %c0_186] : memref<4x1x32xf32, #tpu.memory_space<vmem>>, vector<1x1x32xf32>
    %228 = vector.shape_cast %227 : vector<1x1x32xf32> to vector<1x32xf32>
    %229 = vector.broadcast %228 : vector<1x32xf32> to vector<64x32xf32>
    %230 = arith.addf %226, %229 : vector<64x32xf32>
    %c1_187 = arith.constant 1 : index
    %c0_188 = arith.constant 0 : index
    %c0_189 = arith.constant 0 : index
    %231 = vector.load %arg4[%c1_187, %c0_188, %c0_189] : memref<4x128x32xf32, #tpu.memory_space<vmem>>, vector<1x128x32xf32>
    %232 = vector.shape_cast %231 : vector<1x128x32xf32> to vector<128x32xf32>
    %cst_190 = arith.constant dense<0.000000e+00> : vector<64x32xf32>
    %233 = tpu.matmul %174, %232, %cst_190 {dimension_numbers = #tpu.dot_dimension_numbers<[1], [0], [0], [1], [0, 0, 1, 1], [], []>} : vector<64x128xf32>, vector<128x32xf32>, vector<64x32xf32> -> vector<64x32xf32>
    %c1_191 = arith.constant 1 : index
    %c0_192 = arith.constant 0 : index
    %c0_193 = arith.constant 0 : index
    %234 = vector.load %arg7[%c1_191, %c0_192, %c0_193] : memref<4x1x32xf32, #tpu.memory_space<vmem>>, vector<1x1x32xf32>
    %235 = vector.shape_cast %234 : vector<1x1x32xf32> to vector<1x32xf32>
    %236 = vector.broadcast %235 : vector<1x32xf32> to vector<64x32xf32>
    %237 = arith.addf %233, %236 : vector<64x32xf32>
    %cst_194 = arith.constant 0.176776692 : f32
    %238 = vector.broadcast %cst_194 : f32 to vector<64x32xf32>
    %239 = arith.mulf %223, %238 : vector<64x32xf32>
    %cst_195 = arith.constant dense<0.000000e+00> : vector<64x64xf32>
    %240 = tpu.matmul %239, %230, %cst_195 {dimension_numbers = #tpu.dot_dimension_numbers<[1], [1], [0], [0], [0, 0, 1, 0], [], []>} : vector<64x32xf32>, vector<64x32xf32>, vector<64x64xf32> -> vector<64x64xf32>
    %c1_196 = arith.constant 1 : index
    %c0_197 = arith.constant 0 : index
    %c0_198 = arith.constant 0 : index
    %241 = vector.load %arg8[%c1_196, %c0_197, %c0_198] : memref<4x64x64xf32, #tpu.memory_space<vmem>>, vector<1x64x64xf32>
    %242 = vector.shape_cast %241 : vector<1x64x64xf32> to vector<64x64xf32>
    %243 = arith.addf %240, %242 : vector<64x64xf32>
    %cst_199 = arith.constant dense<0xFF800000> : vector<64xf32>
    %244 = vector.multi_reduction <maximumf>, %243, %cst_199 [1] : vector<64x64xf32> to vector<64xf32>
    %245 = vector.shape_cast %244 : vector<64xf32> to vector<64x1xf32>
    %246 = vector.broadcast %245 : vector<64x1xf32> to vector<64x64xf32>
    %247 = arith.subf %243, %246 : vector<64x64xf32>
    %248 = math.exp %247 : vector<64x64xf32>
    %cst_200 = arith.constant dense<0.000000e+00> : vector<64xf32>
    %249 = vector.multi_reduction <add>, %248, %cst_200 [1] : vector<64x64xf32> to vector<64xf32>
    %250 = vector.shape_cast %249 : vector<64xf32> to vector<64x1xf32>
    %251 = vector.broadcast %250 : vector<64x1xf32> to vector<64x64xf32>
    %252 = arith.divf %248, %251 : vector<64x64xf32>
    %cst_201 = arith.constant dense<0.000000e+00> : vector<64x32xf32>
    %253 = tpu.matmul %252, %237, %cst_201 {dimension_numbers = #tpu.dot_dimension_numbers<[1], [0], [0], [1], [0, 0, 1, 1], [], []>} : vector<64x64xf32>, vector<64x32xf32>, vector<64x32xf32> -> vector<64x32xf32>
    %c1_202 = arith.constant 1 : index
    %c0_203 = arith.constant 0 : index
    %c0_204 = arith.constant 0 : index
    %254 = vector.load %arg9[%c1_202, %c0_203, %c0_204] : memref<4x32x128xf32, #tpu.memory_space<vmem>>, vector<1x32x128xf32>
    %255 = vector.shape_cast %254 : vector<1x32x128xf32> to vector<32x128xf32>
    %cst_205 = arith.constant dense<0.000000e+00> : vector<64x128xf32>
    %256 = tpu.matmul %253, %255, %cst_205 {dimension_numbers = #tpu.dot_dimension_numbers<[1], [0], [0], [1], [0, 0, 1, 1], [], []>} : vector<64x32xf32>, vector<32x128xf32>, vector<64x128xf32> -> vector<64x128xf32>
    %257 = arith.addf %216, %256 : vector<64x128xf32>
    %c2_206 = arith.constant 2 : index
    %c0_207 = arith.constant 0 : index
    %c0_208 = arith.constant 0 : index
    %258 = vector.load %arg2[%c2_206, %c0_207, %c0_208] : memref<4x128x32xf32, #tpu.memory_space<vmem>>, vector<1x128x32xf32>
    %259 = vector.shape_cast %258 : vector<1x128x32xf32> to vector<128x32xf32>
    %cst_209 = arith.constant dense<0.000000e+00> : vector<64x32xf32>
    %260 = tpu.matmul %174, %259, %cst_209 {dimension_numbers = #tpu.dot_dimension_numbers<[1], [0], [0], [1], [0, 0, 1, 1], [], []>} : vector<64x128xf32>, vector<128x32xf32>, vector<64x32xf32> -> vector<64x32xf32>
    %c2_210 = arith.constant 2 : index
    %c0_211 = arith.constant 0 : index
    %c0_212 = arith.constant 0 : index
    %261 = vector.load %arg5[%c2_210, %c0_211, %c0_212] : memref<4x1x32xf32, #tpu.memory_space<vmem>>, vector<1x1x32xf32>
    %262 = vector.shape_cast %261 : vector<1x1x32xf32> to vector<1x32xf32>
    %263 = vector.broadcast %262 : vector<1x32xf32> to vector<64x32xf32>
    %264 = arith.addf %260, %263 : vector<64x32xf32>
    %c2_213 = arith.constant 2 : index
    %c0_214 = arith.constant 0 : index
    %c0_215 = arith.constant 0 : index
    %265 = vector.load %arg3[%c2_213, %c0_214, %c0_215] : memref<4x128x32xf32, #tpu.memory_space<vmem>>, vector<1x128x32xf32>
    %266 = vector.shape_cast %265 : vector<1x128x32xf32> to vector<128x32xf32>
    %cst_216 = arith.constant dense<0.000000e+00> : vector<64x32xf32>
    %267 = tpu.matmul %174, %266, %cst_216 {dimension_numbers = #tpu.dot_dimension_numbers<[1], [0], [0], [1], [0, 0, 1, 1], [], []>} : vector<64x128xf32>, vector<128x32xf32>, vector<64x32xf32> -> vector<64x32xf32>
    %c2_217 = arith.constant 2 : index
    %c0_218 = arith.constant 0 : index
    %c0_219 = arith.constant 0 : index
    %268 = vector.load %arg6[%c2_217, %c0_218, %c0_219] : memref<4x1x32xf32, #tpu.memory_space<vmem>>, vector<1x1x32xf32>
    %269 = vector.shape_cast %268 : vector<1x1x32xf32> to vector<1x32xf32>
    %270 = vector.broadcast %269 : vector<1x32xf32> to vector<64x32xf32>
    %271 = arith.addf %267, %270 : vector<64x32xf32>
    %c2_220 = arith.constant 2 : index
    %c0_221 = arith.constant 0 : index
    %c0_222 = arith.constant 0 : index
    %272 = vector.load %arg4[%c2_220, %c0_221, %c0_222] : memref<4x128x32xf32, #tpu.memory_space<vmem>>, vector<1x128x32xf32>
    %273 = vector.shape_cast %272 : vector<1x128x32xf32> to vector<128x32xf32>
    %cst_223 = arith.constant dense<0.000000e+00> : vector<64x32xf32>
    %274 = tpu.matmul %174, %273, %cst_223 {dimension_numbers = #tpu.dot_dimension_numbers<[1], [0], [0], [1], [0, 0, 1, 1], [], []>} : vector<64x128xf32>, vector<128x32xf32>, vector<64x32xf32> -> vector<64x32xf32>
    %c2_224 = arith.constant 2 : index
    %c0_225 = arith.constant 0 : index
    %c0_226 = arith.constant 0 : index
    %275 = vector.load %arg7[%c2_224, %c0_225, %c0_226] : memref<4x1x32xf32, #tpu.memory_space<vmem>>, vector<1x1x32xf32>
    %276 = vector.shape_cast %275 : vector<1x1x32xf32> to vector<1x32xf32>
    %277 = vector.broadcast %276 : vector<1x32xf32> to vector<64x32xf32>
    %278 = arith.addf %274, %277 : vector<64x32xf32>
    %cst_227 = arith.constant 0.176776692 : f32
    %279 = vector.broadcast %cst_227 : f32 to vector<64x32xf32>
    %280 = arith.mulf %264, %279 : vector<64x32xf32>
    %cst_228 = arith.constant dense<0.000000e+00> : vector<64x64xf32>
    %281 = tpu.matmul %280, %271, %cst_228 {dimension_numbers = #tpu.dot_dimension_numbers<[1], [1], [0], [0], [0, 0, 1, 0], [], []>} : vector<64x32xf32>, vector<64x32xf32>, vector<64x64xf32> -> vector<64x64xf32>
    %c2_229 = arith.constant 2 : index
    %c0_230 = arith.constant 0 : index
    %c0_231 = arith.constant 0 : index
    %282 = vector.load %arg8[%c2_229, %c0_230, %c0_231] : memref<4x64x64xf32, #tpu.memory_space<vmem>>, vector<1x64x64xf32>
    %283 = vector.shape_cast %282 : vector<1x64x64xf32> to vector<64x64xf32>
    %284 = arith.addf %281, %283 : vector<64x64xf32>
    %cst_232 = arith.constant dense<0xFF800000> : vector<64xf32>
    %285 = vector.multi_reduction <maximumf>, %284, %cst_232 [1] : vector<64x64xf32> to vector<64xf32>
    %286 = vector.shape_cast %285 : vector<64xf32> to vector<64x1xf32>
    %287 = vector.broadcast %286 : vector<64x1xf32> to vector<64x64xf32>
    %288 = arith.subf %284, %287 : vector<64x64xf32>
    %289 = math.exp %288 : vector<64x64xf32>
    %cst_233 = arith.constant dense<0.000000e+00> : vector<64xf32>
    %290 = vector.multi_reduction <add>, %289, %cst_233 [1] : vector<64x64xf32> to vector<64xf32>
    %291 = vector.shape_cast %290 : vector<64xf32> to vector<64x1xf32>
    %292 = vector.broadcast %291 : vector<64x1xf32> to vector<64x64xf32>
    %293 = arith.divf %289, %292 : vector<64x64xf32>
    %cst_234 = arith.constant dense<0.000000e+00> : vector<64x32xf32>
    %294 = tpu.matmul %293, %278, %cst_234 {dimension_numbers = #tpu.dot_dimension_numbers<[1], [0], [0], [1], [0, 0, 1, 1], [], []>} : vector<64x64xf32>, vector<64x32xf32>, vector<64x32xf32> -> vector<64x32xf32>
    %c2_235 = arith.constant 2 : index
    %c0_236 = arith.constant 0 : index
    %c0_237 = arith.constant 0 : index
    %295 = vector.load %arg9[%c2_235, %c0_236, %c0_237] : memref<4x32x128xf32, #tpu.memory_space<vmem>>, vector<1x32x128xf32>
    %296 = vector.shape_cast %295 : vector<1x32x128xf32> to vector<32x128xf32>
    %cst_238 = arith.constant dense<0.000000e+00> : vector<64x128xf32>
    %297 = tpu.matmul %294, %296, %cst_238 {dimension_numbers = #tpu.dot_dimension_numbers<[1], [0], [0], [1], [0, 0, 1, 1], [], []>} : vector<64x32xf32>, vector<32x128xf32>, vector<64x128xf32> -> vector<64x128xf32>
    %298 = arith.addf %257, %297 : vector<64x128xf32>
    %c3_239 = arith.constant 3 : index
    %c0_240 = arith.constant 0 : index
    %c0_241 = arith.constant 0 : index
    %299 = vector.load %arg2[%c3_239, %c0_240, %c0_241] : memref<4x128x32xf32, #tpu.memory_space<vmem>>, vector<1x128x32xf32>
    %300 = vector.shape_cast %299 : vector<1x128x32xf32> to vector<128x32xf32>
    %cst_242 = arith.constant dense<0.000000e+00> : vector<64x32xf32>
    %301 = tpu.matmul %174, %300, %cst_242 {dimension_numbers = #tpu.dot_dimension_numbers<[1], [0], [0], [1], [0, 0, 1, 1], [], []>} : vector<64x128xf32>, vector<128x32xf32>, vector<64x32xf32> -> vector<64x32xf32>
    %c3_243 = arith.constant 3 : index
    %c0_244 = arith.constant 0 : index
    %c0_245 = arith.constant 0 : index
    %302 = vector.load %arg5[%c3_243, %c0_244, %c0_245] : memref<4x1x32xf32, #tpu.memory_space<vmem>>, vector<1x1x32xf32>
    %303 = vector.shape_cast %302 : vector<1x1x32xf32> to vector<1x32xf32>
    %304 = vector.broadcast %303 : vector<1x32xf32> to vector<64x32xf32>
    %305 = arith.addf %301, %304 : vector<64x32xf32>
    %c3_246 = arith.constant 3 : index
    %c0_247 = arith.constant 0 : index
    %c0_248 = arith.constant 0 : index
    %306 = vector.load %arg3[%c3_246, %c0_247, %c0_248] : memref<4x128x32xf32, #tpu.memory_space<vmem>>, vector<1x128x32xf32>
    %307 = vector.shape_cast %306 : vector<1x128x32xf32> to vector<128x32xf32>
    %cst_249 = arith.constant dense<0.000000e+00> : vector<64x32xf32>
    %308 = tpu.matmul %174, %307, %cst_249 {dimension_numbers = #tpu.dot_dimension_numbers<[1], [0], [0], [1], [0, 0, 1, 1], [], []>} : vector<64x128xf32>, vector<128x32xf32>, vector<64x32xf32> -> vector<64x32xf32>
    %c3_250 = arith.constant 3 : index
    %c0_251 = arith.constant 0 : index
    %c0_252 = arith.constant 0 : index
    %309 = vector.load %arg6[%c3_250, %c0_251, %c0_252] : memref<4x1x32xf32, #tpu.memory_space<vmem>>, vector<1x1x32xf32>
    %310 = vector.shape_cast %309 : vector<1x1x32xf32> to vector<1x32xf32>
    %311 = vector.broadcast %310 : vector<1x32xf32> to vector<64x32xf32>
    %312 = arith.addf %308, %311 : vector<64x32xf32>
    %c3_253 = arith.constant 3 : index
    %c0_254 = arith.constant 0 : index
    %c0_255 = arith.constant 0 : index
    %313 = vector.load %arg4[%c3_253, %c0_254, %c0_255] : memref<4x128x32xf32, #tpu.memory_space<vmem>>, vector<1x128x32xf32>
    %314 = vector.shape_cast %313 : vector<1x128x32xf32> to vector<128x32xf32>
    %cst_256 = arith.constant dense<0.000000e+00> : vector<64x32xf32>
    %315 = tpu.matmul %174, %314, %cst_256 {dimension_numbers = #tpu.dot_dimension_numbers<[1], [0], [0], [1], [0, 0, 1, 1], [], []>} : vector<64x128xf32>, vector<128x32xf32>, vector<64x32xf32> -> vector<64x32xf32>
    %c3_257 = arith.constant 3 : index
    %c0_258 = arith.constant 0 : index
    %c0_259 = arith.constant 0 : index
    %316 = vector.load %arg7[%c3_257, %c0_258, %c0_259] : memref<4x1x32xf32, #tpu.memory_space<vmem>>, vector<1x1x32xf32>
    %317 = vector.shape_cast %316 : vector<1x1x32xf32> to vector<1x32xf32>
    %318 = vector.broadcast %317 : vector<1x32xf32> to vector<64x32xf32>
    %319 = arith.addf %315, %318 : vector<64x32xf32>
    %cst_260 = arith.constant 0.176776692 : f32
    %320 = vector.broadcast %cst_260 : f32 to vector<64x32xf32>
    %321 = arith.mulf %305, %320 : vector<64x32xf32>
    %cst_261 = arith.constant dense<0.000000e+00> : vector<64x64xf32>
    %322 = tpu.matmul %321, %312, %cst_261 {dimension_numbers = #tpu.dot_dimension_numbers<[1], [1], [0], [0], [0, 0, 1, 0], [], []>} : vector<64x32xf32>, vector<64x32xf32>, vector<64x64xf32> -> vector<64x64xf32>
    %c3_262 = arith.constant 3 : index
    %c0_263 = arith.constant 0 : index
    %c0_264 = arith.constant 0 : index
    %323 = vector.load %arg8[%c3_262, %c0_263, %c0_264] : memref<4x64x64xf32, #tpu.memory_space<vmem>>, vector<1x64x64xf32>
    %324 = vector.shape_cast %323 : vector<1x64x64xf32> to vector<64x64xf32>
    %325 = arith.addf %322, %324 : vector<64x64xf32>
    %cst_265 = arith.constant dense<0xFF800000> : vector<64xf32>
    %326 = vector.multi_reduction <maximumf>, %325, %cst_265 [1] : vector<64x64xf32> to vector<64xf32>
    %327 = vector.shape_cast %326 : vector<64xf32> to vector<64x1xf32>
    %328 = vector.broadcast %327 : vector<64x1xf32> to vector<64x64xf32>
    %329 = arith.subf %325, %328 : vector<64x64xf32>
    %330 = math.exp %329 : vector<64x64xf32>
    %cst_266 = arith.constant dense<0.000000e+00> : vector<64xf32>
    %331 = vector.multi_reduction <add>, %330, %cst_266 [1] : vector<64x64xf32> to vector<64xf32>
    %332 = vector.shape_cast %331 : vector<64xf32> to vector<64x1xf32>
    %333 = vector.broadcast %332 : vector<64x1xf32> to vector<64x64xf32>
    %334 = arith.divf %330, %333 : vector<64x64xf32>
    %cst_267 = arith.constant dense<0.000000e+00> : vector<64x32xf32>
    %335 = tpu.matmul %334, %319, %cst_267 {dimension_numbers = #tpu.dot_dimension_numbers<[1], [0], [0], [1], [0, 0, 1, 1], [], []>} : vector<64x64xf32>, vector<64x32xf32>, vector<64x32xf32> -> vector<64x32xf32>
    %c3_268 = arith.constant 3 : index
    %c0_269 = arith.constant 0 : index
    %c0_270 = arith.constant 0 : index
    %336 = vector.load %arg9[%c3_268, %c0_269, %c0_270] : memref<4x32x128xf32, #tpu.memory_space<vmem>>, vector<1x32x128xf32>
    %337 = vector.shape_cast %336 : vector<1x32x128xf32> to vector<32x128xf32>
    %cst_271 = arith.constant dense<0.000000e+00> : vector<64x128xf32>
    %338 = tpu.matmul %335, %337, %cst_271 {dimension_numbers = #tpu.dot_dimension_numbers<[1], [0], [0], [1], [0, 0, 1, 1], [], []>} : vector<64x32xf32>, vector<32x128xf32>, vector<64x128xf32> -> vector<64x128xf32>
    %339 = arith.addf %298, %338 : vector<64x128xf32>
    %c0_272 = arith.constant 0 : index
    %c0_273 = arith.constant 0 : index
    %340 = vector.load %arg10[%c0_272, %c0_273] : memref<1x128xf32, #tpu.memory_space<vmem>>, vector<1x128xf32>
    %341 = vector.broadcast %340 : vector<1x128xf32> to vector<64x128xf32>
    %342 = arith.addf %339, %341 : vector<64x128xf32>
    %c1_274 = arith.constant 1 : index
    %c0_275 = arith.constant 0 : index
    %c0_276 = arith.constant 0 : index
    %343 = vector.load %arg11[%c1_274, %c0_275, %c0_276] : memref<4x64x128xf32, #tpu.memory_space<vmem>>, vector<1x64x128xf32>
    %344 = vector.shape_cast %343 : vector<1x64x128xf32> to vector<64x128xf32>
    %345 = vector.shape_cast %342 : vector<64x128xf32> to vector<1x64x128xf32>
    tpu.vector_store %arg11[%c1_274, %c0_275, %c0_276], %345 {strides = array<i32>} : memref<4x64x128xf32, #tpu.memory_space<vmem>>, vector<1x64x128xf32>,
    %c2_277 = arith.constant 2 : index
    %c0_278 = arith.constant 0 : index
    %c0_279 = arith.constant 0 : index
    %346 = vector.load %arg1[%c2_277, %c0_278, %c0_279] : memref<4x64x128xf32, #tpu.memory_space<vmem>>, vector<1x64x128xf32>
    %347 = vector.shape_cast %346 : vector<1x64x128xf32> to vector<64x128xf32>
    %cst_280 = arith.constant 0.000000e+00 : f32
    %348 = vector.broadcast %cst_280 : f32 to vector<64x128xf32>
    %c0_281 = arith.constant 0 : index
    %c0_282 = arith.constant 0 : index
    %c0_283 = arith.constant 0 : index
    %349 = vector.load %arg2[%c0_281, %c0_282, %c0_283] : memref<4x128x32xf32, #tpu.memory_space<vmem>>, vector<1x128x32xf32>
    %350 = vector.shape_cast %349 : vector<1x128x32xf32> to vector<128x32xf32>
    %cst_284 = arith.constant dense<0.000000e+00> : vector<64x32xf32>
    %351 = tpu.matmul %347, %350, %cst_284 {dimension_numbers = #tpu.dot_dimension_numbers<[1], [0], [0], [1], [0, 0, 1, 1], [], []>} : vector<64x128xf32>, vector<128x32xf32>, vector<64x32xf32> -> vector<64x32xf32>
    %c0_285 = arith.constant 0 : index
    %c0_286 = arith.constant 0 : index
    %c0_287 = arith.constant 0 : index
    %352 = vector.load %arg5[%c0_285, %c0_286, %c0_287] : memref<4x1x32xf32, #tpu.memory_space<vmem>>, vector<1x1x32xf32>
    %353 = vector.shape_cast %352 : vector<1x1x32xf32> to vector<1x32xf32>
    %354 = vector.broadcast %353 : vector<1x32xf32> to vector<64x32xf32>
    %355 = arith.addf %351, %354 : vector<64x32xf32>
    %c0_288 = arith.constant 0 : index
    %c0_289 = arith.constant 0 : index
    %c0_290 = arith.constant 0 : index
    %356 = vector.load %arg3[%c0_288, %c0_289, %c0_290] : memref<4x128x32xf32, #tpu.memory_space<vmem>>, vector<1x128x32xf32>
    %357 = vector.shape_cast %356 : vector<1x128x32xf32> to vector<128x32xf32>
    %cst_291 = arith.constant dense<0.000000e+00> : vector<64x32xf32>
    %358 = tpu.matmul %347, %357, %cst_291 {dimension_numbers = #tpu.dot_dimension_numbers<[1], [0], [0], [1], [0, 0, 1, 1], [], []>} : vector<64x128xf32>, vector<128x32xf32>, vector<64x32xf32> -> vector<64x32xf32>
    %c0_292 = arith.constant 0 : index
    %c0_293 = arith.constant 0 : index
    %c0_294 = arith.constant 0 : index
    %359 = vector.load %arg6[%c0_292, %c0_293, %c0_294] : memref<4x1x32xf32, #tpu.memory_space<vmem>>, vector<1x1x32xf32>
    %360 = vector.shape_cast %359 : vector<1x1x32xf32> to vector<1x32xf32>
    %361 = vector.broadcast %360 : vector<1x32xf32> to vector<64x32xf32>
    %362 = arith.addf %358, %361 : vector<64x32xf32>
    %c0_295 = arith.constant 0 : index
    %c0_296 = arith.constant 0 : index
    %c0_297 = arith.constant 0 : index
    %363 = vector.load %arg4[%c0_295, %c0_296, %c0_297] : memref<4x128x32xf32, #tpu.memory_space<vmem>>, vector<1x128x32xf32>
    %364 = vector.shape_cast %363 : vector<1x128x32xf32> to vector<128x32xf32>
    %cst_298 = arith.constant dense<0.000000e+00> : vector<64x32xf32>
    %365 = tpu.matmul %347, %364, %cst_298 {dimension_numbers = #tpu.dot_dimension_numbers<[1], [0], [0], [1], [0, 0, 1, 1], [], []>} : vector<64x128xf32>, vector<128x32xf32>, vector<64x32xf32> -> vector<64x32xf32>
    %c0_299 = arith.constant 0 : index
    %c0_300 = arith.constant 0 : index
    %c0_301 = arith.constant 0 : index
    %366 = vector.load %arg7[%c0_299, %c0_300, %c0_301] : memref<4x1x32xf32, #tpu.memory_space<vmem>>, vector<1x1x32xf32>
    %367 = vector.shape_cast %366 : vector<1x1x32xf32> to vector<1x32xf32>
    %368 = vector.broadcast %367 : vector<1x32xf32> to vector<64x32xf32>
    %369 = arith.addf %365, %368 : vector<64x32xf32>
    %cst_302 = arith.constant 0.176776692 : f32
    %370 = vector.broadcast %cst_302 : f32 to vector<64x32xf32>
    %371 = arith.mulf %355, %370 : vector<64x32xf32>
    %cst_303 = arith.constant dense<0.000000e+00> : vector<64x64xf32>
    %372 = tpu.matmul %371, %362, %cst_303 {dimension_numbers = #tpu.dot_dimension_numbers<[1], [1], [0], [0], [0, 0, 1, 0], [], []>} : vector<64x32xf32>, vector<64x32xf32>, vector<64x64xf32> -> vector<64x64xf32>
    %c0_304 = arith.constant 0 : index
    %c0_305 = arith.constant 0 : index
    %c0_306 = arith.constant 0 : index
    %373 = vector.load %arg8[%c0_304, %c0_305, %c0_306] : memref<4x64x64xf32, #tpu.memory_space<vmem>>, vector<1x64x64xf32>
    %374 = vector.shape_cast %373 : vector<1x64x64xf32> to vector<64x64xf32>
    %375 = arith.addf %372, %374 : vector<64x64xf32>
    %cst_307 = arith.constant dense<0xFF800000> : vector<64xf32>
    %376 = vector.multi_reduction <maximumf>, %375, %cst_307 [1] : vector<64x64xf32> to vector<64xf32>
    %377 = vector.shape_cast %376 : vector<64xf32> to vector<64x1xf32>
    %378 = vector.broadcast %377 : vector<64x1xf32> to vector<64x64xf32>
    %379 = arith.subf %375, %378 : vector<64x64xf32>
    %380 = math.exp %379 : vector<64x64xf32>
    %cst_308 = arith.constant dense<0.000000e+00> : vector<64xf32>
    %381 = vector.multi_reduction <add>, %380, %cst_308 [1] : vector<64x64xf32> to vector<64xf32>
    %382 = vector.shape_cast %381 : vector<64xf32> to vector<64x1xf32>
    %383 = vector.broadcast %382 : vector<64x1xf32> to vector<64x64xf32>
    %384 = arith.divf %380, %383 : vector<64x64xf32>
    %cst_309 = arith.constant dense<0.000000e+00> : vector<64x32xf32>
    %385 = tpu.matmul %384, %369, %cst_309 {dimension_numbers = #tpu.dot_dimension_numbers<[1], [0], [0], [1], [0, 0, 1, 1], [], []>} : vector<64x64xf32>, vector<64x32xf32>, vector<64x32xf32> -> vector<64x32xf32>
    %c0_310 = arith.constant 0 : index
    %c0_311 = arith.constant 0 : index
    %c0_312 = arith.constant 0 : index
    %386 = vector.load %arg9[%c0_310, %c0_311, %c0_312] : memref<4x32x128xf32, #tpu.memory_space<vmem>>, vector<1x32x128xf32>
    %387 = vector.shape_cast %386 : vector<1x32x128xf32> to vector<32x128xf32>
    %cst_313 = arith.constant dense<0.000000e+00> : vector<64x128xf32>
    %388 = tpu.matmul %385, %387, %cst_313 {dimension_numbers = #tpu.dot_dimension_numbers<[1], [0], [0], [1], [0, 0, 1, 1], [], []>} : vector<64x32xf32>, vector<32x128xf32>, vector<64x128xf32> -> vector<64x128xf32>
    %389 = arith.addf %348, %388 : vector<64x128xf32>
    %c1_314 = arith.constant 1 : index
    %c0_315 = arith.constant 0 : index
    %c0_316 = arith.constant 0 : index
    %390 = vector.load %arg2[%c1_314, %c0_315, %c0_316] : memref<4x128x32xf32, #tpu.memory_space<vmem>>, vector<1x128x32xf32>
    %391 = vector.shape_cast %390 : vector<1x128x32xf32> to vector<128x32xf32>
    %cst_317 = arith.constant dense<0.000000e+00> : vector<64x32xf32>
    %392 = tpu.matmul %347, %391, %cst_317 {dimension_numbers = #tpu.dot_dimension_numbers<[1], [0], [0], [1], [0, 0, 1, 1], [], []>} : vector<64x128xf32>, vector<128x32xf32>, vector<64x32xf32> -> vector<64x32xf32>
    %c1_318 = arith.constant 1 : index
    %c0_319 = arith.constant 0 : index
    %c0_320 = arith.constant 0 : index
    %393 = vector.load %arg5[%c1_318, %c0_319, %c0_320] : memref<4x1x32xf32, #tpu.memory_space<vmem>>, vector<1x1x32xf32>
    %394 = vector.shape_cast %393 : vector<1x1x32xf32> to vector<1x32xf32>
    %395 = vector.broadcast %394 : vector<1x32xf32> to vector<64x32xf32>
    %396 = arith.addf %392, %395 : vector<64x32xf32>
    %c1_321 = arith.constant 1 : index
    %c0_322 = arith.constant 0 : index
    %c0_323 = arith.constant 0 : index
    %397 = vector.load %arg3[%c1_321, %c0_322, %c0_323] : memref<4x128x32xf32, #tpu.memory_space<vmem>>, vector<1x128x32xf32>
    %398 = vector.shape_cast %397 : vector<1x128x32xf32> to vector<128x32xf32>
    %cst_324 = arith.constant dense<0.000000e+00> : vector<64x32xf32>
    %399 = tpu.matmul %347, %398, %cst_324 {dimension_numbers = #tpu.dot_dimension_numbers<[1], [0], [0], [1], [0, 0, 1, 1], [], []>} : vector<64x128xf32>, vector<128x32xf32>, vector<64x32xf32> -> vector<64x32xf32>
    %c1_325 = arith.constant 1 : index
    %c0_326 = arith.constant 0 : index
    %c0_327 = arith.constant 0 : index
    %400 = vector.load %arg6[%c1_325, %c0_326, %c0_327] : memref<4x1x32xf32, #tpu.memory_space<vmem>>, vector<1x1x32xf32>
    %401 = vector.shape_cast %400 : vector<1x1x32xf32> to vector<1x32xf32>
    %402 = vector.broadcast %401 : vector<1x32xf32> to vector<64x32xf32>
    %403 = arith.addf %399, %402 : vector<64x32xf32>
    %c1_328 = arith.constant 1 : index
    %c0_329 = arith.constant 0 : index
    %c0_330 = arith.constant 0 : index
    %404 = vector.load %arg4[%c1_328, %c0_329, %c0_330] : memref<4x128x32xf32, #tpu.memory_space<vmem>>, vector<1x128x32xf32>
    %405 = vector.shape_cast %404 : vector<1x128x32xf32> to vector<128x32xf32>
    %cst_331 = arith.constant dense<0.000000e+00> : vector<64x32xf32>
    %406 = tpu.matmul %347, %405, %cst_331 {dimension_numbers = #tpu.dot_dimension_numbers<[1], [0], [0], [1], [0, 0, 1, 1], [], []>} : vector<64x128xf32>, vector<128x32xf32>, vector<64x32xf32> -> vector<64x32xf32>
    %c1_332 = arith.constant 1 : index
    %c0_333 = arith.constant 0 : index
    %c0_334 = arith.constant 0 : index
    %407 = vector.load %arg7[%c1_332, %c0_333, %c0_334] : memref<4x1x32xf32, #tpu.memory_space<vmem>>, vector<1x1x32xf32>
    %408 = vector.shape_cast %407 : vector<1x1x32xf32> to vector<1x32xf32>
    %409 = vector.broadcast %408 : vector<1x32xf32> to vector<64x32xf32>
    %410 = arith.addf %406, %409 : vector<64x32xf32>
    %cst_335 = arith.constant 0.176776692 : f32
    %411 = vector.broadcast %cst_335 : f32 to vector<64x32xf32>
    %412 = arith.mulf %396, %411 : vector<64x32xf32>
    %cst_336 = arith.constant dense<0.000000e+00> : vector<64x64xf32>
    %413 = tpu.matmul %412, %403, %cst_336 {dimension_numbers = #tpu.dot_dimension_numbers<[1], [1], [0], [0], [0, 0, 1, 0], [], []>} : vector<64x32xf32>, vector<64x32xf32>, vector<64x64xf32> -> vector<64x64xf32>
    %c1_337 = arith.constant 1 : index
    %c0_338 = arith.constant 0 : index
    %c0_339 = arith.constant 0 : index
    %414 = vector.load %arg8[%c1_337, %c0_338, %c0_339] : memref<4x64x64xf32, #tpu.memory_space<vmem>>, vector<1x64x64xf32>
    %415 = vector.shape_cast %414 : vector<1x64x64xf32> to vector<64x64xf32>
    %416 = arith.addf %413, %415 : vector<64x64xf32>
    %cst_340 = arith.constant dense<0xFF800000> : vector<64xf32>
    %417 = vector.multi_reduction <maximumf>, %416, %cst_340 [1] : vector<64x64xf32> to vector<64xf32>
    %418 = vector.shape_cast %417 : vector<64xf32> to vector<64x1xf32>
    %419 = vector.broadcast %418 : vector<64x1xf32> to vector<64x64xf32>
    %420 = arith.subf %416, %419 : vector<64x64xf32>
    %421 = math.exp %420 : vector<64x64xf32>
    %cst_341 = arith.constant dense<0.000000e+00> : vector<64xf32>
    %422 = vector.multi_reduction <add>, %421, %cst_341 [1] : vector<64x64xf32> to vector<64xf32>
    %423 = vector.shape_cast %422 : vector<64xf32> to vector<64x1xf32>
    %424 = vector.broadcast %423 : vector<64x1xf32> to vector<64x64xf32>
    %425 = arith.divf %421, %424 : vector<64x64xf32>
    %cst_342 = arith.constant dense<0.000000e+00> : vector<64x32xf32>
    %426 = tpu.matmul %425, %410, %cst_342 {dimension_numbers = #tpu.dot_dimension_numbers<[1], [0], [0], [1], [0, 0, 1, 1], [], []>} : vector<64x64xf32>, vector<64x32xf32>, vector<64x32xf32> -> vector<64x32xf32>
    %c1_343 = arith.constant 1 : index
    %c0_344 = arith.constant 0 : index
    %c0_345 = arith.constant 0 : index
    %427 = vector.load %arg9[%c1_343, %c0_344, %c0_345] : memref<4x32x128xf32, #tpu.memory_space<vmem>>, vector<1x32x128xf32>
    %428 = vector.shape_cast %427 : vector<1x32x128xf32> to vector<32x128xf32>
    %cst_346 = arith.constant dense<0.000000e+00> : vector<64x128xf32>
    %429 = tpu.matmul %426, %428, %cst_346 {dimension_numbers = #tpu.dot_dimension_numbers<[1], [0], [0], [1], [0, 0, 1, 1], [], []>} : vector<64x32xf32>, vector<32x128xf32>, vector<64x128xf32> -> vector<64x128xf32>
    %430 = arith.addf %389, %429 : vector<64x128xf32>
    %c2_347 = arith.constant 2 : index
    %c0_348 = arith.constant 0 : index
    %c0_349 = arith.constant 0 : index
    %431 = vector.load %arg2[%c2_347, %c0_348, %c0_349] : memref<4x128x32xf32, #tpu.memory_space<vmem>>, vector<1x128x32xf32>
    %432 = vector.shape_cast %431 : vector<1x128x32xf32> to vector<128x32xf32>
    %cst_350 = arith.constant dense<0.000000e+00> : vector<64x32xf32>
    %433 = tpu.matmul %347, %432, %cst_350 {dimension_numbers = #tpu.dot_dimension_numbers<[1], [0], [0], [1], [0, 0, 1, 1], [], []>} : vector<64x128xf32>, vector<128x32xf32>, vector<64x32xf32> -> vector<64x32xf32>
    %c2_351 = arith.constant 2 : index
    %c0_352 = arith.constant 0 : index
    %c0_353 = arith.constant 0 : index
    %434 = vector.load %arg5[%c2_351, %c0_352, %c0_353] : memref<4x1x32xf32, #tpu.memory_space<vmem>>, vector<1x1x32xf32>
    %435 = vector.shape_cast %434 : vector<1x1x32xf32> to vector<1x32xf32>
    %436 = vector.broadcast %435 : vector<1x32xf32> to vector<64x32xf32>
    %437 = arith.addf %433, %436 : vector<64x32xf32>
    %c2_354 = arith.constant 2 : index
    %c0_355 = arith.constant 0 : index
    %c0_356 = arith.constant 0 : index
    %438 = vector.load %arg3[%c2_354, %c0_355, %c0_356] : memref<4x128x32xf32, #tpu.memory_space<vmem>>, vector<1x128x32xf32>
    %439 = vector.shape_cast %438 : vector<1x128x32xf32> to vector<128x32xf32>
    %cst_357 = arith.constant dense<0.000000e+00> : vector<64x32xf32>
    %440 = tpu.matmul %347, %439, %cst_357 {dimension_numbers = #tpu.dot_dimension_numbers<[1], [0], [0], [1], [0, 0, 1, 1], [], []>} : vector<64x128xf32>, vector<128x32xf32>, vector<64x32xf32> -> vector<64x32xf32>
    %c2_358 = arith.constant 2 : index
    %c0_359 = arith.constant 0 : index
    %c0_360 = arith.constant 0 : index
    %441 = vector.load %arg6[%c2_358, %c0_359, %c0_360] : memref<4x1x32xf32, #tpu.memory_space<vmem>>, vector<1x1x32xf32>
    %442 = vector.shape_cast %441 : vector<1x1x32xf32> to vector<1x32xf32>
    %443 = vector.broadcast %442 : vector<1x32xf32> to vector<64x32xf32>
    %444 = arith.addf %440, %443 : vector<64x32xf32>
    %c2_361 = arith.constant 2 : index
    %c0_362 = arith.constant 0 : index
    %c0_363 = arith.constant 0 : index
    %445 = vector.load %arg4[%c2_361, %c0_362, %c0_363] : memref<4x128x32xf32, #tpu.memory_space<vmem>>, vector<1x128x32xf32>
    %446 = vector.shape_cast %445 : vector<1x128x32xf32> to vector<128x32xf32>
    %cst_364 = arith.constant dense<0.000000e+00> : vector<64x32xf32>
    %447 = tpu.matmul %347, %446, %cst_364 {dimension_numbers = #tpu.dot_dimension_numbers<[1], [0], [0], [1], [0, 0, 1, 1], [], []>} : vector<64x128xf32>, vector<128x32xf32>, vector<64x32xf32> -> vector<64x32xf32>
    %c2_365 = arith.constant 2 : index
    %c0_366 = arith.constant 0 : index
    %c0_367 = arith.constant 0 : index
    %448 = vector.load %arg7[%c2_365, %c0_366, %c0_367] : memref<4x1x32xf32, #tpu.memory_space<vmem>>, vector<1x1x32xf32>
    %449 = vector.shape_cast %448 : vector<1x1x32xf32> to vector<1x32xf32>
    %450 = vector.broadcast %449 : vector<1x32xf32> to vector<64x32xf32>
    %451 = arith.addf %447, %450 : vector<64x32xf32>
    %cst_368 = arith.constant 0.176776692 : f32
    %452 = vector.broadcast %cst_368 : f32 to vector<64x32xf32>
    %453 = arith.mulf %437, %452 : vector<64x32xf32>
    %cst_369 = arith.constant dense<0.000000e+00> : vector<64x64xf32>
    %454 = tpu.matmul %453, %444, %cst_369 {dimension_numbers = #tpu.dot_dimension_numbers<[1], [1], [0], [0], [0, 0, 1, 0], [], []>} : vector<64x32xf32>, vector<64x32xf32>, vector<64x64xf32> -> vector<64x64xf32>
    %c2_370 = arith.constant 2 : index
    %c0_371 = arith.constant 0 : index
    %c0_372 = arith.constant 0 : index
    %455 = vector.load %arg8[%c2_370, %c0_371, %c0_372] : memref<4x64x64xf32, #tpu.memory_space<vmem>>, vector<1x64x64xf32>
    %456 = vector.shape_cast %455 : vector<1x64x64xf32> to vector<64x64xf32>
    %457 = arith.addf %454, %456 : vector<64x64xf32>
    %cst_373 = arith.constant dense<0xFF800000> : vector<64xf32>
    %458 = vector.multi_reduction <maximumf>, %457, %cst_373 [1] : vector<64x64xf32> to vector<64xf32>
    %459 = vector.shape_cast %458 : vector<64xf32> to vector<64x1xf32>
    %460 = vector.broadcast %459 : vector<64x1xf32> to vector<64x64xf32>
    %461 = arith.subf %457, %460 : vector<64x64xf32>
    %462 = math.exp %461 : vector<64x64xf32>
    %cst_374 = arith.constant dense<0.000000e+00> : vector<64xf32>
    %463 = vector.multi_reduction <add>, %462, %cst_374 [1] : vector<64x64xf32> to vector<64xf32>
    %464 = vector.shape_cast %463 : vector<64xf32> to vector<64x1xf32>
    %465 = vector.broadcast %464 : vector<64x1xf32> to vector<64x64xf32>
    %466 = arith.divf %462, %465 : vector<64x64xf32>
    %cst_375 = arith.constant dense<0.000000e+00> : vector<64x32xf32>
    %467 = tpu.matmul %466, %451, %cst_375 {dimension_numbers = #tpu.dot_dimension_numbers<[1], [0], [0], [1], [0, 0, 1, 1], [], []>} : vector<64x64xf32>, vector<64x32xf32>, vector<64x32xf32> -> vector<64x32xf32>
    %c2_376 = arith.constant 2 : index
    %c0_377 = arith.constant 0 : index
    %c0_378 = arith.constant 0 : index
    %468 = vector.load %arg9[%c2_376, %c0_377, %c0_378] : memref<4x32x128xf32, #tpu.memory_space<vmem>>, vector<1x32x128xf32>
    %469 = vector.shape_cast %468 : vector<1x32x128xf32> to vector<32x128xf32>
    %cst_379 = arith.constant dense<0.000000e+00> : vector<64x128xf32>
    %470 = tpu.matmul %467, %469, %cst_379 {dimension_numbers = #tpu.dot_dimension_numbers<[1], [0], [0], [1], [0, 0, 1, 1], [], []>} : vector<64x32xf32>, vector<32x128xf32>, vector<64x128xf32> -> vector<64x128xf32>
    %471 = arith.addf %430, %470 : vector<64x128xf32>
    %c3_380 = arith.constant 3 : index
    %c0_381 = arith.constant 0 : index
    %c0_382 = arith.constant 0 : index
    %472 = vector.load %arg2[%c3_380, %c0_381, %c0_382] : memref<4x128x32xf32, #tpu.memory_space<vmem>>, vector<1x128x32xf32>
    %473 = vector.shape_cast %472 : vector<1x128x32xf32> to vector<128x32xf32>
    %cst_383 = arith.constant dense<0.000000e+00> : vector<64x32xf32>
    %474 = tpu.matmul %347, %473, %cst_383 {dimension_numbers = #tpu.dot_dimension_numbers<[1], [0], [0], [1], [0, 0, 1, 1], [], []>} : vector<64x128xf32>, vector<128x32xf32>, vector<64x32xf32> -> vector<64x32xf32>
    %c3_384 = arith.constant 3 : index
    %c0_385 = arith.constant 0 : index
    %c0_386 = arith.constant 0 : index
    %475 = vector.load %arg5[%c3_384, %c0_385, %c0_386] : memref<4x1x32xf32, #tpu.memory_space<vmem>>, vector<1x1x32xf32>
    %476 = vector.shape_cast %475 : vector<1x1x32xf32> to vector<1x32xf32>
    %477 = vector.broadcast %476 : vector<1x32xf32> to vector<64x32xf32>
    %478 = arith.addf %474, %477 : vector<64x32xf32>
    %c3_387 = arith.constant 3 : index
    %c0_388 = arith.constant 0 : index
    %c0_389 = arith.constant 0 : index
    %479 = vector.load %arg3[%c3_387, %c0_388, %c0_389] : memref<4x128x32xf32, #tpu.memory_space<vmem>>, vector<1x128x32xf32>
    %480 = vector.shape_cast %479 : vector<1x128x32xf32> to vector<128x32xf32>
    %cst_390 = arith.constant dense<0.000000e+00> : vector<64x32xf32>
    %481 = tpu.matmul %347, %480, %cst_390 {dimension_numbers = #tpu.dot_dimension_numbers<[1], [0], [0], [1], [0, 0, 1, 1], [], []>} : vector<64x128xf32>, vector<128x32xf32>, vector<64x32xf32> -> vector<64x32xf32>
    %c3_391 = arith.constant 3 : index
    %c0_392 = arith.constant 0 : index
    %c0_393 = arith.constant 0 : index
    %482 = vector.load %arg6[%c3_391, %c0_392, %c0_393] : memref<4x1x32xf32, #tpu.memory_space<vmem>>, vector<1x1x32xf32>
    %483 = vector.shape_cast %482 : vector<1x1x32xf32> to vector<1x32xf32>
    %484 = vector.broadcast %483 : vector<1x32xf32> to vector<64x32xf32>
    %485 = arith.addf %481, %484 : vector<64x32xf32>
    %c3_394 = arith.constant 3 : index
    %c0_395 = arith.constant 0 : index
    %c0_396 = arith.constant 0 : index
    %486 = vector.load %arg4[%c3_394, %c0_395, %c0_396] : memref<4x128x32xf32, #tpu.memory_space<vmem>>, vector<1x128x32xf32>
    %487 = vector.shape_cast %486 : vector<1x128x32xf32> to vector<128x32xf32>
    %cst_397 = arith.constant dense<0.000000e+00> : vector<64x32xf32>
    %488 = tpu.matmul %347, %487, %cst_397 {dimension_numbers = #tpu.dot_dimension_numbers<[1], [0], [0], [1], [0, 0, 1, 1], [], []>} : vector<64x128xf32>, vector<128x32xf32>, vector<64x32xf32> -> vector<64x32xf32>
    %c3_398 = arith.constant 3 : index
    %c0_399 = arith.constant 0 : index
    %c0_400 = arith.constant 0 : index
    %489 = vector.load %arg7[%c3_398, %c0_399, %c0_400] : memref<4x1x32xf32, #tpu.memory_space<vmem>>, vector<1x1x32xf32>
    %490 = vector.shape_cast %489 : vector<1x1x32xf32> to vector<1x32xf32>
    %491 = vector.broadcast %490 : vector<1x32xf32> to vector<64x32xf32>
    %492 = arith.addf %488, %491 : vector<64x32xf32>
    %cst_401 = arith.constant 0.176776692 : f32
    %493 = vector.broadcast %cst_401 : f32 to vector<64x32xf32>
    %494 = arith.mulf %478, %493 : vector<64x32xf32>
    %cst_402 = arith.constant dense<0.000000e+00> : vector<64x64xf32>
    %495 = tpu.matmul %494, %485, %cst_402 {dimension_numbers = #tpu.dot_dimension_numbers<[1], [1], [0], [0], [0, 0, 1, 0], [], []>} : vector<64x32xf32>, vector<64x32xf32>, vector<64x64xf32> -> vector<64x64xf32>
    %c3_403 = arith.constant 3 : index
    %c0_404 = arith.constant 0 : index
    %c0_405 = arith.constant 0 : index
    %496 = vector.load %arg8[%c3_403, %c0_404, %c0_405] : memref<4x64x64xf32, #tpu.memory_space<vmem>>, vector<1x64x64xf32>
    %497 = vector.shape_cast %496 : vector<1x64x64xf32> to vector<64x64xf32>
    %498 = arith.addf %495, %497 : vector<64x64xf32>
    %cst_406 = arith.constant dense<0xFF800000> : vector<64xf32>
    %499 = vector.multi_reduction <maximumf>, %498, %cst_406 [1] : vector<64x64xf32> to vector<64xf32>
    %500 = vector.shape_cast %499 : vector<64xf32> to vector<64x1xf32>
    %501 = vector.broadcast %500 : vector<64x1xf32> to vector<64x64xf32>
    %502 = arith.subf %498, %501 : vector<64x64xf32>
    %503 = math.exp %502 : vector<64x64xf32>
    %cst_407 = arith.constant dense<0.000000e+00> : vector<64xf32>
    %504 = vector.multi_reduction <add>, %503, %cst_407 [1] : vector<64x64xf32> to vector<64xf32>
    %505 = vector.shape_cast %504 : vector<64xf32> to vector<64x1xf32>
    %506 = vector.broadcast %505 : vector<64x1xf32> to vector<64x64xf32>
    %507 = arith.divf %503, %506 : vector<64x64xf32>
    %cst_408 = arith.constant dense<0.000000e+00> : vector<64x32xf32>
    %508 = tpu.matmul %507, %492, %cst_408 {dimension_numbers = #tpu.dot_dimension_numbers<[1], [0], [0], [1], [0, 0, 1, 1], [], []>} : vector<64x64xf32>, vector<64x32xf32>, vector<64x32xf32> -> vector<64x32xf32>
    %c3_409 = arith.constant 3 : index
    %c0_410 = arith.constant 0 : index
    %c0_411 = arith.constant 0 : index
    %509 = vector.load %arg9[%c3_409, %c0_410, %c0_411] : memref<4x32x128xf32, #tpu.memory_space<vmem>>, vector<1x32x128xf32>
    %510 = vector.shape_cast %509 : vector<1x32x128xf32> to vector<32x128xf32>
    %cst_412 = arith.constant dense<0.000000e+00> : vector<64x128xf32>
    %511 = tpu.matmul %508, %510, %cst_412 {dimension_numbers = #tpu.dot_dimension_numbers<[1], [0], [0], [1], [0, 0, 1, 1], [], []>} : vector<64x32xf32>, vector<32x128xf32>, vector<64x128xf32> -> vector<64x128xf32>
    %512 = arith.addf %471, %511 : vector<64x128xf32>
    %c0_413 = arith.constant 0 : index
    %c0_414 = arith.constant 0 : index
    %513 = vector.load %arg10[%c0_413, %c0_414] : memref<1x128xf32, #tpu.memory_space<vmem>>, vector<1x128xf32>
    %514 = vector.broadcast %513 : vector<1x128xf32> to vector<64x128xf32>
    %515 = arith.addf %512, %514 : vector<64x128xf32>
    %c2_415 = arith.constant 2 : index
    %c0_416 = arith.constant 0 : index
    %c0_417 = arith.constant 0 : index
    %516 = vector.load %arg11[%c2_415, %c0_416, %c0_417] : memref<4x64x128xf32, #tpu.memory_space<vmem>>, vector<1x64x128xf32>
    %517 = vector.shape_cast %516 : vector<1x64x128xf32> to vector<64x128xf32>
    %518 = vector.shape_cast %515 : vector<64x128xf32> to vector<1x64x128xf32>
    tpu.vector_store %arg11[%c2_415, %c0_416, %c0_417], %518 {strides = array<i32>} : memref<4x64x128xf32, #tpu.memory_space<vmem>>, vector<1x64x128xf32>,
    %c3_418 = arith.constant 3 : index
    %c0_419 = arith.constant 0 : index
    %c0_420 = arith.constant 0 : index
    %519 = vector.load %arg1[%c3_418, %c0_419, %c0_420] : memref<4x64x128xf32, #tpu.memory_space<vmem>>, vector<1x64x128xf32>
    %520 = vector.shape_cast %519 : vector<1x64x128xf32> to vector<64x128xf32>
    %cst_421 = arith.constant 0.000000e+00 : f32
    %521 = vector.broadcast %cst_421 : f32 to vector<64x128xf32>
    %c0_422 = arith.constant 0 : index
    %c0_423 = arith.constant 0 : index
    %c0_424 = arith.constant 0 : index
    %522 = vector.load %arg2[%c0_422, %c0_423, %c0_424] : memref<4x128x32xf32, #tpu.memory_space<vmem>>, vector<1x128x32xf32>
    %523 = vector.shape_cast %522 : vector<1x128x32xf32> to vector<128x32xf32>
    %cst_425 = arith.constant dense<0.000000e+00> : vector<64x32xf32>
    %524 = tpu.matmul %520, %523, %cst_425 {dimension_numbers = #tpu.dot_dimension_numbers<[1], [0], [0], [1], [0, 0, 1, 1], [], []>} : vector<64x128xf32>, vector<128x32xf32>, vector<64x32xf32> -> vector<64x32xf32>
    %c0_426 = arith.constant 0 : index
    %c0_427 = arith.constant 0 : index
    %c0_428 = arith.constant 0 : index
    %525 = vector.load %arg5[%c0_426, %c0_427, %c0_428] : memref<4x1x32xf32, #tpu.memory_space<vmem>>, vector<1x1x32xf32>
    %526 = vector.shape_cast %525 : vector<1x1x32xf32> to vector<1x32xf32>
    %527 = vector.broadcast %526 : vector<1x32xf32> to vector<64x32xf32>
    %528 = arith.addf %524, %527 : vector<64x32xf32>
    %c0_429 = arith.constant 0 : index
    %c0_430 = arith.constant 0 : index
    %c0_431 = arith.constant 0 : index
    %529 = vector.load %arg3[%c0_429, %c0_430, %c0_431] : memref<4x128x32xf32, #tpu.memory_space<vmem>>, vector<1x128x32xf32>
    %530 = vector.shape_cast %529 : vector<1x128x32xf32> to vector<128x32xf32>
    %cst_432 = arith.constant dense<0.000000e+00> : vector<64x32xf32>
    %531 = tpu.matmul %520, %530, %cst_432 {dimension_numbers = #tpu.dot_dimension_numbers<[1], [0], [0], [1], [0, 0, 1, 1], [], []>} : vector<64x128xf32>, vector<128x32xf32>, vector<64x32xf32> -> vector<64x32xf32>
    %c0_433 = arith.constant 0 : index
    %c0_434 = arith.constant 0 : index
    %c0_435 = arith.constant 0 : index
    %532 = vector.load %arg6[%c0_433, %c0_434, %c0_435] : memref<4x1x32xf32, #tpu.memory_space<vmem>>, vector<1x1x32xf32>
    %533 = vector.shape_cast %532 : vector<1x1x32xf32> to vector<1x32xf32>
    %534 = vector.broadcast %533 : vector<1x32xf32> to vector<64x32xf32>
    %535 = arith.addf %531, %534 : vector<64x32xf32>
    %c0_436 = arith.constant 0 : index
    %c0_437 = arith.constant 0 : index
    %c0_438 = arith.constant 0 : index
    %536 = vector.load %arg4[%c0_436, %c0_437, %c0_438] : memref<4x128x32xf32, #tpu.memory_space<vmem>>, vector<1x128x32xf32>
    %537 = vector.shape_cast %536 : vector<1x128x32xf32> to vector<128x32xf32>
    %cst_439 = arith.constant dense<0.000000e+00> : vector<64x32xf32>
    %538 = tpu.matmul %520, %537, %cst_439 {dimension_numbers = #tpu.dot_dimension_numbers<[1], [0], [0], [1], [0, 0, 1, 1], [], []>} : vector<64x128xf32>, vector<128x32xf32>, vector<64x32xf32> -> vector<64x32xf32>
    %c0_440 = arith.constant 0 : index
    %c0_441 = arith.constant 0 : index
    %c0_442 = arith.constant 0 : index
    %539 = vector.load %arg7[%c0_440, %c0_441, %c0_442] : memref<4x1x32xf32, #tpu.memory_space<vmem>>, vector<1x1x32xf32>
    %540 = vector.shape_cast %539 : vector<1x1x32xf32> to vector<1x32xf32>
    %541 = vector.broadcast %540 : vector<1x32xf32> to vector<64x32xf32>
    %542 = arith.addf %538, %541 : vector<64x32xf32>
    %cst_443 = arith.constant 0.176776692 : f32
    %543 = vector.broadcast %cst_443 : f32 to vector<64x32xf32>
    %544 = arith.mulf %528, %543 : vector<64x32xf32>
    %cst_444 = arith.constant dense<0.000000e+00> : vector<64x64xf32>
    %545 = tpu.matmul %544, %535, %cst_444 {dimension_numbers = #tpu.dot_dimension_numbers<[1], [1], [0], [0], [0, 0, 1, 0], [], []>} : vector<64x32xf32>, vector<64x32xf32>, vector<64x64xf32> -> vector<64x64xf32>
    %c0_445 = arith.constant 0 : index
    %c0_446 = arith.constant 0 : index
    %c0_447 = arith.constant 0 : index
    %546 = vector.load %arg8[%c0_445, %c0_446, %c0_447] : memref<4x64x64xf32, #tpu.memory_space<vmem>>, vector<1x64x64xf32>
    %547 = vector.shape_cast %546 : vector<1x64x64xf32> to vector<64x64xf32>
    %548 = arith.addf %545, %547 : vector<64x64xf32>
    %cst_448 = arith.constant dense<0xFF800000> : vector<64xf32>
    %549 = vector.multi_reduction <maximumf>, %548, %cst_448 [1] : vector<64x64xf32> to vector<64xf32>
    %550 = vector.shape_cast %549 : vector<64xf32> to vector<64x1xf32>
    %551 = vector.broadcast %550 : vector<64x1xf32> to vector<64x64xf32>
    %552 = arith.subf %548, %551 : vector<64x64xf32>
    %553 = math.exp %552 : vector<64x64xf32>
    %cst_449 = arith.constant dense<0.000000e+00> : vector<64xf32>
    %554 = vector.multi_reduction <add>, %553, %cst_449 [1] : vector<64x64xf32> to vector<64xf32>
    %555 = vector.shape_cast %554 : vector<64xf32> to vector<64x1xf32>
    %556 = vector.broadcast %555 : vector<64x1xf32> to vector<64x64xf32>
    %557 = arith.divf %553, %556 : vector<64x64xf32>
    %cst_450 = arith.constant dense<0.000000e+00> : vector<64x32xf32>
    %558 = tpu.matmul %557, %542, %cst_450 {dimension_numbers = #tpu.dot_dimension_numbers<[1], [0], [0], [1], [0, 0, 1, 1], [], []>} : vector<64x64xf32>, vector<64x32xf32>, vector<64x32xf32> -> vector<64x32xf32>
    %c0_451 = arith.constant 0 : index
    %c0_452 = arith.constant 0 : index
    %c0_453 = arith.constant 0 : index
    %559 = vector.load %arg9[%c0_451, %c0_452, %c0_453] : memref<4x32x128xf32, #tpu.memory_space<vmem>>, vector<1x32x128xf32>
    %560 = vector.shape_cast %559 : vector<1x32x128xf32> to vector<32x128xf32>
    %cst_454 = arith.constant dense<0.000000e+00> : vector<64x128xf32>
    %561 = tpu.matmul %558, %560, %cst_454 {dimension_numbers = #tpu.dot_dimension_numbers<[1], [0], [0], [1], [0, 0, 1, 1], [], []>} : vector<64x32xf32>, vector<32x128xf32>, vector<64x128xf32> -> vector<64x128xf32>
    %562 = arith.addf %521, %561 : vector<64x128xf32>
    %c1_455 = arith.constant 1 : index
    %c0_456 = arith.constant 0 : index
    %c0_457 = arith.constant 0 : index
    %563 = vector.load %arg2[%c1_455, %c0_456, %c0_457] : memref<4x128x32xf32, #tpu.memory_space<vmem>>, vector<1x128x32xf32>
    %564 = vector.shape_cast %563 : vector<1x128x32xf32> to vector<128x32xf32>
    %cst_458 = arith.constant dense<0.000000e+00> : vector<64x32xf32>
    %565 = tpu.matmul %520, %564, %cst_458 {dimension_numbers = #tpu.dot_dimension_numbers<[1], [0], [0], [1], [0, 0, 1, 1], [], []>} : vector<64x128xf32>, vector<128x32xf32>, vector<64x32xf32> -> vector<64x32xf32>
    %c1_459 = arith.constant 1 : index
    %c0_460 = arith.constant 0 : index
    %c0_461 = arith.constant 0 : index
    %566 = vector.load %arg5[%c1_459, %c0_460, %c0_461] : memref<4x1x32xf32, #tpu.memory_space<vmem>>, vector<1x1x32xf32>
    %567 = vector.shape_cast %566 : vector<1x1x32xf32> to vector<1x32xf32>
    %568 = vector.broadcast %567 : vector<1x32xf32> to vector<64x32xf32>
    %569 = arith.addf %565, %568 : vector<64x32xf32>
    %c1_462 = arith.constant 1 : index
    %c0_463 = arith.constant 0 : index
    %c0_464 = arith.constant 0 : index
    %570 = vector.load %arg3[%c1_462, %c0_463, %c0_464] : memref<4x128x32xf32, #tpu.memory_space<vmem>>, vector<1x128x32xf32>
    %571 = vector.shape_cast %570 : vector<1x128x32xf32> to vector<128x32xf32>
    %cst_465 = arith.constant dense<0.000000e+00> : vector<64x32xf32>
    %572 = tpu.matmul %520, %571, %cst_465 {dimension_numbers = #tpu.dot_dimension_numbers<[1], [0], [0], [1], [0, 0, 1, 1], [], []>} : vector<64x128xf32>, vector<128x32xf32>, vector<64x32xf32> -> vector<64x32xf32>
    %c1_466 = arith.constant 1 : index
    %c0_467 = arith.constant 0 : index
    %c0_468 = arith.constant 0 : index
    %573 = vector.load %arg6[%c1_466, %c0_467, %c0_468] : memref<4x1x32xf32, #tpu.memory_space<vmem>>, vector<1x1x32xf32>
    %574 = vector.shape_cast %573 : vector<1x1x32xf32> to vector<1x32xf32>
    %575 = vector.broadcast %574 : vector<1x32xf32> to vector<64x32xf32>
    %576 = arith.addf %572, %575 : vector<64x32xf32>
    %c1_469 = arith.constant 1 : index
    %c0_470 = arith.constant 0 : index
    %c0_471 = arith.constant 0 : index
    %577 = vector.load %arg4[%c1_469, %c0_470, %c0_471] : memref<4x128x32xf32, #tpu.memory_space<vmem>>, vector<1x128x32xf32>
    %578 = vector.shape_cast %577 : vector<1x128x32xf32> to vector<128x32xf32>
    %cst_472 = arith.constant dense<0.000000e+00> : vector<64x32xf32>
    %579 = tpu.matmul %520, %578, %cst_472 {dimension_numbers = #tpu.dot_dimension_numbers<[1], [0], [0], [1], [0, 0, 1, 1], [], []>} : vector<64x128xf32>, vector<128x32xf32>, vector<64x32xf32> -> vector<64x32xf32>
    %c1_473 = arith.constant 1 : index
    %c0_474 = arith.constant 0 : index
    %c0_475 = arith.constant 0 : index
    %580 = vector.load %arg7[%c1_473, %c0_474, %c0_475] : memref<4x1x32xf32, #tpu.memory_space<vmem>>, vector<1x1x32xf32>
    %581 = vector.shape_cast %580 : vector<1x1x32xf32> to vector<1x32xf32>
    %582 = vector.broadcast %581 : vector<1x32xf32> to vector<64x32xf32>
    %583 = arith.addf %579, %582 : vector<64x32xf32>
    %cst_476 = arith.constant 0.176776692 : f32
    %584 = vector.broadcast %cst_476 : f32 to vector<64x32xf32>
    %585 = arith.mulf %569, %584 : vector<64x32xf32>
    %cst_477 = arith.constant dense<0.000000e+00> : vector<64x64xf32>
    %586 = tpu.matmul %585, %576, %cst_477 {dimension_numbers = #tpu.dot_dimension_numbers<[1], [1], [0], [0], [0, 0, 1, 0], [], []>} : vector<64x32xf32>, vector<64x32xf32>, vector<64x64xf32> -> vector<64x64xf32>
    %c1_478 = arith.constant 1 : index
    %c0_479 = arith.constant 0 : index
    %c0_480 = arith.constant 0 : index
    %587 = vector.load %arg8[%c1_478, %c0_479, %c0_480] : memref<4x64x64xf32, #tpu.memory_space<vmem>>, vector<1x64x64xf32>
    %588 = vector.shape_cast %587 : vector<1x64x64xf32> to vector<64x64xf32>
    %589 = arith.addf %586, %588 : vector<64x64xf32>
    %cst_481 = arith.constant dense<0xFF800000> : vector<64xf32>
    %590 = vector.multi_reduction <maximumf>, %589, %cst_481 [1] : vector<64x64xf32> to vector<64xf32>
    %591 = vector.shape_cast %590 : vector<64xf32> to vector<64x1xf32>
    %592 = vector.broadcast %591 : vector<64x1xf32> to vector<64x64xf32>
    %593 = arith.subf %589, %592 : vector<64x64xf32>
    %594 = math.exp %593 : vector<64x64xf32>
    %cst_482 = arith.constant dense<0.000000e+00> : vector<64xf32>
    %595 = vector.multi_reduction <add>, %594, %cst_482 [1] : vector<64x64xf32> to vector<64xf32>
    %596 = vector.shape_cast %595 : vector<64xf32> to vector<64x1xf32>
    %597 = vector.broadcast %596 : vector<64x1xf32> to vector<64x64xf32>
    %598 = arith.divf %594, %597 : vector<64x64xf32>
    %cst_483 = arith.constant dense<0.000000e+00> : vector<64x32xf32>
    %599 = tpu.matmul %598, %583, %cst_483 {dimension_numbers = #tpu.dot_dimension_numbers<[1], [0], [0], [1], [0, 0, 1, 1], [], []>} : vector<64x64xf32>, vector<64x32xf32>, vector<64x32xf32> -> vector<64x32xf32>
    %c1_484 = arith.constant 1 : index
    %c0_485 = arith.constant 0 : index
    %c0_486 = arith.constant 0 : index
    %600 = vector.load %arg9[%c1_484, %c0_485, %c0_486] : memref<4x32x128xf32, #tpu.memory_space<vmem>>, vector<1x32x128xf32>
    %601 = vector.shape_cast %600 : vector<1x32x128xf32> to vector<32x128xf32>
    %cst_487 = arith.constant dense<0.000000e+00> : vector<64x128xf32>
    %602 = tpu.matmul %599, %601, %cst_487 {dimension_numbers = #tpu.dot_dimension_numbers<[1], [0], [0], [1], [0, 0, 1, 1], [], []>} : vector<64x32xf32>, vector<32x128xf32>, vector<64x128xf32> -> vector<64x128xf32>
    %603 = arith.addf %562, %602 : vector<64x128xf32>
    %c2_488 = arith.constant 2 : index
    %c0_489 = arith.constant 0 : index
    %c0_490 = arith.constant 0 : index
    %604 = vector.load %arg2[%c2_488, %c0_489, %c0_490] : memref<4x128x32xf32, #tpu.memory_space<vmem>>, vector<1x128x32xf32>
    %605 = vector.shape_cast %604 : vector<1x128x32xf32> to vector<128x32xf32>
    %cst_491 = arith.constant dense<0.000000e+00> : vector<64x32xf32>
    %606 = tpu.matmul %520, %605, %cst_491 {dimension_numbers = #tpu.dot_dimension_numbers<[1], [0], [0], [1], [0, 0, 1, 1], [], []>} : vector<64x128xf32>, vector<128x32xf32>, vector<64x32xf32> -> vector<64x32xf32>
    %c2_492 = arith.constant 2 : index
    %c0_493 = arith.constant 0 : index
    %c0_494 = arith.constant 0 : index
    %607 = vector.load %arg5[%c2_492, %c0_493, %c0_494] : memref<4x1x32xf32, #tpu.memory_space<vmem>>, vector<1x1x32xf32>
    %608 = vector.shape_cast %607 : vector<1x1x32xf32> to vector<1x32xf32>
    %609 = vector.broadcast %608 : vector<1x32xf32> to vector<64x32xf32>
    %610 = arith.addf %606, %609 : vector<64x32xf32>
    %c2_495 = arith.constant 2 : index
    %c0_496 = arith.constant 0 : index
    %c0_497 = arith.constant 0 : index
    %611 = vector.load %arg3[%c2_495, %c0_496, %c0_497] : memref<4x128x32xf32, #tpu.memory_space<vmem>>, vector<1x128x32xf32>
    %612 = vector.shape_cast %611 : vector<1x128x32xf32> to vector<128x32xf32>
    %cst_498 = arith.constant dense<0.000000e+00> : vector<64x32xf32>
    %613 = tpu.matmul %520, %612, %cst_498 {dimension_numbers = #tpu.dot_dimension_numbers<[1], [0], [0], [1], [0, 0, 1, 1], [], []>} : vector<64x128xf32>, vector<128x32xf32>, vector<64x32xf32> -> vector<64x32xf32>
    %c2_499 = arith.constant 2 : index
    %c0_500 = arith.constant 0 : index
    %c0_501 = arith.constant 0 : index
    %614 = vector.load %arg6[%c2_499, %c0_500, %c0_501] : memref<4x1x32xf32, #tpu.memory_space<vmem>>, vector<1x1x32xf32>
    %615 = vector.shape_cast %614 : vector<1x1x32xf32> to vector<1x32xf32>
    %616 = vector.broadcast %615 : vector<1x32xf32> to vector<64x32xf32>
    %617 = arith.addf %613, %616 : vector<64x32xf32>
    %c2_502 = arith.constant 2 : index
    %c0_503 = arith.constant 0 : index
    %c0_504 = arith.constant 0 : index
    %618 = vector.load %arg4[%c2_502, %c0_503, %c0_504] : memref<4x128x32xf32, #tpu.memory_space<vmem>>, vector<1x128x32xf32>
    %619 = vector.shape_cast %618 : vector<1x128x32xf32> to vector<128x32xf32>
    %cst_505 = arith.constant dense<0.000000e+00> : vector<64x32xf32>
    %620 = tpu.matmul %520, %619, %cst_505 {dimension_numbers = #tpu.dot_dimension_numbers<[1], [0], [0], [1], [0, 0, 1, 1], [], []>} : vector<64x128xf32>, vector<128x32xf32>, vector<64x32xf32> -> vector<64x32xf32>
    %c2_506 = arith.constant 2 : index
    %c0_507 = arith.constant 0 : index
    %c0_508 = arith.constant 0 : index
    %621 = vector.load %arg7[%c2_506, %c0_507, %c0_508] : memref<4x1x32xf32, #tpu.memory_space<vmem>>, vector<1x1x32xf32>
    %622 = vector.shape_cast %621 : vector<1x1x32xf32> to vector<1x32xf32>
    %623 = vector.broadcast %622 : vector<1x32xf32> to vector<64x32xf32>
    %624 = arith.addf %620, %623 : vector<64x32xf32>
    %cst_509 = arith.constant 0.176776692 : f32
    %625 = vector.broadcast %cst_509 : f32 to vector<64x32xf32>
    %626 = arith.mulf %610, %625 : vector<64x32xf32>
    %cst_510 = arith.constant dense<0.000000e+00> : vector<64x64xf32>
    %627 = tpu.matmul %626, %617, %cst_510 {dimension_numbers = #tpu.dot_dimension_numbers<[1], [1], [0], [0], [0, 0, 1, 0], [], []>} : vector<64x32xf32>, vector<64x32xf32>, vector<64x64xf32> -> vector<64x64xf32>
    %c2_511 = arith.constant 2 : index
    %c0_512 = arith.constant 0 : index
    %c0_513 = arith.constant 0 : index
    %628 = vector.load %arg8[%c2_511, %c0_512, %c0_513] : memref<4x64x64xf32, #tpu.memory_space<vmem>>, vector<1x64x64xf32>
    %629 = vector.shape_cast %628 : vector<1x64x64xf32> to vector<64x64xf32>
    %630 = arith.addf %627, %629 : vector<64x64xf32>
    %cst_514 = arith.constant dense<0xFF800000> : vector<64xf32>
    %631 = vector.multi_reduction <maximumf>, %630, %cst_514 [1] : vector<64x64xf32> to vector<64xf32>
    %632 = vector.shape_cast %631 : vector<64xf32> to vector<64x1xf32>
    %633 = vector.broadcast %632 : vector<64x1xf32> to vector<64x64xf32>
    %634 = arith.subf %630, %633 : vector<64x64xf32>
    %635 = math.exp %634 : vector<64x64xf32>
    %cst_515 = arith.constant dense<0.000000e+00> : vector<64xf32>
    %636 = vector.multi_reduction <add>, %635, %cst_515 [1] : vector<64x64xf32> to vector<64xf32>
    %637 = vector.shape_cast %636 : vector<64xf32> to vector<64x1xf32>
    %638 = vector.broadcast %637 : vector<64x1xf32> to vector<64x64xf32>
    %639 = arith.divf %635, %638 : vector<64x64xf32>
    %cst_516 = arith.constant dense<0.000000e+00> : vector<64x32xf32>
    %640 = tpu.matmul %639, %624, %cst_516 {dimension_numbers = #tpu.dot_dimension_numbers<[1], [0], [0], [1], [0, 0, 1, 1], [], []>} : vector<64x64xf32>, vector<64x32xf32>, vector<64x32xf32> -> vector<64x32xf32>
    %c2_517 = arith.constant 2 : index
    %c0_518 = arith.constant 0 : index
    %c0_519 = arith.constant 0 : index
    %641 = vector.load %arg9[%c2_517, %c0_518, %c0_519] : memref<4x32x128xf32, #tpu.memory_space<vmem>>, vector<1x32x128xf32>
    %642 = vector.shape_cast %641 : vector<1x32x128xf32> to vector<32x128xf32>
    %cst_520 = arith.constant dense<0.000000e+00> : vector<64x128xf32>
    %643 = tpu.matmul %640, %642, %cst_520 {dimension_numbers = #tpu.dot_dimension_numbers<[1], [0], [0], [1], [0, 0, 1, 1], [], []>} : vector<64x32xf32>, vector<32x128xf32>, vector<64x128xf32> -> vector<64x128xf32>
    %644 = arith.addf %603, %643 : vector<64x128xf32>
    %c3_521 = arith.constant 3 : index
    %c0_522 = arith.constant 0 : index
    %c0_523 = arith.constant 0 : index
    %645 = vector.load %arg2[%c3_521, %c0_522, %c0_523] : memref<4x128x32xf32, #tpu.memory_space<vmem>>, vector<1x128x32xf32>
    %646 = vector.shape_cast %645 : vector<1x128x32xf32> to vector<128x32xf32>
    %cst_524 = arith.constant dense<0.000000e+00> : vector<64x32xf32>
    %647 = tpu.matmul %520, %646, %cst_524 {dimension_numbers = #tpu.dot_dimension_numbers<[1], [0], [0], [1], [0, 0, 1, 1], [], []>} : vector<64x128xf32>, vector<128x32xf32>, vector<64x32xf32> -> vector<64x32xf32>
    %c3_525 = arith.constant 3 : index
    %c0_526 = arith.constant 0 : index
    %c0_527 = arith.constant 0 : index
    %648 = vector.load %arg5[%c3_525, %c0_526, %c0_527] : memref<4x1x32xf32, #tpu.memory_space<vmem>>, vector<1x1x32xf32>
    %649 = vector.shape_cast %648 : vector<1x1x32xf32> to vector<1x32xf32>
    %650 = vector.broadcast %649 : vector<1x32xf32> to vector<64x32xf32>
    %651 = arith.addf %647, %650 : vector<64x32xf32>
    %c3_528 = arith.constant 3 : index
    %c0_529 = arith.constant 0 : index
    %c0_530 = arith.constant 0 : index
    %652 = vector.load %arg3[%c3_528, %c0_529, %c0_530] : memref<4x128x32xf32, #tpu.memory_space<vmem>>, vector<1x128x32xf32>
    %653 = vector.shape_cast %652 : vector<1x128x32xf32> to vector<128x32xf32>
    %cst_531 = arith.constant dense<0.000000e+00> : vector<64x32xf32>
    %654 = tpu.matmul %520, %653, %cst_531 {dimension_numbers = #tpu.dot_dimension_numbers<[1], [0], [0], [1], [0, 0, 1, 1], [], []>} : vector<64x128xf32>, vector<128x32xf32>, vector<64x32xf32> -> vector<64x32xf32>
    %c3_532 = arith.constant 3 : index
    %c0_533 = arith.constant 0 : index
    %c0_534 = arith.constant 0 : index
    %655 = vector.load %arg6[%c3_532, %c0_533, %c0_534] : memref<4x1x32xf32, #tpu.memory_space<vmem>>, vector<1x1x32xf32>
    %656 = vector.shape_cast %655 : vector<1x1x32xf32> to vector<1x32xf32>
    %657 = vector.broadcast %656 : vector<1x32xf32> to vector<64x32xf32>
    %658 = arith.addf %654, %657 : vector<64x32xf32>
    %c3_535 = arith.constant 3 : index
    %c0_536 = arith.constant 0 : index
    %c0_537 = arith.constant 0 : index
    %659 = vector.load %arg4[%c3_535, %c0_536, %c0_537] : memref<4x128x32xf32, #tpu.memory_space<vmem>>, vector<1x128x32xf32>
    %660 = vector.shape_cast %659 : vector<1x128x32xf32> to vector<128x32xf32>
    %cst_538 = arith.constant dense<0.000000e+00> : vector<64x32xf32>
    %661 = tpu.matmul %520, %660, %cst_538 {dimension_numbers = #tpu.dot_dimension_numbers<[1], [0], [0], [1], [0, 0, 1, 1], [], []>} : vector<64x128xf32>, vector<128x32xf32>, vector<64x32xf32> -> vector<64x32xf32>
    %c3_539 = arith.constant 3 : index
    %c0_540 = arith.constant 0 : index
    %c0_541 = arith.constant 0 : index
    %662 = vector.load %arg7[%c3_539, %c0_540, %c0_541] : memref<4x1x32xf32, #tpu.memory_space<vmem>>, vector<1x1x32xf32>
    %663 = vector.shape_cast %662 : vector<1x1x32xf32> to vector<1x32xf32>
    %664 = vector.broadcast %663 : vector<1x32xf32> to vector<64x32xf32>
    %665 = arith.addf %661, %664 : vector<64x32xf32>
    %cst_542 = arith.constant 0.176776692 : f32
    %666 = vector.broadcast %cst_542 : f32 to vector<64x32xf32>
    %667 = arith.mulf %651, %666 : vector<64x32xf32>
    %cst_543 = arith.constant dense<0.000000e+00> : vector<64x64xf32>
    %668 = tpu.matmul %667, %658, %cst_543 {dimension_numbers = #tpu.dot_dimension_numbers<[1], [1], [0], [0], [0, 0, 1, 0], [], []>} : vector<64x32xf32>, vector<64x32xf32>, vector<64x64xf32> -> vector<64x64xf32>
    %c3_544 = arith.constant 3 : index
    %c0_545 = arith.constant 0 : index
    %c0_546 = arith.constant 0 : index
    %669 = vector.load %arg8[%c3_544, %c0_545, %c0_546] : memref<4x64x64xf32, #tpu.memory_space<vmem>>, vector<1x64x64xf32>
    %670 = vector.shape_cast %669 : vector<1x64x64xf32> to vector<64x64xf32>
    %671 = arith.addf %668, %670 : vector<64x64xf32>
    %cst_547 = arith.constant dense<0xFF800000> : vector<64xf32>
    %672 = vector.multi_reduction <maximumf>, %671, %cst_547 [1] : vector<64x64xf32> to vector<64xf32>
    %673 = vector.shape_cast %672 : vector<64xf32> to vector<64x1xf32>
    %674 = vector.broadcast %673 : vector<64x1xf32> to vector<64x64xf32>
    %675 = arith.subf %671, %674 : vector<64x64xf32>
    %676 = math.exp %675 : vector<64x64xf32>
    %cst_548 = arith.constant dense<0.000000e+00> : vector<64xf32>
    %677 = vector.multi_reduction <add>, %676, %cst_548 [1] : vector<64x64xf32> to vector<64xf32>
    %678 = vector.shape_cast %677 : vector<64xf32> to vector<64x1xf32>
    %679 = vector.broadcast %678 : vector<64x1xf32> to vector<64x64xf32>
    %680 = arith.divf %676, %679 : vector<64x64xf32>
    %cst_549 = arith.constant dense<0.000000e+00> : vector<64x32xf32>
    %681 = tpu.matmul %680, %665, %cst_549 {dimension_numbers = #tpu.dot_dimension_numbers<[1], [0], [0], [1], [0, 0, 1, 1], [], []>} : vector<64x64xf32>, vector<64x32xf32>, vector<64x32xf32> -> vector<64x32xf32>
    %c3_550 = arith.constant 3 : index
    %c0_551 = arith.constant 0 : index
    %c0_552 = arith.constant 0 : index
    %682 = vector.load %arg9[%c3_550, %c0_551, %c0_552] : memref<4x32x128xf32, #tpu.memory_space<vmem>>, vector<1x32x128xf32>
    %683 = vector.shape_cast %682 : vector<1x32x128xf32> to vector<32x128xf32>
    %cst_553 = arith.constant dense<0.000000e+00> : vector<64x128xf32>
    %684 = tpu.matmul %681, %683, %cst_553 {dimension_numbers = #tpu.dot_dimension_numbers<[1], [0], [0], [1], [0, 0, 1, 1], [], []>} : vector<64x32xf32>, vector<32x128xf32>, vector<64x128xf32> -> vector<64x128xf32>
    %685 = arith.addf %644, %684 : vector<64x128xf32>
    %c0_554 = arith.constant 0 : index
    %c0_555 = arith.constant 0 : index
    %686 = vector.load %arg10[%c0_554, %c0_555] : memref<1x128xf32, #tpu.memory_space<vmem>>, vector<1x128xf32>
    %687 = vector.broadcast %686 : vector<1x128xf32> to vector<64x128xf32>
    %688 = arith.addf %685, %687 : vector<64x128xf32>
    %c3_556 = arith.constant 3 : index
    %c0_557 = arith.constant 0 : index
    %c0_558 = arith.constant 0 : index
    %689 = vector.load %arg11[%c3_556, %c0_557, %c0_558] : memref<4x64x128xf32, #tpu.memory_space<vmem>>, vector<1x64x128xf32>
    %690 = vector.shape_cast %689 : vector<1x64x128xf32> to vector<64x128xf32>
    %691 = vector.shape_cast %688 : vector<64x128xf32> to vector<1x64x128xf32>
    tpu.vector_store %arg11[%c3_556, %c0_557, %c0_558], %691 {strides = array<i32>} : memref<4x64x128xf32, #tpu.memory_space<vmem>>, vector<1x64x128xf32>,
    return
  }
  func.func @transform_0(%arg0: i32) -> (i32, i32, i32) {
    %c0_i32 = arith.constant 0 : i32
    %c0_i32_0 = arith.constant 0 : i32
    %c0_i32_1 = arith.constant 0 : i32
    return %arg0, %c0_i32, %c0_i32_0 : i32, i32, i32
  }
  func.func @transform_1(%arg0: i32) -> (i32, i32, i32) {
    %c0_i32 = arith.constant 0 : i32
    %c0_i32_0 = arith.constant 0 : i32
    %c0_i32_1 = arith.constant 0 : i32
    %c0_i32_2 = arith.constant 0 : i32
    return %c0_i32, %c0_i32_0, %c0_i32_1 : i32, i32, i32
  }
  func.func @transform_2(%arg0: i32) -> (i32, i32, i32) {
    %c0_i32 = arith.constant 0 : i32
    %c0_i32_0 = arith.constant 0 : i32
    %c0_i32_1 = arith.constant 0 : i32
    %c0_i32_2 = arith.constant 0 : i32
    return %c0_i32, %c0_i32_0, %c0_i32_1 : i32, i32, i32
  }
  func.func @transform_3(%arg0: i32) -> (i32, i32, i32) {
    %c0_i32 = arith.constant 0 : i32
    %c0_i32_0 = arith.constant 0 : i32
    %c0_i32_1 = arith.constant 0 : i32
    %c0_i32_2 = arith.constant 0 : i32
    return %c0_i32, %c0_i32_0, %c0_i32_1 : i32, i32, i32
  }
  func.func @transform_4(%arg0: i32) -> (i32, i32, i32) {
    %c0_i32 = arith.constant 0 : i32
    %c0_i32_0 = arith.constant 0 : i32
    %c0_i32_1 = arith.constant 0 : i32
    %c0_i32_2 = arith.constant 0 : i32
    return %c0_i32, %c0_i32_0, %c0_i32_1 : i32, i32, i32
  }
  func.func @transform_5(%arg0: i32) -> (i32, i32, i32) {
    %c0_i32 = arith.constant 0 : i32
    %c0_i32_0 = arith.constant 0 : i32
    %c0_i32_1 = arith.constant 0 : i32
    %c0_i32_2 = arith.constant 0 : i32
    return %c0_i32, %c0_i32_0, %c0_i32_1 : i32, i32, i32
  }
  func.func @transform_6(%arg0: i32) -> (i32, i32, i32) {
    %c0_i32 = arith.constant 0 : i32
    %c0_i32_0 = arith.constant 0 : i32
    %c0_i32_1 = arith.constant 0 : i32
    %c0_i32_2 = arith.constant 0 : i32
    return %c0_i32, %c0_i32_0, %c0_i32_1 : i32, i32, i32
  }
  func.func @transform_7(%arg0: i32) -> (i32, i32, i32) {
    %c0_i32 = arith.constant 0 : i32
    %c0_i32_0 = arith.constant 0 : i32
    %c0_i32_1 = arith.constant 0 : i32
    %c0_i32_2 = arith.constant 0 : i32
    return %c0_i32, %c0_i32_0, %c0_i32_1 : i32, i32, i32
  }
  func.func @transform_8(%arg0: i32) -> (i32, i32, i32) {
    %c0_i32 = arith.constant 0 : i32
    %c0_i32_0 = arith.constant 0 : i32
    %c0_i32_1 = arith.constant 0 : i32
    %c0_i32_2 = arith.constant 0 : i32
    return %c0_i32, %c0_i32_0, %c0_i32_1 : i32, i32, i32
  }
  func.func @transform_9(%arg0: i32) -> (i32, i32) {
    %c0_i32 = arith.constant 0 : i32
    %c0_i32_0 = arith.constant 0 : i32
    %c0_i32_1 = arith.constant 0 : i32
    return %c0_i32, %c0_i32_0 : i32, i32
  }
  func.func @transform_10(%arg0: i32) -> (i32, i32, i32) {
    %c0_i32 = arith.constant 0 : i32
    %c0_i32_0 = arith.constant 0 : i32
    %c0_i32_1 = arith.constant 0 : i32
    return %arg0, %c0_i32, %c0_i32_0 : i32, i32, i32
  }
}

</mosaic_0001>

<llo_original>
// kernel: swin_attn_block_forward.1
$region0: #{swin_attn_block_forward.1}
  #allocation0 [shape = 'u32[]', space=smem, size = 0x4, offset = 0x4, fixed_abs, tag = 'smem constant byte address 0x4 - core index']
  #allocation1 [shape = 'u32[72,128]{1,0:T(1,128)}', space=vmem, size = 0x9000, scoped, tag = 'internal scratch']
  %s0 = inlined_call_operand.vmem [shape: f32[8,64,128], index: 0, kind: input, shape index: {}]
  %s1 = inlined_call_operand.vmem [shape: f32[4,128,32], index: 1, kind: input, shape index: {}]
  %s2 = inlined_call_operand.vmem [shape: f32[4,128,32], index: 2, kind: input, shape index: {}]
  %s3 = inlined_call_operand.vmem [shape: f32[4,128,32], index: 3, kind: input, shape index: {}]
  %s4 = inlined_call_operand.vmem [shape: f32[4,1,32], index: 4, kind: input, shape index: {}]
  %s5 = inlined_call_operand.vmem [shape: f32[4,1,32], index: 5, kind: input, shape index: {}]
  %s6 = inlined_call_operand.vmem [shape: f32[4,1,32], index: 6, kind: input, shape index: {}]
  %s7 = inlined_call_operand.vmem [shape: f32[4,64,64], index: 7, kind: input, shape index: {}]
  %s8 = inlined_call_operand.vmem [shape: f32[4,32,128], index: 8, kind: input, shape index: {}]
  %s9 = inlined_call_operand.vmem [shape: f32[1,128], index: 9, kind: input, shape index: {}]
  %s10 = inlined_call_operand.vmem [shape: f32[8,64,128], index: 10, kind: output, shape index: {}]
  %s11 = sld [smem:[#allocation0]]
  $region73: #{swin_attn_block_forward.1} parent=0
    _
  %s13 = ssub.s32 1, %s11
  %s14 = scalar_select 0, %s13, %s11
  loop: start=0, step=1, limit=4
  $region2: #{swin_attn_block_forward.1} parent=0 // loop_pre_header
    _
  $region3: #{swin_attn_block_forward.1} parent=0 // loop_header
    %s16 = sphi 0, %s20
    %p17 = scmp.ge.s32.totalorder %s16, 4
    %s26 = sphi 0, %s28
    %s29 = sphi 0, %s26
    %s30 = sphi 0, %s29
    %s46 = sphi 0, %s30
    %s50 = sphi 0, %s50
    %s52 = sphi 0, %s50
    %s53 = sphi 0, %s52
    %s67 = sphi 0, %s53
    %s71 = sphi 0, %s71
    %s73 = sphi 0, %s71
    %s74 = sphi 0, %s73
    %s88 = sphi 0, %s74
    %s92 = sphi 0, %s92
    %s94 = sphi 0, %s92
    %s95 = sphi 0, %s94
    %s109 = sphi 0, %s95
    %s113 = sphi 0, %s113
    %s115 = sphi 0, %s113
    %s116 = sphi 0, %s115
    %s130 = sphi 0, %s116
    %s134 = sphi 0, %s134
    %s136 = sphi 0, %s134
    %s137 = sphi 0, %s136
    %s151 = sphi 0, %s137
    %s155 = sphi 0, %s155
    %s157 = sphi 0, %s155
    %s158 = sphi 0, %s157
    %s172 = sphi 0, %s158
    %s176 = sphi 0, %s176
    %s178 = sphi 0, %s176
    %s179 = sphi 0, %s178
    %s193 = sphi 0, %s179
    %s197 = sphi 0, %s197
    %s199 = sphi 0, %s197
    %s200 = sphi 0, %s199
    %s214 = sphi 0, %s200
    %s218 = sphi 0, %s218
    %s220 = sphi 0, %s218
    %s221 = sphi 0, %s220
    %s235 = sphi 0, %s221
    %s241 = sphi 0, %s243
    %s244 = sphi 0, %s241
    %s245 = sphi 0, %s244
    %s261 = sphi 0, %s245
  $region4: #{swin_attn_block_forward.1} parent=0 // loop_header_branch
    %19 = sbr.rel (%p17) target = $region8
  $region5: #{swin_attn_block_forward.1} parent=0 // loop_body
    %s21 = ssub.s32 %s16, 1
    %s22 = ssub.s32 %s16, 2
    %s23 = sadd.s32 %s16, 1
    %s24 = ssub.s32 %s16, %s23
    %p25 = scmp.eq.s32.totalorder %s24, 0
    %s27 = sadd.s32 %s26, 1
    %s28 = scalar_select %p25, %s26, %s27
    %p31 = pneg %p25
    %p32 = scmp.eq.s32.totalorder %s16, 1
    %p33 = por %p31, %p32
    %p34 = scmp.ne.s32.totalorder %s26, %s29
    %p35 = scmp.eq.s32.totalorder %s16, 0
    %p36 = por %p34, %p35
    %p37 = scmp.ne.s32.totalorder %s26, %s29
    %p38 = scmp.eq.s32.totalorder %s21, 1
    %p39 = por %p37, %p38
    %p40 = scmp.ne.s32.totalorder %s29, %s30
    %p41 = scmp.eq.s32.totalorder %s21, 0
    %p42 = por %p40, %p41
    %p43 = scmp.ne.s32.totalorder %s29, %s30
    %p44 = scmp.eq.s32.totalorder %s22, 1
    %p45 = por %p43, %p44
    %p47 = scmp.ne.s32.totalorder %s30, %s46
    %p48 = scmp.eq.s32.totalorder %s22, 0
    %p49 = por %p47, %p48
    %s51 = sadd.s32 %s50, 1
    %p54 = scmp.eq.s32.totalorder %s16, 1
    %p55 = scmp.ne.s32.totalorder %s50, %s52
    %p56 = scmp.eq.s32.totalorder %s16, 0
    %p57 = por %p55, %p56
    %p58 = scmp.ne.s32.totalorder %s50, %s52
    %p59 = scmp.eq.s32.totalorder %s21, 1
    %p60 = por %p58, %p59
    %p61 = scmp.ne.s32.totalorder %s52, %s53
    %p62 = scmp.eq.s32.totalorder %s21, 0
    %p63 = por %p61, %p62
    %p64 = scmp.ne.s32.totalorder %s52, %s53
    %p65 = scmp.eq.s32.totalorder %s22, 1
    %p66 = por %p64, %p65
    %p68 = scmp.ne.s32.totalorder %s53, %s67
    %p69 = scmp.eq.s32.totalorder %s22, 0
    %p70 = por %p68, %p69
    %s72 = sadd.s32 %s71, 1
    %p75 = scmp.eq.s32.totalorder %s16, 1
    %p76 = scmp.ne.s32.totalorder %s71, %s73
    %p77 = scmp.eq.s32.totalorder %s16, 0
    %p78 = por %p76, %p77
    %p79 = scmp.ne.s32.totalorder %s71, %s73
    %p80 = scmp.eq.s32.totalorder %s21, 1
    %p81 = por %p79, %p80
    %p82 = scmp.ne.s32.totalorder %s73, %s74
    %p83 = scmp.eq.s32.totalorder %s21, 0
    %p84 = por %p82, %p83
    %p85 = scmp.ne.s32.totalorder %s73, %s74
    %p86 = scmp.eq.s32.totalorder %s22, 1
    %p87 = por %p85, %p86
    %p89 = scmp.ne.s32.totalorder %s74, %s88
    %p90 = scmp.eq.s32.totalorder %s22, 0
    %p91 = por %p89, %p90
    %s93 = sadd.s32 %s92, 1
    %p96 = scmp.eq.s32.totalorder %s16, 1
    %p97 = scmp.ne.s32.totalorder %s92, %s94
    %p98 = scmp.eq.s32.totalorder %s16, 0
    %p99 = por %p97, %p98
    %p100 = scmp.ne.s32.totalorder %s92, %s94
    %p101 = scmp.eq.s32.totalorder %s21, 1
    %p102 = por %p100, %p101
    %p103 = scmp.ne.s32.totalorder %s94, %s95
    %p104 = scmp.eq.s32.totalorder %s21, 0
    %p105 = por %p103, %p104
    %p106 = scmp.ne.s32.totalorder %s94, %s95
    %p107 = scmp.eq.s32.totalorder %s22, 1
    %p108 = por %p106, %p107
    %p110 = scmp.ne.s32.totalorder %s95, %s109
    %p111 = scmp.eq.s32.totalorder %s22, 0
    %p112 = por %p110, %p111
    %s114 = sadd.s32 %s113, 1
    %p117 = scmp.eq.s32.totalorder %s16, 1
    %p118 = scmp.ne.s32.totalorder %s113, %s115
    %p119 = scmp.eq.s32.totalorder %s16, 0
    %p120 = por %p118, %p119
    %p121 = scmp.ne.s32.totalorder %s113, %s115
    %p122 = scmp.eq.s32.totalorder %s21, 1
    %p123 = por %p121, %p122
    %p124 = scmp.ne.s32.totalorder %s115, %s116
    %p125 = scmp.eq.s32.totalorder %s21, 0
    %p126 = por %p124, %p125
    %p127 = scmp.ne.s32.totalorder %s115, %s116
    %p128 = scmp.eq.s32.totalorder %s22, 1
    %p129 = por %p127, %p128
    %p131 = scmp.ne.s32.totalorder %s116, %s130
    %p132 = scmp.eq.s32.totalorder %s22, 0
    %p133 = por %p131, %p132
    %s135 = sadd.s32 %s134, 1
    %p138 = scmp.eq.s32.totalorder %s16, 1
    %p139 = scmp.ne.s32.totalorder %s134, %s136
    %p140 = scmp.eq.s32.totalorder %s16, 0
    %p141 = por %p139, %p140
    %p142 = scmp.ne.s32.totalorder %s134, %s136
    %p143 = scmp.eq.s32.totalorder %s21, 1
    %p144 = por %p142, %p143
    %p145 = scmp.ne.s32.totalorder %s136, %s137
    %p146 = scmp.eq.s32.totalorder %s21, 0
    %p147 = por %p145, %p146
    %p148 = scmp.ne.s32.totalorder %s136, %s137
    %p149 = scmp.eq.s32.totalorder %s22, 1
    %p150 = por %p148, %p149
    %p152 = scmp.ne.s32.totalorder %s137, %s151
    %p153 = scmp.eq.s32.totalorder %s22, 0
    %p154 = por %p152, %p153
    %s156 = sadd.s32 %s155, 1
    %p159 = scmp.eq.s32.totalorder %s16, 1
    %p160 = scmp.ne.s32.totalorder %s155, %s157
    %p161 = scmp.eq.s32.totalorder %s16, 0
    %p162 = por %p160, %p161
    %p163 = scmp.ne.s32.totalorder %s155, %s157
    %p164 = scmp.eq.s32.totalorder %s21, 1
    %p165 = por %p163, %p164
    %p166 = scmp.ne.s32.totalorder %s157, %s158
    %p167 = scmp.eq.s32.totalorder %s21, 0
    %p168 = por %p166, %p167
    %p169 = scmp.ne.s32.totalorder %s157, %s158
    %p170 = scmp.eq.s32.totalorder %s22, 1
    %p171 = por %p169, %p170
    %p173 = scmp.ne.s32.totalorder %s158, %s172
    %p174 = scmp.eq.s32.totalorder %s22, 0
    %p175 = por %p173, %p174
    %s177 = sadd.s32 %s176, 1
    %p180 = scmp.eq.s32.totalorder %s16, 1
    %p181 = scmp.ne.s32.totalorder %s176, %s178
    %p182 = scmp.eq.s32.totalorder %s16, 0
    %p183 = por %p181, %p182
    %p184 = scmp.ne.s32.totalorder %s176, %s178
    %p185 = scmp.eq.s32.totalorder %s21, 1
    %p186 = por %p184, %p185
    %p187 = scmp.ne.s32.totalorder %s178, %s179
    %p188 = scmp.eq.s32.totalorder %s21, 0
    %p189 = por %p187, %p188
    %p190 = scmp.ne.s32.totalorder %s178, %s179
    %p191 = scmp.eq.s32.totalorder %s22, 1
    %p192 = por %p190, %p191
    %p194 = scmp.ne.s32.totalorder %s179, %s193
    %p195 = scmp.eq.s32.totalorder %s22, 0
    %p196 = por %p194, %p195
    %s198 = sadd.s32 %s197, 1
    %p201 = scmp.eq.s32.totalorder %s16, 1
    %p202 = scmp.ne.s32.totalorder %s197, %s199
    %p203 = scmp.eq.s32.totalorder %s16, 0
    %p204 = por %p202, %p203
    %p205 = scmp.ne.s32.totalorder %s197, %s199
    %p206 = scmp.eq.s32.totalorder %s21, 1
    %p207 = por %p205, %p206
    %p208 = scmp.ne.s32.totalorder %s199, %s200
    %p209 = scmp.eq.s32.totalorder %s21, 0
    %p210 = por %p208, %p209
    %p211 = scmp.ne.s32.totalorder %s199, %s200
    %p212 = scmp.eq.s32.totalorder %s22, 1
    %p213 = por %p211, %p212
    %p215 = scmp.ne.s32.totalorder %s200, %s214
    %p216 = scmp.eq.s32.totalorder %s22, 0
    %p217 = por %p215, %p216
    %s219 = sadd.s32 %s218, 1
    %p222 = scmp.eq.s32.totalorder %s16, 1
    %p223 = scmp.ne.s32.totalorder %s218, %s220
    %p224 = scmp.eq.s32.totalorder %s16, 0
    %p225 = por %p223, %p224
    %p226 = scmp.ne.s32.totalorder %s218, %s220
    %p227 = scmp.eq.s32.totalorder %s21, 1
    %p228 = por %p226, %p227
    %p229 = scmp.ne.s32.totalorder %s220, %s221
    %p230 = scmp.eq.s32.totalorder %s21, 0
    %p231 = por %p229, %p230
    %p232 = scmp.ne.s32.totalorder %s220, %s221
    %p233 = scmp.eq.s32.totalorder %s22, 1
    %p234 = por %p232, %p233
    %p236 = scmp.ne.s32.totalorder %s221, %s235
    %p237 = scmp.eq.s32.totalorder %s22, 0
    %p238 = por %p236, %p237
    %s239 = ssub.s32 %s16, %s23
    %p240 = scmp.eq.s32.totalorder %s239, 0
    %s242 = sadd.s32 %s241, 1
    %s243 = scalar_select %p240, %s241, %s242
    %p246 = pneg %p240
    %p247 = scmp.eq.s32.totalorder %s16, 1
    %p248 = por %p246, %p247
    %p249 = scmp.ne.s32.totalorder %s241, %s244
    %p250 = scmp.eq.s32.totalorder %s16, 0
    %p251 = por %p249, %p250
    %p252 = scmp.ne.s32.totalorder %s241, %s244
    %p253 = scmp.eq.s32.totalorder %s21, 1
    %p254 = por %p252, %p253
    %p255 = scmp.ne.s32.totalorder %s244, %s245
    %p256 = scmp.eq.s32.totalorder %s21, 0
    %p257 = por %p255, %p256
    %p258 = scmp.ne.s32.totalorder %s244, %s245
    %p259 = scmp.eq.s32.totalorder %s22, 1
    %p260 = por %p258, %p259
    %p262 = scmp.ne.s32.totalorder %s245, %s261
    %p263 = scmp.eq.s32.totalorder %s22, 0
    %p264 = por %p262, %p263
    %p265 = scmp.le.s32.totalorder 1, %s16
    %p266 = scmp.lt.s32.totalorder %s16, 3
    %p267 = pnand %p265, %p266
    %p268 = pneg %p267
    // Predicated region
    $region9: #{swin_attn_block_forward.1} parent=5 // pred_check
      _
    $region10: #{swin_attn_block_forward.1} parent=5 // pred_check_branch
      %270 = sbr.rel (%p267) target = $region12
    $region11: #{swin_attn_block_forward.1} parent=5 // pred_region
      %s271 = ssub.s32 %s16, 1
      // Predicated region
      $region13: #{swin_attn_block_forward.1} parent=11 // pred_check
        %p272 = pneg %p63
      $region14: #{swin_attn_block_forward.1} parent=11 // pred_check_branch
        %274 = sbr.rel (%p272) target = $region16
      $region15: #{swin_attn_block_forward.1} parent=11 // pred_region
        _
      $region16: #{swin_attn_block_forward.1} parent=11 // pred_fallthru
        _
      // Predicated region
      $region17: #{swin_attn_block_forward.1} parent=11 // pred_check
        %p275 = pneg %p84
      $region18: #{swin_attn_block_forward.1} parent=11 // pred_check_branch
        %277 = sbr.rel (%p275) target = $region20
      $region19: #{swin_attn_block_forward.1} parent=11 // pred_region
        _
      $region20: #{swin_attn_block_forward.1} parent=11 // pred_fallthru
        _
      // Predicated region
      $region21: #{swin_attn_block_forward.1} parent=11 // pred_check
        %p278 = pneg %p105
      $region22: #{swin_attn_block_forward.1} parent=11 // pred_check_branch
        %280 = sbr.rel (%p278) target = $region24
      $region23: #{swin_attn_block_forward.1} parent=11 // pred_region
        _
      $region24: #{swin_attn_block_forward.1} parent=11 // pred_fallthru
        _
      // Predicated region
      $region25: #{swin_attn_block_forward.1} parent=11 // pred_check
        %p281 = pneg %p126
      $region26: #{swin_attn_block_forward.1} parent=11 // pred_check_branch
        %283 = sbr.rel (%p281) target = $region28
      $region27: #{swin_attn_block_forward.1} parent=11 // pred_region
        _
      $region28: #{swin_attn_block_forward.1} parent=11 // pred_fallthru
        _
      // Predicated region
      $region29: #{swin_attn_block_forward.1} parent=11 // pred_check
        %p284 = pneg %p147
      $region30: #{swin_attn_block_forward.1} parent=11 // pred_check_branch
        %286 = sbr.rel (%p284) target = $region32
      $region31: #{swin_attn_block_forward.1} parent=11 // pred_region
        _
      $region32: #{swin_attn_block_forward.1} parent=11 // pred_fallthru
        _
      // Predicated region
      $region33: #{swin_attn_block_forward.1} parent=11 // pred_check
        %p287 = pneg %p168
      $region34: #{swin_attn_block_forward.1} parent=11 // pred_check_branch
        %289 = sbr.rel (%p287) target = $region36
      $region35: #{swin_attn_block_forward.1} parent=11 // pred_region
        _
      $region36: #{swin_attn_block_forward.1} parent=11 // pred_fallthru
        _
      // Predicated region
      $region37: #{swin_attn_block_forward.1} parent=11 // pred_check
        %p290 = pneg %p189
      $region38: #{swin_attn_block_forward.1} parent=11 // pred_check_branch
        %292 = sbr.rel (%p290) target = $region40
      $region39: #{swin_attn_block_forward.1} parent=11 // pred_region
        _
      $region40: #{swin_attn_block_forward.1} parent=11 // pred_fallthru
        _
      // Predicated region
      $region41: #{swin_attn_block_forward.1} parent=11 // pred_check
        %p293 = pneg %p210
      $region42: #{swin_attn_block_forward.1} parent=11 // pred_check_branch
        %295 = sbr.rel (%p293) target = $region44
      $region43: #{swin_attn_block_forward.1} parent=11 // pred_region
        _
      $region44: #{swin_attn_block_forward.1} parent=11 // pred_fallthru
        _
      // Predicated region
      $region45: #{swin_attn_block_forward.1} parent=11 // pred_check
        %p296 = pneg %p231
      $region46: #{swin_attn_block_forward.1} parent=11 // pred_check_branch
        %298 = sbr.rel (%p296) target = $region48
      $region47: #{swin_attn_block_forward.1} parent=11 // pred_region
        _
      $region48: #{swin_attn_block_forward.1} parent=11 // pred_fallthru
        _
    $region12: #{swin_attn_block_forward.1} parent=5 // pred_fallthru
      _
    %p299 = scmp.lt.s32.totalorder %s16, 2
    // Predicated region
    $region49: #{swin_attn_block_forward.1} parent=5 // pred_check
      %p300 = pneg %p299
    $region50: #{swin_attn_block_forward.1} parent=5 // pred_check_branch
      %302 = sbr.rel (%p300) target = $region52
    $region51: #{swin_attn_block_forward.1} parent=5 // pred_region
      // Predicated region
      $region53: #{swin_attn_block_forward.1} parent=51 // pred_check
        %p303 = pneg %p36
      $region54: #{swin_attn_block_forward.1} parent=51 // pred_check_branch
        %305 = sbr.rel (%p303) target = $region56
      $region55: #{swin_attn_block_forward.1} parent=51 // pred_region
        %s306 = smul.u32 4, %s16
        %p307 = scmp.lt.s32.totalorder %s306, 7
        %s308 = scalar_select %p307, %s306, 7
        %s309 = smul.addr %s308, 8
        %s310 = smul.addr %s309, 8
        %s311 = scalar_lea.vmem %s0, %s310
        %s312 = smul.u32 4, %s16
      $region56: #{swin_attn_block_forward.1} parent=51 // pred_fallthru
        _
    $region52: #{swin_attn_block_forward.1} parent=5 // pred_fallthru
      _
    %p313 = scmp.le.s32.totalorder 1, %s16
    %p314 = scmp.lt.s32.totalorder %s16, 3
    %p315 = pnand %p313, %p314
    %p316 = pneg %p315
    // Predicated region
    $region57: #{swin_attn_block_forward.1} parent=5 // pred_check
      _
    $region58: #{swin_attn_block_forward.1} parent=5 // pred_check_branch
      %318 = sbr.rel (%p315) target = $region60
    $region59: #{swin_attn_block_forward.1} parent=5 // pred_region
      %s319 = ssub.s32 %s16, 1
      %s320 = smul.u32 4, %s21
      %p321 = scmp.lt.s32.totalorder %s320, 7
      %s322 = scalar_select %p321, %s320, 7
      %s323 = smul.addr %s322, 8
      %s324 = smul.addr %s323, 8
      %s325 = scalar_lea.vmem %s0, %s324
      %p326 = pneg %p42
      %p327 = pneg %p39
      %p328 = pneg %p63
      %p329 = pneg %p60
      %p330 = pneg %p84
      %p331 = pneg %p81
      %p332 = pneg %p105
      %p333 = pneg %p102
      %p334 = pneg %p126
      %p335 = pneg %p123
      %p336 = pneg %p147
      %p337 = pneg %p144
      %p338 = pneg %p168
      %p339 = pneg %p165
      %p340 = pneg %p189
      %p341 = pneg %p186
      %p342 = pneg %p210
      %p343 = pneg %p207
      %p344 = pneg %p231
      %p345 = pneg %p228
      %p346 = pneg %p257
      %p347 = pneg %p254
      %s348 = smul.u32 4, %s21
      %p349 = scmp.lt.s32.totalorder %s348, 7
      %s350 = scalar_select %p349, %s348, 7
      %s351 = smul.addr %s350, 8
      %s352 = smul.addr %s351, 8
      %s353 = scalar_lea.vmem %s10, %s352
      %s354 = smul.u32 4, %s21
      %p355 = scmp.lt.s32.totalorder %s354, 7
      %s356 = scalar_select %p355, %s354, 7
      %s357 = smul.addr %s356, 8
      %s358 = smul.addr %s357, 8
      %s359 = scalar_lea.vmem %s0, %s358
      %s360 = smul.u32 4, %s21
      %s361 = smul.u32 4, %s21
      %p362 = scmp.lt.s32.totalorder %s361, 7
      %s363 = scalar_select %p362, %s361, 7
      %s364 = smul.addr %s363, 8
      %s365 = smul.addr %s364, 8
      %s366 = scalar_lea.vmem %s10, %s365
      %s367 = smul.u32 4, %s21
      %v368 = vld [vmem:[%s359] sm:$0xff]
      %v369 = vld [vmem:[%s359 + $0x8] sm:$0xff]
      %v370 = vld [vmem:[%s359 + $0x10] sm:$0xff]
      %v371 = vld [vmem:[%s359 + $0x18] sm:$0xff]
      %v372 = vld [vmem:[%s359 + $0x20] sm:$0xff]
      %v373 = vld [vmem:[%s359 + $0x28] sm:$0xff]
      %v374 = vld [vmem:[%s359 + $0x30] sm:$0xff]
      %v375 = vld [vmem:[%s359 + $0x38] sm:$0xff]
      %v376 = vld [vmem:[%s1] sm:$0xff]
      %v377 = vld [vmem:[%s1 + $0x8] sm:$0xff]
      %v378 = vld [vmem:[%s1 + $0x10] sm:$0xff]
      %v379 = vld [vmem:[%s1 + $0x18] sm:$0xff]
      %v380 = vld [vmem:[%s1 + $0x20] sm:$0xff]
      %v381 = vld [vmem:[%s1 + $0x28] sm:$0xff]
      %v382 = vld [vmem:[%s1 + $0x30] sm:$0xff]
      %v383 = vld [vmem:[%s1 + $0x38] sm:$0xff]
      %v384 = vld [vmem:[%s1 + $0x40] sm:$0xff]
      %v385 = vld [vmem:[%s1 + $0x48] sm:$0xff]
      %v386 = vld [vmem:[%s1 + $0x50] sm:$0xff]
      %v387 = vld [vmem:[%s1 + $0x58] sm:$0xff]
      %v388 = vld [vmem:[%s1 + $0x60] sm:$0xff]
      %v389 = vld [vmem:[%s1 + $0x68] sm:$0xff]
      %v390 = vld [vmem:[%s1 + $0x70] sm:$0xff]
      %v391 = vld [vmem:[%s1 + $0x78] sm:$0xff]
      %v392 = vld [vmem:[%s4] sm:$0x1]
      %v394 = vperm.slane %v392, 0
      %396 = vmatpush.msra.mxu0 %v391
      %397 = vmatpush.msra.mxu0 %v390
      %398 = vmatpush.msra.mxu0 %v389
      %399 = vmatpush.msra.mxu0 %v388
      %400 = vmatpush.msra.mxu0 %v387
      %401 = vmatpush.msra.mxu0 %v386
      %402 = vmatpush.msra.mxu0 %v385
      %403 = vmatpush.msra.mxu0 %v384
      %404 = vmatpush.msra.mxu0 %v383
      %405 = vmatpush.msra.mxu0 %v382
      %406 = vmatpush.msra.mxu0 %v381
      %407 = vmatpush.msra.mxu0 %v380
      %408 = vmatpush.msra.mxu0 %v379
      %409 = vmatpush.msra.mxu0 %v378
      %410 = vmatpush.msra.mxu0 %v377
      %411 = vmatpush.msra.mxu0 %v376
      %412 = vmatmul.f32.gmra.mxu0 %v368
      %v413 = vpop.f32.mrf.mxu0
      %v414 = vadd.f32 %v394, %v413
      %415 = vmatmul.f32.gmra.mxu0 %v369
      %v416 = vpop.f32.mrf.mxu0
      %v417 = vadd.f32 %v394, %v416
      %418 = vmatmul.f32.gmra.mxu0 %v370
      %v419 = vpop.f32.mrf.mxu0
      %v420 = vadd.f32 %v394, %v419
      %421 = vmatmul.f32.gmra.mxu0 %v371
      %v422 = vpop.f32.mrf.mxu0
      %v423 = vadd.f32 %v394, %v422
      %424 = vmatmul.f32.gmra.mxu0 %v372
      %v425 = vpop.f32.mrf.mxu0
      %v426 = vadd.f32 %v394, %v425
      %427 = vmatmul.f32.gmra.mxu0 %v373
      %v428 = vpop.f32.mrf.mxu0
      %v429 = vadd.f32 %v394, %v428
      %430 = vmatmul.f32.gmra.mxu0 %v374
      %v431 = vpop.f32.mrf.mxu0
      %v432 = vadd.f32 %v394, %v431
      %433 = vmatmul.f32.gmra.mxu0 %v375
      %v434 = vpop.f32.mrf.mxu0
      %v435 = vadd.f32 %v394, %v434
      %436 = vdwg.mxu0
      %v437 = vld [vmem:[%s2] sm:$0xff]
      %v438 = vld [vmem:[%s2 + $0x8] sm:$0xff]
      %v439 = vld [vmem:[%s2 + $0x10] sm:$0xff]
      %v440 = vld [vmem:[%s2 + $0x18] sm:$0xff]
      %v441 = vld [vmem:[%s2 + $0x20] sm:$0xff]
      %v442 = vld [vmem:[%s2 + $0x28] sm:$0xff]
      %v443 = vld [vmem:[%s2 + $0x30] sm:$0xff]
      %v444 = vld [vmem:[%s2 + $0x38] sm:$0xff]
      %v445 = vld [vmem:[%s2 + $0x40] sm:$0xff]
      %v446 = vld [vmem:[%s2 + $0x48] sm:$0xff]
      %v447 = vld [vmem:[%s2 + $0x50] sm:$0xff]
      %v448 = vld [vmem:[%s2 + $0x58] sm:$0xff]
      %v449 = vld [vmem:[%s2 + $0x60] sm:$0xff]
      %v450 = vld [vmem:[%s2 + $0x68] sm:$0xff]
      %v451 = vld [vmem:[%s2 + $0x70] sm:$0xff]
      %v452 = vld [vmem:[%s2 + $0x78] sm:$0xff]
      %v453 = vld [vmem:[%s5] sm:$0x1]
      %v455 = vperm.slane %v453, 0
      %457 = vmatpush.msra.mxu0 %v452
      %458 = vmatpush.msra.mxu0 %v451
      %459 = vmatpush.msra.mxu0 %v450
      %460 = vmatpush.msra.mxu0 %v449
      %461 = vmatpush.msra.mxu0 %v448
      %462 = vmatpush.msra.mxu0 %v447
      %463 = vmatpush.msra.mxu0 %v446
      %464 = vmatpush.msra.mxu0 %v445
      %465 = vmatpush.msra.mxu0 %v444
      %466 = vmatpush.msra.mxu0 %v443
      %467 = vmatpush.msra.mxu0 %v442
      %468 = vmatpush.msra.mxu0 %v441
      %469 = vmatpush.msra.mxu0 %v440
      %470 = vmatpush.msra.mxu0 %v439
      %471 = vmatpush.msra.mxu0 %v438
      %472 = vmatpush.msra.mxu0 %v437
      %473 = vmatmul.f32.gmra.mxu0 %v368
      %v474 = vpop.f32.mrf.mxu0
      %v475 = vadd.f32 %v455, %v474
      %476 = vmatmul.f32.gmra.mxu0 %v369
      %v477 = vpop.f32.mrf.mxu0
      %v478 = vadd.f32 %v455, %v477
      %479 = vmatmul.f32.gmra.mxu0 %v370
      %v480 = vpop.f32.mrf.mxu0
      %v481 = vadd.f32 %v455, %v480
      %482 = vmatmul.f32.gmra.mxu0 %v371
      %v483 = vpop.f32.mrf.mxu0
      %v484 = vadd.f32 %v455, %v483
      %485 = vmatmul.f32.gmra.mxu0 %v372
      %v486 = vpop.f32.mrf.mxu0
      %v487 = vadd.f32 %v455, %v486
      %488 = vmatmul.f32.gmra.mxu0 %v373
      %v489 = vpop.f32.mrf.mxu0
      %v490 = vadd.f32 %v455, %v489
      %491 = vmatmul.f32.gmra.mxu0 %v374
      %v492 = vpop.f32.mrf.mxu0
      %v493 = vadd.f32 %v455, %v492
      %494 = vmatmul.f32.gmra.mxu0 %v375
      %v495 = vpop.f32.mrf.mxu0
      %v496 = vadd.f32 %v455, %v495
      %497 = vdwg.mxu0
      %v498 = vld [vmem:[%s3] sm:$0xff]
      %v499 = vld [vmem:[%s3 + $0x8] sm:$0xff]
      %v500 = vld [vmem:[%s3 + $0x10] sm:$0xff]
      %v501 = vld [vmem:[%s3 + $0x18] sm:$0xff]
      %v502 = vld [vmem:[%s3 + $0x20] sm:$0xff]
      %v503 = vld [vmem:[%s3 + $0x28] sm:$0xff]
      %v504 = vld [vmem:[%s3 + $0x30] sm:$0xff]
      %v505 = vld [vmem:[%s3 + $0x38] sm:$0xff]
      %v506 = vld [vmem:[%s3 + $0x40] sm:$0xff]
      %v507 = vld [vmem:[%s3 + $0x48] sm:$0xff]
      %v508 = vld [vmem:[%s3 + $0x50] sm:$0xff]
      %v509 = vld [vmem:[%s3 + $0x58] sm:$0xff]
      %v510 = vld [vmem:[%s3 + $0x60] sm:$0xff]
      %v511 = vld [vmem:[%s3 + $0x68] sm:$0xff]
      %v512 = vld [vmem:[%s3 + $0x70] sm:$0xff]
      %v513 = vld [vmem:[%s3 + $0x78] sm:$0xff]
      %v514 = vld [vmem:[%s6] sm:$0x1]
      %v516 = vperm.slane %v514, 0
      %518 = vmatpush.msra.mxu0 %v513
      %519 = vmatpush.msra.mxu0 %v512
      %520 = vmatpush.msra.mxu0 %v511
      %521 = vmatpush.msra.mxu0 %v510
      %522 = vmatpush.msra.mxu0 %v509
      %523 = vmatpush.msra.mxu0 %v508
      %524 = vmatpush.msra.mxu0 %v507
      %525 = vmatpush.msra.mxu0 %v506
      %526 = vmatpush.msra.mxu0 %v505
      %527 = vmatpush.msra.mxu0 %v504
      %528 = vmatpush.msra.mxu0 %v503
      %529 = vmatpush.msra.mxu0 %v502
      %530 = vmatpush.msra.mxu0 %v501
      %531 = vmatpush.msra.mxu0 %v500
      %532 = vmatpush.msra.mxu0 %v499
      %533 = vmatpush.msra.mxu0 %v498
      %534 = vmatmul.f32.gmra.mxu0 %v368
      %v535 = vpop.f32.mrf.mxu0
      %v536 = vadd.f32 %v516, %v535
      %537 = vmatmul.f32.gmra.mxu0 %v369
      %v538 = vpop.f32.mrf.mxu0
      %v539 = vadd.f32 %v516, %v538
      %540 = vmatmul.f32.gmra.mxu0 %v370
      %v541 = vpop.f32.mrf.mxu0
      %v542 = vadd.f32 %v516, %v541
      %543 = vmatmul.f32.gmra.mxu0 %v371
      %v544 = vpop.f32.mrf.mxu0
      %v545 = vadd.f32 %v516, %v544
      %546 = vmatmul.f32.gmra.mxu0 %v372
      %v547 = vpop.f32.mrf.mxu0
      %v548 = vadd.f32 %v516, %v547
      %549 = vmatmul.f32.gmra.mxu0 %v373
      %v550 = vpop.f32.mrf.mxu0
      %v551 = vadd.f32 %v516, %v550
      %552 = vmatmul.f32.gmra.mxu0 %v374
      %v553 = vpop.f32.mrf.mxu0
      %v554 = vadd.f32 %v516, %v553
      %555 = vmatmul.f32.gmra.mxu0 %v375
      %v556 = vpop.f32.mrf.mxu0
      %v557 = vadd.f32 %v516, %v556
      %558 = vdwg.mxu0
      %v559 = vmul.f32 %v414, 0.17677669
      %v560 = vmul.f32 %v417, 0.17677669
      %v561 = vmul.f32 %v420, 0.17677669
      %v562 = vmul.f32 %v423, 0.17677669
      %v563 = vmul.f32 %v426, 0.17677669
      %v564 = vmul.f32 %v429, 0.17677669
      %v565 = vmul.f32 %v432, 0.17677669
      %v566 = vmul.f32 %v435, 0.17677669
      %v567 = vld [vmem:[%s7] sm:$0xff]
      %v568 = vld [vmem:[%s7 + $0x8] sm:$0xff]
      %v569 = vld [vmem:[%s7 + $0x10] sm:$0xff]
      %v570 = vld [vmem:[%s7 + $0x18] sm:$0xff]
      %v571 = vld [vmem:[%s7 + $0x20] sm:$0xff]
      %v572 = vld [vmem:[%s7 + $0x28] sm:$0xff]
      %v573 = vld [vmem:[%s7 + $0x30] sm:$0xff]
      %v574 = vld [vmem:[%s7 + $0x38] sm:$0xff]
      %vm575 = vcmask 261120
      %v577 = vsel %vm575, %v559, 0
      %v580 = vsel %vm575, %v560, 0
      %v583 = vsel %vm575, %v561, 0
      %v586 = vsel %vm575, %v562, 0
      %v589 = vsel %vm575, %v563, 0
      %v592 = vsel %vm575, %v564, 0
      %v595 = vsel %vm575, %v565, 0
      %v598 = vsel %vm575, %v566, 0
      %v601 = vsel %vm575, %v475, 0
      %v604 = vsel %vm575, %v478, 0
      %v607 = vsel %vm575, %v481, 0
      %v610 = vsel %vm575, %v484, 0
      %v613 = vsel %vm575, %v487, 0
      %v616 = vsel %vm575, %v490, 0
      %v619 = vsel %vm575, %v493, 0
      %v622 = vsel %vm575, %v496, 0
      %624 = vmatpush.xpose.msra.mxu0 0.0
      %625 = vmatpush.xpose.msra.mxu0 0.0
      %626 = vmatpush.xpose.msra.mxu0 0.0
      %627 = vmatpush.xpose.msra.mxu0 0.0
      %628 = vmatpush.xpose.msra.mxu0 0.0
      %629 = vmatpush.xpose.msra.mxu0 0.0
      %630 = vmatpush.xpose.msra.mxu0 0.0
      %631 = vmatpush.xpose.msra.mxu0 0.0
      %632 = vmatpush.xpose.msra.mxu0 %v622
      %633 = vmatpush.xpose.msra.mxu0 %v619
      %634 = vmatpush.xpose.msra.mxu0 %v616
      %635 = vmatpush.xpose.msra.mxu0 %v613
      %636 = vmatpush.xpose.msra.mxu0 %v610
      %637 = vmatpush.xpose.msra.mxu0 %v607
      %638 = vmatpush.xpose.msra.mxu0 %v604
      %639 = vmatpush.xpose.msra.mxu0 %v601
      %640 = vmatmul.f32.gmra.mxu0 %v577
      %v641 = vpop.f32.mrf.mxu0
      %v642 = vadd.f32 %v567, %v641
      %643 = vmatmul.f32.gmra.mxu0 %v580
      %v644 = vpop.f32.mrf.mxu0
      %v645 = vadd.f32 %v568, %v644
      %646 = vmatmul.f32.gmra.mxu0 %v583
      %v647 = vpop.f32.mrf.mxu0
      %v648 = vadd.f32 %v569, %v647
      %649 = vmatmul.f32.gmra.mxu0 %v586
      %v650 = vpop.f32.mrf.mxu0
      %v651 = vadd.f32 %v570, %v650
      %652 = vmatmul.f32.gmra.mxu0 %v589
      %v653 = vpop.f32.mrf.mxu0
      %v654 = vadd.f32 %v571, %v653
      %655 = vmatmul.f32.gmra.mxu0 %v592
      %v656 = vpop.f32.mrf.mxu0
      %v657 = vadd.f32 %v572, %v656
      %658 = vmatmul.f32.gmra.mxu0 %v595
      %v659 = vpop.f32.mrf.mxu0
      %v660 = vadd.f32 %v573, %v659
      %661 = vmatmul.f32.gmra.mxu0 %v598
      %v662 = vpop.f32.mrf.mxu0
      %v663 = vadd.f32 %v574, %v662
      %664 = vdwg.mxu0
      %vm665 = vcmask 523264
      %v666 = vsel %vm665, %v642, -inf
      %667 = vmax.xlane.f32.xlu0 %v666
      %v668 = vpop.xlane.xlu0 %667
      %v669 = vsel %vm665, %v645, -inf
      %670 = vmax.xlane.f32.xlu0 %v669
      %v671 = vpop.xlane.xlu0 %670
      %v672 = vsel %vm665, %v648, -inf
      %673 = vmax.xlane.f32.xlu0 %v672
      %v674 = vpop.xlane.xlu0 %673
      %v675 = vsel %vm665, %v651, -inf
      %676 = vmax.xlane.f32.xlu0 %v675
      %v677 = vpop.xlane.xlu0 %676
      %v678 = vsel %vm665, %v654, -inf
      %679 = vmax.xlane.f32.xlu0 %v678
      %v680 = vpop.xlane.xlu0 %679
      %v681 = vsel %vm665, %v657, -inf
      %682 = vmax.xlane.f32.xlu0 %v681
      %v683 = vpop.xlane.xlu0 %682
      %v684 = vsel %vm665, %v660, -inf
      %685 = vmax.xlane.f32.xlu0 %v684
      %v686 = vpop.xlane.xlu0 %685
      %v687 = vsel %vm665, %v663, -inf
      %688 = vmax.xlane.f32.xlu0 %v687
      %v689 = vpop.xlane.xlu0 %688
      %v690 = vsub.f32 %v642, %v668
      %v691 = vsub.f32 %v645, %v671
      %v692 = vsub.f32 %v648, %v674
      %v693 = vsub.f32 %v651, %v677
      %v694 = vsub.f32 %v654, %v680
      %v695 = vsub.f32 %v657, %v683
      %v696 = vsub.f32 %v660, %v686
      %v697 = vsub.f32 %v663, %v689
      %v698 = vmul.f32 %v690, 1.442695
      %v699 = vpow.pop %v698
      %v700 = vmul.f32 %v691, 1.442695
      %v701 = vpow.pop %v700
      %v702 = vmul.f32 %v692, 1.442695
      %v703 = vpow.pop %v702
      %v704 = vmul.f32 %v693, 1.442695
      %v705 = vpow.pop %v704
      %v706 = vmul.f32 %v694, 1.442695
      %v707 = vpow.pop %v706
      %v708 = vmul.f32 %v695, 1.442695
      %v709 = vpow.pop %v708
      %v710 = vmul.f32 %v696, 1.442695
      %v711 = vpow.pop %v710
      %v712 = vmul.f32 %v697, 1.442695
      %v713 = vpow.pop %v712
      %v714 = vsel %vm665, %v699, 0.0
      %715 = vadd.xlane.f32.xlu0 %v714
      %v716 = vpop.xlane.xlu0 %715
      %v717 = vsel %vm665, %v701, 0.0
      %718 = vadd.xlane.f32.xlu0 %v717
      %v719 = vpop.xlane.xlu0 %718
      %v720 = vsel %vm665, %v703, 0.0
      %721 = vadd.xlane.f32.xlu0 %v720
      %v722 = vpop.xlane.xlu0 %721
      %v723 = vsel %vm665, %v705, 0.0
      %724 = vadd.xlane.f32.xlu0 %v723
      %v725 = vpop.xlane.xlu0 %724
      %v726 = vsel %vm665, %v707, 0.0
      %727 = vadd.xlane.f32.xlu0 %v726
      %v728 = vpop.xlane.xlu0 %727
      %v729 = vsel %vm665, %v709, 0.0
      %730 = vadd.xlane.f32.xlu0 %v729
      %v731 = vpop.xlane.xlu0 %730
      %v732 = vsel %vm665, %v711, 0.0
      %733 = vadd.xlane.f32.xlu0 %v732
      %v734 = vpop.xlane.xlu0 %733
      %v735 = vsel %vm665, %v713, 0.0
      %736 = vadd.xlane.f32.xlu0 %v735
      %v737 = vpop.xlane.xlu0 %736
      %v738 = vrcp.pop %v716
      %v739 = vmul.f32 %v716, %v738
      %v740 = vsub.f32 1.0, %v739
      %v741 = vmul.f32 %v738, %v740
      %v742 = vadd.f32 %v738, %v741
      %vm743 = vweird.f32 %v716
      %vm744 = vweird.f32 %v738
      %vm745 = vmor %vm743, %vm744
      %v746 = vsel %vm745, %v738, %v742
      %v747 = vand.u32 2147483647, %v716
      %vm748 = vcmp.eq.f32.partialorder %v747, 8.507059e+37
      %v749 = vand.u32 %v716, 2147483648
      %v750 = vor.u32 1.1754944e-38, %v749
      %v751 = vsel %vm748, %v750, %v746
      %v752 = vmul.f32 %v699, %v751
      %v753 = vrcp.pop %v719
      %v754 = vmul.f32 %v719, %v753
      %v755 = vsub.f32 1.0, %v754
      %v756 = vmul.f32 %v753, %v755
      %v757 = vadd.f32 %v753, %v756
      %vm758 = vweird.f32 %v719
      %vm759 = vweird.f32 %v753
      %vm760 = vmor %vm758, %vm759
      %v761 = vsel %vm760, %v753, %v757
      %v762 = vand.u32 2147483647, %v719
      %vm763 = vcmp.eq.f32.partialorder %v762, 8.507059e+37
      %v764 = vand.u32 %v719, 2147483648
      %v765 = vor.u32 1.1754944e-38, %v764
      %v766 = vsel %vm763, %v765, %v761
      %v767 = vmul.f32 %v701, %v766
      %v768 = vrcp.pop %v722
      %v769 = vmul.f32 %v722, %v768
      %v770 = vsub.f32 1.0, %v769
      %v771 = vmul.f32 %v768, %v770
      %v772 = vadd.f32 %v768, %v771
      %vm773 = vweird.f32 %v722
      %vm774 = vweird.f32 %v768
      %vm775 = vmor %vm773, %vm774
      %v776 = vsel %vm775, %v768, %v772
      %v777 = vand.u32 2147483647, %v722
      %vm778 = vcmp.eq.f32.partialorder %v777, 8.507059e+37
      %v779 = vand.u32 %v722, 2147483648
      %v780 = vor.u32 1.1754944e-38, %v779
      %v781 = vsel %vm778, %v780, %v776
      %v782 = vmul.f32 %v703, %v781
      %v783 = vrcp.pop %v725
      %v784 = vmul.f32 %v725, %v783
      %v785 = vsub.f32 1.0, %v784
      %v786 = vmul.f32 %v783, %v785
      %v787 = vadd.f32 %v783, %v786
      %vm788 = vweird.f32 %v725
      %vm789 = vweird.f32 %v783
      %vm790 = vmor %vm788, %vm789
      %v791 = vsel %vm790, %v783, %v787
      %v792 = vand.u32 2147483647, %v725
      %vm793 = vcmp.eq.f32.partialorder %v792, 8.507059e+37
      %v794 = vand.u32 %v725, 2147483648
      %v795 = vor.u32 1.1754944e-38, %v794
      %v796 = vsel %vm793, %v795, %v791
      %v797 = vmul.f32 %v705, %v796
      %v798 = vrcp.pop %v728
      %v799 = vmul.f32 %v728, %v798
      %v800 = vsub.f32 1.0, %v799
      %v801 = vmul.f32 %v798, %v800
      %v802 = vadd.f32 %v798, %v801
      %vm803 = vweird.f32 %v728
      %vm804 = vweird.f32 %v798
      %vm805 = vmor %vm803, %vm804
      %v806 = vsel %vm805, %v798, %v802
      %v807 = vand.u32 2147483647, %v728
      %vm808 = vcmp.eq.f32.partialorder %v807, 8.507059e+37
      %v809 = vand.u32 %v728, 2147483648
      %v810 = vor.u32 1.1754944e-38, %v809
      %v811 = vsel %vm808, %v810, %v806
      %v812 = vmul.f32 %v707, %v811
      %v813 = vrcp.pop %v731
      %v814 = vmul.f32 %v731, %v813
      %v815 = vsub.f32 1.0, %v814
      %v816 = vmul.f32 %v813, %v815
      %v817 = vadd.f32 %v813, %v816
      %vm818 = vweird.f32 %v731
      %vm819 = vweird.f32 %v813
      %vm820 = vmor %vm818, %vm819
      %v821 = vsel %vm820, %v813, %v817
      %v822 = vand.u32 2147483647, %v731
      %vm823 = vcmp.eq.f32.partialorder %v822, 8.507059e+37
      %v824 = vand.u32 %v731, 2147483648
      %v825 = vor.u32 1.1754944e-38, %v824
      %v826 = vsel %vm823, %v825, %v821
      %v827 = vmul.f32 %v709, %v826
      %v828 = vrcp.pop %v734
      %v829 = vmul.f32 %v734, %v828
      %v830 = vsub.f32 1.0, %v829
      %v831 = vmul.f32 %v828, %v830
      %v832 = vadd.f32 %v828, %v831
      %vm833 = vweird.f32 %v734
      %vm834 = vweird.f32 %v828
      %vm835 = vmor %vm833, %vm834
      %v836 = vsel %vm835, %v828, %v832
      %v837 = vand.u32 2147483647, %v734
      %vm838 = vcmp.eq.f32.partialorder %v837, 8.507059e+37
      %v839 = vand.u32 %v734, 2147483648
      %v840 = vor.u32 1.1754944e-38, %v839
      %v841 = vsel %vm838, %v840, %v836
      %v842 = vmul.f32 %v711, %v841
      %v843 = vrcp.pop %v737
      %v844 = vmul.f32 %v737, %v843
      %v845 = vsub.f32 1.0, %v844
      %v846 = vmul.f32 %v843, %v845
      %v847 = vadd.f32 %v843, %v846
      %vm848 = vweird.f32 %v737
      %vm849 = vweird.f32 %v843
      %vm850 = vmor %vm848, %vm849
      %v851 = vsel %vm850, %v843, %v847
      %v852 = vand.u32 2147483647, %v737
      %vm853 = vcmp.eq.f32.partialorder %v852, 8.507059e+37
      %v854 = vand.u32 %v737, 2147483648
      %v855 = vor.u32 1.1754944e-38, %v854
      %v856 = vsel %vm853, %v855, %v851
      %v857 = vmul.f32 %v713, %v856
      %v859 = vsel %vm665, %v752, 0
      %v862 = vsel %vm665, %v767, 0
      %v865 = vsel %vm665, %v782, 0
      %v868 = vsel %vm665, %v797, 0
      %v871 = vsel %vm665, %v812, 0
      %v874 = vsel %vm665, %v827, 0
      %v877 = vsel %vm665, %v842, 0
      %v880 = vsel %vm665, %v857, 0
      %882 = vmatpush.msra.mxu0 0.0
      %883 = vmatpush.msra.mxu0 0.0
      %884 = vmatpush.msra.mxu0 0.0
      %885 = vmatpush.msra.mxu0 0.0
      %886 = vmatpush.msra.mxu0 0.0
      %887 = vmatpush.msra.mxu0 0.0
      %888 = vmatpush.msra.mxu0 0.0
      %889 = vmatpush.msra.mxu0 0.0
      %890 = vmatpush.msra.mxu0 %v557
      %891 = vmatpush.msra.mxu0 %v554
      %892 = vmatpush.msra.mxu0 %v551
      %893 = vmatpush.msra.mxu0 %v548
      %894 = vmatpush.msra.mxu0 %v545
      %895 = vmatpush.msra.mxu0 %v542
      %896 = vmatpush.msra.mxu0 %v539
      %897 = vmatpush.msra.mxu0 %v536
      %898 = vmatmul.f32.gmra.mxu0 %v859
      %v899 = vpop.f32.mrf.mxu0
      %v900 = vadd.f32 0.0, %v899
      %901 = vmatmul.f32.gmra.mxu0 %v862
      %v902 = vpop.f32.mrf.mxu0
      %v903 = vadd.f32 0.0, %v902
      %904 = vmatmul.f32.gmra.mxu0 %v865
      %v905 = vpop.f32.mrf.mxu0
      %v906 = vadd.f32 0.0, %v905
      %907 = vmatmul.f32.gmra.mxu0 %v868
      %v908 = vpop.f32.mrf.mxu0
      %v909 = vadd.f32 0.0, %v908
      %910 = vmatmul.f32.gmra.mxu0 %v871
      %v911 = vpop.f32.mrf.mxu0
      %v912 = vadd.f32 0.0, %v911
      %913 = vmatmul.f32.gmra.mxu0 %v874
      %v914 = vpop.f32.mrf.mxu0
      %v915 = vadd.f32 0.0, %v914
      %916 = vmatmul.f32.gmra.mxu0 %v877
      %v917 = vpop.f32.mrf.mxu0
      %v918 = vadd.f32 0.0, %v917
      %919 = vmatmul.f32.gmra.mxu0 %v880
      %v920 = vpop.f32.mrf.mxu0
      %v921 = vadd.f32 0.0, %v920
      %922 = vdwg.mxu0
      %v923 = vld [vmem:[%s8] sm:$0xff]
      %v924 = vld [vmem:[%s8 + $0x8] sm:$0xff]
      %v925 = vld [vmem:[%s8 + $0x10] sm:$0xff]
      %v926 = vld [vmem:[%s8 + $0x18] sm:$0xff]
      %s927 = scalar_lea.vmem %s1, 128
      %v928 = vld [vmem:[%s927] sm:$0xff]
      %v929 = vld [vmem:[%s927 + $0x8] sm:$0xff]
      %v930 = vld [vmem:[%s927 + $0x10] sm:$0xff]
      %v931 = vld [vmem:[%s927 + $0x18] sm:$0xff]
      %v932 = vld [vmem:[%s927 + $0x20] sm:$0xff]
      %v933 = vld [vmem:[%s927 + $0x28] sm:$0xff]
      %v934 = vld [vmem:[%s927 + $0x30] sm:$0xff]
      %v935 = vld [vmem:[%s927 + $0x38] sm:$0xff]
      %v936 = vld [vmem:[%s927 + $0x40] sm:$0xff]
      %v937 = vld [vmem:[%s927 + $0x48] sm:$0xff]
      %v938 = vld [vmem:[%s927 + $0x50] sm:$0xff]
      %v939 = vld [vmem:[%s927 + $0x58] sm:$0xff]
      %v940 = vld [vmem:[%s927 + $0x60] sm:$0xff]
      %v941 = vld [vmem:[%s927 + $0x68] sm:$0xff]
      %v942 = vld [vmem:[%s927 + $0x70] sm:$0xff]
      %v943 = vld [vmem:[%s927 + $0x78] sm:$0xff]
      %s944 = scalar_lea.vmem %s4, 1
      %v945 = vld [vmem:[%s944] sm:$0x1]
      %v947 = vperm.slane %v945, 0
      %949 = vmatpush.msra.mxu0 %v943
      %950 = vmatpush.msra.mxu0 %v942
      %951 = vmatpush.msra.mxu0 %v941
      %952 = vmatpush.msra.mxu0 %v940
      %953 = vmatpush.msra.mxu0 %v939
      %954 = vmatpush.msra.mxu0 %v938
      %955 = vmatpush.msra.mxu0 %v937
      %956 = vmatpush.msra.mxu0 %v936
      %957 = vmatpush.msra.mxu0 %v935
      %958 = vmatpush.msra.mxu0 %v934
      %959 = vmatpush.msra.mxu0 %v933
      %960 = vmatpush.msra.mxu0 %v932
      %961 = vmatpush.msra.mxu0 %v931
      %962 = vmatpush.msra.mxu0 %v930
      %963 = vmatpush.msra.mxu0 %v929
      %964 = vmatpush.msra.mxu0 %v928
      %965 = vmatmul.f32.gmra.mxu0 %v368
      %v966 = vpop.f32.mrf.mxu0
      %v967 = vadd.f32 %v947, %v966
      %968 = vmatmul.f32.gmra.mxu0 %v369
      %v969 = vpop.f32.mrf.mxu0
      %v970 = vadd.f32 %v947, %v969
      %971 = vmatmul.f32.gmra.mxu0 %v370
      %v972 = vpop.f32.mrf.mxu0
      %v973 = vadd.f32 %v947, %v972
      %974 = vmatmul.f32.gmra.mxu0 %v371
      %v975 = vpop.f32.mrf.mxu0
      %v976 = vadd.f32 %v947, %v975
      %977 = vmatmul.f32.gmra.mxu0 %v372
      %v978 = vpop.f32.mrf.mxu0
      %v979 = vadd.f32 %v947, %v978
      %980 = vmatmul.f32.gmra.mxu0 %v373
      %v981 = vpop.f32.mrf.mxu0
      %v982 = vadd.f32 %v947, %v981
      %983 = vmatmul.f32.gmra.mxu0 %v374
      %v984 = vpop.f32.mrf.mxu0
      %v985 = vadd.f32 %v947, %v984
      %986 = vmatmul.f32.gmra.mxu0 %v375
      %v987 = vpop.f32.mrf.mxu0
      %v988 = vadd.f32 %v947, %v987
      %989 = vdwg.mxu0
      %s990 = scalar_lea.vmem %s2, 128
      %v991 = vld [vmem:[%s990] sm:$0xff]
      %v992 = vld [vmem:[%s990 + $0x8] sm:$0xff]
      %v993 = vld [vmem:[%s990 + $0x10] sm:$0xff]
      %v994 = vld [vmem:[%s990 + $0x18] sm:$0xff]
      %v995 = vld [vmem:[%s990 + $0x20] sm:$0xff]
      %v996 = vld [vmem:[%s990 + $0x28] sm:$0xff]
      %v997 = vld [vmem:[%s990 + $0x30] sm:$0xff]
      %v998 = vld [vmem:[%s990 + $0x38] sm:$0xff]
      %v999 = vld [vmem:[%s990 + $0x40] sm:$0xff]
      %v1000 = vld [vmem:[%s990 + $0x48] sm:$0xff]
      %v1001 = vld [vmem:[%s990 + $0x50] sm:$0xff]
      %v1002 = vld [vmem:[%s990 + $0x58] sm:$0xff]
      %v1003 = vld [vmem:[%s990 + $0x60] sm:$0xff]
      %v1004 = vld [vmem:[%s990 + $0x68] sm:$0xff]
      %v1005 = vld [vmem:[%s990 + $0x70] sm:$0xff]
      %v1006 = vld [vmem:[%s990 + $0x78] sm:$0xff]
      %s1007 = scalar_lea.vmem %s5, 1
      %v1008 = vld [vmem:[%s1007] sm:$0x1]
      %v1010 = vperm.slane %v1008, 0
      %1012 = vmatpush.msra.mxu0 %v1006
      %1013 = vmatpush.msra.mxu0 %v1005
      %1014 = vmatpush.msra.mxu0 %v1004
      %1015 = vmatpush.msra.mxu0 %v1003
      %1016 = vmatpush.msra.mxu0 %v1002
      %1017 = vmatpush.msra.mxu0 %v1001
      %1018 = vmatpush.msra.mxu0 %v1000
      %1019 = vmatpush.msra.mxu0 %v999
      %1020 = vmatpush.msra.mxu0 %v998
      %1021 = vmatpush.msra.mxu0 %v997
      %1022 = vmatpush.msra.mxu0 %v996
      %1023 = vmatpush.msra.mxu0 %v995
      %1024 = vmatpush.msra.mxu0 %v994
      %1025 = vmatpush.msra.mxu0 %v993
      %1026 = vmatpush.msra.mxu0 %v992
      %1027 = vmatpush.msra.mxu0 %v991
      %1028 = vmatmul.f32.gmra.mxu0 %v368
      %v1029 = vpop.f32.mrf.mxu0
      %v1030 = vadd.f32 %v1010, %v1029
      %1031 = vmatmul.f32.gmra.mxu0 %v369
      %v1032 = vpop.f32.mrf.mxu0
      %v1033 = vadd.f32 %v1010, %v1032
      %1034 = vmatmul.f32.gmra.mxu0 %v370
      %v1035 = vpop.f32.mrf.mxu0
      %v1036 = vadd.f32 %v1010, %v1035
      %1037 = vmatmul.f32.gmra.mxu0 %v371
      %v1038 = vpop.f32.mrf.mxu0
      %v1039 = vadd.f32 %v1010, %v1038
      %1040 = vmatmul.f32.gmra.mxu0 %v372
      %v1041 = vpop.f32.mrf.mxu0
      %v1042 = vadd.f32 %v1010, %v1041
      %1043 = vmatmul.f32.gmra.mxu0 %v373
      %v1044 = vpop.f32.mrf.mxu0
      %v1045 = vadd.f32 %v1010, %v1044
      %1046 = vmatmul.f32.gmra.mxu0 %v374
      %v1047 = vpop.f32.mrf.mxu0
      %v1048 = vadd.f32 %v1010, %v1047
      %1049 = vmatmul.f32.gmra.mxu0 %v375
      %v1050 = vpop.f32.mrf.mxu0
      %v1051 = vadd.f32 %v1010, %v1050
      %1052 = vdwg.mxu0
      %s1053 = scalar_lea.vmem %s3, 128
      %v1054 = vld [vmem:[%s1053] sm:$0xff]
      %v1055 = vld [vmem:[%s1053 + $0x8] sm:$0xff]
      %v1056 = vld [vmem:[%s1053 + $0x10] sm:$0xff]
      %v1057 = vld [vmem:[%s1053 + $0x18] sm:$0xff]
      %v1058 = vld [vmem:[%s1053 + $0x20] sm:$0xff]
      %v1059 = vld [vmem:[%s1053 + $0x28] sm:$0xff]
      %v1060 = vld [vmem:[%s1053 + $0x30] sm:$0xff]
      %v1061 = vld [vmem:[%s1053 + $0x38] sm:$0xff]
      %v1062 = vld [vmem:[%s1053 + $0x40] sm:$0xff]
      %v1063 = vld [vmem:[%s1053 + $0x48] sm:$0xff]
      %v1064 = vld [vmem:[%s1053 + $0x50] sm:$0xff]
      %v1065 = vld [vmem:[%s1053 + $0x58] sm:$0xff]
      %v1066 = vld [vmem:[%s1053 + $0x60] sm:$0xff]
      %v1067 = vld [vmem:[%s1053 + $0x68] sm:$0xff]
      %v1068 = vld [vmem:[%s1053 + $0x70] sm:$0xff]
      %v1069 = vld [vmem:[%s1053 + $0x78] sm:$0xff]
      %s1070 = scalar_lea.vmem %s6, 1
      %v1071 = vld [vmem:[%s1070] sm:$0x1]
      %v1073 = vperm.slane %v1071, 0
      %1075 = vmatpush.msra.mxu0 %v1069
      %1076 = vmatpush.msra.mxu0 %v1068
      %1077 = vmatpush.msra.mxu0 %v1067
      %1078 = vmatpush.msra.mxu0 %v1066
      %1079 = vmatpush.msra.mxu0 %v1065
      %1080 = vmatpush.msra.mxu0 %v1064
      %1081 = vmatpush.msra.mxu0 %v1063
      %1082 = vmatpush.msra.mxu0 %v1062
      %1083 = vmatpush.msra.mxu0 %v1061
      %1084 = vmatpush.msra.mxu0 %v1060
      %1085 = vmatpush.msra.mxu0 %v1059
      %1086 = vmatpush.msra.mxu0 %v1058
      %1087 = vmatpush.msra.mxu0 %v1057
      %1088 = vmatpush.msra.mxu0 %v1056
      %1089 = vmatpush.msra.mxu0 %v1055
      %1090 = vmatpush.msra.mxu0 %v1054
      %1091 = vmatmul.f32.gmra.mxu0 %v368
      %v1092 = vpop.f32.mrf.mxu0
      %v1093 = vadd.f32 %v1073, %v1092
      %1094 = vmatmul.f32.gmra.mxu0 %v369
      %v1095 = vpop.f32.mrf.mxu0
      %v1096 = vadd.f32 %v1073, %v1095
      %1097 = vmatmul.f32.gmra.mxu0 %v370
      %v1098 = vpop.f32.mrf.mxu0
      %v1099 = vadd.f32 %v1073, %v1098
      %1100 = vmatmul.f32.gmra.mxu0 %v371
      %v1101 = vpop.f32.mrf.mxu0
      %v1102 = vadd.f32 %v1073, %v1101
      %1103 = vmatmul.f32.gmra.mxu0 %v372
      %v1104 = vpop.f32.mrf.mxu0
      %v1105 = vadd.f32 %v1073, %v1104
      %1106 = vmatmul.f32.gmra.mxu0 %v373
      %v1107 = vpop.f32.mrf.mxu0
      %v1108 = vadd.f32 %v1073, %v1107
      %1109 = vmatmul.f32.gmra.mxu0 %v374
      %v1110 = vpop.f32.mrf.mxu0
      %v1111 = vadd.f32 %v1073, %v1110
      %1112 = vmatmul.f32.gmra.mxu0 %v375
      %v1113 = vpop.f32.mrf.mxu0
      %v1114 = vadd.f32 %v1073, %v1113
      %1115 = vdwg.mxu0
      %v1116 = vmul.f32 %v967, 0.17677669
      %v1117 = vmul.f32 %v970, 0.17677669
      %v1118 = vmul.f32 %v973, 0.17677669
      %v1119 = vmul.f32 %v976, 0.17677669
      %v1120 = vmul.f32 %v979, 0.17677669
      %v1121 = vmul.f32 %v982, 0.17677669
      %v1122 = vmul.f32 %v985, 0.17677669
      %v1123 = vmul.f32 %v988, 0.17677669
      %s1124 = scalar_lea.vmem %s7, 64
      %v1125 = vld [vmem:[%s1124] sm:$0xff]
      %v1126 = vld [vmem:[%s1124 + $0x8] sm:$0xff]
      %v1127 = vld [vmem:[%s1124 + $0x10] sm:$0xff]
      %v1128 = vld [vmem:[%s1124 + $0x18] sm:$0xff]
      %v1129 = vld [vmem:[%s1124 + $0x20] sm:$0xff]
      %v1130 = vld [vmem:[%s1124 + $0x28] sm:$0xff]
      %v1131 = vld [vmem:[%s1124 + $0x30] sm:$0xff]
      %v1132 = vld [vmem:[%s1124 + $0x38] sm:$0xff]
      %v1134 = vsel %vm575, %v1116, 0
      %v1137 = vsel %vm575, %v1117, 0
      %v1140 = vsel %vm575, %v1118, 0
      %v1143 = vsel %vm575, %v1119, 0
      %v1146 = vsel %vm575, %v1120, 0
      %v1149 = vsel %vm575, %v1121, 0
      %v1152 = vsel %vm575, %v1122, 0
      %v1155 = vsel %vm575, %v1123, 0
      %v1158 = vsel %vm575, %v1030, 0
      %v1161 = vsel %vm575, %v1033, 0
      %v1164 = vsel %vm575, %v1036, 0
      %v1167 = vsel %vm575, %v1039, 0
      %v1170 = vsel %vm575, %v1042, 0
      %v1173 = vsel %vm575, %v1045, 0
      %v1176 = vsel %vm575, %v1048, 0
      %v1179 = vsel %vm575, %v1051, 0
      %1181 = vmatpush.xpose.msra.mxu0 0.0
      %1182 = vmatpush.xpose.msra.mxu0 0.0
      %1183 = vmatpush.xpose.msra.mxu0 0.0
      %1184 = vmatpush.xpose.msra.mxu0 0.0
      %1185 = vmatpush.xpose.msra.mxu0 0.0
      %1186 = vmatpush.xpose.msra.mxu0 0.0
      %1187 = vmatpush.xpose.msra.mxu0 0.0
      %1188 = vmatpush.xpose.msra.mxu0 0.0
      %1189 = vmatpush.xpose.msra.mxu0 %v1179
      %1190 = vmatpush.xpose.msra.mxu0 %v1176
      %1191 = vmatpush.xpose.msra.mxu0 %v1173
      %1192 = vmatpush.xpose.msra.mxu0 %v1170
      %1193 = vmatpush.xpose.msra.mxu0 %v1167
      %1194 = vmatpush.xpose.msra.mxu0 %v1164
      %1195 = vmatpush.xpose.msra.mxu0 %v1161
      %1196 = vmatpush.xpose.msra.mxu0 %v1158
      %1197 = vmatmul.f32.gmra.mxu0 %v1134
      %v1198 = vpop.f32.mrf.mxu0
      %v1199 = vadd.f32 %v1125, %v1198
      %1200 = vmatmul.f32.gmra.mxu0 %v1137
      %v1201 = vpop.f32.mrf.mxu0
      %v1202 = vadd.f32 %v1126, %v1201
      %1203 = vmatmul.f32.gmra.mxu0 %v1140
      %v1204 = vpop.f32.mrf.mxu0
      %v1205 = vadd.f32 %v1127, %v1204
      %1206 = vmatmul.f32.gmra.mxu0 %v1143
      %v1207 = vpop.f32.mrf.mxu0
      %v1208 = vadd.f32 %v1128, %v1207
      %1209 = vmatmul.f32.gmra.mxu0 %v1146
      %v1210 = vpop.f32.mrf.mxu0
      %v1211 = vadd.f32 %v1129, %v1210
      %1212 = vmatmul.f32.gmra.mxu0 %v1149
      %v1213 = vpop.f32.mrf.mxu0
      %v1214 = vadd.f32 %v1130, %v1213
      %1215 = vmatmul.f32.gmra.mxu0 %v1152
      %v1216 = vpop.f32.mrf.mxu0
      %v1217 = vadd.f32 %v1131, %v1216
      %1218 = vmatmul.f32.gmra.mxu0 %v1155
      %v1219 = vpop.f32.mrf.mxu0
      %v1220 = vadd.f32 %v1132, %v1219
      %1221 = vdwg.mxu0
      %v1222 = vsel %vm665, %v1199, -inf
      %1223 = vmax.xlane.f32.xlu0 %v1222
      %v1224 = vpop.xlane.xlu0 %1223
      %v1225 = vsel %vm665, %v1202, -inf
      %1226 = vmax.xlane.f32.xlu0 %v1225
      %v1227 = vpop.xlane.xlu0 %1226
      %v1228 = vsel %vm665, %v1205, -inf
      %1229 = vmax.xlane.f32.xlu0 %v1228
      %v1230 = vpop.xlane.xlu0 %1229
      %v1231 = vsel %vm665, %v1208, -inf
      %1232 = vmax.xlane.f32.xlu0 %v1231
      %v1233 = vpop.xlane.xlu0 %1232
      %v1234 = vsel %vm665, %v1211, -inf
      %1235 = vmax.xlane.f32.xlu0 %v1234
      %v1236 = vpop.xlane.xlu0 %1235
      %v1237 = vsel %vm665, %v1214, -inf
      %1238 = vmax.xlane.f32.xlu0 %v1237
      %v1239 = vpop.xlane.xlu0 %1238
      %v1240 = vsel %vm665, %v1217, -inf
      %1241 = vmax.xlane.f32.xlu0 %v1240
      %v1242 = vpop.xlane.xlu0 %1241
      %v1243 = vsel %vm665, %v1220, -inf
      %1244 = vmax.xlane.f32.xlu0 %v1243
      %v1245 = vpop.xlane.xlu0 %1244
      %v1246 = vsub.f32 %v1199, %v1224
      %v1247 = vsub.f32 %v1202, %v1227
      %v1248 = vsub.f32 %v1205, %v1230
      %v1249 = vsub.f32 %v1208, %v1233
      %v1250 = vsub.f32 %v1211, %v1236
      %v1251 = vsub.f32 %v1214, %v1239
      %v1252 = vsub.f32 %v1217, %v1242
      %v1253 = vsub.f32 %v1220, %v1245
      %v1254 = vmul.f32 %v1246, 1.442695
      %v1255 = vpow.pop %v1254
      %v1256 = vmul.f32 %v1247, 1.442695
      %v1257 = vpow.pop %v1256
      %v1258 = vmul.f32 %v1248, 1.442695
      %v1259 = vpow.pop %v1258
      %v1260 = vmul.f32 %v1249, 1.442695
      %v1261 = vpow.pop %v1260
      %v1262 = vmul.f32 %v1250, 1.442695
      %v1263 = vpow.pop %v1262
      %v1264 = vmul.f32 %v1251, 1.442695
      %v1265 = vpow.pop %v1264
      %v1266 = vmul.f32 %v1252, 1.442695
      %v1267 = vpow.pop %v1266
      %v1268 = vmul.f32 %v1253, 1.442695
      %v1269 = vpow.pop %v1268
      %v1270 = vsel %vm665, %v1255, 0.0
      %1271 = vadd.xlane.f32.xlu0 %v1270
      %v1272 = vpop.xlane.xlu0 %1271
      %v1273 = vsel %vm665, %v1257, 0.0
      %1274 = vadd.xlane.f32.xlu0 %v1273
      %v1275 = vpop.xlane.xlu0 %1274
      %v1276 = vsel %vm665, %v1259, 0.0
      %1277 = vadd.xlane.f32.xlu0 %v1276
      %v1278 = vpop.xlane.xlu0 %1277
      %v1279 = vsel %vm665, %v1261, 0.0
      %1280 = vadd.xlane.f32.xlu0 %v1279
      %v1281 = vpop.xlane.xlu0 %1280
      %v1282 = vsel %vm665, %v1263, 0.0
      %1283 = vadd.xlane.f32.xlu0 %v1282
      %v1284 = vpop.xlane.xlu0 %1283
      %v1285 = vsel %vm665, %v1265, 0.0
      %1286 = vadd.xlane.f32.xlu0 %v1285
      %v1287 = vpop.xlane.xlu0 %1286
      %v1288 = vsel %vm665, %v1267, 0.0
      %1289 = vadd.xlane.f32.xlu0 %v1288
      %v1290 = vpop.xlane.xlu0 %1289
      %v1291 = vsel %vm665, %v1269, 0.0
      %1292 = vadd.xlane.f32.xlu0 %v1291
      %v1293 = vpop.xlane.xlu0 %1292
      %v1294 = vrcp.pop %v1272
      %v1295 = vmul.f32 %v1272, %v1294
      %v1296 = vsub.f32 1.0, %v1295
      %v1297 = vmul.f32 %v1294, %v1296
      %v1298 = vadd.f32 %v1294, %v1297
      %vm1299 = vweird.f32 %v1272
      %vm1300 = vweird.f32 %v1294
      %vm1301 = vmor %vm1299, %vm1300
      %v1302 = vsel %vm1301, %v1294, %v1298
      %v1303 = vand.u32 2147483647, %v1272
      %vm1304 = vcmp.eq.f32.partialorder %v1303, 8.507059e+37
      %v1305 = vand.u32 %v1272, 2147483648
      %v1306 = vor.u32 1.1754944e-38, %v1305
      %v1307 = vsel %vm1304, %v1306, %v1302
      %v1308 = vmul.f32 %v1255, %v1307
      %v1309 = vrcp.pop %v1275
      %v1310 = vmul.f32 %v1275, %v1309
      %v1311 = vsub.f32 1.0, %v1310
      %v1312 = vmul.f32 %v1309, %v1311
      %v1313 = vadd.f32 %v1309, %v1312
      %vm1314 = vweird.f32 %v1275
      %vm1315 = vweird.f32 %v1309
      %vm1316 = vmor %vm1314, %vm1315
      %v1317 = vsel %vm1316, %v1309, %v1313
      %v1318 = vand.u32 2147483647, %v1275
      %vm1319 = vcmp.eq.f32.partialorder %v1318, 8.507059e+37
      %v1320 = vand.u32 %v1275, 2147483648
      %v1321 = vor.u32 1.1754944e-38, %v1320
      %v1322 = vsel %vm1319, %v1321, %v1317
      %v1323 = vmul.f32 %v1257, %v1322
      %v1324 = vrcp.pop %v1278
      %v1325 = vmul.f32 %v1278, %v1324
      %v1326 = vsub.f32 1.0, %v1325
      %v1327 = vmul.f32 %v1324, %v1326
      %v1328 = vadd.f32 %v1324, %v1327
      %vm1329 = vweird.f32 %v1278
      %vm1330 = vweird.f32 %v1324
      %vm1331 = vmor %vm1329, %vm1330
      %v1332 = vsel %vm1331, %v1324, %v1328
      %v1333 = vand.u32 2147483647, %v1278
      %vm1334 = vcmp.eq.f32.partialorder %v1333, 8.507059e+37
      %v1335 = vand.u32 %v1278, 2147483648
      %v1336 = vor.u32 1.1754944e-38, %v1335
      %v1337 = vsel %vm1334, %v1336, %v1332
      %v1338 = vmul.f32 %v1259, %v1337
      %v1339 = vrcp.pop %v1281
      %v1340 = vmul.f32 %v1281, %v1339
      %v1341 = vsub.f32 1.0, %v1340
      %v1342 = vmul.f32 %v1339, %v1341
      %v1343 = vadd.f32 %v1339, %v1342
      %vm1344 = vweird.f32 %v1281
      %vm1345 = vweird.f32 %v1339
      %vm1346 = vmor %vm1344, %vm1345
      %v1347 = vsel %vm1346, %v1339, %v1343
      %v1348 = vand.u32 2147483647, %v1281
      %vm1349 = vcmp.eq.f32.partialorder %v1348, 8.507059e+37
      %v1350 = vand.u32 %v1281, 2147483648
      %v1351 = vor.u32 1.1754944e-38, %v1350
      %v1352 = vsel %vm1349, %v1351, %v1347
      %v1353 = vmul.f32 %v1261, %v1352
      %v1354 = vrcp.pop %v1284
      %v1355 = vmul.f32 %v1284, %v1354
      %v1356 = vsub.f32 1.0, %v1355
      %v1357 = vmul.f32 %v1354, %v1356
      %v1358 = vadd.f32 %v1354, %v1357
      %vm1359 = vweird.f32 %v1284
      %vm1360 = vweird.f32 %v1354
      %vm1361 = vmor %vm1359, %vm1360
      %v1362 = vsel %vm1361, %v1354, %v1358
      %v1363 = vand.u32 2147483647, %v1284
      %vm1364 = vcmp.eq.f32.partialorder %v1363, 8.507059e+37
      %v1365 = vand.u32 %v1284, 2147483648
      %v1366 = vor.u32 1.1754944e-38, %v1365
      %v1367 = vsel %vm1364, %v1366, %v1362
      %v1368 = vmul.f32 %v1263, %v1367
      %v1369 = vrcp.pop %v1287
      %v1370 = vmul.f32 %v1287, %v1369
      %v1371 = vsub.f32 1.0, %v1370
      %v1372 = vmul.f32 %v1369, %v1371
      %v1373 = vadd.f32 %v1369, %v1372
      %vm1374 = vweird.f32 %v1287
      %vm1375 = vweird.f32 %v1369
      %vm1376 = vmor %vm1374, %vm1375
      %v1377 = vsel %vm1376, %v1369, %v1373
      %v1378 = vand.u32 2147483647, %v1287
      %vm1379 = vcmp.eq.f32.partialorder %v1378, 8.507059e+37
      %v1380 = vand.u32 %v1287, 2147483648
      %v1381 = vor.u32 1.1754944e-38, %v1380
      %v1382 = vsel %vm1379, %v1381, %v1377
      %v1383 = vmul.f32 %v1265, %v1382
      %v1384 = vrcp.pop %v1290
      %v1385 = vmul.f32 %v1290, %v1384
      %v1386 = vsub.f32 1.0, %v1385
      %v1387 = vmul.f32 %v1384, %v1386
      %v1388 = vadd.f32 %v1384, %v1387
      %vm1389 = vweird.f32 %v1290
      %vm1390 = vweird.f32 %v1384
      %vm1391 = vmor %vm1389, %vm1390
      %v1392 = vsel %vm1391, %v1384, %v1388
      %v1393 = vand.u32 2147483647, %v1290
      %vm1394 = vcmp.eq.f32.partialorder %v1393, 8.507059e+37
      %v1395 = vand.u32 %v1290, 2147483648
      %v1396 = vor.u32 1.1754944e-38, %v1395
      %v1397 = vsel %vm1394, %v1396, %v1392
      %v1398 = vmul.f32 %v1267, %v1397
      %v1399 = vrcp.pop %v1293
      %v1400 = vmul.f32 %v1293, %v1399
      %v1401 = vsub.f32 1.0, %v1400
      %v1402 = vmul.f32 %v1399, %v1401
      %v1403 = vadd.f32 %v1399, %v1402
      %vm1404 = vweird.f32 %v1293
      %vm1405 = vweird.f32 %v1399
      %vm1406 = vmor %vm1404, %vm1405
      %v1407 = vsel %vm1406, %v1399, %v1403
      %v1408 = vand.u32 2147483647, %v1293
      %vm1409 = vcmp.eq.f32.partialorder %v1408, 8.507059e+37
      %v1410 = vand.u32 %v1293, 2147483648
      %v1411 = vor.u32 1.1754944e-38, %v1410
      %v1412 = vsel %vm1409, %v1411, %v1407
      %v1413 = vmul.f32 %v1269, %v1412
      %v1415 = vsel %vm665, %v1308, 0
      %v1418 = vsel %vm665, %v1323, 0
      %v1421 = vsel %vm665, %v1338, 0
      %v1424 = vsel %vm665, %v1353, 0
      %v1427 = vsel %vm665, %v1368, 0
      %v1430 = vsel %vm665, %v1383, 0
      %v1433 = vsel %vm665, %v1398, 0
      %v1436 = vsel %vm665, %v1413, 0
      %1438 = vmatpush.msra.mxu0 0.0
      %1439 = vmatpush.msra.mxu0 0.0
      %1440 = vmatpush.msra.mxu0 0.0
      %1441 = vmatpush.msra.mxu0 0.0
      %1442 = vmatpush.msra.mxu0 0.0
      %1443 = vmatpush.msra.mxu0 0.0
      %1444 = vmatpush.msra.mxu0 0.0
      %1445 = vmatpush.msra.mxu0 0.0
      %1446 = vmatpush.msra.mxu0 %v1114
      %1447 = vmatpush.msra.mxu0 %v1111
      %1448 = vmatpush.msra.mxu0 %v1108
      %1449 = vmatpush.msra.mxu0 %v1105
      %1450 = vmatpush.msra.mxu0 %v1102
      %1451 = vmatpush.msra.mxu0 %v1099
      %1452 = vmatpush.msra.mxu0 %v1096
      %1453 = vmatpush.msra.mxu0 %v1093
      %1454 = vmatmul.f32.gmra.mxu0 %v1415
      %v1455 = vpop.f32.mrf.mxu0
      %v1456 = vadd.f32 0.0, %v1455
      %1457 = vmatmul.f32.gmra.mxu0 %v1418
      %v1458 = vpop.f32.mrf.mxu0
      %v1459 = vadd.f32 0.0, %v1458
      %1460 = vmatmul.f32.gmra.mxu0 %v1421
      %v1461 = vpop.f32.mrf.mxu0
      %v1462 = vadd.f32 0.0, %v1461
      %1463 = vmatmul.f32.gmra.mxu0 %v1424
      %v1464 = vpop.f32.mrf.mxu0
      %v1465 = vadd.f32 0.0, %v1464
      %1466 = vmatmul.f32.gmra.mxu0 %v1427
      %v1467 = vpop.f32.mrf.mxu0
      %v1468 = vadd.f32 0.0, %v1467
      %1469 = vmatmul.f32.gmra.mxu0 %v1430
      %v1470 = vpop.f32.mrf.mxu0
      %v1471 = vadd.f32 0.0, %v1470
      %1472 = vmatmul.f32.gmra.mxu0 %v1433
      %v1473 = vpop.f32.mrf.mxu0
      %v1474 = vadd.f32 0.0, %v1473
      %1475 = vmatmul.f32.gmra.mxu0 %v1436
      %v1476 = vpop.f32.mrf.mxu0
      %v1477 = vadd.f32 0.0, %v1476
      %1478 = vdwg.mxu0
      %s1479 = scalar_lea.vmem %s8, 32
      %v1480 = vld [vmem:[%s1479] sm:$0xff]
      %v1481 = vld [vmem:[%s1479 + $0x8] sm:$0xff]
      %v1482 = vld [vmem:[%s1479 + $0x10] sm:$0xff]
      %v1483 = vld [vmem:[%s1479 + $0x18] sm:$0xff]
      %v1485 = vsel %vm575, %v1456, 0
      %v1488 = vsel %vm575, %v1459, 0
      %v1491 = vsel %vm575, %v1462, 0
      %v1494 = vsel %vm575, %v1465, 0
      %v1497 = vsel %vm575, %v1468, 0
      %v1500 = vsel %vm575, %v1471, 0
      %v1503 = vsel %vm575, %v1474, 0
      %v1506 = vsel %vm575, %v1477, 0
      %1508 = vmatpush.msra.mxu0 0.0
      %1509 = vmatpush.msra.mxu0 0.0
      %1510 = vmatpush.msra.mxu0 0.0
      %1511 = vmatpush.msra.mxu0 0.0
      %1512 = vmatpush.msra.mxu0 0.0
      %1513 = vmatpush.msra.mxu0 0.0
      %1514 = vmatpush.msra.mxu0 0.0
      %1515 = vmatpush.msra.mxu0 0.0
      %1516 = vmatpush.msra.mxu0 0.0
      %1517 = vmatpush.msra.mxu0 0.0
      %1518 = vmatpush.msra.mxu0 0.0
      %1519 = vmatpush.msra.mxu0 0.0
      %1520 = vmatpush.msra.mxu0 %v1483
      %1521 = vmatpush.msra.mxu0 %v1482
      %1522 = vmatpush.msra.mxu0 %v1481
      %1523 = vmatpush.msra.mxu0 %v1480
      %1524 = vmatmul.f32.gmra.mxu0 %v1485
      %v1525 = vpop.f32.mrf.mxu0
      %v1526 = vadd.f32 0.0, %v1525
      %1527 = vmatmul.f32.gmra.mxu0 %v1488
      %v1528 = vpop.f32.mrf.mxu0
      %v1529 = vadd.f32 0.0, %v1528
      %1530 = vmatmul.f32.gmra.mxu0 %v1491
      %v1531 = vpop.f32.mrf.mxu0
      %v1532 = vadd.f32 0.0, %v1531
      %1533 = vmatmul.f32.gmra.mxu0 %v1494
      %v1534 = vpop.f32.mrf.mxu0
      %v1535 = vadd.f32 0.0, %v1534
      %1536 = vmatmul.f32.gmra.mxu0 %v1497
      %v1537 = vpop.f32.mrf.mxu0
      %v1538 = vadd.f32 0.0, %v1537
      %1539 = vmatmul.f32.gmra.mxu0 %v1500
      %v1540 = vpop.f32.mrf.mxu0
      %v1541 = vadd.f32 0.0, %v1540
      %1542 = vmatmul.f32.gmra.mxu0 %v1503
      %v1543 = vpop.f32.mrf.mxu0
      %v1544 = vadd.f32 0.0, %v1543
      %1545 = vmatmul.f32.gmra.mxu0 %v1506
      %v1546 = vpop.f32.mrf.mxu0
      %v1547 = vadd.f32 0.0, %v1546
      %1548 = vdwg.mxu0
      %v1550 = vsel %vm575, %v900, 0
      %v1553 = vsel %vm575, %v903, 0
      %v1556 = vsel %vm575, %v906, 0
      %v1559 = vsel %vm575, %v909, 0
      %v1562 = vsel %vm575, %v912, 0
      %v1565 = vsel %vm575, %v915, 0
      %v1568 = vsel %vm575, %v918, 0
      %v1571 = vsel %vm575, %v921, 0
      %1573 = vmatpush.msra.mxu0 0.0
      %1574 = vmatpush.msra.mxu0 0.0
      %1575 = vmatpush.msra.mxu0 0.0
      %1576 = vmatpush.msra.mxu0 0.0
      %1577 = vmatpush.msra.mxu0 0.0
      %1578 = vmatpush.msra.mxu0 0.0
      %1579 = vmatpush.msra.mxu0 0.0
      %1580 = vmatpush.msra.mxu0 0.0
      %1581 = vmatpush.msra.mxu0 0.0
      %1582 = vmatpush.msra.mxu0 0.0
      %1583 = vmatpush.msra.mxu0 0.0
      %1584 = vmatpush.msra.mxu0 0.0
      %1585 = vmatpush.msra.mxu0 %v926
      %1586 = vmatpush.msra.mxu0 %v925
      %1587 = vmatpush.msra.mxu0 %v924
      %1588 = vmatpush.msra.mxu0 %v923
      %1589 = vmatmul.f32.gmra.mxu0 %v1550
      %v1590 = vpop.f32.mrf.mxu0
      %v1591 = vadd.f32 %v1526, %v1590
      %1592 = vmatmul.f32.gmra.mxu0 %v1553
      %v1593 = vpop.f32.mrf.mxu0
      %v1594 = vadd.f32 %v1529, %v1593
      %1595 = vmatmul.f32.gmra.mxu0 %v1556
      %v1596 = vpop.f32.mrf.mxu0
      %v1597 = vadd.f32 %v1532, %v1596
      %1598 = vmatmul.f32.gmra.mxu0 %v1559
      %v1599 = vpop.f32.mrf.mxu0
      %v1600 = vadd.f32 %v1535, %v1599
      %1601 = vmatmul.f32.gmra.mxu0 %v1562
      %v1602 = vpop.f32.mrf.mxu0
      %v1603 = vadd.f32 %v1538, %v1602
      %1604 = vmatmul.f32.gmra.mxu0 %v1565
      %v1605 = vpop.f32.mrf.mxu0
      %v1606 = vadd.f32 %v1541, %v1605
      %1607 = vmatmul.f32.gmra.mxu0 %v1568
      %v1608 = vpop.f32.mrf.mxu0
      %v1609 = vadd.f32 %v1544, %v1608
      %1610 = vmatmul.f32.gmra.mxu0 %v1571
      %v1611 = vpop.f32.mrf.mxu0
      %v1612 = vadd.f32 %v1547, %v1611
      %1613 = vdwg.mxu0
      %s1614 = scalar_lea.vmem %s1, 256
      %v1615 = vld [vmem:[%s1614] sm:$0xff]
      %v1616 = vld [vmem:[%s1614 + $0x8] sm:$0xff]
      %v1617 = vld [vmem:[%s1614 + $0x10] sm:$0xff]
      %v1618 = vld [vmem:[%s1614 + $0x18] sm:$0xff]
      %v1619 = vld [vmem:[%s1614 + $0x20] sm:$0xff]
      %v1620 = vld [vmem:[%s1614 + $0x28] sm:$0xff]
      %v1621 = vld [vmem:[%s1614 + $0x30] sm:$0xff]
      %v1622 = vld [vmem:[%s1614 + $0x38] sm:$0xff]
      %v1623 = vld [vmem:[%s1614 + $0x40] sm:$0xff]
      %v1624 = vld [vmem:[%s1614 + $0x48] sm:$0xff]
      %v1625 = vld [vmem:[%s1614 + $0x50] sm:$0xff]
      %v1626 = vld [vmem:[%s1614 + $0x58] sm:$0xff]
      %v1627 = vld [vmem:[%s1614 + $0x60] sm:$0xff]
      %v1628 = vld [vmem:[%s1614 + $0x68] sm:$0xff]
      %v1629 = vld [vmem:[%s1614 + $0x70] sm:$0xff]
      %v1630 = vld [vmem:[%s1614 + $0x78] sm:$0xff]
      %s1631 = scalar_lea.vmem %s4, 2
      %v1632 = vld [vmem:[%s1631] sm:$0x1]
      %v1634 = vperm.slane %v1632, 0
      %1636 = vmatpush.msra.mxu0 %v1630
      %1637 = vmatpush.msra.mxu0 %v1629
      %1638 = vmatpush.msra.mxu0 %v1628
      %1639 = vmatpush.msra.mxu0 %v1627
      %1640 = vmatpush.msra.mxu0 %v1626
      %1641 = vmatpush.msra.mxu0 %v1625
      %1642 = vmatpush.msra.mxu0 %v1624
      %1643 = vmatpush.msra.mxu0 %v1623
      %1644 = vmatpush.msra.mxu0 %v1622
      %1645 = vmatpush.msra.mxu0 %v1621
      %1646 = vmatpush.msra.mxu0 %v1620
      %1647 = vmatpush.msra.mxu0 %v1619
      %1648 = vmatpush.msra.mxu0 %v1618
      %1649 = vmatpush.msra.mxu0 %v1617
      %1650 = vmatpush.msra.mxu0 %v1616
      %1651 = vmatpush.msra.mxu0 %v1615
      %1652 = vmatmul.f32.gmra.mxu0 %v368
      %v1653 = vpop.f32.mrf.mxu0
      %v1654 = vadd.f32 %v1634, %v1653
      %1655 = vmatmul.f32.gmra.mxu0 %v369
      %v1656 = vpop.f32.mrf.mxu0
      %v1657 = vadd.f32 %v1634, %v1656
      %1658 = vmatmul.f32.gmra.mxu0 %v370
      %v1659 = vpop.f32.mrf.mxu0
      %v1660 = vadd.f32 %v1634, %v1659
      %1661 = vmatmul.f32.gmra.mxu0 %v371
      %v1662 = vpop.f32.mrf.mxu0
      %v1663 = vadd.f32 %v1634, %v1662
      %1664 = vmatmul.f32.gmra.mxu0 %v372
      %v1665 = vpop.f32.mrf.mxu0
      %v1666 = vadd.f32 %v1634, %v1665
      %1667 = vmatmul.f32.gmra.mxu0 %v373
      %v1668 = vpop.f32.mrf.mxu0
      %v1669 = vadd.f32 %v1634, %v1668
      %1670 = vmatmul.f32.gmra.mxu0 %v374
      %v1671 = vpop.f32.mrf.mxu0
      %v1672 = vadd.f32 %v1634, %v1671
      %1673 = vmatmul.f32.gmra.mxu0 %v375
      %v1674 = vpop.f32.mrf.mxu0
      %v1675 = vadd.f32 %v1634, %v1674
      %1676 = vdwg.mxu0
      %s1677 = scalar_lea.vmem %s2, 256
      %v1678 = vld [vmem:[%s1677] sm:$0xff]
      %v1679 = vld [vmem:[%s1677 + $0x8] sm:$0xff]
      %v1680 = vld [vmem:[%s1677 + $0x10] sm:$0xff]
      %v1681 = vld [vmem:[%s1677 + $0x18] sm:$0xff]
      %v1682 = vld [vmem:[%s1677 + $0x20] sm:$0xff]
      %v1683 = vld [vmem:[%s1677 + $0x28] sm:$0xff]
      %v1684 = vld [vmem:[%s1677 + $0x30] sm:$0xff]
      %v1685 = vld [vmem:[%s1677 + $0x38] sm:$0xff]
      %v1686 = vld [vmem:[%s1677 + $0x40] sm:$0xff]
      %v1687 = vld [vmem:[%s1677 + $0x48] sm:$0xff]
      %v1688 = vld [vmem:[%s1677 + $0x50] sm:$0xff]
      %v1689 = vld [vmem:[%s1677 + $0x58] sm:$0xff]
      %v1690 = vld [vmem:[%s1677 + $0x60] sm:$0xff]
      %v1691 = vld [vmem:[%s1677 + $0x68] sm:$0xff]
      %v1692 = vld [vmem:[%s1677 + $0x70] sm:$0xff]
      %v1693 = vld [vmem:[%s1677 + $0x78] sm:$0xff]
      %s1694 = scalar_lea.vmem %s5, 2
      %v1695 = vld [vmem:[%s1694] sm:$0x1]
      %v1697 = vperm.slane %v1695, 0
      %1699 = vmatpush.msra.mxu0 %v1693
      %1700 = vmatpush.msra.mxu0 %v1692
      %1701 = vmatpush.msra.mxu0 %v1691
      %1702 = vmatpush.msra.mxu0 %v1690
      %1703 = vmatpush.msra.mxu0 %v1689
      %1704 = vmatpush.msra.mxu0 %v1688
      %1705 = vmatpush.msra.mxu0 %v1687
      %1706 = vmatpush.msra.mxu0 %v1686
      %1707 = vmatpush.msra.mxu0 %v1685
      %1708 = vmatpush.msra.mxu0 %v1684
      %1709 = vmatpush.msra.mxu0 %v1683
      %1710 = vmatpush.msra.mxu0 %v1682
      %1711 = vmatpush.msra.mxu0 %v1681
      %1712 = vmatpush.msra.mxu0 %v1680
      %1713 = vmatpush.msra.mxu0 %v1679
      %1714 = vmatpush.msra.mxu0 %v1678
      %1715 = vmatmul.f32.gmra.mxu0 %v368
      %v1716 = vpop.f32.mrf.mxu0
      %v1717 = vadd.f32 %v1697, %v1716
      %1718 = vmatmul.f32.gmra.mxu0 %v369
      %v1719 = vpop.f32.mrf.mxu0
      %v1720 = vadd.f32 %v1697, %v1719
      %1721 = vmatmul.f32.gmra.mxu0 %v370
      %v1722 = vpop.f32.mrf.mxu0
      %v1723 = vadd.f32 %v1697, %v1722
      %1724 = vmatmul.f32.gmra.mxu0 %v371
      %v1725 = vpop.f32.mrf.mxu0
      %v1726 = vadd.f32 %v1697, %v1725
      %1727 = vmatmul.f32.gmra.mxu0 %v372
      %v1728 = vpop.f32.mrf.mxu0
      %v1729 = vadd.f32 %v1697, %v1728
      %1730 = vmatmul.f32.gmra.mxu0 %v373
      %v1731 = vpop.f32.mrf.mxu0
      %v1732 = vadd.f32 %v1697, %v1731
      %1733 = vmatmul.f32.gmra.mxu0 %v374
      %v1734 = vpop.f32.mrf.mxu0
      %v1735 = vadd.f32 %v1697, %v1734
      %1736 = vmatmul.f32.gmra.mxu0 %v375
      %v1737 = vpop.f32.mrf.mxu0
      %v1738 = vadd.f32 %v1697, %v1737
      %1739 = vdwg.mxu0
      %s1740 = scalar_lea.vmem %s3, 256
      %v1741 = vld [vmem:[%s1740] sm:$0xff]
      %v1742 = vld [vmem:[%s1740 + $0x8] sm:$0xff]
      %v1743 = vld [vmem:[%s1740 + $0x10] sm:$0xff]
      %v1744 = vld [vmem:[%s1740 + $0x18] sm:$0xff]
      %v1745 = vld [vmem:[%s1740 + $0x20] sm:$0xff]
      %v1746 = vld [vmem:[%s1740 + $0x28] sm:$0xff]
      %v1747 = vld [vmem:[%s1740 + $0x30] sm:$0xff]
      %v1748 = vld [vmem:[%s1740 + $0x38] sm:$0xff]
      %v1749 = vld [vmem:[%s1740 + $0x40] sm:$0xff]
      %v1750 = vld [vmem:[%s1740 + $0x48] sm:$0xff]
      %v1751 = vld [vmem:[%s1740 + $0x50] sm:$0xff]
      %v1752 = vld [vmem:[%s1740 + $0x58] sm:$0xff]
      %v1753 = vld [vmem:[%s1740 + $0x60] sm:$0xff]
      %v1754 = vld [vmem:[%s1740 + $0x68] sm:$0xff]
      %v1755 = vld [vmem:[%s1740 + $0x70] sm:$0xff]
      %v1756 = vld [vmem:[%s1740 + $0x78] sm:$0xff]
      %s1757 = scalar_lea.vmem %s6, 2
      %v1758 = vld [vmem:[%s1757] sm:$0x1]
      %v1760 = vperm.slane %v1758, 0
      %1762 = vmatpush.msra.mxu0 %v1756
      %1763 = vmatpush.msra.mxu0 %v1755
      %1764 = vmatpush.msra.mxu0 %v1754
      %1765 = vmatpush.msra.mxu0 %v1753
      %1766 = vmatpush.msra.mxu0 %v1752
      %1767 = vmatpush.msra.mxu0 %v1751
      %1768 = vmatpush.msra.mxu0 %v1750
      %1769 = vmatpush.msra.mxu0 %v1749
      %1770 = vmatpush.msra.mxu0 %v1748
      %1771 = vmatpush.msra.mxu0 %v1747
      %1772 = vmatpush.msra.mxu0 %v1746
      %1773 = vmatpush.msra.mxu0 %v1745
      %1774 = vmatpush.msra.mxu0 %v1744
      %1775 = vmatpush.msra.mxu0 %v1743
      %1776 = vmatpush.msra.mxu0 %v1742
      %1777 = vmatpush.msra.mxu0 %v1741
      %1778 = vmatmul.f32.gmra.mxu0 %v368
      %v1779 = vpop.f32.mrf.mxu0
      %v1780 = vadd.f32 %v1760, %v1779
      %1781 = vmatmul.f32.gmra.mxu0 %v369
      %v1782 = vpop.f32.mrf.mxu0
      %v1783 = vadd.f32 %v1760, %v1782
      %1784 = vmatmul.f32.gmra.mxu0 %v370
      %v1785 = vpop.f32.mrf.mxu0
      %v1786 = vadd.f32 %v1760, %v1785
      %1787 = vmatmul.f32.gmra.mxu0 %v371
      %v1788 = vpop.f32.mrf.mxu0
      %v1789 = vadd.f32 %v1760, %v1788
      %1790 = vmatmul.f32.gmra.mxu0 %v372
      %v1791 = vpop.f32.mrf.mxu0
      %v1792 = vadd.f32 %v1760, %v1791
      %1793 = vmatmul.f32.gmra.mxu0 %v373
      %v1794 = vpop.f32.mrf.mxu0
      %v1795 = vadd.f32 %v1760, %v1794
      %1796 = vmatmul.f32.gmra.mxu0 %v374
      %v1797 = vpop.f32.mrf.mxu0
      %v1798 = vadd.f32 %v1760, %v1797
      %1799 = vmatmul.f32.gmra.mxu0 %v375
      %v1800 = vpop.f32.mrf.mxu0
      %v1801 = vadd.f32 %v1760, %v1800
      %1802 = vdwg.mxu0
      %v1803 = vmul.f32 %v1654, 0.17677669
      %v1804 = vmul.f32 %v1657, 0.17677669
      %v1805 = vmul.f32 %v1660, 0.17677669
      %v1806 = vmul.f32 %v1663, 0.17677669
      %v1807 = vmul.f32 %v1666, 0.17677669
      %v1808 = vmul.f32 %v1669, 0.17677669
      %v1809 = vmul.f32 %v1672, 0.17677669
      %v1810 = vmul.f32 %v1675, 0.17677669
      %s1811 = scalar_lea.vmem %s7, 128
      %v1812 = vld [vmem:[%s1811] sm:$0xff]
      %v1813 = vld [vmem:[%s1811 + $0x8] sm:$0xff]
      %v1814 = vld [vmem:[%s1811 + $0x10] sm:$0xff]
      %v1815 = vld [vmem:[%s1811 + $0x18] sm:$0xff]
      %v1816 = vld [vmem:[%s1811 + $0x20] sm:$0xff]
      %v1817 = vld [vmem:[%s1811 + $0x28] sm:$0xff]
      %v1818 = vld [vmem:[%s1811 + $0x30] sm:$0xff]
      %v1819 = vld [vmem:[%s1811 + $0x38] sm:$0xff]
      %v1821 = vsel %vm575, %v1803, 0
      %v1824 = vsel %vm575, %v1804, 0
      %v1827 = vsel %vm575, %v1805, 0
      %v1830 = vsel %vm575, %v1806, 0
      %v1833 = vsel %vm575, %v1807, 0
      %v1836 = vsel %vm575, %v1808, 0
      %v1839 = vsel %vm575, %v1809, 0
      %v1842 = vsel %vm575, %v1810, 0
      %v1845 = vsel %vm575, %v1717, 0
      %v1848 = vsel %vm575, %v1720, 0
      %v1851 = vsel %vm575, %v1723, 0
      %v1854 = vsel %vm575, %v1726, 0
      %v1857 = vsel %vm575, %v1729, 0
      %v1860 = vsel %vm575, %v1732, 0
      %v1863 = vsel %vm575, %v1735, 0
      %v1866 = vsel %vm575, %v1738, 0
      %1868 = vmatpush.xpose.msra.mxu0 0.0
      %1869 = vmatpush.xpose.msra.mxu0 0.0
      %1870 = vmatpush.xpose.msra.mxu0 0.0
      %1871 = vmatpush.xpose.msra.mxu0 0.0
      %1872 = vmatpush.xpose.msra.mxu0 0.0
      %1873 = vmatpush.xpose.msra.mxu0 0.0
      %1874 = vmatpush.xpose.msra.mxu0 0.0
      %1875 = vmatpush.xpose.msra.mxu0 0.0
      %1876 = vmatpush.xpose.msra.mxu0 %v1866
      %1877 = vmatpush.xpose.msra.mxu0 %v1863
      %1878 = vmatpush.xpose.msra.mxu0 %v1860
      %1879 = vmatpush.xpose.msra.mxu0 %v1857
      %1880 = vmatpush.xpose.msra.mxu0 %v1854
      %1881 = vmatpush.xpose.msra.mxu0 %v1851
      %1882 = vmatpush.xpose.msra.mxu0 %v1848
      %1883 = vmatpush.xpose.msra.mxu0 %v1845
      %1884 = vmatmul.f32.gmra.mxu0 %v1821
      %v1885 = vpop.f32.mrf.mxu0
      %v1886 = vadd.f32 %v1812, %v1885
      %1887 = vmatmul.f32.gmra.mxu0 %v1824
      %v1888 = vpop.f32.mrf.mxu0
      %v1889 = vadd.f32 %v1813, %v1888
      %1890 = vmatmul.f32.gmra.mxu0 %v1827
      %v1891 = vpop.f32.mrf.mxu0
      %v1892 = vadd.f32 %v1814, %v1891
      %1893 = vmatmul.f32.gmra.mxu0 %v1830
      %v1894 = vpop.f32.mrf.mxu0
      %v1895 = vadd.f32 %v1815, %v1894
      %1896 = vmatmul.f32.gmra.mxu0 %v1833
      %v1897 = vpop.f32.mrf.mxu0
      %v1898 = vadd.f32 %v1816, %v1897
      %1899 = vmatmul.f32.gmra.mxu0 %v1836
      %v1900 = vpop.f32.mrf.mxu0
      %v1901 = vadd.f32 %v1817, %v1900
      %1902 = vmatmul.f32.gmra.mxu0 %v1839
      %v1903 = vpop.f32.mrf.mxu0
      %v1904 = vadd.f32 %v1818, %v1903
      %1905 = vmatmul.f32.gmra.mxu0 %v1842
      %v1906 = vpop.f32.mrf.mxu0
      %v1907 = vadd.f32 %v1819, %v1906
      %1908 = vdwg.mxu0
      %v1909 = vsel %vm665, %v1886, -inf
      %1910 = vmax.xlane.f32.xlu0 %v1909
      %v1911 = vpop.xlane.xlu0 %1910
      %v1912 = vsel %vm665, %v1889, -inf
      %1913 = vmax.xlane.f32.xlu0 %v1912
      %v1914 = vpop.xlane.xlu0 %1913
      %v1915 = vsel %vm665, %v1892, -inf
      %1916 = vmax.xlane.f32.xlu0 %v1915
      %v1917 = vpop.xlane.xlu0 %1916
      %v1918 = vsel %vm665, %v1895, -inf
      %1919 = vmax.xlane.f32.xlu0 %v1918
      %v1920 = vpop.xlane.xlu0 %1919
      %v1921 = vsel %vm665, %v1898, -inf
      %1922 = vmax.xlane.f32.xlu0 %v1921
      %v1923 = vpop.xlane.xlu0 %1922
      %v1924 = vsel %vm665, %v1901, -inf
      %1925 = vmax.xlane.f32.xlu0 %v1924
      %v1926 = vpop.xlane.xlu0 %1925
      %v1927 = vsel %vm665, %v1904, -inf
      %1928 = vmax.xlane.f32.xlu0 %v1927
      %v1929 = vpop.xlane.xlu0 %1928
      %v1930 = vsel %vm665, %v1907, -inf
      %1931 = vmax.xlane.f32.xlu0 %v1930
      %v1932 = vpop.xlane.xlu0 %1931
      %v1933 = vsub.f32 %v1886, %v1911
      %v1934 = vsub.f32 %v1889, %v1914
      %v1935 = vsub.f32 %v1892, %v1917
      %v1936 = vsub.f32 %v1895, %v1920
      %v1937 = vsub.f32 %v1898, %v1923
      %v1938 = vsub.f32 %v1901, %v1926
      %v1939 = vsub.f32 %v1904, %v1929
      %v1940 = vsub.f32 %v1907, %v1932
      %v1941 = vmul.f32 %v1933, 1.442695
      %v1942 = vpow.pop %v1941
      %v1943 = vmul.f32 %v1934, 1.442695
      %v1944 = vpow.pop %v1943
      %v1945 = vmul.f32 %v1935, 1.442695
      %v1946 = vpow.pop %v1945
      %v1947 = vmul.f32 %v1936, 1.442695
      %v1948 = vpow.pop %v1947
      %v1949 = vmul.f32 %v1937, 1.442695
      %v1950 = vpow.pop %v1949
      %v1951 = vmul.f32 %v1938, 1.442695
      %v1952 = vpow.pop %v1951
      %v1953 = vmul.f32 %v1939, 1.442695
      %v1954 = vpow.pop %v1953
      %v1955 = vmul.f32 %v1940, 1.442695
      %v1956 = vpow.pop %v1955
      %v1957 = vsel %vm665, %v1942, 0.0
      %1958 = vadd.xlane.f32.xlu0 %v1957
      %v1959 = vpop.xlane.xlu0 %1958
      %v1960 = vsel %vm665, %v1944, 0.0
      %1961 = vadd.xlane.f32.xlu0 %v1960
      %v1962 = vpop.xlane.xlu0 %1961
      %v1963 = vsel %vm665, %v1946, 0.0
      %1964 = vadd.xlane.f32.xlu0 %v1963
      %v1965 = vpop.xlane.xlu0 %1964
      %v1966 = vsel %vm665, %v1948, 0.0
      %1967 = vadd.xlane.f32.xlu0 %v1966
      %v1968 = vpop.xlane.xlu0 %1967
      %v1969 = vsel %vm665, %v1950, 0.0
      %1970 = vadd.xlane.f32.xlu0 %v1969
      %v1971 = vpop.xlane.xlu0 %1970
      %v1972 = vsel %vm665, %v1952, 0.0
      %1973 = vadd.xlane.f32.xlu0 %v1972
      %v1974 = vpop.xlane.xlu0 %1973
      %v1975 = vsel %vm665, %v1954, 0.0
      %1976 = vadd.xlane.f32.xlu0 %v1975
      %v1977 = vpop.xlane.xlu0 %1976
      %v1978 = vsel %vm665, %v1956, 0.0
      %1979 = vadd.xlane.f32.xlu0 %v1978
      %v1980 = vpop.xlane.xlu0 %1979
      %v1981 = vrcp.pop %v1959
      %v1982 = vmul.f32 %v1959, %v1981
      %v1983 = vsub.f32 1.0, %v1982
      %v1984 = vmul.f32 %v1981, %v1983
      %v1985 = vadd.f32 %v1981, %v1984
      %vm1986 = vweird.f32 %v1959
      %vm1987 = vweird.f32 %v1981
      %vm1988 = vmor %vm1986, %vm1987
      %v1989 = vsel %vm1988, %v1981, %v1985
      %v1990 = vand.u32 2147483647, %v1959
      %vm1991 = vcmp.eq.f32.partialorder %v1990, 8.507059e+37
      %v1992 = vand.u32 %v1959, 2147483648
      %v1993 = vor.u32 1.1754944e-38, %v1992
      %v1994 = vsel %vm1991, %v1993, %v1989
      %v1995 = vmul.f32 %v1942, %v1994
      %v1996 = vrcp.pop %v1962
      %v1997 = vmul.f32 %v1962, %v1996
      %v1998 = vsub.f32 1.0, %v1997
      %v1999 = vmul.f32 %v1996, %v1998
      %v2000 = vadd.f32 %v1996, %v1999
      %vm2001 = vweird.f32 %v1962
      %vm2002 = vweird.f32 %v1996
      %vm2003 = vmor %vm2001, %vm2002
      %v2004 = vsel %vm2003, %v1996, %v2000
      %v2005 = vand.u32 2147483647, %v1962
      %vm2006 = vcmp.eq.f32.partialorder %v2005, 8.507059e+37
      %v2007 = vand.u32 %v1962, 2147483648
      %v2008 = vor.u32 1.1754944e-38, %v2007
      %v2009 = vsel %vm2006, %v2008, %v2004
      %v2010 = vmul.f32 %v1944, %v2009
      %v2011 = vrcp.pop %v1965
      %v2012 = vmul.f32 %v1965, %v2011
      %v2013 = vsub.f32 1.0, %v2012
      %v2014 = vmul.f32 %v2011, %v2013
      %v2015 = vadd.f32 %v2011, %v2014
      %vm2016 = vweird.f32 %v1965
      %vm2017 = vweird.f32 %v2011
      %vm2018 = vmor %vm2016, %vm2017
      %v2019 = vsel %vm2018, %v2011, %v2015
      %v2020 = vand.u32 2147483647, %v1965
      %vm2021 = vcmp.eq.f32.partialorder %v2020, 8.507059e+37
      %v2022 = vand.u32 %v1965, 2147483648
      %v2023 = vor.u32 1.1754944e-38, %v2022
      %v2024 = vsel %vm2021, %v2023, %v2019
      %v2025 = vmul.f32 %v1946, %v2024
      %v2026 = vrcp.pop %v1968
      %v2027 = vmul.f32 %v1968, %v2026
      %v2028 = vsub.f32 1.0, %v2027
      %v2029 = vmul.f32 %v2026, %v2028
      %v2030 = vadd.f32 %v2026, %v2029
      %vm2031 = vweird.f32 %v1968
      %vm2032 = vweird.f32 %v2026
      %vm2033 = vmor %vm2031, %vm2032
      %v2034 = vsel %vm2033, %v2026, %v2030
      %v2035 = vand.u32 2147483647, %v1968
      %vm2036 = vcmp.eq.f32.partialorder %v2035, 8.507059e+37
      %v2037 = vand.u32 %v1968, 2147483648
      %v2038 = vor.u32 1.1754944e-38, %v2037
      %v2039 = vsel %vm2036, %v2038, %v2034
      %v2040 = vmul.f32 %v1948, %v2039
      %v2041 = vrcp.pop %v1971
      %v2042 = vmul.f32 %v1971, %v2041
      %v2043 = vsub.f32 1.0, %v2042
      %v2044 = vmul.f32 %v2041, %v2043
      %v2045 = vadd.f32 %v2041, %v2044
      %vm2046 = vweird.f32 %v1971
      %vm2047 = vweird.f32 %v2041
      %vm2048 = vmor %vm2046, %vm2047
      %v2049 = vsel %vm2048, %v2041, %v2045
      %v2050 = vand.u32 2147483647, %v1971
      %vm2051 = vcmp.eq.f32.partialorder %v2050, 8.507059e+37
      %v2052 = vand.u32 %v1971, 2147483648
      %v2053 = vor.u32 1.1754944e-38, %v2052
      %v2054 = vsel %vm2051, %v2053, %v2049
      %v2055 = vmul.f32 %v1950, %v2054
      %v2056 = vrcp.pop %v1974
      %v2057 = vmul.f32 %v1974, %v2056
      %v2058 = vsub.f32 1.0, %v2057
      %v2059 = vmul.f32 %v2056, %v2058
      %v2060 = vadd.f32 %v2056, %v2059
      %vm2061 = vweird.f32 %v1974
      %vm2062 = vweird.f32 %v2056
      %vm2063 = vmor %vm2061, %vm2062
      %v2064 = vsel %vm2063, %v2056, %v2060
      %v2065 = vand.u32 2147483647, %v1974
      %vm2066 = vcmp.eq.f32.partialorder %v2065, 8.507059e+37
      %v2067 = vand.u32 %v1974, 2147483648
      %v2068 = vor.u32 1.1754944e-38, %v2067
      %v2069 = vsel %vm2066, %v2068, %v2064
      %v2070 = vmul.f32 %v1952, %v2069
      %v2071 = vrcp.pop %v1977
      %v2072 = vmul.f32 %v1977, %v2071
      %v2073 = vsub.f32 1.0, %v2072
      %v2074 = vmul.f32 %v2071, %v2073
      %v2075 = vadd.f32 %v2071, %v2074
      %vm2076 = vweird.f32 %v1977
      %vm2077 = vweird.f32 %v2071
      %vm2078 = vmor %vm2076, %vm2077
      %v2079 = vsel %vm2078, %v2071, %v2075
      %v2080 = vand.u32 2147483647, %v1977
      %vm2081 = vcmp.eq.f32.partialorder %v2080, 8.507059e+37
      %v2082 = vand.u32 %v1977, 2147483648
      %v2083 = vor.u32 1.1754944e-38, %v2082
      %v2084 = vsel %vm2081, %v2083, %v2079
      %v2085 = vmul.f32 %v1954, %v2084
      %v2086 = vrcp.pop %v1980
      %v2087 = vmul.f32 %v1980, %v2086
      %v2088 = vsub.f32 1.0, %v2087
      %v2089 = vmul.f32 %v2086, %v2088
      %v2090 = vadd.f32 %v2086, %v2089
      %vm2091 = vweird.f32 %v1980
      %vm2092 = vweird.f32 %v2086
      %vm2093 = vmor %vm2091, %vm2092
      %v2094 = vsel %vm2093, %v2086, %v2090
      %v2095 = vand.u32 2147483647, %v1980
      %vm2096 = vcmp.eq.f32.partialorder %v2095, 8.507059e+37
      %v2097 = vand.u32 %v1980, 2147483648
      %v2098 = vor.u32 1.1754944e-38, %v2097
      %v2099 = vsel %vm2096, %v2098, %v2094
      %v2100 = vmul.f32 %v1956, %v2099
      %v2102 = vsel %vm665, %v1995, 0
      %v2105 = vsel %vm665, %v2010, 0
      %v2108 = vsel %vm665, %v2025, 0
      %v2111 = vsel %vm665, %v2040, 0
      %v2114 = vsel %vm665, %v2055, 0
      %v2117 = vsel %vm665, %v2070, 0
      %v2120 = vsel %vm665, %v2085, 0
      %v2123 = vsel %vm665, %v2100, 0
      %2125 = vmatpush.msra.mxu0 0.0
      %2126 = vmatpush.msra.mxu0 0.0
      %2127 = vmatpush.msra.mxu0 0.0
      %2128 = vmatpush.msra.mxu0 0.0
      %2129 = vmatpush.msra.mxu0 0.0
      %2130 = vmatpush.msra.mxu0 0.0
      %2131 = vmatpush.msra.mxu0 0.0
      %2132 = vmatpush.msra.mxu0 0.0
      %2133 = vmatpush.msra.mxu0 %v1801
      %2134 = vmatpush.msra.mxu0 %v1798
      %2135 = vmatpush.msra.mxu0 %v1795
      %2136 = vmatpush.msra.mxu0 %v1792
      %2137 = vmatpush.msra.mxu0 %v1789
      %2138 = vmatpush.msra.mxu0 %v1786
      %2139 = vmatpush.msra.mxu0 %v1783
      %2140 = vmatpush.msra.mxu0 %v1780
      %2141 = vmatmul.f32.gmra.mxu0 %v2102
      %v2142 = vpop.f32.mrf.mxu0
      %v2143 = vadd.f32 0.0, %v2142
      %2144 = vmatmul.f32.gmra.mxu0 %v2105
      %v2145 = vpop.f32.mrf.mxu0
      %v2146 = vadd.f32 0.0, %v2145
      %2147 = vmatmul.f32.gmra.mxu0 %v2108
      %v2148 = vpop.f32.mrf.mxu0
      %v2149 = vadd.f32 0.0, %v2148
      %2150 = vmatmul.f32.gmra.mxu0 %v2111
      %v2151 = vpop.f32.mrf.mxu0
      %v2152 = vadd.f32 0.0, %v2151
      %2153 = vmatmul.f32.gmra.mxu0 %v2114
      %v2154 = vpop.f32.mrf.mxu0
      %v2155 = vadd.f32 0.0, %v2154
      %2156 = vmatmul.f32.gmra.mxu0 %v2117
      %v2157 = vpop.f32.mrf.mxu0
      %v2158 = vadd.f32 0.0, %v2157
      %2159 = vmatmul.f32.gmra.mxu0 %v2120
      %v2160 = vpop.f32.mrf.mxu0
      %v2161 = vadd.f32 0.0, %v2160
      %2162 = vmatmul.f32.gmra.mxu0 %v2123
      %v2163 = vpop.f32.mrf.mxu0
      %v2164 = vadd.f32 0.0, %v2163
      %2165 = vdwg.mxu0
      %s2166 = scalar_lea.vmem %s8, 64
      %v2167 = vld [vmem:[%s2166] sm:$0xff]
      %v2168 = vld [vmem:[%s2166 + $0x8] sm:$0xff]
      %v2169 = vld [vmem:[%s2166 + $0x10] sm:$0xff]
      %v2170 = vld [vmem:[%s2166 + $0x18] sm:$0xff]
      %v2172 = vsel %vm575, %v2143, 0
      %v2175 = vsel %vm575, %v2146, 0
      %v2178 = vsel %vm575, %v2149, 0
      %v2181 = vsel %vm575, %v2152, 0
      %v2184 = vsel %vm575, %v2155, 0
      %v2187 = vsel %vm575, %v2158, 0
      %v2190 = vsel %vm575, %v2161, 0
      %v2193 = vsel %vm575, %v2164, 0
      %2195 = vmatpush.msra.mxu0 0.0
      %2196 = vmatpush.msra.mxu0 0.0
      %2197 = vmatpush.msra.mxu0 0.0
      %2198 = vmatpush.msra.mxu0 0.0
      %2199 = vmatpush.msra.mxu0 0.0
      %2200 = vmatpush.msra.mxu0 0.0
      %2201 = vmatpush.msra.mxu0 0.0
      %2202 = vmatpush.msra.mxu0 0.0
      %2203 = vmatpush.msra.mxu0 0.0
      %2204 = vmatpush.msra.mxu0 0.0
      %2205 = vmatpush.msra.mxu0 0.0
      %2206 = vmatpush.msra.mxu0 0.0
      %2207 = vmatpush.msra.mxu0 %v2170
      %2208 = vmatpush.msra.mxu0 %v2169
      %2209 = vmatpush.msra.mxu0 %v2168
      %2210 = vmatpush.msra.mxu0 %v2167
      %2211 = vmatmul.f32.gmra.mxu0 %v2172
      %v2212 = vpop.f32.mrf.mxu0
      %v2213 = vadd.f32 0.0, %v2212
      %2214 = vmatmul.f32.gmra.mxu0 %v2175
      %v2215 = vpop.f32.mrf.mxu0
      %v2216 = vadd.f32 0.0, %v2215
      %2217 = vmatmul.f32.gmra.mxu0 %v2178
      %v2218 = vpop.f32.mrf.mxu0
      %v2219 = vadd.f32 0.0, %v2218
      %2220 = vmatmul.f32.gmra.mxu0 %v2181
      %v2221 = vpop.f32.mrf.mxu0
      %v2222 = vadd.f32 0.0, %v2221
      %2223 = vmatmul.f32.gmra.mxu0 %v2184
      %v2224 = vpop.f32.mrf.mxu0
      %v2225 = vadd.f32 0.0, %v2224
      %2226 = vmatmul.f32.gmra.mxu0 %v2187
      %v2227 = vpop.f32.mrf.mxu0
      %v2228 = vadd.f32 0.0, %v2227
      %2229 = vmatmul.f32.gmra.mxu0 %v2190
      %v2230 = vpop.f32.mrf.mxu0
      %v2231 = vadd.f32 0.0, %v2230
      %2232 = vmatmul.f32.gmra.mxu0 %v2193
      %v2233 = vpop.f32.mrf.mxu0
      %v2234 = vadd.f32 0.0, %v2233
      %2235 = vdwg.mxu0
      %v2236 = vadd.f32 %v1591, %v2213
      %v2237 = vadd.f32 %v1594, %v2216
      %v2238 = vadd.f32 %v1597, %v2219
      %v2239 = vadd.f32 %v1600, %v2222
      %v2240 = vadd.f32 %v1603, %v2225
      %v2241 = vadd.f32 %v1606, %v2228
      %v2242 = vadd.f32 %v1609, %v2231
      %v2243 = vadd.f32 %v1612, %v2234
      %s2244 = scalar_lea.vmem %s1, 384
      %v2245 = vld [vmem:[%s2244] sm:$0xff]
      %v2246 = vld [vmem:[%s2244 + $0x8] sm:$0xff]
      %v2247 = vld [vmem:[%s2244 + $0x10] sm:$0xff]
      %v2248 = vld [vmem:[%s2244 + $0x18] sm:$0xff]
      %v2249 = vld [vmem:[%s2244 + $0x20] sm:$0xff]
      %v2250 = vld [vmem:[%s2244 + $0x28] sm:$0xff]
      %v2251 = vld [vmem:[%s2244 + $0x30] sm:$0xff]
      %v2252 = vld [vmem:[%s2244 + $0x38] sm:$0xff]
      %v2253 = vld [vmem:[%s2244 + $0x40] sm:$0xff]
      %v2254 = vld [vmem:[%s2244 + $0x48] sm:$0xff]
      %v2255 = vld [vmem:[%s2244 + $0x50] sm:$0xff]
      %v2256 = vld [vmem:[%s2244 + $0x58] sm:$0xff]
      %v2257 = vld [vmem:[%s2244 + $0x60] sm:$0xff]
      %v2258 = vld [vmem:[%s2244 + $0x68] sm:$0xff]
      %v2259 = vld [vmem:[%s2244 + $0x70] sm:$0xff]
      %v2260 = vld [vmem:[%s2244 + $0x78] sm:$0xff]
      %s2261 = scalar_lea.vmem %s4, 3
      %v2262 = vld [vmem:[%s2261] sm:$0x1]
      %v2264 = vperm.slane %v2262, 0
      %2266 = vmatpush.msra.mxu0 %v2260
      %2267 = vmatpush.msra.mxu0 %v2259
      %2268 = vmatpush.msra.mxu0 %v2258
      %2269 = vmatpush.msra.mxu0 %v2257
      %2270 = vmatpush.msra.mxu0 %v2256
      %2271 = vmatpush.msra.mxu0 %v2255
      %2272 = vmatpush.msra.mxu0 %v2254
      %2273 = vmatpush.msra.mxu0 %v2253
      %2274 = vmatpush.msra.mxu0 %v2252
      %2275 = vmatpush.msra.mxu0 %v2251
      %2276 = vmatpush.msra.mxu0 %v2250
      %2277 = vmatpush.msra.mxu0 %v2249
      %2278 = vmatpush.msra.mxu0 %v2248
      %2279 = vmatpush.msra.mxu0 %v2247
      %2280 = vmatpush.msra.mxu0 %v2246
      %2281 = vmatpush.msra.mxu0 %v2245
      %2282 = vmatmul.f32.gmra.mxu0 %v368
      %v2283 = vpop.f32.mrf.mxu0
      %v2284 = vadd.f32 %v2264, %v2283
      %2285 = vmatmul.f32.gmra.mxu0 %v369
      %v2286 = vpop.f32.mrf.mxu0
      %v2287 = vadd.f32 %v2264, %v2286
      %2288 = vmatmul.f32.gmra.mxu0 %v370
      %v2289 = vpop.f32.mrf.mxu0
      %v2290 = vadd.f32 %v2264, %v2289
      %2291 = vmatmul.f32.gmra.mxu0 %v371
      %v2292 = vpop.f32.mrf.mxu0
      %v2293 = vadd.f32 %v2264, %v2292
      %2294 = vmatmul.f32.gmra.mxu0 %v372
      %v2295 = vpop.f32.mrf.mxu0
      %v2296 = vadd.f32 %v2264, %v2295
      %2297 = vmatmul.f32.gmra.mxu0 %v373
      %v2298 = vpop.f32.mrf.mxu0
      %v2299 = vadd.f32 %v2264, %v2298
      %2300 = vmatmul.f32.gmra.mxu0 %v374
      %v2301 = vpop.f32.mrf.mxu0
      %v2302 = vadd.f32 %v2264, %v2301
      %2303 = vmatmul.f32.gmra.mxu0 %v375
      %v2304 = vpop.f32.mrf.mxu0
      %v2305 = vadd.f32 %v2264, %v2304
      %2306 = vdwg.mxu0
      %s2307 = scalar_lea.vmem %s2, 384
      %v2308 = vld [vmem:[%s2307] sm:$0xff]
      %v2309 = vld [vmem:[%s2307 + $0x8] sm:$0xff]
      %v2310 = vld [vmem:[%s2307 + $0x10] sm:$0xff]
      %v2311 = vld [vmem:[%s2307 + $0x18] sm:$0xff]
      %v2312 = vld [vmem:[%s2307 + $0x20] sm:$0xff]
      %v2313 = vld [vmem:[%s2307 + $0x28] sm:$0xff]
      %v2314 = vld [vmem:[%s2307 + $0x30] sm:$0xff]
      %v2315 = vld [vmem:[%s2307 + $0x38] sm:$0xff]
      %v2316 = vld [vmem:[%s2307 + $0x40] sm:$0xff]
      %v2317 = vld [vmem:[%s2307 + $0x48] sm:$0xff]
      %v2318 = vld [vmem:[%s2307 + $0x50] sm:$0xff]
      %v2319 = vld [vmem:[%s2307 + $0x58] sm:$0xff]
      %v2320 = vld [vmem:[%s2307 + $0x60] sm:$0xff]
      %v2321 = vld [vmem:[%s2307 + $0x68] sm:$0xff]
      %v2322 = vld [vmem:[%s2307 + $0x70] sm:$0xff]
      %v2323 = vld [vmem:[%s2307 + $0x78] sm:$0xff]
      %s2324 = scalar_lea.vmem %s5, 3
      %v2325 = vld [vmem:[%s2324] sm:$0x1]
      %v2327 = vperm.slane %v2325, 0
      %2329 = vmatpush.msra.mxu0 %v2323
      %2330 = vmatpush.msra.mxu0 %v2322
      %2331 = vmatpush.msra.mxu0 %v2321
      %2332 = vmatpush.msra.mxu0 %v2320
      %2333 = vmatpush.msra.mxu0 %v2319
      %2334 = vmatpush.msra.mxu0 %v2318
      %2335 = vmatpush.msra.mxu0 %v2317
      %2336 = vmatpush.msra.mxu0 %v2316
      %2337 = vmatpush.msra.mxu0 %v2315
      %2338 = vmatpush.msra.mxu0 %v2314
      %2339 = vmatpush.msra.mxu0 %v2313
      %2340 = vmatpush.msra.mxu0 %v2312
      %2341 = vmatpush.msra.mxu0 %v2311
      %2342 = vmatpush.msra.mxu0 %v2310
      %2343 = vmatpush.msra.mxu0 %v2309
      %2344 = vmatpush.msra.mxu0 %v2308
      %2345 = vmatmul.f32.gmra.mxu0 %v368
      %v2346 = vpop.f32.mrf.mxu0
      %v2347 = vadd.f32 %v2327, %v2346
      %2348 = vmatmul.f32.gmra.mxu0 %v369
      %v2349 = vpop.f32.mrf.mxu0
      %v2350 = vadd.f32 %v2327, %v2349
      %2351 = vmatmul.f32.gmra.mxu0 %v370
      %v2352 = vpop.f32.mrf.mxu0
      %v2353 = vadd.f32 %v2327, %v2352
      %2354 = vmatmul.f32.gmra.mxu0 %v371
      %v2355 = vpop.f32.mrf.mxu0
      %v2356 = vadd.f32 %v2327, %v2355
      %2357 = vmatmul.f32.gmra.mxu0 %v372
      %v2358 = vpop.f32.mrf.mxu0
      %v2359 = vadd.f32 %v2327, %v2358
      %2360 = vmatmul.f32.gmra.mxu0 %v373
      %v2361 = vpop.f32.mrf.mxu0
      %v2362 = vadd.f32 %v2327, %v2361
      %2363 = vmatmul.f32.gmra.mxu0 %v374
      %v2364 = vpop.f32.mrf.mxu0
      %v2365 = vadd.f32 %v2327, %v2364
      %2366 = vmatmul.f32.gmra.mxu0 %v375
      %v2367 = vpop.f32.mrf.mxu0
      %v2368 = vadd.f32 %v2327, %v2367
      %2369 = vdwg.mxu0
      %s2370 = scalar_lea.vmem %s3, 384
      %v2371 = vld [vmem:[%s2370] sm:$0xff]
      %v2372 = vld [vmem:[%s2370 + $0x8] sm:$0xff]
      %v2373 = vld [vmem:[%s2370 + $0x10] sm:$0xff]
      %v2374 = vld [vmem:[%s2370 + $0x18] sm:$0xff]
      %v2375 = vld [vmem:[%s2370 + $0x20] sm:$0xff]
      %v2376 = vld [vmem:[%s2370 + $0x28] sm:$0xff]
      %v2377 = vld [vmem:[%s2370 + $0x30] sm:$0xff]
      %v2378 = vld [vmem:[%s2370 + $0x38] sm:$0xff]
      %v2379 = vld [vmem:[%s2370 + $0x40] sm:$0xff]
      %v2380 = vld [vmem:[%s2370 + $0x48] sm:$0xff]
      %v2381 = vld [vmem:[%s2370 + $0x50] sm:$0xff]
      %v2382 = vld [vmem:[%s2370 + $0x58] sm:$0xff]
      %v2383 = vld [vmem:[%s2370 + $0x60] sm:$0xff]
      %v2384 = vld [vmem:[%s2370 + $0x68] sm:$0xff]
      %v2385 = vld [vmem:[%s2370 + $0x70] sm:$0xff]
      %v2386 = vld [vmem:[%s2370 + $0x78] sm:$0xff]
      %s2387 = scalar_lea.vmem %s6, 3
      %v2388 = vld [vmem:[%s2387] sm:$0x1]
      %v2390 = vperm.slane %v2388, 0
      %2392 = vmatpush.msra.mxu0 %v2386
      %2393 = vmatpush.msra.mxu0 %v2385
      %2394 = vmatpush.msra.mxu0 %v2384
      %2395 = vmatpush.msra.mxu0 %v2383
      %2396 = vmatpush.msra.mxu0 %v2382
      %2397 = vmatpush.msra.mxu0 %v2381
      %2398 = vmatpush.msra.mxu0 %v2380
      %2399 = vmatpush.msra.mxu0 %v2379
      %2400 = vmatpush.msra.mxu0 %v2378
      %2401 = vmatpush.msra.mxu0 %v2377
      %2402 = vmatpush.msra.mxu0 %v2376
      %2403 = vmatpush.msra.mxu0 %v2375
      %2404 = vmatpush.msra.mxu0 %v2374
      %2405 = vmatpush.msra.mxu0 %v2373
      %2406 = vmatpush.msra.mxu0 %v2372
      %2407 = vmatpush.msra.mxu0 %v2371
      %2408 = vmatmul.f32.gmra.mxu0 %v368
      %v2409 = vpop.f32.mrf.mxu0
      %v2410 = vadd.f32 %v2390, %v2409
      %2411 = vmatmul.f32.gmra.mxu0 %v369
      %v2412 = vpop.f32.mrf.mxu0
      %v2413 = vadd.f32 %v2390, %v2412
      %2414 = vmatmul.f32.gmra.mxu0 %v370
      %v2415 = vpop.f32.mrf.mxu0
      %v2416 = vadd.f32 %v2390, %v2415
      %2417 = vmatmul.f32.gmra.mxu0 %v371
      %v2418 = vpop.f32.mrf.mxu0
      %v2419 = vadd.f32 %v2390, %v2418
      %2420 = vmatmul.f32.gmra.mxu0 %v372
      %v2421 = vpop.f32.mrf.mxu0
      %v2422 = vadd.f32 %v2390, %v2421
      %2423 = vmatmul.f32.gmra.mxu0 %v373
      %v2424 = vpop.f32.mrf.mxu0
      %v2425 = vadd.f32 %v2390, %v2424
      %2426 = vmatmul.f32.gmra.mxu0 %v374
      %v2427 = vpop.f32.mrf.mxu0
      %v2428 = vadd.f32 %v2390, %v2427
      %2429 = vmatmul.f32.gmra.mxu0 %v375
      %v2430 = vpop.f32.mrf.mxu0
      %v2431 = vadd.f32 %v2390, %v2430
      %2432 = vdwg.mxu0
      %v2433 = vmul.f32 %v2284, 0.17677669
      %v2434 = vmul.f32 %v2287, 0.17677669
      %v2435 = vmul.f32 %v2290, 0.17677669
      %v2436 = vmul.f32 %v2293, 0.17677669
      %v2437 = vmul.f32 %v2296, 0.17677669
      %v2438 = vmul.f32 %v2299, 0.17677669
      %v2439 = vmul.f32 %v2302, 0.17677669
      %v2440 = vmul.f32 %v2305, 0.17677669
      %s2441 = scalar_lea.vmem %s7, 192
      %v2442 = vld [vmem:[%s2441] sm:$0xff]
      %v2443 = vld [vmem:[%s2441 + $0x8] sm:$0xff]
      %v2444 = vld [vmem:[%s2441 + $0x10] sm:$0xff]
      %v2445 = vld [vmem:[%s2441 + $0x18] sm:$0xff]
      %v2446 = vld [vmem:[%s2441 + $0x20] sm:$0xff]
      %v2447 = vld [vmem:[%s2441 + $0x28] sm:$0xff]
      %v2448 = vld [vmem:[%s2441 + $0x30] sm:$0xff]
      %v2449 = vld [vmem:[%s2441 + $0x38] sm:$0xff]
      %v2451 = vsel %vm575, %v2433, 0
      %v2454 = vsel %vm575, %v2434, 0
      %v2457 = vsel %vm575, %v2435, 0
      %v2460 = vsel %vm575, %v2436, 0
      %v2463 = vsel %vm575, %v2437, 0
      %v2466 = vsel %vm575, %v2438, 0
      %v2469 = vsel %vm575, %v2439, 0
      %v2472 = vsel %vm575, %v2440, 0
      %v2475 = vsel %vm575, %v2347, 0
      %v2478 = vsel %vm575, %v2350, 0
      %v2481 = vsel %vm575, %v2353, 0
      %v2484 = vsel %vm575, %v2356, 0
      %v2487 = vsel %vm575, %v2359, 0
      %v2490 = vsel %vm575, %v2362, 0
      %v2493 = vsel %vm575, %v2365, 0
      %v2496 = vsel %vm575, %v2368, 0
      %2498 = vmatpush.xpose.msra.mxu0 0.0
      %2499 = vmatpush.xpose.msra.mxu0 0.0
      %2500 = vmatpush.xpose.msra.mxu0 0.0
      %2501 = vmatpush.xpose.msra.mxu0 0.0
      %2502 = vmatpush.xpose.msra.mxu0 0.0
      %2503 = vmatpush.xpose.msra.mxu0 0.0
      %2504 = vmatpush.xpose.msra.mxu0 0.0
      %2505 = vmatpush.xpose.msra.mxu0 0.0
      %2506 = vmatpush.xpose.msra.mxu0 %v2496
      %2507 = vmatpush.xpose.msra.mxu0 %v2493
      %2508 = vmatpush.xpose.msra.mxu0 %v2490
      %2509 = vmatpush.xpose.msra.mxu0 %v2487
      %2510 = vmatpush.xpose.msra.mxu0 %v2484
      %2511 = vmatpush.xpose.msra.mxu0 %v2481
      %2512 = vmatpush.xpose.msra.mxu0 %v2478
      %2513 = vmatpush.xpose.msra.mxu0 %v2475
      %2514 = vmatmul.f32.gmra.mxu0 %v2451
      %v2515 = vpop.f32.mrf.mxu0
      %v2516 = vadd.f32 %v2442, %v2515
      %2517 = vmatmul.f32.gmra.mxu0 %v2454
      %v2518 = vpop.f32.mrf.mxu0
      %v2519 = vadd.f32 %v2443, %v2518
      %2520 = vmatmul.f32.gmra.mxu0 %v2457
      %v2521 = vpop.f32.mrf.mxu0
      %v2522 = vadd.f32 %v2444, %v2521
      %2523 = vmatmul.f32.gmra.mxu0 %v2460
      %v2524 = vpop.f32.mrf.mxu0
      %v2525 = vadd.f32 %v2445, %v2524
      %2526 = vmatmul.f32.gmra.mxu0 %v2463
      %v2527 = vpop.f32.mrf.mxu0
      %v2528 = vadd.f32 %v2446, %v2527
      %2529 = vmatmul.f32.gmra.mxu0 %v2466
      %v2530 = vpop.f32.mrf.mxu0
      %v2531 = vadd.f32 %v2447, %v2530
      %2532 = vmatmul.f32.gmra.mxu0 %v2469
      %v2533 = vpop.f32.mrf.mxu0
      %v2534 = vadd.f32 %v2448, %v2533
      %2535 = vmatmul.f32.gmra.mxu0 %v2472
      %v2536 = vpop.f32.mrf.mxu0
      %v2537 = vadd.f32 %v2449, %v2536
      %2538 = vdwg.mxu0
      %v2539 = vsel %vm665, %v2516, -inf
      %2540 = vmax.xlane.f32.xlu0 %v2539
      %v2541 = vpop.xlane.xlu0 %2540
      %v2542 = vsel %vm665, %v2519, -inf
      %2543 = vmax.xlane.f32.xlu0 %v2542
      %v2544 = vpop.xlane.xlu0 %2543
      %v2545 = vsel %vm665, %v2522, -inf
      %2546 = vmax.xlane.f32.xlu0 %v2545
      %v2547 = vpop.xlane.xlu0 %2546
      %v2548 = vsel %vm665, %v2525, -inf
      %2549 = vmax.xlane.f32.xlu0 %v2548
      %v2550 = vpop.xlane.xlu0 %2549
      %v2551 = vsel %vm665, %v2528, -inf
      %2552 = vmax.xlane.f32.xlu0 %v2551
      %v2553 = vpop.xlane.xlu0 %2552
      %v2554 = vsel %vm665, %v2531, -inf
      %2555 = vmax.xlane.f32.xlu0 %v2554
      %v2556 = vpop.xlane.xlu0 %2555
      %v2557 = vsel %vm665, %v2534, -inf
      %2558 = vmax.xlane.f32.xlu0 %v2557
      %v2559 = vpop.xlane.xlu0 %2558
      %v2560 = vsel %vm665, %v2537, -inf
      %2561 = vmax.xlane.f32.xlu0 %v2560
      %v2562 = vpop.xlane.xlu0 %2561
      %v2563 = vsub.f32 %v2516, %v2541
      %v2564 = vsub.f32 %v2519, %v2544
      %v2565 = vsub.f32 %v2522, %v2547
      %v2566 = vsub.f32 %v2525, %v2550
      %v2567 = vsub.f32 %v2528, %v2553
      %v2568 = vsub.f32 %v2531, %v2556
      %v2569 = vsub.f32 %v2534, %v2559
      %v2570 = vsub.f32 %v2537, %v2562
      %v2571 = vmul.f32 %v2563, 1.442695
      %v2572 = vpow.pop %v2571
      %v2573 = vmul.f32 %v2564, 1.442695
      %v2574 = vpow.pop %v2573
      %v2575 = vmul.f32 %v2565, 1.442695
      %v2576 = vpow.pop %v2575
      %v2577 = vmul.f32 %v2566, 1.442695
      %v2578 = vpow.pop %v2577
      %v2579 = vmul.f32 %v2567, 1.442695
      %v2580 = vpow.pop %v2579
      %v2581 = vmul.f32 %v2568, 1.442695
      %v2582 = vpow.pop %v2581
      %v2583 = vmul.f32 %v2569, 1.442695
      %v2584 = vpow.pop %v2583
      %v2585 = vmul.f32 %v2570, 1.442695
      %v2586 = vpow.pop %v2585
      %v2587 = vsel %vm665, %v2572, 0.0
      %2588 = vadd.xlane.f32.xlu0 %v2587
      %v2589 = vpop.xlane.xlu0 %2588
      %v2590 = vsel %vm665, %v2574, 0.0
      %2591 = vadd.xlane.f32.xlu0 %v2590
      %v2592 = vpop.xlane.xlu0 %2591
      %v2593 = vsel %vm665, %v2576, 0.0
      %2594 = vadd.xlane.f32.xlu0 %v2593
      %v2595 = vpop.xlane.xlu0 %2594
      %v2596 = vsel %vm665, %v2578, 0.0
      %2597 = vadd.xlane.f32.xlu0 %v2596
      %v2598 = vpop.xlane.xlu0 %2597
      %v2599 = vsel %vm665, %v2580, 0.0
      %2600 = vadd.xlane.f32.xlu0 %v2599
      %v2601 = vpop.xlane.xlu0 %2600
      %v2602 = vsel %vm665, %v2582, 0.0
      %2603 = vadd.xlane.f32.xlu0 %v2602
      %v2604 = vpop.xlane.xlu0 %2603
      %v2605 = vsel %vm665, %v2584, 0.0
      %2606 = vadd.xlane.f32.xlu0 %v2605
      %v2607 = vpop.xlane.xlu0 %2606
      %v2608 = vsel %vm665, %v2586, 0.0
      %2609 = vadd.xlane.f32.xlu0 %v2608
      %v2610 = vpop.xlane.xlu0 %2609
      %v2611 = vrcp.pop %v2589
      %v2612 = vmul.f32 %v2589, %v2611
      %v2613 = vsub.f32 1.0, %v2612
      %v2614 = vmul.f32 %v2611, %v2613
      %v2615 = vadd.f32 %v2611, %v2614
      %vm2616 = vweird.f32 %v2589
      %vm2617 = vweird.f32 %v2611
      %vm2618 = vmor %vm2616, %vm2617
      %v2619 = vsel %vm2618, %v2611, %v2615
      %v2620 = vand.u32 2147483647, %v2589
      %vm2621 = vcmp.eq.f32.partialorder %v2620, 8.507059e+37
      %v2622 = vand.u32 %v2589, 2147483648
      %v2623 = vor.u32 1.1754944e-38, %v2622
      %v2624 = vsel %vm2621, %v2623, %v2619
      %v2625 = vmul.f32 %v2572, %v2624
      %v2626 = vrcp.pop %v2592
      %v2627 = vmul.f32 %v2592, %v2626
      %v2628 = vsub.f32 1.0, %v2627
      %v2629 = vmul.f32 %v2626, %v2628
      %v2630 = vadd.f32 %v2626, %v2629
      %vm2631 = vweird.f32 %v2592
      %vm2632 = vweird.f32 %v2626
      %vm2633 = vmor %vm2631, %vm2632
      %v2634 = vsel %vm2633, %v2626, %v2630
      %v2635 = vand.u32 2147483647, %v2592
      %vm2636 = vcmp.eq.f32.partialorder %v2635, 8.507059e+37
      %v2637 = vand.u32 %v2592, 2147483648
      %v2638 = vor.u32 1.1754944e-38, %v2637
      %v2639 = vsel %vm2636, %v2638, %v2634
      %v2640 = vmul.f32 %v2574, %v2639
      %v2641 = vrcp.pop %v2595
      %v2642 = vmul.f32 %v2595, %v2641
      %v2643 = vsub.f32 1.0, %v2642
      %v2644 = vmul.f32 %v2641, %v2643
      %v2645 = vadd.f32 %v2641, %v2644
      %vm2646 = vweird.f32 %v2595
      %vm2647 = vweird.f32 %v2641
      %vm2648 = vmor %vm2646, %vm2647
      %v2649 = vsel %vm2648, %v2641, %v2645
      %v2650 = vand.u32 2147483647, %v2595
      %vm2651 = vcmp.eq.f32.partialorder %v2650, 8.507059e+37
      %v2652 = vand.u32 %v2595, 2147483648
      %v2653 = vor.u32 1.1754944e-38, %v2652
      %v2654 = vsel %vm2651, %v2653, %v2649
      %v2655 = vmul.f32 %v2576, %v2654
      %v2656 = vrcp.pop %v2598
      %v2657 = vmul.f32 %v2598, %v2656
      %v2658 = vsub.f32 1.0, %v2657
      %v2659 = vmul.f32 %v2656, %v2658
      %v2660 = vadd.f32 %v2656, %v2659
      %vm2661 = vweird.f32 %v2598
      %vm2662 = vweird.f32 %v2656
      %vm2663 = vmor %vm2661, %vm2662
      %v2664 = vsel %vm2663, %v2656, %v2660
      %v2665 = vand.u32 2147483647, %v2598
      %vm2666 = vcmp.eq.f32.partialorder %v2665, 8.507059e+37
      %v2667 = vand.u32 %v2598, 2147483648
      %v2668 = vor.u32 1.1754944e-38, %v2667
      %v2669 = vsel %vm2666, %v2668, %v2664
      %v2670 = vmul.f32 %v2578, %v2669
      %v2671 = vrcp.pop %v2601
      %v2672 = vmul.f32 %v2601, %v2671
      %v2673 = vsub.f32 1.0, %v2672
      %v2674 = vmul.f32 %v2671, %v2673
      %v2675 = vadd.f32 %v2671, %v2674
      %vm2676 = vweird.f32 %v2601
      %vm2677 = vweird.f32 %v2671
      %vm2678 = vmor %vm2676, %vm2677
      %v2679 = vsel %vm2678, %v2671, %v2675
      %v2680 = vand.u32 2147483647, %v2601
      %vm2681 = vcmp.eq.f32.partialorder %v2680, 8.507059e+37
      %v2682 = vand.u32 %v2601, 2147483648
      %v2683 = vor.u32 1.1754944e-38, %v2682
      %v2684 = vsel %vm2681, %v2683, %v2679
      %v2685 = vmul.f32 %v2580, %v2684
      %v2686 = vrcp.pop %v2604
      %v2687 = vmul.f32 %v2604, %v2686
      %v2688 = vsub.f32 1.0, %v2687
      %v2689 = vmul.f32 %v2686, %v2688
      %v2690 = vadd.f32 %v2686, %v2689
      %vm2691 = vweird.f32 %v2604
      %vm2692 = vweird.f32 %v2686
      %vm2693 = vmor %vm2691, %vm2692
      %v2694 = vsel %vm2693, %v2686, %v2690
      %v2695 = vand.u32 2147483647, %v2604
      %vm2696 = vcmp.eq.f32.partialorder %v2695, 8.507059e+37
      %v2697 = vand.u32 %v2604, 2147483648
      %v2698 = vor.u32 1.1754944e-38, %v2697
      %v2699 = vsel %vm2696, %v2698, %v2694
      %v2700 = vmul.f32 %v2582, %v2699
      %v2701 = vrcp.pop %v2607
      %v2702 = vmul.f32 %v2607, %v2701
      %v2703 = vsub.f32 1.0, %v2702
      %v2704 = vmul.f32 %v2701, %v2703
      %v2705 = vadd.f32 %v2701, %v2704
      %vm2706 = vweird.f32 %v2607
      %vm2707 = vweird.f32 %v2701
      %vm2708 = vmor %vm2706, %vm2707
      %v2709 = vsel %vm2708, %v2701, %v2705
      %v2710 = vand.u32 2147483647, %v2607
      %vm2711 = vcmp.eq.f32.partialorder %v2710, 8.507059e+37
      %v2712 = vand.u32 %v2607, 2147483648
      %v2713 = vor.u32 1.1754944e-38, %v2712
      %v2714 = vsel %vm2711, %v2713, %v2709
      %v2715 = vmul.f32 %v2584, %v2714
      %v2716 = vrcp.pop %v2610
      %v2717 = vmul.f32 %v2610, %v2716
      %v2718 = vsub.f32 1.0, %v2717
      %v2719 = vmul.f32 %v2716, %v2718
      %v2720 = vadd.f32 %v2716, %v2719
      %vm2721 = vweird.f32 %v2610
      %vm2722 = vweird.f32 %v2716
      %vm2723 = vmor %vm2721, %vm2722
      %v2724 = vsel %vm2723, %v2716, %v2720
      %v2725 = vand.u32 2147483647, %v2610
      %vm2726 = vcmp.eq.f32.partialorder %v2725, 8.507059e+37
      %v2727 = vand.u32 %v2610, 2147483648
      %v2728 = vor.u32 1.1754944e-38, %v2727
      %v2729 = vsel %vm2726, %v2728, %v2724
      %v2730 = vmul.f32 %v2586, %v2729
      %v2732 = vsel %vm665, %v2625, 0
      %v2735 = vsel %vm665, %v2640, 0
      %v2738 = vsel %vm665, %v2655, 0
      %v2741 = vsel %vm665, %v2670, 0
      %v2744 = vsel %vm665, %v2685, 0
      %v2747 = vsel %vm665, %v2700, 0
      %v2750 = vsel %vm665, %v2715, 0
      %v2753 = vsel %vm665, %v2730, 0
      %2755 = vmatpush.msra.mxu0 0.0
      %2756 = vmatpush.msra.mxu0 0.0
      %2757 = vmatpush.msra.mxu0 0.0
      %2758 = vmatpush.msra.mxu0 0.0
      %2759 = vmatpush.msra.mxu0 0.0
      %2760 = vmatpush.msra.mxu0 0.0
      %2761 = vmatpush.msra.mxu0 0.0
      %2762 = vmatpush.msra.mxu0 0.0
      %2763 = vmatpush.msra.mxu0 %v2431
      %2764 = vmatpush.msra.mxu0 %v2428
      %2765 = vmatpush.msra.mxu0 %v2425
      %2766 = vmatpush.msra.mxu0 %v2422
      %2767 = vmatpush.msra.mxu0 %v2419
      %2768 = vmatpush.msra.mxu0 %v2416
      %2769 = vmatpush.msra.mxu0 %v2413
      %2770 = vmatpush.msra.mxu0 %v2410
      %2771 = vmatmul.f32.gmra.mxu0 %v2732
      %v2772 = vpop.f32.mrf.mxu0
      %v2773 = vadd.f32 0.0, %v2772
      %2774 = vmatmul.f32.gmra.mxu0 %v2735
      %v2775 = vpop.f32.mrf.mxu0
      %v2776 = vadd.f32 0.0, %v2775
      %2777 = vmatmul.f32.gmra.mxu0 %v2738
      %v2778 = vpop.f32.mrf.mxu0
      %v2779 = vadd.f32 0.0, %v2778
      %2780 = vmatmul.f32.gmra.mxu0 %v2741
      %v2781 = vpop.f32.mrf.mxu0
      %v2782 = vadd.f32 0.0, %v2781
      %2783 = vmatmul.f32.gmra.mxu0 %v2744
      %v2784 = vpop.f32.mrf.mxu0
      %v2785 = vadd.f32 0.0, %v2784
      %2786 = vmatmul.f32.gmra.mxu0 %v2747
      %v2787 = vpop.f32.mrf.mxu0
      %v2788 = vadd.f32 0.0, %v2787
      %2789 = vmatmul.f32.gmra.mxu0 %v2750
      %v2790 = vpop.f32.mrf.mxu0
      %v2791 = vadd.f32 0.0, %v2790
      %2792 = vmatmul.f32.gmra.mxu0 %v2753
      %v2793 = vpop.f32.mrf.mxu0
      %v2794 = vadd.f32 0.0, %v2793
      %2795 = vdwg.mxu0
      %s2796 = scalar_lea.vmem %s8, 96
      %v2797 = vld [vmem:[%s2796] sm:$0xff]
      %v2798 = vld [vmem:[%s2796 + $0x8] sm:$0xff]
      %v2799 = vld [vmem:[%s2796 + $0x10] sm:$0xff]
      %v2800 = vld [vmem:[%s2796 + $0x18] sm:$0xff]
      %v2802 = vsel %vm575, %v2773, 0
      %v2805 = vsel %vm575, %v2776, 0
      %v2808 = vsel %vm575, %v2779, 0
      %v2811 = vsel %vm575, %v2782, 0
      %v2814 = vsel %vm575, %v2785, 0
      %v2817 = vsel %vm575, %v2788, 0
      %v2820 = vsel %vm575, %v2791, 0
      %v2823 = vsel %vm575, %v2794, 0
      %2825 = vmatpush.msra.mxu0 0.0
      %2826 = vmatpush.msra.mxu0 0.0
      %2827 = vmatpush.msra.mxu0 0.0
      %2828 = vmatpush.msra.mxu0 0.0
      %2829 = vmatpush.msra.mxu0 0.0
      %2830 = vmatpush.msra.mxu0 0.0
      %2831 = vmatpush.msra.mxu0 0.0
      %2832 = vmatpush.msra.mxu0 0.0
      %2833 = vmatpush.msra.mxu0 0.0
      %2834 = vmatpush.msra.mxu0 0.0
      %2835 = vmatpush.msra.mxu0 0.0
      %2836 = vmatpush.msra.mxu0 0.0
      %2837 = vmatpush.msra.mxu0 %v2800
      %2838 = vmatpush.msra.mxu0 %v2799
      %2839 = vmatpush.msra.mxu0 %v2798
      %2840 = vmatpush.msra.mxu0 %v2797
      %2841 = vmatmul.f32.gmra.mxu0 %v2802
      %v2842 = vpop.f32.mrf.mxu0
      %v2843 = vadd.f32 0.0, %v2842
      %2844 = vmatmul.f32.gmra.mxu0 %v2805
      %v2845 = vpop.f32.mrf.mxu0
      %v2846 = vadd.f32 0.0, %v2845
      %2847 = vmatmul.f32.gmra.mxu0 %v2808
      %v2848 = vpop.f32.mrf.mxu0
      %v2849 = vadd.f32 0.0, %v2848
      %2850 = vmatmul.f32.gmra.mxu0 %v2811
      %v2851 = vpop.f32.mrf.mxu0
      %v2852 = vadd.f32 0.0, %v2851
      %2853 = vmatmul.f32.gmra.mxu0 %v2814
      %v2854 = vpop.f32.mrf.mxu0
      %v2855 = vadd.f32 0.0, %v2854
      %2856 = vmatmul.f32.gmra.mxu0 %v2817
      %v2857 = vpop.f32.mrf.mxu0
      %v2858 = vadd.f32 0.0, %v2857
      %2859 = vmatmul.f32.gmra.mxu0 %v2820
      %v2860 = vpop.f32.mrf.mxu0
      %v2861 = vadd.f32 0.0, %v2860
      %2862 = vmatmul.f32.gmra.mxu0 %v2823
      %v2863 = vpop.f32.mrf.mxu0
      %v2864 = vadd.f32 0.0, %v2863
      %2865 = vdwg.mxu0
      %v2866 = vadd.f32 %v2236, %v2843
      %v2867 = vadd.f32 %v2237, %v2846
      %v2868 = vadd.f32 %v2238, %v2849
      %v2869 = vadd.f32 %v2239, %v2852
      %v2870 = vadd.f32 %v2240, %v2855
      %v2871 = vadd.f32 %v2241, %v2858
      %v2872 = vadd.f32 %v2242, %v2861
      %v2873 = vadd.f32 %v2243, %v2864
      %v2874 = vld [vmem:[%s9] sm:$0x1]
      %v2876 = vperm.slane %v2874, 0
      %v2878 = vadd.f32 %v2866, %v2876
      %v2879 = vadd.f32 %v2867, %v2876
      %v2880 = vadd.f32 %v2868, %v2876
      %v2881 = vadd.f32 %v2869, %v2876
      %v2882 = vadd.f32 %v2870, %v2876
      %v2883 = vadd.f32 %v2871, %v2876
      %v2884 = vadd.f32 %v2872, %v2876
      %v2885 = vadd.f32 %v2873, %v2876
      %2886 = vst [vmem:[%s366] sm:$0xff] %v2878
      %2887 = vst [vmem:[%s366 + $0x8] sm:$0xff] %v2879
      %2888 = vst [vmem:[%s366 + $0x10] sm:$0xff] %v2880
      %2889 = vst [vmem:[%s366 + $0x18] sm:$0xff] %v2881
      %2890 = vst [vmem:[%s366 + $0x20] sm:$0xff] %v2882
      %2891 = vst [vmem:[%s366 + $0x28] sm:$0xff] %v2883
      %2892 = vst [vmem:[%s366 + $0x30] sm:$0xff] %v2884
      %2893 = vst [vmem:[%s366 + $0x38] sm:$0xff] %v2885
      %s2894 = scalar_lea.vmem %s359, 64
      %v2895 = vld [vmem:[%s2894] sm:$0xff]
      %v2896 = vld [vmem:[%s2894 + $0x8] sm:$0xff]
      %v2897 = vld [vmem:[%s2894 + $0x10] sm:$0xff]
      %v2898 = vld [vmem:[%s2894 + $0x18] sm:$0xff]
      %v2899 = vld [vmem:[%s2894 + $0x20] sm:$0xff]
      %v2900 = vld [vmem:[%s2894 + $0x28] sm:$0xff]
      %v2901 = vld [vmem:[%s2894 + $0x30] sm:$0xff]
      %v2902 = vld [vmem:[%s2894 + $0x38] sm:$0xff]
      %v2903 = vld [vmem:[%s1] sm:$0xff]
      %v2904 = vld [vmem:[%s1 + $0x8] sm:$0xff]
      %v2905 = vld [vmem:[%s1 + $0x10] sm:$0xff]
      %v2906 = vld [vmem:[%s1 + $0x18] sm:$0xff]
      %v2907 = vld [vmem:[%s1 + $0x20] sm:$0xff]
      %v2908 = vld [vmem:[%s1 + $0x28] sm:$0xff]
      %v2909 = vld [vmem:[%s1 + $0x30] sm:$0xff]
      %v2910 = vld [vmem:[%s1 + $0x38] sm:$0xff]
      %v2911 = vld [vmem:[%s1 + $0x40] sm:$0xff]
      %v2912 = vld [vmem:[%s1 + $0x48] sm:$0xff]
      %v2913 = vld [vmem:[%s1 + $0x50] sm:$0xff]
      %v2914 = vld [vmem:[%s1 + $0x58] sm:$0xff]
      %v2915 = vld [vmem:[%s1 + $0x60] sm:$0xff]
      %v2916 = vld [vmem:[%s1 + $0x68] sm:$0xff]
      %v2917 = vld [vmem:[%s1 + $0x70] sm:$0xff]
      %v2918 = vld [vmem:[%s1 + $0x78] sm:$0xff]
      %v2919 = vld [vmem:[%s4] sm:$0x1]
      %v2921 = vperm.slane %v2919, 0
      %2923 = vmatpush.msra.mxu0 %v2918
      %2924 = vmatpush.msra.mxu0 %v2917
      %2925 = vmatpush.msra.mxu0 %v2916
      %2926 = vmatpush.msra.mxu0 %v2915
      %2927 = vmatpush.msra.mxu0 %v2914
      %2928 = vmatpush.msra.mxu0 %v2913
      %2929 = vmatpush.msra.mxu0 %v2912
      %2930 = vmatpush.msra.mxu0 %v2911
      %2931 = vmatpush.msra.mxu0 %v2910
      %2932 = vmatpush.msra.mxu0 %v2909
      %2933 = vmatpush.msra.mxu0 %v2908
      %2934 = vmatpush.msra.mxu0 %v2907
      %2935 = vmatpush.msra.mxu0 %v2906
      %2936 = vmatpush.msra.mxu0 %v2905
      %2937 = vmatpush.msra.mxu0 %v2904
      %2938 = vmatpush.msra.mxu0 %v2903
      %2939 = vmatmul.f32.gmra.mxu0 %v2895
      %v2940 = vpop.f32.mrf.mxu0
      %v2941 = vadd.f32 %v2921, %v2940
      %2942 = vmatmul.f32.gmra.mxu0 %v2896
      %v2943 = vpop.f32.mrf.mxu0
      %v2944 = vadd.f32 %v2921, %v2943
      %2945 = vmatmul.f32.gmra.mxu0 %v2897
      %v2946 = vpop.f32.mrf.mxu0
      %v2947 = vadd.f32 %v2921, %v2946
      %2948 = vmatmul.f32.gmra.mxu0 %v2898
      %v2949 = vpop.f32.mrf.mxu0
      %v2950 = vadd.f32 %v2921, %v2949
      %2951 = vmatmul.f32.gmra.mxu0 %v2899
      %v2952 = vpop.f32.mrf.mxu0
      %v2953 = vadd.f32 %v2921, %v2952
      %2954 = vmatmul.f32.gmra.mxu0 %v2900
      %v2955 = vpop.f32.mrf.mxu0
      %v2956 = vadd.f32 %v2921, %v2955
      %2957 = vmatmul.f32.gmra.mxu0 %v2901
      %v2958 = vpop.f32.mrf.mxu0
      %v2959 = vadd.f32 %v2921, %v2958
      %2960 = vmatmul.f32.gmra.mxu0 %v2902
      %v2961 = vpop.f32.mrf.mxu0
      %v2962 = vadd.f32 %v2921, %v2961
      %2963 = vdwg.mxu0
      %v2964 = vld [vmem:[%s2] sm:$0xff]
      %v2965 = vld [vmem:[%s2 + $0x8] sm:$0xff]
      %v2966 = vld [vmem:[%s2 + $0x10] sm:$0xff]
      %v2967 = vld [vmem:[%s2 + $0x18] sm:$0xff]
      %v2968 = vld [vmem:[%s2 + $0x20] sm:$0xff]
      %v2969 = vld [vmem:[%s2 + $0x28] sm:$0xff]
      %v2970 = vld [vmem:[%s2 + $0x30] sm:$0xff]
      %v2971 = vld [vmem:[%s2 + $0x38] sm:$0xff]
      %v2972 = vld [vmem:[%s2 + $0x40] sm:$0xff]
      %v2973 = vld [vmem:[%s2 + $0x48] sm:$0xff]
      %v2974 = vld [vmem:[%s2 + $0x50] sm:$0xff]
      %v2975 = vld [vmem:[%s2 + $0x58] sm:$0xff]
      %v2976 = vld [vmem:[%s2 + $0x60] sm:$0xff]
      %v2977 = vld [vmem:[%s2 + $0x68] sm:$0xff]
      %v2978 = vld [vmem:[%s2 + $0x70] sm:$0xff]
      %v2979 = vld [vmem:[%s2 + $0x78] sm:$0xff]
      %v2980 = vld [vmem:[%s5] sm:$0x1]
      %v2982 = vperm.slane %v2980, 0
      %2984 = vmatpush.msra.mxu0 %v2979
      %2985 = vmatpush.msra.mxu0 %v2978
      %2986 = vmatpush.msra.mxu0 %v2977
      %2987 = vmatpush.msra.mxu0 %v2976
      %2988 = vmatpush.msra.mxu0 %v2975
      %2989 = vmatpush.msra.mxu0 %v2974
      %2990 = vmatpush.msra.mxu0 %v2973
      %2991 = vmatpush.msra.mxu0 %v2972
      %2992 = vmatpush.msra.mxu0 %v2971
      %2993 = vmatpush.msra.mxu0 %v2970
      %2994 = vmatpush.msra.mxu0 %v2969
      %2995 = vmatpush.msra.mxu0 %v2968
      %2996 = vmatpush.msra.mxu0 %v2967
      %2997 = vmatpush.msra.mxu0 %v2966
      %2998 = vmatpush.msra.mxu0 %v2965
      %2999 = vmatpush.msra.mxu0 %v2964
      %3000 = vmatmul.f32.gmra.mxu0 %v2895
      %v3001 = vpop.f32.mrf.mxu0
      %v3002 = vadd.f32 %v2982, %v3001
      %3003 = vmatmul.f32.gmra.mxu0 %v2896
      %v3004 = vpop.f32.mrf.mxu0
      %v3005 = vadd.f32 %v2982, %v3004
      %3006 = vmatmul.f32.gmra.mxu0 %v2897
      %v3007 = vpop.f32.mrf.mxu0
      %v3008 = vadd.f32 %v2982, %v3007
      %3009 = vmatmul.f32.gmra.mxu0 %v2898
      %v3010 = vpop.f32.mrf.mxu0
      %v3011 = vadd.f32 %v2982, %v3010
      %3012 = vmatmul.f32.gmra.mxu0 %v2899
      %v3013 = vpop.f32.mrf.mxu0
      %v3014 = vadd.f32 %v2982, %v3013
      %3015 = vmatmul.f32.gmra.mxu0 %v2900
      %v3016 = vpop.f32.mrf.mxu0
      %v3017 = vadd.f32 %v2982, %v3016
      %3018 = vmatmul.f32.gmra.mxu0 %v2901
      %v3019 = vpop.f32.mrf.mxu0
      %v3020 = vadd.f32 %v2982, %v3019
      %3021 = vmatmul.f32.gmra.mxu0 %v2902
      %v3022 = vpop.f32.mrf.mxu0
      %v3023 = vadd.f32 %v2982, %v3022
      %3024 = vdwg.mxu0
      %v3025 = vld [vmem:[%s3] sm:$0xff]
      %v3026 = vld [vmem:[%s3 + $0x8] sm:$0xff]
      %v3027 = vld [vmem:[%s3 + $0x10] sm:$0xff]
      %v3028 = vld [vmem:[%s3 + $0x18] sm:$0xff]
      %v3029 = vld [vmem:[%s3 + $0x20] sm:$0xff]
      %v3030 = vld [vmem:[%s3 + $0x28] sm:$0xff]
      %v3031 = vld [vmem:[%s3 + $0x30] sm:$0xff]
      %v3032 = vld [vmem:[%s3 + $0x38] sm:$0xff]
      %v3033 = vld [vmem:[%s3 + $0x40] sm:$0xff]
      %v3034 = vld [vmem:[%s3 + $0x48] sm:$0xff]
      %v3035 = vld [vmem:[%s3 + $0x50] sm:$0xff]
      %v3036 = vld [vmem:[%s3 + $0x58] sm:$0xff]
      %v3037 = vld [vmem:[%s3 + $0x60] sm:$0xff]
      %v3038 = vld [vmem:[%s3 + $0x68] sm:$0xff]
      %v3039 = vld [vmem:[%s3 + $0x70] sm:$0xff]
      %v3040 = vld [vmem:[%s3 + $0x78] sm:$0xff]
      %v3041 = vld [vmem:[%s6] sm:$0x1]
      %v3043 = vperm.slane %v3041, 0
      %3045 = vmatpush.msra.mxu0 %v3040
      %3046 = vmatpush.msra.mxu0 %v3039
      %3047 = vmatpush.msra.mxu0 %v3038
      %3048 = vmatpush.msra.mxu0 %v3037
      %3049 = vmatpush.msra.mxu0 %v3036
      %3050 = vmatpush.msra.mxu0 %v3035
      %3051 = vmatpush.msra.mxu0 %v3034
      %3052 = vmatpush.msra.mxu0 %v3033
      %3053 = vmatpush.msra.mxu0 %v3032
      %3054 = vmatpush.msra.mxu0 %v3031
      %3055 = vmatpush.msra.mxu0 %v3030
      %3056 = vmatpush.msra.mxu0 %v3029
      %3057 = vmatpush.msra.mxu0 %v3028
      %3058 = vmatpush.msra.mxu0 %v3027
      %3059 = vmatpush.msra.mxu0 %v3026
      %3060 = vmatpush.msra.mxu0 %v3025
      %3061 = vmatmul.f32.gmra.mxu0 %v2895
      %v3062 = vpop.f32.mrf.mxu0
      %v3063 = vadd.f32 %v3043, %v3062
      %3064 = vmatmul.f32.gmra.mxu0 %v2896
      %v3065 = vpop.f32.mrf.mxu0
      %v3066 = vadd.f32 %v3043, %v3065
      %3067 = vmatmul.f32.gmra.mxu0 %v2897
      %v3068 = vpop.f32.mrf.mxu0
      %v3069 = vadd.f32 %v3043, %v3068
      %3070 = vmatmul.f32.gmra.mxu0 %v2898
      %v3071 = vpop.f32.mrf.mxu0
      %v3072 = vadd.f32 %v3043, %v3071
      %3073 = vmatmul.f32.gmra.mxu0 %v2899
      %v3074 = vpop.f32.mrf.mxu0
      %v3075 = vadd.f32 %v3043, %v3074
      %3076 = vmatmul.f32.gmra.mxu0 %v2900
      %v3077 = vpop.f32.mrf.mxu0
      %v3078 = vadd.f32 %v3043, %v3077
      %3079 = vmatmul.f32.gmra.mxu0 %v2901
      %v3080 = vpop.f32.mrf.mxu0
      %v3081 = vadd.f32 %v3043, %v3080
      %3082 = vmatmul.f32.gmra.mxu0 %v2902
      %v3083 = vpop.f32.mrf.mxu0
      %v3084 = vadd.f32 %v3043, %v3083
      %3085 = vdwg.mxu0
      %v3086 = vmul.f32 %v2941, 0.17677669
      %v3087 = vmul.f32 %v2944, 0.17677669
      %v3088 = vmul.f32 %v2947, 0.17677669
      %v3089 = vmul.f32 %v2950, 0.17677669
      %v3090 = vmul.f32 %v2953, 0.17677669
      %v3091 = vmul.f32 %v2956, 0.17677669
      %v3092 = vmul.f32 %v2959, 0.17677669
      %v3093 = vmul.f32 %v2962, 0.17677669
      %v3094 = vld [vmem:[%s7] sm:$0xff]
      %v3095 = vld [vmem:[%s7 + $0x8] sm:$0xff]
      %v3096 = vld [vmem:[%s7 + $0x10] sm:$0xff]
      %v3097 = vld [vmem:[%s7 + $0x18] sm:$0xff]
      %v3098 = vld [vmem:[%s7 + $0x20] sm:$0xff]
      %v3099 = vld [vmem:[%s7 + $0x28] sm:$0xff]
      %v3100 = vld [vmem:[%s7 + $0x30] sm:$0xff]
      %v3101 = vld [vmem:[%s7 + $0x38] sm:$0xff]
      %v3103 = vsel %vm575, %v3086, 0
      %v3106 = vsel %vm575, %v3087, 0
      %v3109 = vsel %vm575, %v3088, 0
      %v3112 = vsel %vm575, %v3089, 0
      %v3115 = vsel %vm575, %v3090, 0
      %v3118 = vsel %vm575, %v3091, 0
      %v3121 = vsel %vm575, %v3092, 0
      %v3124 = vsel %vm575, %v3093, 0
      %v3127 = vsel %vm575, %v3002, 0
      %v3130 = vsel %vm575, %v3005, 0
      %v3133 = vsel %vm575, %v3008, 0
      %v3136 = vsel %vm575, %v3011, 0
      %v3139 = vsel %vm575, %v3014, 0
      %v3142 = vsel %vm575, %v3017, 0
      %v3145 = vsel %vm575, %v3020, 0
      %v3148 = vsel %vm575, %v3023, 0
      %3150 = vmatpush.xpose.msra.mxu0 0.0
      %3151 = vmatpush.xpose.msra.mxu0 0.0
      %3152 = vmatpush.xpose.msra.mxu0 0.0
      %3153 = vmatpush.xpose.msra.mxu0 0.0
      %3154 = vmatpush.xpose.msra.mxu0 0.0
      %3155 = vmatpush.xpose.msra.mxu0 0.0
      %3156 = vmatpush.xpose.msra.mxu0 0.0
      %3157 = vmatpush.xpose.msra.mxu0 0.0
      %3158 = vmatpush.xpose.msra.mxu0 %v3148
      %3159 = vmatpush.xpose.msra.mxu0 %v3145
      %3160 = vmatpush.xpose.msra.mxu0 %v3142
      %3161 = vmatpush.xpose.msra.mxu0 %v3139
      %3162 = vmatpush.xpose.msra.mxu0 %v3136
      %3163 = vmatpush.xpose.msra.mxu0 %v3133
      %3164 = vmatpush.xpose.msra.mxu0 %v3130
      %3165 = vmatpush.xpose.msra.mxu0 %v3127
      %3166 = vmatmul.f32.gmra.mxu0 %v3103
      %v3167 = vpop.f32.mrf.mxu0
      %v3168 = vadd.f32 %v3094, %v3167
      %3169 = vmatmul.f32.gmra.mxu0 %v3106
      %v3170 = vpop.f32.mrf.mxu0
      %v3171 = vadd.f32 %v3095, %v3170
      %3172 = vmatmul.f32.gmra.mxu0 %v3109
      %v3173 = vpop.f32.mrf.mxu0
      %v3174 = vadd.f32 %v3096, %v3173
      %3175 = vmatmul.f32.gmra.mxu0 %v3112
      %v3176 = vpop.f32.mrf.mxu0
      %v3177 = vadd.f32 %v3097, %v3176
      %3178 = vmatmul.f32.gmra.mxu0 %v3115
      %v3179 = vpop.f32.mrf.mxu0
      %v3180 = vadd.f32 %v3098, %v3179
      %3181 = vmatmul.f32.gmra.mxu0 %v3118
      %v3182 = vpop.f32.mrf.mxu0
      %v3183 = vadd.f32 %v3099, %v3182
      %3184 = vmatmul.f32.gmra.mxu0 %v3121
      %v3185 = vpop.f32.mrf.mxu0
      %v3186 = vadd.f32 %v3100, %v3185
      %3187 = vmatmul.f32.gmra.mxu0 %v3124
      %v3188 = vpop.f32.mrf.mxu0
      %v3189 = vadd.f32 %v3101, %v3188
      %3190 = vdwg.mxu0
      %v3191 = vsel %vm665, %v3168, -inf
      %3192 = vmax.xlane.f32.xlu0 %v3191
      %v3193 = vpop.xlane.xlu0 %3192
      %v3194 = vsel %vm665, %v3171, -inf
      %3195 = vmax.xlane.f32.xlu0 %v3194
      %v3196 = vpop.xlane.xlu0 %3195
      %v3197 = vsel %vm665, %v3174, -inf
      %3198 = vmax.xlane.f32.xlu0 %v3197
      %v3199 = vpop.xlane.xlu0 %3198
      %v3200 = vsel %vm665, %v3177, -inf
      %3201 = vmax.xlane.f32.xlu0 %v3200
      %v3202 = vpop.xlane.xlu0 %3201
      %v3203 = vsel %vm665, %v3180, -inf
      %3204 = vmax.xlane.f32.xlu0 %v3203
      %v3205 = vpop.xlane.xlu0 %3204
      %v3206 = vsel %vm665, %v3183, -inf
      %3207 = vmax.xlane.f32.xlu0 %v3206
      %v3208 = vpop.xlane.xlu0 %3207
      %v3209 = vsel %vm665, %v3186, -inf
      %3210 = vmax.xlane.f32.xlu0 %v3209
      %v3211 = vpop.xlane.xlu0 %3210
      %v3212 = vsel %vm665, %v3189, -inf
      %3213 = vmax.xlane.f32.xlu0 %v3212
      %v3214 = vpop.xlane.xlu0 %3213
      %v3215 = vsub.f32 %v3168, %v3193
      %v3216 = vsub.f32 %v3171, %v3196
      %v3217 = vsub.f32 %v3174, %v3199
      %v3218 = vsub.f32 %v3177, %v3202
      %v3219 = vsub.f32 %v3180, %v3205
      %v3220 = vsub.f32 %v3183, %v3208
      %v3221 = vsub.f32 %v3186, %v3211
      %v3222 = vsub.f32 %v3189, %v3214
      %v3223 = vmul.f32 %v3215, 1.442695
      %v3224 = vpow.pop %v3223
      %v3225 = vmul.f32 %v3216, 1.442695
      %v3226 = vpow.pop %v3225
      %v3227 = vmul.f32 %v3217, 1.442695
      %v3228 = vpow.pop %v3227
      %v3229 = vmul.f32 %v3218, 1.442695
      %v3230 = vpow.pop %v3229
      %v3231 = vmul.f32 %v3219, 1.442695
      %v3232 = vpow.pop %v3231
      %v3233 = vmul.f32 %v3220, 1.442695
      %v3234 = vpow.pop %v3233
      %v3235 = vmul.f32 %v3221, 1.442695
      %v3236 = vpow.pop %v3235
      %v3237 = vmul.f32 %v3222, 1.442695
      %v3238 = vpow.pop %v3237
      %v3239 = vsel %vm665, %v3224, 0.0
      %3240 = vadd.xlane.f32.xlu0 %v3239
      %v3241 = vpop.xlane.xlu0 %3240
      %v3242 = vsel %vm665, %v3226, 0.0
      %3243 = vadd.xlane.f32.xlu0 %v3242
      %v3244 = vpop.xlane.xlu0 %3243
      %v3245 = vsel %vm665, %v3228, 0.0
      %3246 = vadd.xlane.f32.xlu0 %v3245
      %v3247 = vpop.xlane.xlu0 %3246
      %v3248 = vsel %vm665, %v3230, 0.0
      %3249 = vadd.xlane.f32.xlu0 %v3248
      %v3250 = vpop.xlane.xlu0 %3249
      %v3251 = vsel %vm665, %v3232, 0.0
      %3252 = vadd.xlane.f32.xlu0 %v3251
      %v3253 = vpop.xlane.xlu0 %3252
      %v3254 = vsel %vm665, %v3234, 0.0
      %3255 = vadd.xlane.f32.xlu0 %v3254
      %v3256 = vpop.xlane.xlu0 %3255
      %v3257 = vsel %vm665, %v3236, 0.0
      %3258 = vadd.xlane.f32.xlu0 %v3257
      %v3259 = vpop.xlane.xlu0 %3258
      %v3260 = vsel %vm665, %v3238, 0.0
      %3261 = vadd.xlane.f32.xlu0 %v3260
      %v3262 = vpop.xlane.xlu0 %3261
      %v3263 = vrcp.pop %v3241
      %v3264 = vmul.f32 %v3241, %v3263
      %v3265 = vsub.f32 1.0, %v3264
      %v3266 = vmul.f32 %v3263, %v3265
      %v3267 = vadd.f32 %v3263, %v3266
      %vm3268 = vweird.f32 %v3241
      %vm3269 = vweird.f32 %v3263
      %vm3270 = vmor %vm3268, %vm3269
      %v3271 = vsel %vm3270, %v3263, %v3267
      %v3272 = vand.u32 2147483647, %v3241
      %vm3273 = vcmp.eq.f32.partialorder %v3272, 8.507059e+37
      %v3274 = vand.u32 %v3241, 2147483648
      %v3275 = vor.u32 1.1754944e-38, %v3274
      %v3276 = vsel %vm3273, %v3275, %v3271
      %v3277 = vmul.f32 %v3224, %v3276
      %v3278 = vrcp.pop %v3244
      %v3279 = vmul.f32 %v3244, %v3278
      %v3280 = vsub.f32 1.0, %v3279
      %v3281 = vmul.f32 %v3278, %v3280
      %v3282 = vadd.f32 %v3278, %v3281
      %vm3283 = vweird.f32 %v3244
      %vm3284 = vweird.f32 %v3278
      %vm3285 = vmor %vm3283, %vm3284
      %v3286 = vsel %vm3285, %v3278, %v3282
      %v3287 = vand.u32 2147483647, %v3244
      %vm3288 = vcmp.eq.f32.partialorder %v3287, 8.507059e+37
      %v3289 = vand.u32 %v3244, 2147483648
      %v3290 = vor.u32 1.1754944e-38, %v3289
      %v3291 = vsel %vm3288, %v3290, %v3286
      %v3292 = vmul.f32 %v3226, %v3291
      %v3293 = vrcp.pop %v3247
      %v3294 = vmul.f32 %v3247, %v3293
      %v3295 = vsub.f32 1.0, %v3294
      %v3296 = vmul.f32 %v3293, %v3295
      %v3297 = vadd.f32 %v3293, %v3296
      %vm3298 = vweird.f32 %v3247
      %vm3299 = vweird.f32 %v3293
      %vm3300 = vmor %vm3298, %vm3299
      %v3301 = vsel %vm3300, %v3293, %v3297
      %v3302 = vand.u32 2147483647, %v3247
      %vm3303 = vcmp.eq.f32.partialorder %v3302, 8.507059e+37
      %v3304 = vand.u32 %v3247, 2147483648
      %v3305 = vor.u32 1.1754944e-38, %v3304
      %v3306 = vsel %vm3303, %v3305, %v3301
      %v3307 = vmul.f32 %v3228, %v3306
      %v3308 = vrcp.pop %v3250
      %v3309 = vmul.f32 %v3250, %v3308
      %v3310 = vsub.f32 1.0, %v3309
      %v3311 = vmul.f32 %v3308, %v3310
      %v3312 = vadd.f32 %v3308, %v3311
      %vm3313 = vweird.f32 %v3250
      %vm3314 = vweird.f32 %v3308
      %vm3315 = vmor %vm3313, %vm3314
      %v3316 = vsel %vm3315, %v3308, %v3312
      %v3317 = vand.u32 2147483647, %v3250
      %vm3318 = vcmp.eq.f32.partialorder %v3317, 8.507059e+37
      %v3319 = vand.u32 %v3250, 2147483648
      %v3320 = vor.u32 1.1754944e-38, %v3319
      %v3321 = vsel %vm3318, %v3320, %v3316
      %v3322 = vmul.f32 %v3230, %v3321
      %v3323 = vrcp.pop %v3253
      %v3324 = vmul.f32 %v3253, %v3323
      %v3325 = vsub.f32 1.0, %v3324
      %v3326 = vmul.f32 %v3323, %v3325
      %v3327 = vadd.f32 %v3323, %v3326
      %vm3328 = vweird.f32 %v3253
      %vm3329 = vweird.f32 %v3323
      %vm3330 = vmor %vm3328, %vm3329
      %v3331 = vsel %vm3330, %v3323, %v3327
      %v3332 = vand.u32 2147483647, %v3253
      %vm3333 = vcmp.eq.f32.partialorder %v3332, 8.507059e+37
      %v3334 = vand.u32 %v3253, 2147483648
      %v3335 = vor.u32 1.1754944e-38, %v3334
      %v3336 = vsel %vm3333, %v3335, %v3331
      %v3337 = vmul.f32 %v3232, %v3336
      %v3338 = vrcp.pop %v3256
      %v3339 = vmul.f32 %v3256, %v3338
      %v3340 = vsub.f32 1.0, %v3339
      %v3341 = vmul.f32 %v3338, %v3340
      %v3342 = vadd.f32 %v3338, %v3341
      %vm3343 = vweird.f32 %v3256
      %vm3344 = vweird.f32 %v3338
      %vm3345 = vmor %vm3343, %vm3344
      %v3346 = vsel %vm3345, %v3338, %v3342
      %v3347 = vand.u32 2147483647, %v3256
      %vm3348 = vcmp.eq.f32.partialorder %v3347, 8.507059e+37
      %v3349 = vand.u32 %v3256, 2147483648
      %v3350 = vor.u32 1.1754944e-38, %v3349
      %v3351 = vsel %vm3348, %v3350, %v3346
      %v3352 = vmul.f32 %v3234, %v3351
      %v3353 = vrcp.pop %v3259
      %v3354 = vmul.f32 %v3259, %v3353
      %v3355 = vsub.f32 1.0, %v3354
      %v3356 = vmul.f32 %v3353, %v3355
      %v3357 = vadd.f32 %v3353, %v3356
      %vm3358 = vweird.f32 %v3259
      %vm3359 = vweird.f32 %v3353
      %vm3360 = vmor %vm3358, %vm3359
      %v3361 = vsel %vm3360, %v3353, %v3357
      %v3362 = vand.u32 2147483647, %v3259
      %vm3363 = vcmp.eq.f32.partialorder %v3362, 8.507059e+37
      %v3364 = vand.u32 %v3259, 2147483648
      %v3365 = vor.u32 1.1754944e-38, %v3364
      %v3366 = vsel %vm3363, %v3365, %v3361
      %v3367 = vmul.f32 %v3236, %v3366
      %v3368 = vrcp.pop %v3262
      %v3369 = vmul.f32 %v3262, %v3368
      %v3370 = vsub.f32 1.0, %v3369
      %v3371 = vmul.f32 %v3368, %v3370
      %v3372 = vadd.f32 %v3368, %v3371
      %vm3373 = vweird.f32 %v3262
      %vm3374 = vweird.f32 %v3368
      %vm3375 = vmor %vm3373, %vm3374
      %v3376 = vsel %vm3375, %v3368, %v3372
      %v3377 = vand.u32 2147483647, %v3262
      %vm3378 = vcmp.eq.f32.partialorder %v3377, 8.507059e+37
      %v3379 = vand.u32 %v3262, 2147483648
      %v3380 = vor.u32 1.1754944e-38, %v3379
      %v3381 = vsel %vm3378, %v3380, %v3376
      %v3382 = vmul.f32 %v3238, %v3381
      %v3384 = vsel %vm665, %v3277, 0
      %v3387 = vsel %vm665, %v3292, 0
      %v3390 = vsel %vm665, %v3307, 0
      %v3393 = vsel %vm665, %v3322, 0
      %v3396 = vsel %vm665, %v3337, 0
      %v3399 = vsel %vm665, %v3352, 0
      %v3402 = vsel %vm665, %v3367, 0
      %v3405 = vsel %vm665, %v3382, 0
      %3407 = vmatpush.msra.mxu0 0.0
      %3408 = vmatpush.msra.mxu0 0.0
      %3409 = vmatpush.msra.mxu0 0.0
      %3410 = vmatpush.msra.mxu0 0.0
      %3411 = vmatpush.msra.mxu0 0.0
      %3412 = vmatpush.msra.mxu0 0.0
      %3413 = vmatpush.msra.mxu0 0.0
      %3414 = vmatpush.msra.mxu0 0.0
      %3415 = vmatpush.msra.mxu0 %v3084
      %3416 = vmatpush.msra.mxu0 %v3081
      %3417 = vmatpush.msra.mxu0 %v3078
      %3418 = vmatpush.msra.mxu0 %v3075
      %3419 = vmatpush.msra.mxu0 %v3072
      %3420 = vmatpush.msra.mxu0 %v3069
      %3421 = vmatpush.msra.mxu0 %v3066
      %3422 = vmatpush.msra.mxu0 %v3063
      %3423 = vmatmul.f32.gmra.mxu0 %v3384
      %v3424 = vpop.f32.mrf.mxu0
      %v3425 = vadd.f32 0.0, %v3424
      %3426 = vmatmul.f32.gmra.mxu0 %v3387
      %v3427 = vpop.f32.mrf.mxu0
      %v3428 = vadd.f32 0.0, %v3427
      %3429 = vmatmul.f32.gmra.mxu0 %v3390
      %v3430 = vpop.f32.mrf.mxu0
      %v3431 = vadd.f32 0.0, %v3430
      %3432 = vmatmul.f32.gmra.mxu0 %v3393
      %v3433 = vpop.f32.mrf.mxu0
      %v3434 = vadd.f32 0.0, %v3433
      %3435 = vmatmul.f32.gmra.mxu0 %v3396
      %v3436 = vpop.f32.mrf.mxu0
      %v3437 = vadd.f32 0.0, %v3436
      %3438 = vmatmul.f32.gmra.mxu0 %v3399
      %v3439 = vpop.f32.mrf.mxu0
      %v3440 = vadd.f32 0.0, %v3439
      %3441 = vmatmul.f32.gmra.mxu0 %v3402
      %v3442 = vpop.f32.mrf.mxu0
      %v3443 = vadd.f32 0.0, %v3442
      %3444 = vmatmul.f32.gmra.mxu0 %v3405
      %v3445 = vpop.f32.mrf.mxu0
      %v3446 = vadd.f32 0.0, %v3445
      %3447 = vdwg.mxu0
      %v3448 = vld [vmem:[%s8] sm:$0xff]
      %v3449 = vld [vmem:[%s8 + $0x8] sm:$0xff]
      %v3450 = vld [vmem:[%s8 + $0x10] sm:$0xff]
      %v3451 = vld [vmem:[%s8 + $0x18] sm:$0xff]
      %v3452 = vld [vmem:[%s927] sm:$0xff]
      %v3453 = vld [vmem:[%s927 + $0x8] sm:$0xff]
      %v3454 = vld [vmem:[%s927 + $0x10] sm:$0xff]
      %v3455 = vld [vmem:[%s927 + $0x18] sm:$0xff]
      %v3456 = vld [vmem:[%s927 + $0x20] sm:$0xff]
      %v3457 = vld [vmem:[%s927 + $0x28] sm:$0xff]
      %v3458 = vld [vmem:[%s927 + $0x30] sm:$0xff]
      %v3459 = vld [vmem:[%s927 + $0x38] sm:$0xff]
      %v3460 = vld [vmem:[%s927 + $0x40] sm:$0xff]
      %v3461 = vld [vmem:[%s927 + $0x48] sm:$0xff]
      %v3462 = vld [vmem:[%s927 + $0x50] sm:$0xff]
      %v3463 = vld [vmem:[%s927 + $0x58] sm:$0xff]
      %v3464 = vld [vmem:[%s927 + $0x60] sm:$0xff]
      %v3465 = vld [vmem:[%s927 + $0x68] sm:$0xff]
      %v3466 = vld [vmem:[%s927 + $0x70] sm:$0xff]
      %v3467 = vld [vmem:[%s927 + $0x78] sm:$0xff]
      %v3468 = vld [vmem:[%s944] sm:$0x1]
      %v3470 = vperm.slane %v3468, 0
      %3472 = vmatpush.msra.mxu0 %v3467
      %3473 = vmatpush.msra.mxu0 %v3466
      %3474 = vmatpush.msra.mxu0 %v3465
      %3475 = vmatpush.msra.mxu0 %v3464
      %3476 = vmatpush.msra.mxu0 %v3463
      %3477 = vmatpush.msra.mxu0 %v3462
      %3478 = vmatpush.msra.mxu0 %v3461
      %3479 = vmatpush.msra.mxu0 %v3460
      %3480 = vmatpush.msra.mxu0 %v3459
      %3481 = vmatpush.msra.mxu0 %v3458
      %3482 = vmatpush.msra.mxu0 %v3457
      %3483 = vmatpush.msra.mxu0 %v3456
      %3484 = vmatpush.msra.mxu0 %v3455
      %3485 = vmatpush.msra.mxu0 %v3454
      %3486 = vmatpush.msra.mxu0 %v3453
      %3487 = vmatpush.msra.mxu0 %v3452
      %3488 = vmatmul.f32.gmra.mxu0 %v2895
      %v3489 = vpop.f32.mrf.mxu0
      %v3490 = vadd.f32 %v3470, %v3489
      %3491 = vmatmul.f32.gmra.mxu0 %v2896
      %v3492 = vpop.f32.mrf.mxu0
      %v3493 = vadd.f32 %v3470, %v3492
      %3494 = vmatmul.f32.gmra.mxu0 %v2897
      %v3495 = vpop.f32.mrf.mxu0
      %v3496 = vadd.f32 %v3470, %v3495
      %3497 = vmatmul.f32.gmra.mxu0 %v2898
      %v3498 = vpop.f32.mrf.mxu0
      %v3499 = vadd.f32 %v3470, %v3498
      %3500 = vmatmul.f32.gmra.mxu0 %v2899
      %v3501 = vpop.f32.mrf.mxu0
      %v3502 = vadd.f32 %v3470, %v3501
      %3503 = vmatmul.f32.gmra.mxu0 %v2900
      %v3504 = vpop.f32.mrf.mxu0
      %v3505 = vadd.f32 %v3470, %v3504
      %3506 = vmatmul.f32.gmra.mxu0 %v2901
      %v3507 = vpop.f32.mrf.mxu0
      %v3508 = vadd.f32 %v3470, %v3507
      %3509 = vmatmul.f32.gmra.mxu0 %v2902
      %v3510 = vpop.f32.mrf.mxu0
      %v3511 = vadd.f32 %v3470, %v3510
      %3512 = vdwg.mxu0
      %v3513 = vld [vmem:[%s990] sm:$0xff]
      %v3514 = vld [vmem:[%s990 + $0x8] sm:$0xff]
      %v3515 = vld [vmem:[%s990 + $0x10] sm:$0xff]
      %v3516 = vld [vmem:[%s990 + $0x18] sm:$0xff]
      %v3517 = vld [vmem:[%s990 + $0x20] sm:$0xff]
      %v3518 = vld [vmem:[%s990 + $0x28] sm:$0xff]
      %v3519 = vld [vmem:[%s990 + $0x30] sm:$0xff]
      %v3520 = vld [vmem:[%s990 + $0x38] sm:$0xff]
      %v3521 = vld [vmem:[%s990 + $0x40] sm:$0xff]
      %v3522 = vld [vmem:[%s990 + $0x48] sm:$0xff]
      %v3523 = vld [vmem:[%s990 + $0x50] sm:$0xff]
      %v3524 = vld [vmem:[%s990 + $0x58] sm:$0xff]
      %v3525 = vld [vmem:[%s990 + $0x60] sm:$0xff]
      %v3526 = vld [vmem:[%s990 + $0x68] sm:$0xff]
      %v3527 = vld [vmem:[%s990 + $0x70] sm:$0xff]
      %v3528 = vld [vmem:[%s990 + $0x78] sm:$0xff]
      %v3529 = vld [vmem:[%s1007] sm:$0x1]
      %v3531 = vperm.slane %v3529, 0
      %3533 = vmatpush.msra.mxu0 %v3528
      %3534 = vmatpush.msra.mxu0 %v3527
      %3535 = vmatpush.msra.mxu0 %v3526
      %3536 = vmatpush.msra.mxu0 %v3525
      %3537 = vmatpush.msra.mxu0 %v3524
      %3538 = vmatpush.msra.mxu0 %v3523
      %3539 = vmatpush.msra.mxu0 %v3522
      %3540 = vmatpush.msra.mxu0 %v3521
      %3541 = vmatpush.msra.mxu0 %v3520
      %3542 = vmatpush.msra.mxu0 %v3519
      %3543 = vmatpush.msra.mxu0 %v3518
      %3544 = vmatpush.msra.mxu0 %v3517
      %3545 = vmatpush.msra.mxu0 %v3516
      %3546 = vmatpush.msra.mxu0 %v3515
      %3547 = vmatpush.msra.mxu0 %v3514
      %3548 = vmatpush.msra.mxu0 %v3513
      %3549 = vmatmul.f32.gmra.mxu0 %v2895
      %v3550 = vpop.f32.mrf.mxu0
      %v3551 = vadd.f32 %v3531, %v3550
      %3552 = vmatmul.f32.gmra.mxu0 %v2896
      %v3553 = vpop.f32.mrf.mxu0
      %v3554 = vadd.f32 %v3531, %v3553
      %3555 = vmatmul.f32.gmra.mxu0 %v2897
      %v3556 = vpop.f32.mrf.mxu0
      %v3557 = vadd.f32 %v3531, %v3556
      %3558 = vmatmul.f32.gmra.mxu0 %v2898
      %v3559 = vpop.f32.mrf.mxu0
      %v3560 = vadd.f32 %v3531, %v3559
      %3561 = vmatmul.f32.gmra.mxu0 %v2899
      %v3562 = vpop.f32.mrf.mxu0
      %v3563 = vadd.f32 %v3531, %v3562
      %3564 = vmatmul.f32.gmra.mxu0 %v2900
      %v3565 = vpop.f32.mrf.mxu0
      %v3566 = vadd.f32 %v3531, %v3565
      %3567 = vmatmul.f32.gmra.mxu0 %v2901
      %v3568 = vpop.f32.mrf.mxu0
      %v3569 = vadd.f32 %v3531, %v3568
      %3570 = vmatmul.f32.gmra.mxu0 %v2902
      %v3571 = vpop.f32.mrf.mxu0
      %v3572 = vadd.f32 %v3531, %v3571
      %3573 = vdwg.mxu0
      %v3574 = vld [vmem:[%s1053] sm:$0xff]
      %v3575 = vld [vmem:[%s1053 + $0x8] sm:$0xff]
      %v3576 = vld [vmem:[%s1053 + $0x10] sm:$0xff]
      %v3577 = vld [vmem:[%s1053 + $0x18] sm:$0xff]
      %v3578 = vld [vmem:[%s1053 + $0x20] sm:$0xff]
      %v3579 = vld [vmem:[%s1053 + $0x28] sm:$0xff]
      %v3580 = vld [vmem:[%s1053 + $0x30] sm:$0xff]
      %v3581 = vld [vmem:[%s1053 + $0x38] sm:$0xff]
      %v3582 = vld [vmem:[%s1053 + $0x40] sm:$0xff]
      %v3583 = vld [vmem:[%s1053 + $0x48] sm:$0xff]
      %v3584 = vld [vmem:[%s1053 + $0x50] sm:$0xff]
      %v3585 = vld [vmem:[%s1053 + $0x58] sm:$0xff]
      %v3586 = vld [vmem:[%s1053 + $0x60] sm:$0xff]
      %v3587 = vld [vmem:[%s1053 + $0x68] sm:$0xff]
      %v3588 = vld [vmem:[%s1053 + $0x70] sm:$0xff]
      %v3589 = vld [vmem:[%s1053 + $0x78] sm:$0xff]
      %v3590 = vld [vmem:[%s1070] sm:$0x1]
      %v3592 = vperm.slane %v3590, 0
      %3594 = vmatpush.msra.mxu0 %v3589
      %3595 = vmatpush.msra.mxu0 %v3588
      %3596 = vmatpush.msra.mxu0 %v3587
      %3597 = vmatpush.msra.mxu0 %v3586
      %3598 = vmatpush.msra.mxu0 %v3585
      %3599 = vmatpush.msra.mxu0 %v3584
      %3600 = vmatpush.msra.mxu0 %v3583
      %3601 = vmatpush.msra.mxu0 %v3582
      %3602 = vmatpush.msra.mxu0 %v3581
      %3603 = vmatpush.msra.mxu0 %v3580
      %3604 = vmatpush.msra.mxu0 %v3579
      %3605 = vmatpush.msra.mxu0 %v3578
      %3606 = vmatpush.msra.mxu0 %v3577
      %3607 = vmatpush.msra.mxu0 %v3576
      %3608 = vmatpush.msra.mxu0 %v3575
      %3609 = vmatpush.msra.mxu0 %v3574
      %3610 = vmatmul.f32.gmra.mxu0 %v2895
      %v3611 = vpop.f32.mrf.mxu0
      %v3612 = vadd.f32 %v3592, %v3611
      %3613 = vmatmul.f32.gmra.mxu0 %v2896
      %v3614 = vpop.f32.mrf.mxu0
      %v3615 = vadd.f32 %v3592, %v3614
      %3616 = vmatmul.f32.gmra.mxu0 %v2897
      %v3617 = vpop.f32.mrf.mxu0
      %v3618 = vadd.f32 %v3592, %v3617
      %3619 = vmatmul.f32.gmra.mxu0 %v2898
      %v3620 = vpop.f32.mrf.mxu0
      %v3621 = vadd.f32 %v3592, %v3620
      %3622 = vmatmul.f32.gmra.mxu0 %v2899
      %v3623 = vpop.f32.mrf.mxu0
      %v3624 = vadd.f32 %v3592, %v3623
      %3625 = vmatmul.f32.gmra.mxu0 %v2900
      %v3626 = vpop.f32.mrf.mxu0
      %v3627 = vadd.f32 %v3592, %v3626
      %3628 = vmatmul.f32.gmra.mxu0 %v2901
      %v3629 = vpop.f32.mrf.mxu0
      %v3630 = vadd.f32 %v3592, %v3629
      %3631 = vmatmul.f32.gmra.mxu0 %v2902
      %v3632 = vpop.f32.mrf.mxu0
      %v3633 = vadd.f32 %v3592, %v3632
      %3634 = vdwg.mxu0
      %v3635 = vmul.f32 %v3490, 0.17677669
      %v3636 = vmul.f32 %v3493, 0.17677669
      %v3637 = vmul.f32 %v3496, 0.17677669
      %v3638 = vmul.f32 %v3499, 0.17677669
      %v3639 = vmul.f32 %v3502, 0.17677669
      %v3640 = vmul.f32 %v3505, 0.17677669
      %v3641 = vmul.f32 %v3508, 0.17677669
      %v3642 = vmul.f32 %v3511, 0.17677669
      %v3643 = vld [vmem:[%s1124] sm:$0xff]
      %v3644 = vld [vmem:[%s1124 + $0x8] sm:$0xff]
      %v3645 = vld [vmem:[%s1124 + $0x10] sm:$0xff]
      %v3646 = vld [vmem:[%s1124 + $0x18] sm:$0xff]
      %v3647 = vld [vmem:[%s1124 + $0x20] sm:$0xff]
      %v3648 = vld [vmem:[%s1124 + $0x28] sm:$0xff]
      %v3649 = vld [vmem:[%s1124 + $0x30] sm:$0xff]
      %v3650 = vld [vmem:[%s1124 + $0x38] sm:$0xff]
      %v3652 = vsel %vm575, %v3635, 0
      %v3655 = vsel %vm575, %v3636, 0
      %v3658 = vsel %vm575, %v3637, 0
      %v3661 = vsel %vm575, %v3638, 0
      %v3664 = vsel %vm575, %v3639, 0
      %v3667 = vsel %vm575, %v3640, 0
      %v3670 = vsel %vm575, %v3641, 0
      %v3673 = vsel %vm575, %v3642, 0
      %v3676 = vsel %vm575, %v3551, 0
      %v3679 = vsel %vm575, %v3554, 0
      %v3682 = vsel %vm575, %v3557, 0
      %v3685 = vsel %vm575, %v3560, 0
      %v3688 = vsel %vm575, %v3563, 0
      %v3691 = vsel %vm575, %v3566, 0
      %v3694 = vsel %vm575, %v3569, 0
      %v3697 = vsel %vm575, %v3572, 0
      %3699 = vmatpush.xpose.msra.mxu0 0.0
      %3700 = vmatpush.xpose.msra.mxu0 0.0
      %3701 = vmatpush.xpose.msra.mxu0 0.0
      %3702 = vmatpush.xpose.msra.mxu0 0.0
      %3703 = vmatpush.xpose.msra.mxu0 0.0
      %3704 = vmatpush.xpose.msra.mxu0 0.0
      %3705 = vmatpush.xpose.msra.mxu0 0.0
      %3706 = vmatpush.xpose.msra.mxu0 0.0
      %3707 = vmatpush.xpose.msra.mxu0 %v3697
      %3708 = vmatpush.xpose.msra.mxu0 %v3694
      %3709 = vmatpush.xpose.msra.mxu0 %v3691
      %3710 = vmatpush.xpose.msra.mxu0 %v3688
      %3711 = vmatpush.xpose.msra.mxu0 %v3685
      %3712 = vmatpush.xpose.msra.mxu0 %v3682
      %3713 = vmatpush.xpose.msra.mxu0 %v3679
      %3714 = vmatpush.xpose.msra.mxu0 %v3676
      %3715 = vmatmul.f32.gmra.mxu0 %v3652
      %v3716 = vpop.f32.mrf.mxu0
      %v3717 = vadd.f32 %v3643, %v3716
      %3718 = vmatmul.f32.gmra.mxu0 %v3655
      %v3719 = vpop.f32.mrf.mxu0
      %v3720 = vadd.f32 %v3644, %v3719
      %3721 = vmatmul.f32.gmra.mxu0 %v3658
      %v3722 = vpop.f32.mrf.mxu0
      %v3723 = vadd.f32 %v3645, %v3722
      %3724 = vmatmul.f32.gmra.mxu0 %v3661
      %v3725 = vpop.f32.mrf.mxu0
      %v3726 = vadd.f32 %v3646, %v3725
      %3727 = vmatmul.f32.gmra.mxu0 %v3664
      %v3728 = vpop.f32.mrf.mxu0
      %v3729 = vadd.f32 %v3647, %v3728
      %3730 = vmatmul.f32.gmra.mxu0 %v3667
      %v3731 = vpop.f32.mrf.mxu0
      %v3732 = vadd.f32 %v3648, %v3731
      %3733 = vmatmul.f32.gmra.mxu0 %v3670
      %v3734 = vpop.f32.mrf.mxu0
      %v3735 = vadd.f32 %v3649, %v3734
      %3736 = vmatmul.f32.gmra.mxu0 %v3673
      %v3737 = vpop.f32.mrf.mxu0
      %v3738 = vadd.f32 %v3650, %v3737
      %3739 = vdwg.mxu0
      %v3740 = vsel %vm665, %v3717, -inf
      %3741 = vmax.xlane.f32.xlu0 %v3740
      %v3742 = vpop.xlane.xlu0 %3741
      %v3743 = vsel %vm665, %v3720, -inf
      %3744 = vmax.xlane.f32.xlu0 %v3743
      %v3745 = vpop.xlane.xlu0 %3744
      %v3746 = vsel %vm665, %v3723, -inf
      %3747 = vmax.xlane.f32.xlu0 %v3746
      %v3748 = vpop.xlane.xlu0 %3747
      %v3749 = vsel %vm665, %v3726, -inf
      %3750 = vmax.xlane.f32.xlu0 %v3749
      %v3751 = vpop.xlane.xlu0 %3750
      %v3752 = vsel %vm665, %v3729, -inf
      %3753 = vmax.xlane.f32.xlu0 %v3752
      %v3754 = vpop.xlane.xlu0 %3753
      %v3755 = vsel %vm665, %v3732, -inf
      %3756 = vmax.xlane.f32.xlu0 %v3755
      %v3757 = vpop.xlane.xlu0 %3756
      %v3758 = vsel %vm665, %v3735, -inf
      %3759 = vmax.xlane.f32.xlu0 %v3758
      %v3760 = vpop.xlane.xlu0 %3759
      %v3761 = vsel %vm665, %v3738, -inf
      %3762 = vmax.xlane.f32.xlu0 %v3761
      %v3763 = vpop.xlane.xlu0 %3762
      %v3764 = vsub.f32 %v3717, %v3742
      %v3765 = vsub.f32 %v3720, %v3745
      %v3766 = vsub.f32 %v3723, %v3748
      %v3767 = vsub.f32 %v3726, %v3751
      %v3768 = vsub.f32 %v3729, %v3754
      %v3769 = vsub.f32 %v3732, %v3757
      %v3770 = vsub.f32 %v3735, %v3760
      %v3771 = vsub.f32 %v3738, %v3763
      %v3772 = vmul.f32 %v3764, 1.442695
      %v3773 = vpow.pop %v3772
      %v3774 = vmul.f32 %v3765, 1.442695
      %v3775 = vpow.pop %v3774
      %v3776 = vmul.f32 %v3766, 1.442695
      %v3777 = vpow.pop %v3776
      %v3778 = vmul.f32 %v3767, 1.442695
      %v3779 = vpow.pop %v3778
      %v3780 = vmul.f32 %v3768, 1.442695
      %v3781 = vpow.pop %v3780
      %v3782 = vmul.f32 %v3769, 1.442695
      %v3783 = vpow.pop %v3782
      %v3784 = vmul.f32 %v3770, 1.442695
      %v3785 = vpow.pop %v3784
      %v3786 = vmul.f32 %v3771, 1.442695
      %v3787 = vpow.pop %v3786
      %v3788 = vsel %vm665, %v3773, 0.0
      %3789 = vadd.xlane.f32.xlu0 %v3788
      %v3790 = vpop.xlane.xlu0 %3789
      %v3791 = vsel %vm665, %v3775, 0.0
      %3792 = vadd.xlane.f32.xlu0 %v3791
      %v3793 = vpop.xlane.xlu0 %3792
      %v3794 = vsel %vm665, %v3777, 0.0
      %3795 = vadd.xlane.f32.xlu0 %v3794
      %v3796 = vpop.xlane.xlu0 %3795
      %v3797 = vsel %vm665, %v3779, 0.0
      %3798 = vadd.xlane.f32.xlu0 %v3797
      %v3799 = vpop.xlane.xlu0 %3798
      %v3800 = vsel %vm665, %v3781, 0.0
      %3801 = vadd.xlane.f32.xlu0 %v3800
      %v3802 = vpop.xlane.xlu0 %3801
      %v3803 = vsel %vm665, %v3783, 0.0
      %3804 = vadd.xlane.f32.xlu0 %v3803
      %v3805 = vpop.xlane.xlu0 %3804
      %v3806 = vsel %vm665, %v3785, 0.0
      %3807 = vadd.xlane.f32.xlu0 %v3806
      %v3808 = vpop.xlane.xlu0 %3807
      %v3809 = vsel %vm665, %v3787, 0.0
      %3810 = vadd.xlane.f32.xlu0 %v3809
      %v3811 = vpop.xlane.xlu0 %3810
      %v3812 = vrcp.pop %v3790
      %v3813 = vmul.f32 %v3790, %v3812
      %v3814 = vsub.f32 1.0, %v3813
      %v3815 = vmul.f32 %v3812, %v3814
      %v3816 = vadd.f32 %v3812, %v3815
      %vm3817 = vweird.f32 %v3790
      %vm3818 = vweird.f32 %v3812
      %vm3819 = vmor %vm3817, %vm3818
      %v3820 = vsel %vm3819, %v3812, %v3816
      %v3821 = vand.u32 2147483647, %v3790
      %vm3822 = vcmp.eq.f32.partialorder %v3821, 8.507059e+37
      %v3823 = vand.u32 %v3790, 2147483648
      %v3824 = vor.u32 1.1754944e-38, %v3823
      %v3825 = vsel %vm3822, %v3824, %v3820
      %v3826 = vmul.f32 %v3773, %v3825
      %v3827 = vrcp.pop %v3793
      %v3828 = vmul.f32 %v3793, %v3827
      %v3829 = vsub.f32 1.0, %v3828
      %v3830 = vmul.f32 %v3827, %v3829
      %v3831 = vadd.f32 %v3827, %v3830
      %vm3832 = vweird.f32 %v3793
      %vm3833 = vweird.f32 %v3827
      %vm3834 = vmor %vm3832, %vm3833
      %v3835 = vsel %vm3834, %v3827, %v3831
      %v3836 = vand.u32 2147483647, %v3793
      %vm3837 = vcmp.eq.f32.partialorder %v3836, 8.507059e+37
      %v3838 = vand.u32 %v3793, 2147483648
      %v3839 = vor.u32 1.1754944e-38, %v3838
      %v3840 = vsel %vm3837, %v3839, %v3835
      %v3841 = vmul.f32 %v3775, %v3840
      %v3842 = vrcp.pop %v3796
      %v3843 = vmul.f32 %v3796, %v3842
      %v3844 = vsub.f32 1.0, %v3843
      %v3845 = vmul.f32 %v3842, %v3844
      %v3846 = vadd.f32 %v3842, %v3845
      %vm3847 = vweird.f32 %v3796
      %vm3848 = vweird.f32 %v3842
      %vm3849 = vmor %vm3847, %vm3848
      %v3850 = vsel %vm3849, %v3842, %v3846
      %v3851 = vand.u32 2147483647, %v3796
      %vm3852 = vcmp.eq.f32.partialorder %v3851, 8.507059e+37
      %v3853 = vand.u32 %v3796, 2147483648
      %v3854 = vor.u32 1.1754944e-38, %v3853
      %v3855 = vsel %vm3852, %v3854, %v3850
      %v3856 = vmul.f32 %v3777, %v3855
      %v3857 = vrcp.pop %v3799
      %v3858 = vmul.f32 %v3799, %v3857
      %v3859 = vsub.f32 1.0, %v3858
      %v3860 = vmul.f32 %v3857, %v3859
      %v3861 = vadd.f32 %v3857, %v3860
      %vm3862 = vweird.f32 %v3799
      %vm3863 = vweird.f32 %v3857
      %vm3864 = vmor %vm3862, %vm3863
      %v3865 = vsel %vm3864, %v3857, %v3861
      %v3866 = vand.u32 2147483647, %v3799
      %vm3867 = vcmp.eq.f32.partialorder %v3866, 8.507059e+37
      %v3868 = vand.u32 %v3799, 2147483648
      %v3869 = vor.u32 1.1754944e-38, %v3868
      %v3870 = vsel %vm3867, %v3869, %v3865
      %v3871 = vmul.f32 %v3779, %v3870
      %v3872 = vrcp.pop %v3802
      %v3873 = vmul.f32 %v3802, %v3872
      %v3874 = vsub.f32 1.0, %v3873
      %v3875 = vmul.f32 %v3872, %v3874
      %v3876 = vadd.f32 %v3872, %v3875
      %vm3877 = vweird.f32 %v3802
      %vm3878 = vweird.f32 %v3872
      %vm3879 = vmor %vm3877, %vm3878
      %v3880 = vsel %vm3879, %v3872, %v3876
      %v3881 = vand.u32 2147483647, %v3802
      %vm3882 = vcmp.eq.f32.partialorder %v3881, 8.507059e+37
      %v3883 = vand.u32 %v3802, 2147483648
      %v3884 = vor.u32 1.1754944e-38, %v3883
      %v3885 = vsel %vm3882, %v3884, %v3880
      %v3886 = vmul.f32 %v3781, %v3885
      %v3887 = vrcp.pop %v3805
      %v3888 = vmul.f32 %v3805, %v3887
      %v3889 = vsub.f32 1.0, %v3888
      %v3890 = vmul.f32 %v3887, %v3889
      %v3891 = vadd.f32 %v3887, %v3890
      %vm3892 = vweird.f32 %v3805
      %vm3893 = vweird.f32 %v3887
      %vm3894 = vmor %vm3892, %vm3893
      %v3895 = vsel %vm3894, %v3887, %v3891
      %v3896 = vand.u32 2147483647, %v3805
      %vm3897 = vcmp.eq.f32.partialorder %v3896, 8.507059e+37
      %v3898 = vand.u32 %v3805, 2147483648
      %v3899 = vor.u32 1.1754944e-38, %v3898
      %v3900 = vsel %vm3897, %v3899, %v3895
      %v3901 = vmul.f32 %v3783, %v3900
      %v3902 = vrcp.pop %v3808
      %v3903 = vmul.f32 %v3808, %v3902
      %v3904 = vsub.f32 1.0, %v3903
      %v3905 = vmul.f32 %v3902, %v3904
      %v3906 = vadd.f32 %v3902, %v3905
      %vm3907 = vweird.f32 %v3808
      %vm3908 = vweird.f32 %v3902
      %vm3909 = vmor %vm3907, %vm3908
      %v3910 = vsel %vm3909, %v3902, %v3906
      %v3911 = vand.u32 2147483647, %v3808
      %vm3912 = vcmp.eq.f32.partialorder %v3911, 8.507059e+37
      %v3913 = vand.u32 %v3808, 2147483648
      %v3914 = vor.u32 1.1754944e-38, %v3913
      %v3915 = vsel %vm3912, %v3914, %v3910
      %v3916 = vmul.f32 %v3785, %v3915
      %v3917 = vrcp.pop %v3811
      %v3918 = vmul.f32 %v3811, %v3917
      %v3919 = vsub.f32 1.0, %v3918
      %v3920 = vmul.f32 %v3917, %v3919
      %v3921 = vadd.f32 %v3917, %v3920
      %vm3922 = vweird.f32 %v3811
      %vm3923 = vweird.f32 %v3917
      %vm3924 = vmor %vm3922, %vm3923
      %v3925 = vsel %vm3924, %v3917, %v3921
      %v3926 = vand.u32 2147483647, %v3811
      %vm3927 = vcmp.eq.f32.partialorder %v3926, 8.507059e+37
      %v3928 = vand.u32 %v3811, 2147483648
      %v3929 = vor.u32 1.1754944e-38, %v3928
      %v3930 = vsel %vm3927, %v3929, %v3925
      %v3931 = vmul.f32 %v3787, %v3930
      %v3933 = vsel %vm665, %v3826, 0
      %v3936 = vsel %vm665, %v3841, 0
      %v3939 = vsel %vm665, %v3856, 0
      %v3942 = vsel %vm665, %v3871, 0
      %v3945 = vsel %vm665, %v3886, 0
      %v3948 = vsel %vm665, %v3901, 0
      %v3951 = vsel %vm665, %v3916, 0
      %v3954 = vsel %vm665, %v3931, 0
      %3956 = vmatpush.msra.mxu0 0.0
      %3957 = vmatpush.msra.mxu0 0.0
      %3958 = vmatpush.msra.mxu0 0.0
      %3959 = vmatpush.msra.mxu0 0.0
      %3960 = vmatpush.msra.mxu0 0.0
      %3961 = vmatpush.msra.mxu0 0.0
      %3962 = vmatpush.msra.mxu0 0.0
      %3963 = vmatpush.msra.mxu0 0.0
      %3964 = vmatpush.msra.mxu0 %v3633
      %3965 = vmatpush.msra.mxu0 %v3630
      %3966 = vmatpush.msra.mxu0 %v3627
      %3967 = vmatpush.msra.mxu0 %v3624
      %3968 = vmatpush.msra.mxu0 %v3621
      %3969 = vmatpush.msra.mxu0 %v3618
      %3970 = vmatpush.msra.mxu0 %v3615
      %3971 = vmatpush.msra.mxu0 %v3612
      %3972 = vmatmul.f32.gmra.mxu0 %v3933
      %v3973 = vpop.f32.mrf.mxu0
      %v3974 = vadd.f32 0.0, %v3973
      %3975 = vmatmul.f32.gmra.mxu0 %v3936
      %v3976 = vpop.f32.mrf.mxu0
      %v3977 = vadd.f32 0.0, %v3976
      %3978 = vmatmul.f32.gmra.mxu0 %v3939
      %v3979 = vpop.f32.mrf.mxu0
      %v3980 = vadd.f32 0.0, %v3979
      %3981 = vmatmul.f32.gmra.mxu0 %v3942
      %v3982 = vpop.f32.mrf.mxu0
      %v3983 = vadd.f32 0.0, %v3982
      %3984 = vmatmul.f32.gmra.mxu0 %v3945
      %v3985 = vpop.f32.mrf.mxu0
      %v3986 = vadd.f32 0.0, %v3985
      %3987 = vmatmul.f32.gmra.mxu0 %v3948
      %v3988 = vpop.f32.mrf.mxu0
      %v3989 = vadd.f32 0.0, %v3988
      %3990 = vmatmul.f32.gmra.mxu0 %v3951
      %v3991 = vpop.f32.mrf.mxu0
      %v3992 = vadd.f32 0.0, %v3991
      %3993 = vmatmul.f32.gmra.mxu0 %v3954
      %v3994 = vpop.f32.mrf.mxu0
      %v3995 = vadd.f32 0.0, %v3994
      %3996 = vdwg.mxu0
      %v3997 = vld [vmem:[%s1479] sm:$0xff]
      %v3998 = vld [vmem:[%s1479 + $0x8] sm:$0xff]
      %v3999 = vld [vmem:[%s1479 + $0x10] sm:$0xff]
      %v4000 = vld [vmem:[%s1479 + $0x18] sm:$0xff]
      %v4002 = vsel %vm575, %v3974, 0
      %v4005 = vsel %vm575, %v3977, 0
      %v4008 = vsel %vm575, %v3980, 0
      %v4011 = vsel %vm575, %v3983, 0
      %v4014 = vsel %vm575, %v3986, 0
      %v4017 = vsel %vm575, %v3989, 0
      %v4020 = vsel %vm575, %v3992, 0
      %v4023 = vsel %vm575, %v3995, 0
      %4025 = vmatpush.msra.mxu0 0.0
      %4026 = vmatpush.msra.mxu0 0.0
      %4027 = vmatpush.msra.mxu0 0.0
      %4028 = vmatpush.msra.mxu0 0.0
      %4029 = vmatpush.msra.mxu0 0.0
      %4030 = vmatpush.msra.mxu0 0.0
      %4031 = vmatpush.msra.mxu0 0.0
      %4032 = vmatpush.msra.mxu0 0.0
      %4033 = vmatpush.msra.mxu0 0.0
      %4034 = vmatpush.msra.mxu0 0.0
      %4035 = vmatpush.msra.mxu0 0.0
      %4036 = vmatpush.msra.mxu0 0.0
      %4037 = vmatpush.msra.mxu0 %v4000
      %4038 = vmatpush.msra.mxu0 %v3999
      %4039 = vmatpush.msra.mxu0 %v3998
      %4040 = vmatpush.msra.mxu0 %v3997
      %4041 = vmatmul.f32.gmra.mxu0 %v4002
      %v4042 = vpop.f32.mrf.mxu0
      %v4043 = vadd.f32 0.0, %v4042
      %4044 = vmatmul.f32.gmra.mxu0 %v4005
      %v4045 = vpop.f32.mrf.mxu0
      %v4046 = vadd.f32 0.0, %v4045
      %4047 = vmatmul.f32.gmra.mxu0 %v4008
      %v4048 = vpop.f32.mrf.mxu0
      %v4049 = vadd.f32 0.0, %v4048
      %4050 = vmatmul.f32.gmra.mxu0 %v4011
      %v4051 = vpop.f32.mrf.mxu0
      %v4052 = vadd.f32 0.0, %v4051
      %4053 = vmatmul.f32.gmra.mxu0 %v4014
      %v4054 = vpop.f32.mrf.mxu0
      %v4055 = vadd.f32 0.0, %v4054
      %4056 = vmatmul.f32.gmra.mxu0 %v4017
      %v4057 = vpop.f32.mrf.mxu0
      %v4058 = vadd.f32 0.0, %v4057
      %4059 = vmatmul.f32.gmra.mxu0 %v4020
      %v4060 = vpop.f32.mrf.mxu0
      %v4061 = vadd.f32 0.0, %v4060
      %4062 = vmatmul.f32.gmra.mxu0 %v4023
      %v4063 = vpop.f32.mrf.mxu0
      %v4064 = vadd.f32 0.0, %v4063
      %4065 = vdwg.mxu0
      %v4067 = vsel %vm575, %v3425, 0
      %v4070 = vsel %vm575, %v3428, 0
      %v4073 = vsel %vm575, %v3431, 0
      %v4076 = vsel %vm575, %v3434, 0
      %v4079 = vsel %vm575, %v3437, 0
      %v4082 = vsel %vm575, %v3440, 0
      %v4085 = vsel %vm575, %v3443, 0
      %v4088 = vsel %vm575, %v3446, 0
      %4090 = vmatpush.msra.mxu0 0.0
      %4091 = vmatpush.msra.mxu0 0.0
      %4092 = vmatpush.msra.mxu0 0.0
      %4093 = vmatpush.msra.mxu0 0.0
      %4094 = vmatpush.msra.mxu0 0.0
      %4095 = vmatpush.msra.mxu0 0.0
      %4096 = vmatpush.msra.mxu0 0.0
      %4097 = vmatpush.msra.mxu0 0.0
      %4098 = vmatpush.msra.mxu0 0.0
      %4099 = vmatpush.msra.mxu0 0.0
      %4100 = vmatpush.msra.mxu0 0.0
      %4101 = vmatpush.msra.mxu0 0.0
      %4102 = vmatpush.msra.mxu0 %v3451
      %4103 = vmatpush.msra.mxu0 %v3450
      %4104 = vmatpush.msra.mxu0 %v3449
      %4105 = vmatpush.msra.mxu0 %v3448
      %4106 = vmatmul.f32.gmra.mxu0 %v4067
      %v4107 = vpop.f32.mrf.mxu0
      %v4108 = vadd.f32 %v4043, %v4107
      %4109 = vmatmul.f32.gmra.mxu0 %v4070
      %v4110 = vpop.f32.mrf.mxu0
      %v4111 = vadd.f32 %v4046, %v4110
      %4112 = vmatmul.f32.gmra.mxu0 %v4073
      %v4113 = vpop.f32.mrf.mxu0
      %v4114 = vadd.f32 %v4049, %v4113
      %4115 = vmatmul.f32.gmra.mxu0 %v4076
      %v4116 = vpop.f32.mrf.mxu0
      %v4117 = vadd.f32 %v4052, %v4116
      %4118 = vmatmul.f32.gmra.mxu0 %v4079
      %v4119 = vpop.f32.mrf.mxu0
      %v4120 = vadd.f32 %v4055, %v4119
      %4121 = vmatmul.f32.gmra.mxu0 %v4082
      %v4122 = vpop.f32.mrf.mxu0
      %v4123 = vadd.f32 %v4058, %v4122
      %4124 = vmatmul.f32.gmra.mxu0 %v4085
      %v4125 = vpop.f32.mrf.mxu0
      %v4126 = vadd.f32 %v4061, %v4125
      %4127 = vmatmul.f32.gmra.mxu0 %v4088
      %v4128 = vpop.f32.mrf.mxu0
      %v4129 = vadd.f32 %v4064, %v4128
      %4130 = vdwg.mxu0
      %v4131 = vld [vmem:[%s1614] sm:$0xff]
      %v4132 = vld [vmem:[%s1614 + $0x8] sm:$0xff]
      %v4133 = vld [vmem:[%s1614 + $0x10] sm:$0xff]
      %v4134 = vld [vmem:[%s1614 + $0x18] sm:$0xff]
      %v4135 = vld [vmem:[%s1614 + $0x20] sm:$0xff]
      %v4136 = vld [vmem:[%s1614 + $0x28] sm:$0xff]
      %v4137 = vld [vmem:[%s1614 + $0x30] sm:$0xff]
      %v4138 = vld [vmem:[%s1614 + $0x38] sm:$0xff]
      %v4139 = vld [vmem:[%s1614 + $0x40] sm:$0xff]
      %v4140 = vld [vmem:[%s1614 + $0x48] sm:$0xff]
      %v4141 = vld [vmem:[%s1614 + $0x50] sm:$0xff]
      %v4142 = vld [vmem:[%s1614 + $0x58] sm:$0xff]
      %v4143 = vld [vmem:[%s1614 + $0x60] sm:$0xff]
      %v4144 = vld [vmem:[%s1614 + $0x68] sm:$0xff]
      %v4145 = vld [vmem:[%s1614 + $0x70] sm:$0xff]
      %v4146 = vld [vmem:[%s1614 + $0x78] sm:$0xff]
      %v4147 = vld [vmem:[%s1631] sm:$0x1]
      %v4149 = vperm.slane %v4147, 0
      %4151 = vmatpush.msra.mxu0 %v4146
      %4152 = vmatpush.msra.mxu0 %v4145
      %4153 = vmatpush.msra.mxu0 %v4144
      %4154 = vmatpush.msra.mxu0 %v4143
      %4155 = vmatpush.msra.mxu0 %v4142
      %4156 = vmatpush.msra.mxu0 %v4141
      %4157 = vmatpush.msra.mxu0 %v4140
      %4158 = vmatpush.msra.mxu0 %v4139
      %4159 = vmatpush.msra.mxu0 %v4138
      %4160 = vmatpush.msra.mxu0 %v4137
      %4161 = vmatpush.msra.mxu0 %v4136
      %4162 = vmatpush.msra.mxu0 %v4135
      %4163 = vmatpush.msra.mxu0 %v4134
      %4164 = vmatpush.msra.mxu0 %v4133
      %4165 = vmatpush.msra.mxu0 %v4132
      %4166 = vmatpush.msra.mxu0 %v4131
      %4167 = vmatmul.f32.gmra.mxu0 %v2895
      %v4168 = vpop.f32.mrf.mxu0
      %v4169 = vadd.f32 %v4149, %v4168
      %4170 = vmatmul.f32.gmra.mxu0 %v2896
      %v4171 = vpop.f32.mrf.mxu0
      %v4172 = vadd.f32 %v4149, %v4171
      %4173 = vmatmul.f32.gmra.mxu0 %v2897
      %v4174 = vpop.f32.mrf.mxu0
      %v4175 = vadd.f32 %v4149, %v4174
      %4176 = vmatmul.f32.gmra.mxu0 %v2898
      %v4177 = vpop.f32.mrf.mxu0
      %v4178 = vadd.f32 %v4149, %v4177
      %4179 = vmatmul.f32.gmra.mxu0 %v2899
      %v4180 = vpop.f32.mrf.mxu0
      %v4181 = vadd.f32 %v4149, %v4180
      %4182 = vmatmul.f32.gmra.mxu0 %v2900
      %v4183 = vpop.f32.mrf.mxu0
      %v4184 = vadd.f32 %v4149, %v4183
      %4185 = vmatmul.f32.gmra.mxu0 %v2901
      %v4186 = vpop.f32.mrf.mxu0
      %v4187 = vadd.f32 %v4149, %v4186
      %4188 = vmatmul.f32.gmra.mxu0 %v2902
      %v4189 = vpop.f32.mrf.mxu0
      %v4190 = vadd.f32 %v4149, %v4189
      %4191 = vdwg.mxu0
      %v4192 = vld [vmem:[%s1677] sm:$0xff]
      %v4193 = vld [vmem:[%s1677 + $0x8] sm:$0xff]
      %v4194 = vld [vmem:[%s1677 + $0x10] sm:$0xff]
      %v4195 = vld [vmem:[%s1677 + $0x18] sm:$0xff]
      %v4196 = vld [vmem:[%s1677 + $0x20] sm:$0xff]
      %v4197 = vld [vmem:[%s1677 + $0x28] sm:$0xff]
      %v4198 = vld [vmem:[%s1677 + $0x30] sm:$0xff]
      %v4199 = vld [vmem:[%s1677 + $0x38] sm:$0xff]
      %v4200 = vld [vmem:[%s1677 + $0x40] sm:$0xff]
      %v4201 = vld [vmem:[%s1677 + $0x48] sm:$0xff]
      %v4202 = vld [vmem:[%s1677 + $0x50] sm:$0xff]
      %v4203 = vld [vmem:[%s1677 + $0x58] sm:$0xff]
      %v4204 = vld [vmem:[%s1677 + $0x60] sm:$0xff]
      %v4205 = vld [vmem:[%s1677 + $0x68] sm:$0xff]
      %v4206 = vld [vmem:[%s1677 + $0x70] sm:$0xff]
      %v4207 = vld [vmem:[%s1677 + $0x78] sm:$0xff]
      %v4208 = vld [vmem:[%s1694] sm:$0x1]
      %v4210 = vperm.slane %v4208, 0
      %4212 = vmatpush.msra.mxu0 %v4207
      %4213 = vmatpush.msra.mxu0 %v4206
      %4214 = vmatpush.msra.mxu0 %v4205
      %4215 = vmatpush.msra.mxu0 %v4204
      %4216 = vmatpush.msra.mxu0 %v4203
      %4217 = vmatpush.msra.mxu0 %v4202
      %4218 = vmatpush.msra.mxu0 %v4201
      %4219 = vmatpush.msra.mxu0 %v4200
      %4220 = vmatpush.msra.mxu0 %v4199
      %4221 = vmatpush.msra.mxu0 %v4198
      %4222 = vmatpush.msra.mxu0 %v4197
      %4223 = vmatpush.msra.mxu0 %v4196
      %4224 = vmatpush.msra.mxu0 %v4195
      %4225 = vmatpush.msra.mxu0 %v4194
      %4226 = vmatpush.msra.mxu0 %v4193
      %4227 = vmatpush.msra.mxu0 %v4192
      %4228 = vmatmul.f32.gmra.mxu0 %v2895
      %v4229 = vpop.f32.mrf.mxu0
      %v4230 = vadd.f32 %v4210, %v4229
      %4231 = vmatmul.f32.gmra.mxu0 %v2896
      %v4232 = vpop.f32.mrf.mxu0
      %v4233 = vadd.f32 %v4210, %v4232
      %4234 = vmatmul.f32.gmra.mxu0 %v2897
      %v4235 = vpop.f32.mrf.mxu0
      %v4236 = vadd.f32 %v4210, %v4235
      %4237 = vmatmul.f32.gmra.mxu0 %v2898
      %v4238 = vpop.f32.mrf.mxu0
      %v4239 = vadd.f32 %v4210, %v4238
      %4240 = vmatmul.f32.gmra.mxu0 %v2899
      %v4241 = vpop.f32.mrf.mxu0
      %v4242 = vadd.f32 %v4210, %v4241
      %4243 = vmatmul.f32.gmra.mxu0 %v2900
      %v4244 = vpop.f32.mrf.mxu0
      %v4245 = vadd.f32 %v4210, %v4244
      %4246 = vmatmul.f32.gmra.mxu0 %v2901
      %v4247 = vpop.f32.mrf.mxu0
      %v4248 = vadd.f32 %v4210, %v4247
      %4249 = vmatmul.f32.gmra.mxu0 %v2902
      %v4250 = vpop.f32.mrf.mxu0
      %v4251 = vadd.f32 %v4210, %v4250
      %4252 = vdwg.mxu0
      %v4253 = vld [vmem:[%s1740] sm:$0xff]
      %v4254 = vld [vmem:[%s1740 + $0x8] sm:$0xff]
      %v4255 = vld [vmem:[%s1740 + $0x10] sm:$0xff]
      %v4256 = vld [vmem:[%s1740 + $0x18] sm:$0xff]
      %v4257 = vld [vmem:[%s1740 + $0x20] sm:$0xff]
      %v4258 = vld [vmem:[%s1740 + $0x28] sm:$0xff]
      %v4259 = vld [vmem:[%s1740 + $0x30] sm:$0xff]
      %v4260 = vld [vmem:[%s1740 + $0x38] sm:$0xff]
      %v4261 = vld [vmem:[%s1740 + $0x40] sm:$0xff]
      %v4262 = vld [vmem:[%s1740 + $0x48] sm:$0xff]
      %v4263 = vld [vmem:[%s1740 + $0x50] sm:$0xff]
      %v4264 = vld [vmem:[%s1740 + $0x58] sm:$0xff]
      %v4265 = vld [vmem:[%s1740 + $0x60] sm:$0xff]
      %v4266 = vld [vmem:[%s1740 + $0x68] sm:$0xff]
      %v4267 = vld [vmem:[%s1740 + $0x70] sm:$0xff]
      %v4268 = vld [vmem:[%s1740 + $0x78] sm:$0xff]
      %v4269 = vld [vmem:[%s1757] sm:$0x1]
      %v4271 = vperm.slane %v4269, 0
      %4273 = vmatpush.msra.mxu0 %v4268
      %4274 = vmatpush.msra.mxu0 %v4267
      %4275 = vmatpush.msra.mxu0 %v4266
      %4276 = vmatpush.msra.mxu0 %v4265
      %4277 = vmatpush.msra.mxu0 %v4264
      %4278 = vmatpush.msra.mxu0 %v4263
      %4279 = vmatpush.msra.mxu0 %v4262
      %4280 = vmatpush.msra.mxu0 %v4261
      %4281 = vmatpush.msra.mxu0 %v4260
      %4282 = vmatpush.msra.mxu0 %v4259
      %4283 = vmatpush.msra.mxu0 %v4258
      %4284 = vmatpush.msra.mxu0 %v4257
      %4285 = vmatpush.msra.mxu0 %v4256
      %4286 = vmatpush.msra.mxu0 %v4255
      %4287 = vmatpush.msra.mxu0 %v4254
      %4288 = vmatpush.msra.mxu0 %v4253
      %4289 = vmatmul.f32.gmra.mxu0 %v2895
      %v4290 = vpop.f32.mrf.mxu0
      %v4291 = vadd.f32 %v4271, %v4290
      %4292 = vmatmul.f32.gmra.mxu0 %v2896
      %v4293 = vpop.f32.mrf.mxu0
      %v4294 = vadd.f32 %v4271, %v4293
      %4295 = vmatmul.f32.gmra.mxu0 %v2897
      %v4296 = vpop.f32.mrf.mxu0
      %v4297 = vadd.f32 %v4271, %v4296
      %4298 = vmatmul.f32.gmra.mxu0 %v2898
      %v4299 = vpop.f32.mrf.mxu0
      %v4300 = vadd.f32 %v4271, %v4299
      %4301 = vmatmul.f32.gmra.mxu0 %v2899
      %v4302 = vpop.f32.mrf.mxu0
      %v4303 = vadd.f32 %v4271, %v4302
      %4304 = vmatmul.f32.gmra.mxu0 %v2900
      %v4305 = vpop.f32.mrf.mxu0
      %v4306 = vadd.f32 %v4271, %v4305
      %4307 = vmatmul.f32.gmra.mxu0 %v2901
      %v4308 = vpop.f32.mrf.mxu0
      %v4309 = vadd.f32 %v4271, %v4308
      %4310 = vmatmul.f32.gmra.mxu0 %v2902
      %v4311 = vpop.f32.mrf.mxu0
      %v4312 = vadd.f32 %v4271, %v4311
      %4313 = vdwg.mxu0
      %v4314 = vmul.f32 %v4169, 0.17677669
      %v4315 = vmul.f32 %v4172, 0.17677669
      %v4316 = vmul.f32 %v4175, 0.17677669
      %v4317 = vmul.f32 %v4178, 0.17677669
      %v4318 = vmul.f32 %v4181, 0.17677669
      %v4319 = vmul.f32 %v4184, 0.17677669
      %v4320 = vmul.f32 %v4187, 0.17677669
      %v4321 = vmul.f32 %v4190, 0.17677669
      %v4322 = vld [vmem:[%s1811] sm:$0xff]
      %v4323 = vld [vmem:[%s1811 + $0x8] sm:$0xff]
      %v4324 = vld [vmem:[%s1811 + $0x10] sm:$0xff]
      %v4325 = vld [vmem:[%s1811 + $0x18] sm:$0xff]
      %v4326 = vld [vmem:[%s1811 + $0x20] sm:$0xff]
      %v4327 = vld [vmem:[%s1811 + $0x28] sm:$0xff]
      %v4328 = vld [vmem:[%s1811 + $0x30] sm:$0xff]
      %v4329 = vld [vmem:[%s1811 + $0x38] sm:$0xff]
      %v4331 = vsel %vm575, %v4314, 0
      %v4334 = vsel %vm575, %v4315, 0
      %v4337 = vsel %vm575, %v4316, 0
      %v4340 = vsel %vm575, %v4317, 0
      %v4343 = vsel %vm575, %v4318, 0
      %v4346 = vsel %vm575, %v4319, 0
      %v4349 = vsel %vm575, %v4320, 0
      %v4352 = vsel %vm575, %v4321, 0
      %v4355 = vsel %vm575, %v4230, 0
      %v4358 = vsel %vm575, %v4233, 0
      %v4361 = vsel %vm575, %v4236, 0
      %v4364 = vsel %vm575, %v4239, 0
      %v4367 = vsel %vm575, %v4242, 0
      %v4370 = vsel %vm575, %v4245, 0
      %v4373 = vsel %vm575, %v4248, 0
      %v4376 = vsel %vm575, %v4251, 0
      %4378 = vmatpush.xpose.msra.mxu0 0.0
      %4379 = vmatpush.xpose.msra.mxu0 0.0
      %4380 = vmatpush.xpose.msra.mxu0 0.0
      %4381 = vmatpush.xpose.msra.mxu0 0.0
      %4382 = vmatpush.xpose.msra.mxu0 0.0
      %4383 = vmatpush.xpose.msra.mxu0 0.0
      %4384 = vmatpush.xpose.msra.mxu0 0.0
      %4385 = vmatpush.xpose.msra.mxu0 0.0
      %4386 = vmatpush.xpose.msra.mxu0 %v4376
      %4387 = vmatpush.xpose.msra.mxu0 %v4373
      %4388 = vmatpush.xpose.msra.mxu0 %v4370
      %4389 = vmatpush.xpose.msra.mxu0 %v4367
      %4390 = vmatpush.xpose.msra.mxu0 %v4364
      %4391 = vmatpush.xpose.msra.mxu0 %v4361
      %4392 = vmatpush.xpose.msra.mxu0 %v4358
      %4393 = vmatpush.xpose.msra.mxu0 %v4355
      %4394 = vmatmul.f32.gmra.mxu0 %v4331
      %v4395 = vpop.f32.mrf.mxu0
      %v4396 = vadd.f32 %v4322, %v4395
      %4397 = vmatmul.f32.gmra.mxu0 %v4334
      %v4398 = vpop.f32.mrf.mxu0
      %v4399 = vadd.f32 %v4323, %v4398
      %4400 = vmatmul.f32.gmra.mxu0 %v4337
      %v4401 = vpop.f32.mrf.mxu0
      %v4402 = vadd.f32 %v4324, %v4401
      %4403 = vmatmul.f32.gmra.mxu0 %v4340
      %v4404 = vpop.f32.mrf.mxu0
      %v4405 = vadd.f32 %v4325, %v4404
      %4406 = vmatmul.f32.gmra.mxu0 %v4343
      %v4407 = vpop.f32.mrf.mxu0
      %v4408 = vadd.f32 %v4326, %v4407
      %4409 = vmatmul.f32.gmra.mxu0 %v4346
      %v4410 = vpop.f32.mrf.mxu0
      %v4411 = vadd.f32 %v4327, %v4410
      %4412 = vmatmul.f32.gmra.mxu0 %v4349
      %v4413 = vpop.f32.mrf.mxu0
      %v4414 = vadd.f32 %v4328, %v4413
      %4415 = vmatmul.f32.gmra.mxu0 %v4352
      %v4416 = vpop.f32.mrf.mxu0
      %v4417 = vadd.f32 %v4329, %v4416
      %4418 = vdwg.mxu0
      %v4419 = vsel %vm665, %v4396, -inf
      %4420 = vmax.xlane.f32.xlu0 %v4419
      %v4421 = vpop.xlane.xlu0 %4420
      %v4422 = vsel %vm665, %v4399, -inf
      %4423 = vmax.xlane.f32.xlu0 %v4422
      %v4424 = vpop.xlane.xlu0 %4423
      %v4425 = vsel %vm665, %v4402, -inf
      %4426 = vmax.xlane.f32.xlu0 %v4425
      %v4427 = vpop.xlane.xlu0 %4426
      %v4428 = vsel %vm665, %v4405, -inf
      %4429 = vmax.xlane.f32.xlu0 %v4428
      %v4430 = vpop.xlane.xlu0 %4429
      %v4431 = vsel %vm665, %v4408, -inf
      %4432 = vmax.xlane.f32.xlu0 %v4431
      %v4433 = vpop.xlane.xlu0 %4432
      %v4434 = vsel %vm665, %v4411, -inf
      %4435 = vmax.xlane.f32.xlu0 %v4434
      %v4436 = vpop.xlane.xlu0 %4435
      %v4437 = vsel %vm665, %v4414, -inf
      %4438 = vmax.xlane.f32.xlu0 %v4437
      %v4439 = vpop.xlane.xlu0 %4438
      %v4440 = vsel %vm665, %v4417, -inf
      %4441 = vmax.xlane.f32.xlu0 %v4440
      %v4442 = vpop.xlane.xlu0 %4441
      %v4443 = vsub.f32 %v4396, %v4421
      %v4444 = vsub.f32 %v4399, %v4424
      %v4445 = vsub.f32 %v4402, %v4427
      %v4446 = vsub.f32 %v4405, %v4430
      %v4447 = vsub.f32 %v4408, %v4433
      %v4448 = vsub.f32 %v4411, %v4436
      %v4449 = vsub.f32 %v4414, %v4439
      %v4450 = vsub.f32 %v4417, %v4442
      %v4451 = vmul.f32 %v4443, 1.442695
      %v4452 = vpow.pop %v4451
      %v4453 = vmul.f32 %v4444, 1.442695
      %v4454 = vpow.pop %v4453
      %v4455 = vmul.f32 %v4445, 1.442695
      %v4456 = vpow.pop %v4455
      %v4457 = vmul.f32 %v4446, 1.442695
      %v4458 = vpow.pop %v4457
      %v4459 = vmul.f32 %v4447, 1.442695
      %v4460 = vpow.pop %v4459
      %v4461 = vmul.f32 %v4448, 1.442695
      %v4462 = vpow.pop %v4461
      %v4463 = vmul.f32 %v4449, 1.442695
      %v4464 = vpow.pop %v4463
      %v4465 = vmul.f32 %v4450, 1.442695
      %v4466 = vpow.pop %v4465
      %v4467 = vsel %vm665, %v4452, 0.0
      %4468 = vadd.xlane.f32.xlu0 %v4467
      %v4469 = vpop.xlane.xlu0 %4468
      %v4470 = vsel %vm665, %v4454, 0.0
      %4471 = vadd.xlane.f32.xlu0 %v4470
      %v4472 = vpop.xlane.xlu0 %4471
      %v4473 = vsel %vm665, %v4456, 0.0
      %4474 = vadd.xlane.f32.xlu0 %v4473
      %v4475 = vpop.xlane.xlu0 %4474
      %v4476 = vsel %vm665, %v4458, 0.0
      %4477 = vadd.xlane.f32.xlu0 %v4476
      %v4478 = vpop.xlane.xlu0 %4477
      %v4479 = vsel %vm665, %v4460, 0.0
      %4480 = vadd.xlane.f32.xlu0 %v4479
      %v4481 = vpop.xlane.xlu0 %4480
      %v4482 = vsel %vm665, %v4462, 0.0
      %4483 = vadd.xlane.f32.xlu0 %v4482
      %v4484 = vpop.xlane.xlu0 %4483
      %v4485 = vsel %vm665, %v4464, 0.0
      %4486 = vadd.xlane.f32.xlu0 %v4485
      %v4487 = vpop.xlane.xlu0 %4486
      %v4488 = vsel %vm665, %v4466, 0.0
      %4489 = vadd.xlane.f32.xlu0 %v4488
      %v4490 = vpop.xlane.xlu0 %4489
      %v4491 = vrcp.pop %v4469
      %v4492 = vmul.f32 %v4469, %v4491
      %v4493 = vsub.f32 1.0, %v4492
      %v4494 = vmul.f32 %v4491, %v4493
      %v4495 = vadd.f32 %v4491, %v4494
      %vm4496 = vweird.f32 %v4469
      %vm4497 = vweird.f32 %v4491
      %vm4498 = vmor %vm4496, %vm4497
      %v4499 = vsel %vm4498, %v4491, %v4495
      %v4500 = vand.u32 2147483647, %v4469
      %vm4501 = vcmp.eq.f32.partialorder %v4500, 8.507059e+37
      %v4502 = vand.u32 %v4469, 2147483648
      %v4503 = vor.u32 1.1754944e-38, %v4502
      %v4504 = vsel %vm4501, %v4503, %v4499
      %v4505 = vmul.f32 %v4452, %v4504
      %v4506 = vrcp.pop %v4472
      %v4507 = vmul.f32 %v4472, %v4506
      %v4508 = vsub.f32 1.0, %v4507
      %v4509 = vmul.f32 %v4506, %v4508
      %v4510 = vadd.f32 %v4506, %v4509
      %vm4511 = vweird.f32 %v4472
      %vm4512 = vweird.f32 %v4506
      %vm4513 = vmor %vm4511, %vm4512
      %v4514 = vsel %vm4513, %v4506, %v4510
      %v4515 = vand.u32 2147483647, %v4472
      %vm4516 = vcmp.eq.f32.partialorder %v4515, 8.507059e+37
      %v4517 = vand.u32 %v4472, 2147483648
      %v4518 = vor.u32 1.1754944e-38, %v4517
      %v4519 = vsel %vm4516, %v4518, %v4514
      %v4520 = vmul.f32 %v4454, %v4519
      %v4521 = vrcp.pop %v4475
      %v4522 = vmul.f32 %v4475, %v4521
      %v4523 = vsub.f32 1.0, %v4522
      %v4524 = vmul.f32 %v4521, %v4523
      %v4525 = vadd.f32 %v4521, %v4524
      %vm4526 = vweird.f32 %v4475
      %vm4527 = vweird.f32 %v4521
      %vm4528 = vmor %vm4526, %vm4527
      %v4529 = vsel %vm4528, %v4521, %v4525
      %v4530 = vand.u32 2147483647, %v4475
      %vm4531 = vcmp.eq.f32.partialorder %v4530, 8.507059e+37
      %v4532 = vand.u32 %v4475, 2147483648
      %v4533 = vor.u32 1.1754944e-38, %v4532
      %v4534 = vsel %vm4531, %v4533, %v4529
      %v4535 = vmul.f32 %v4456, %v4534
      %v4536 = vrcp.pop %v4478
      %v4537 = vmul.f32 %v4478, %v4536
      %v4538 = vsub.f32 1.0, %v4537
      %v4539 = vmul.f32 %v4536, %v4538
      %v4540 = vadd.f32 %v4536, %v4539
      %vm4541 = vweird.f32 %v4478
      %vm4542 = vweird.f32 %v4536
      %vm4543 = vmor %vm4541, %vm4542
      %v4544 = vsel %vm4543, %v4536, %v4540
      %v4545 = vand.u32 2147483647, %v4478
      %vm4546 = vcmp.eq.f32.partialorder %v4545, 8.507059e+37
      %v4547 = vand.u32 %v4478, 2147483648
      %v4548 = vor.u32 1.1754944e-38, %v4547
      %v4549 = vsel %vm4546, %v4548, %v4544
      %v4550 = vmul.f32 %v4458, %v4549
      %v4551 = vrcp.pop %v4481
      %v4552 = vmul.f32 %v4481, %v4551
      %v4553 = vsub.f32 1.0, %v4552
      %v4554 = vmul.f32 %v4551, %v4553
      %v4555 = vadd.f32 %v4551, %v4554
      %vm4556 = vweird.f32 %v4481
      %vm4557 = vweird.f32 %v4551
      %vm4558 = vmor %vm4556, %vm4557
      %v4559 = vsel %vm4558, %v4551, %v4555
      %v4560 = vand.u32 2147483647, %v4481
      %vm4561 = vcmp.eq.f32.partialorder %v4560, 8.507059e+37
      %v4562 = vand.u32 %v4481, 2147483648
      %v4563 = vor.u32 1.1754944e-38, %v4562
      %v4564 = vsel %vm4561, %v4563, %v4559
      %v4565 = vmul.f32 %v4460, %v4564
      %v4566 = vrcp.pop %v4484
      %v4567 = vmul.f32 %v4484, %v4566
      %v4568 = vsub.f32 1.0, %v4567
      %v4569 = vmul.f32 %v4566, %v4568
      %v4570 = vadd.f32 %v4566, %v4569
      %vm4571 = vweird.f32 %v4484
      %vm4572 = vweird.f32 %v4566
      %vm4573 = vmor %vm4571, %vm4572
      %v4574 = vsel %vm4573, %v4566, %v4570
      %v4575 = vand.u32 2147483647, %v4484
      %vm4576 = vcmp.eq.f32.partialorder %v4575, 8.507059e+37
      %v4577 = vand.u32 %v4484, 2147483648
      %v4578 = vor.u32 1.1754944e-38, %v4577
      %v4579 = vsel %vm4576, %v4578, %v4574
      %v4580 = vmul.f32 %v4462, %v4579
      %v4581 = vrcp.pop %v4487
      %v4582 = vmul.f32 %v4487, %v4581
      %v4583 = vsub.f32 1.0, %v4582
      %v4584 = vmul.f32 %v4581, %v4583
      %v4585 = vadd.f32 %v4581, %v4584
      %vm4586 = vweird.f32 %v4487
      %vm4587 = vweird.f32 %v4581
      %vm4588 = vmor %vm4586, %vm4587
      %v4589 = vsel %vm4588, %v4581, %v4585
      %v4590 = vand.u32 2147483647, %v4487
      %vm4591 = vcmp.eq.f32.partialorder %v4590, 8.507059e+37
      %v4592 = vand.u32 %v4487, 2147483648
      %v4593 = vor.u32 1.1754944e-38, %v4592
      %v4594 = vsel %vm4591, %v4593, %v4589
      %v4595 = vmul.f32 %v4464, %v4594
      %v4596 = vrcp.pop %v4490
      %v4597 = vmul.f32 %v4490, %v4596
      %v4598 = vsub.f32 1.0, %v4597
      %v4599 = vmul.f32 %v4596, %v4598
      %v4600 = vadd.f32 %v4596, %v4599
      %vm4601 = vweird.f32 %v4490
      %vm4602 = vweird.f32 %v4596
      %vm4603 = vmor %vm4601, %vm4602
      %v4604 = vsel %vm4603, %v4596, %v4600
      %v4605 = vand.u32 2147483647, %v4490
      %vm4606 = vcmp.eq.f32.partialorder %v4605, 8.507059e+37
      %v4607 = vand.u32 %v4490, 2147483648
      %v4608 = vor.u32 1.1754944e-38, %v4607
      %v4609 = vsel %vm4606, %v4608, %v4604
      %v4610 = vmul.f32 %v4466, %v4609
      %v4612 = vsel %vm665, %v4505, 0
      %v4615 = vsel %vm665, %v4520, 0
      %v4618 = vsel %vm665, %v4535, 0
      %v4621 = vsel %vm665, %v4550, 0
      %v4624 = vsel %vm665, %v4565, 0
      %v4627 = vsel %vm665, %v4580, 0
      %v4630 = vsel %vm665, %v4595, 0
      %v4633 = vsel %vm665, %v4610, 0
      %4635 = vmatpush.msra.mxu0 0.0
      %4636 = vmatpush.msra.mxu0 0.0
      %4637 = vmatpush.msra.mxu0 0.0
      %4638 = vmatpush.msra.mxu0 0.0
      %4639 = vmatpush.msra.mxu0 0.0
      %4640 = vmatpush.msra.mxu0 0.0
      %4641 = vmatpush.msra.mxu0 0.0
      %4642 = vmatpush.msra.mxu0 0.0
      %4643 = vmatpush.msra.mxu0 %v4312
      %4644 = vmatpush.msra.mxu0 %v4309
      %4645 = vmatpush.msra.mxu0 %v4306
      %4646 = vmatpush.msra.mxu0 %v4303
      %4647 = vmatpush.msra.mxu0 %v4300
      %4648 = vmatpush.msra.mxu0 %v4297
      %4649 = vmatpush.msra.mxu0 %v4294
      %4650 = vmatpush.msra.mxu0 %v4291
      %4651 = vmatmul.f32.gmra.mxu0 %v4612
      %v4652 = vpop.f32.mrf.mxu0
      %v4653 = vadd.f32 0.0, %v4652
      %4654 = vmatmul.f32.gmra.mxu0 %v4615
      %v4655 = vpop.f32.mrf.mxu0
      %v4656 = vadd.f32 0.0, %v4655
      %4657 = vmatmul.f32.gmra.mxu0 %v4618
      %v4658 = vpop.f32.mrf.mxu0
      %v4659 = vadd.f32 0.0, %v4658
      %4660 = vmatmul.f32.gmra.mxu0 %v4621
      %v4661 = vpop.f32.mrf.mxu0
      %v4662 = vadd.f32 0.0, %v4661
      %4663 = vmatmul.f32.gmra.mxu0 %v4624
      %v4664 = vpop.f32.mrf.mxu0
      %v4665 = vadd.f32 0.0, %v4664
      %4666 = vmatmul.f32.gmra.mxu0 %v4627
      %v4667 = vpop.f32.mrf.mxu0
      %v4668 = vadd.f32 0.0, %v4667
      %4669 = vmatmul.f32.gmra.mxu0 %v4630
      %v4670 = vpop.f32.mrf.mxu0
      %v4671 = vadd.f32 0.0, %v4670
      %4672 = vmatmul.f32.gmra.mxu0 %v4633
      %v4673 = vpop.f32.mrf.mxu0
      %v4674 = vadd.f32 0.0, %v4673
      %4675 = vdwg.mxu0
      %v4676 = vld [vmem:[%s2166] sm:$0xff]
      %v4677 = vld [vmem:[%s2166 + $0x8] sm:$0xff]
      %v4678 = vld [vmem:[%s2166 + $0x10] sm:$0xff]
      %v4679 = vld [vmem:[%s2166 + $0x18] sm:$0xff]
      %v4681 = vsel %vm575, %v4653, 0
      %v4684 = vsel %vm575, %v4656, 0
      %v4687 = vsel %vm575, %v4659, 0
      %v4690 = vsel %vm575, %v4662, 0
      %v4693 = vsel %vm575, %v4665, 0
      %v4696 = vsel %vm575, %v4668, 0
      %v4699 = vsel %vm575, %v4671, 0
      %v4702 = vsel %vm575, %v4674, 0
      %4704 = vmatpush.msra.mxu0 0.0
      %4705 = vmatpush.msra.mxu0 0.0
      %4706 = vmatpush.msra.mxu0 0.0
      %4707 = vmatpush.msra.mxu0 0.0
      %4708 = vmatpush.msra.mxu0 0.0
      %4709 = vmatpush.msra.mxu0 0.0
      %4710 = vmatpush.msra.mxu0 0.0
      %4711 = vmatpush.msra.mxu0 0.0
      %4712 = vmatpush.msra.mxu0 0.0
      %4713 = vmatpush.msra.mxu0 0.0
      %4714 = vmatpush.msra.mxu0 0.0
      %4715 = vmatpush.msra.mxu0 0.0
      %4716 = vmatpush.msra.mxu0 %v4679
      %4717 = vmatpush.msra.mxu0 %v4678
      %4718 = vmatpush.msra.mxu0 %v4677
      %4719 = vmatpush.msra.mxu0 %v4676
      %4720 = vmatmul.f32.gmra.mxu0 %v4681
      %v4721 = vpop.f32.mrf.mxu0
      %v4722 = vadd.f32 0.0, %v4721
      %4723 = vmatmul.f32.gmra.mxu0 %v4684
      %v4724 = vpop.f32.mrf.mxu0
      %v4725 = vadd.f32 0.0, %v4724
      %4726 = vmatmul.f32.gmra.mxu0 %v4687
      %v4727 = vpop.f32.mrf.mxu0
      %v4728 = vadd.f32 0.0, %v4727
      %4729 = vmatmul.f32.gmra.mxu0 %v4690
      %v4730 = vpop.f32.mrf.mxu0
      %v4731 = vadd.f32 0.0, %v4730
      %4732 = vmatmul.f32.gmra.mxu0 %v4693
      %v4733 = vpop.f32.mrf.mxu0
      %v4734 = vadd.f32 0.0, %v4733
      %4735 = vmatmul.f32.gmra.mxu0 %v4696
      %v4736 = vpop.f32.mrf.mxu0
      %v4737 = vadd.f32 0.0, %v4736
      %4738 = vmatmul.f32.gmra.mxu0 %v4699
      %v4739 = vpop.f32.mrf.mxu0
      %v4740 = vadd.f32 0.0, %v4739
      %4741 = vmatmul.f32.gmra.mxu0 %v4702
      %v4742 = vpop.f32.mrf.mxu0
      %v4743 = vadd.f32 0.0, %v4742
      %4744 = vdwg.mxu0
      %v4745 = vadd.f32 %v4108, %v4722
      %v4746 = vadd.f32 %v4111, %v4725
      %v4747 = vadd.f32 %v4114, %v4728
      %v4748 = vadd.f32 %v4117, %v4731
      %v4749 = vadd.f32 %v4120, %v4734
      %v4750 = vadd.f32 %v4123, %v4737
      %v4751 = vadd.f32 %v4126, %v4740
      %v4752 = vadd.f32 %v4129, %v4743
      %v4753 = vld [vmem:[%s2244] sm:$0xff]
      %v4754 = vld [vmem:[%s2244 + $0x8] sm:$0xff]
      %v4755 = vld [vmem:[%s2244 + $0x10] sm:$0xff]
      %v4756 = vld [vmem:[%s2244 + $0x18] sm:$0xff]
      %v4757 = vld [vmem:[%s2244 + $0x20] sm:$0xff]
      %v4758 = vld [vmem:[%s2244 + $0x28] sm:$0xff]
      %v4759 = vld [vmem:[%s2244 + $0x30] sm:$0xff]
      %v4760 = vld [vmem:[%s2244 + $0x38] sm:$0xff]
      %v4761 = vld [vmem:[%s2244 + $0x40] sm:$0xff]
      %v4762 = vld [vmem:[%s2244 + $0x48] sm:$0xff]
      %v4763 = vld [vmem:[%s2244 + $0x50] sm:$0xff]
      %v4764 = vld [vmem:[%s2244 + $0x58] sm:$0xff]
      %v4765 = vld [vmem:[%s2244 + $0x60] sm:$0xff]
      %v4766 = vld [vmem:[%s2244 + $0x68] sm:$0xff]
      %v4767 = vld [vmem:[%s2244 + $0x70] sm:$0xff]
      %v4768 = vld [vmem:[%s2244 + $0x78] sm:$0xff]
      %v4769 = vld [vmem:[%s2261] sm:$0x1]
      %v4771 = vperm.slane %v4769, 0
      %4773 = vmatpush.msra.mxu0 %v4768
      %4774 = vmatpush.msra.mxu0 %v4767
      %4775 = vmatpush.msra.mxu0 %v4766
      %4776 = vmatpush.msra.mxu0 %v4765
      %4777 = vmatpush.msra.mxu0 %v4764
      %4778 = vmatpush.msra.mxu0 %v4763
      %4779 = vmatpush.msra.mxu0 %v4762
      %4780 = vmatpush.msra.mxu0 %v4761
      %4781 = vmatpush.msra.mxu0 %v4760
      %4782 = vmatpush.msra.mxu0 %v4759
      %4783 = vmatpush.msra.mxu0 %v4758
      %4784 = vmatpush.msra.mxu0 %v4757
      %4785 = vmatpush.msra.mxu0 %v4756
      %4786 = vmatpush.msra.mxu0 %v4755
      %4787 = vmatpush.msra.mxu0 %v4754
      %4788 = vmatpush.msra.mxu0 %v4753
      %4789 = vmatmul.f32.gmra.mxu0 %v2895
      %v4790 = vpop.f32.mrf.mxu0
      %v4791 = vadd.f32 %v4771, %v4790
      %4792 = vmatmul.f32.gmra.mxu0 %v2896
      %v4793 = vpop.f32.mrf.mxu0
      %v4794 = vadd.f32 %v4771, %v4793
      %4795 = vmatmul.f32.gmra.mxu0 %v2897
      %v4796 = vpop.f32.mrf.mxu0
      %v4797 = vadd.f32 %v4771, %v4796
      %4798 = vmatmul.f32.gmra.mxu0 %v2898
      %v4799 = vpop.f32.mrf.mxu0
      %v4800 = vadd.f32 %v4771, %v4799
      %4801 = vmatmul.f32.gmra.mxu0 %v2899
      %v4802 = vpop.f32.mrf.mxu0
      %v4803 = vadd.f32 %v4771, %v4802
      %4804 = vmatmul.f32.gmra.mxu0 %v2900
      %v4805 = vpop.f32.mrf.mxu0
      %v4806 = vadd.f32 %v4771, %v4805
      %4807 = vmatmul.f32.gmra.mxu0 %v2901
      %v4808 = vpop.f32.mrf.mxu0
      %v4809 = vadd.f32 %v4771, %v4808
      %4810 = vmatmul.f32.gmra.mxu0 %v2902
      %v4811 = vpop.f32.mrf.mxu0
      %v4812 = vadd.f32 %v4771, %v4811
      %4813 = vdwg.mxu0
      %v4814 = vld [vmem:[%s2307] sm:$0xff]
      %v4815 = vld [vmem:[%s2307 + $0x8] sm:$0xff]
      %v4816 = vld [vmem:[%s2307 + $0x10] sm:$0xff]
      %v4817 = vld [vmem:[%s2307 + $0x18] sm:$0xff]
      %v4818 = vld [vmem:[%s2307 + $0x20] sm:$0xff]
      %v4819 = vld [vmem:[%s2307 + $0x28] sm:$0xff]
      %v4820 = vld [vmem:[%s2307 + $0x30] sm:$0xff]
      %v4821 = vld [vmem:[%s2307 + $0x38] sm:$0xff]
      %v4822 = vld [vmem:[%s2307 + $0x40] sm:$0xff]
      %v4823 = vld [vmem:[%s2307 + $0x48] sm:$0xff]
      %v4824 = vld [vmem:[%s2307 + $0x50] sm:$0xff]
      %v4825 = vld [vmem:[%s2307 + $0x58] sm:$0xff]
      %v4826 = vld [vmem:[%s2307 + $0x60] sm:$0xff]
      %v4827 = vld [vmem:[%s2307 + $0x68] sm:$0xff]
      %v4828 = vld [vmem:[%s2307 + $0x70] sm:$0xff]
      %v4829 = vld [vmem:[%s2307 + $0x78] sm:$0xff]
      %v4830 = vld [vmem:[%s2324] sm:$0x1]
      %v4832 = vperm.slane %v4830, 0
      %4834 = vmatpush.msra.mxu0 %v4829
      %4835 = vmatpush.msra.mxu0 %v4828
      %4836 = vmatpush.msra.mxu0 %v4827
      %4837 = vmatpush.msra.mxu0 %v4826
      %4838 = vmatpush.msra.mxu0 %v4825
      %4839 = vmatpush.msra.mxu0 %v4824
      %4840 = vmatpush.msra.mxu0 %v4823
      %4841 = vmatpush.msra.mxu0 %v4822
      %4842 = vmatpush.msra.mxu0 %v4821
      %4843 = vmatpush.msra.mxu0 %v4820
      %4844 = vmatpush.msra.mxu0 %v4819
      %4845 = vmatpush.msra.mxu0 %v4818
      %4846 = vmatpush.msra.mxu0 %v4817
      %4847 = vmatpush.msra.mxu0 %v4816
      %4848 = vmatpush.msra.mxu0 %v4815
      %4849 = vmatpush.msra.mxu0 %v4814
      %4850 = vmatmul.f32.gmra.mxu0 %v2895
      %v4851 = vpop.f32.mrf.mxu0
      %v4852 = vadd.f32 %v4832, %v4851
      %4853 = vmatmul.f32.gmra.mxu0 %v2896
      %v4854 = vpop.f32.mrf.mxu0
      %v4855 = vadd.f32 %v4832, %v4854
      %4856 = vmatmul.f32.gmra.mxu0 %v2897
      %v4857 = vpop.f32.mrf.mxu0
      %v4858 = vadd.f32 %v4832, %v4857
      %4859 = vmatmul.f32.gmra.mxu0 %v2898
      %v4860 = vpop.f32.mrf.mxu0
      %v4861 = vadd.f32 %v4832, %v4860
      %4862 = vmatmul.f32.gmra.mxu0 %v2899
      %v4863 = vpop.f32.mrf.mxu0
      %v4864 = vadd.f32 %v4832, %v4863
      %4865 = vmatmul.f32.gmra.mxu0 %v2900
      %v4866 = vpop.f32.mrf.mxu0
      %v4867 = vadd.f32 %v4832, %v4866
      %4868 = vmatmul.f32.gmra.mxu0 %v2901
      %v4869 = vpop.f32.mrf.mxu0
      %v4870 = vadd.f32 %v4832, %v4869
      %4871 = vmatmul.f32.gmra.mxu0 %v2902
      %v4872 = vpop.f32.mrf.mxu0
      %v4873 = vadd.f32 %v4832, %v4872
      %4874 = vdwg.mxu0
      %v4875 = vld [vmem:[%s2370] sm:$0xff]
      %v4876 = vld [vmem:[%s2370 + $0x8] sm:$0xff]
      %v4877 = vld [vmem:[%s2370 + $0x10] sm:$0xff]
      %v4878 = vld [vmem:[%s2370 + $0x18] sm:$0xff]
      %v4879 = vld [vmem:[%s2370 + $0x20] sm:$0xff]
      %v4880 = vld [vmem:[%s2370 + $0x28] sm:$0xff]
      %v4881 = vld [vmem:[%s2370 + $0x30] sm:$0xff]
      %v4882 = vld [vmem:[%s2370 + $0x38] sm:$0xff]
      %v4883 = vld [vmem:[%s2370 + $0x40] sm:$0xff]
      %v4884 = vld [vmem:[%s2370 + $0x48] sm:$0xff]
      %v4885 = vld [vmem:[%s2370 + $0x50] sm:$0xff]
      %v4886 = vld [vmem:[%s2370 + $0x58] sm:$0xff]
      %v4887 = vld [vmem:[%s2370 + $0x60] sm:$0xff]
      %v4888 = vld [vmem:[%s2370 + $0x68] sm:$0xff]
      %v4889 = vld [vmem:[%s2370 + $0x70] sm:$0xff]
      %v4890 = vld [vmem:[%s2370 + $0x78] sm:$0xff]
      %v4891 = vld [vmem:[%s2387] sm:$0x1]
      %v4893 = vperm.slane %v4891, 0
      %4895 = vmatpush.msra.mxu0 %v4890
      %4896 = vmatpush.msra.mxu0 %v4889
      %4897 = vmatpush.msra.mxu0 %v4888
      %4898 = vmatpush.msra.mxu0 %v4887
      %4899 = vmatpush.msra.mxu0 %v4886
      %4900 = vmatpush.msra.mxu0 %v4885
      %4901 = vmatpush.msra.mxu0 %v4884
      %4902 = vmatpush.msra.mxu0 %v4883
      %4903 = vmatpush.msra.mxu0 %v4882
      %4904 = vmatpush.msra.mxu0 %v4881
      %4905 = vmatpush.msra.mxu0 %v4880
      %4906 = vmatpush.msra.mxu0 %v4879
      %4907 = vmatpush.msra.mxu0 %v4878
      %4908 = vmatpush.msra.mxu0 %v4877
      %4909 = vmatpush.msra.mxu0 %v4876
      %4910 = vmatpush.msra.mxu0 %v4875
      %4911 = vmatmul.f32.gmra.mxu0 %v2895
      %v4912 = vpop.f32.mrf.mxu0
      %v4913 = vadd.f32 %v4893, %v4912
      %4914 = vmatmul.f32.gmra.mxu0 %v2896
      %v4915 = vpop.f32.mrf.mxu0
      %v4916 = vadd.f32 %v4893, %v4915
      %4917 = vmatmul.f32.gmra.mxu0 %v2897
      %v4918 = vpop.f32.mrf.mxu0
      %v4919 = vadd.f32 %v4893, %v4918
      %4920 = vmatmul.f32.gmra.mxu0 %v2898
      %v4921 = vpop.f32.mrf.mxu0
      %v4922 = vadd.f32 %v4893, %v4921
      %4923 = vmatmul.f32.gmra.mxu0 %v2899
      %v4924 = vpop.f32.mrf.mxu0
      %v4925 = vadd.f32 %v4893, %v4924
      %4926 = vmatmul.f32.gmra.mxu0 %v2900
      %v4927 = vpop.f32.mrf.mxu0
      %v4928 = vadd.f32 %v4893, %v4927
      %4929 = vmatmul.f32.gmra.mxu0 %v2901
      %v4930 = vpop.f32.mrf.mxu0
      %v4931 = vadd.f32 %v4893, %v4930
      %4932 = vmatmul.f32.gmra.mxu0 %v2902
      %v4933 = vpop.f32.mrf.mxu0
      %v4934 = vadd.f32 %v4893, %v4933
      %4935 = vdwg.mxu0
      %v4936 = vmul.f32 %v4791, 0.17677669
      %v4937 = vmul.f32 %v4794, 0.17677669
      %v4938 = vmul.f32 %v4797, 0.17677669
      %v4939 = vmul.f32 %v4800, 0.17677669
      %v4940 = vmul.f32 %v4803, 0.17677669
      %v4941 = vmul.f32 %v4806, 0.17677669
      %v4942 = vmul.f32 %v4809, 0.17677669
      %v4943 = vmul.f32 %v4812, 0.17677669
      %v4944 = vld [vmem:[%s2441] sm:$0xff]
      %v4945 = vld [vmem:[%s2441 + $0x8] sm:$0xff]
      %v4946 = vld [vmem:[%s2441 + $0x10] sm:$0xff]
      %v4947 = vld [vmem:[%s2441 + $0x18] sm:$0xff]
      %v4948 = vld [vmem:[%s2441 + $0x20] sm:$0xff]
      %v4949 = vld [vmem:[%s2441 + $0x28] sm:$0xff]
      %v4950 = vld [vmem:[%s2441 + $0x30] sm:$0xff]
      %v4951 = vld [vmem:[%s2441 + $0x38] sm:$0xff]
      %v4953 = vsel %vm575, %v4936, 0
      %v4956 = vsel %vm575, %v4937, 0
      %v4959 = vsel %vm575, %v4938, 0
      %v4962 = vsel %vm575, %v4939, 0
      %v4965 = vsel %vm575, %v4940, 0
      %v4968 = vsel %vm575, %v4941, 0
      %v4971 = vsel %vm575, %v4942, 0
      %v4974 = vsel %vm575, %v4943, 0
      %v4977 = vsel %vm575, %v4852, 0
      %v4980 = vsel %vm575, %v4855, 0
      %v4983 = vsel %vm575, %v4858, 0
      %v4986 = vsel %vm575, %v4861, 0
      %v4989 = vsel %vm575, %v4864, 0
      %v4992 = vsel %vm575, %v4867, 0
      %v4995 = vsel %vm575, %v4870, 0
      %v4998 = vsel %vm575, %v4873, 0
      %5000 = vmatpush.xpose.msra.mxu0 0.0
      %5001 = vmatpush.xpose.msra.mxu0 0.0
      %5002 = vmatpush.xpose.msra.mxu0 0.0
      %5003 = vmatpush.xpose.msra.mxu0 0.0
      %5004 = vmatpush.xpose.msra.mxu0 0.0
      %5005 = vmatpush.xpose.msra.mxu0 0.0
      %5006 = vmatpush.xpose.msra.mxu0 0.0
      %5007 = vmatpush.xpose.msra.mxu0 0.0
      %5008 = vmatpush.xpose.msra.mxu0 %v4998
      %5009 = vmatpush.xpose.msra.mxu0 %v4995
      %5010 = vmatpush.xpose.msra.mxu0 %v4992
      %5011 = vmatpush.xpose.msra.mxu0 %v4989
      %5012 = vmatpush.xpose.msra.mxu0 %v4986
      %5013 = vmatpush.xpose.msra.mxu0 %v4983
      %5014 = vmatpush.xpose.msra.mxu0 %v4980
      %5015 = vmatpush.xpose.msra.mxu0 %v4977
      %5016 = vmatmul.f32.gmra.mxu0 %v4953
      %v5017 = vpop.f32.mrf.mxu0
      %v5018 = vadd.f32 %v4944, %v5017
      %5019 = vmatmul.f32.gmra.mxu0 %v4956
      %v5020 = vpop.f32.mrf.mxu0
      %v5021 = vadd.f32 %v4945, %v5020
      %5022 = vmatmul.f32.gmra.mxu0 %v4959
      %v5023 = vpop.f32.mrf.mxu0
      %v5024 = vadd.f32 %v4946, %v5023
      %5025 = vmatmul.f32.gmra.mxu0 %v4962
      %v5026 = vpop.f32.mrf.mxu0
      %v5027 = vadd.f32 %v4947, %v5026
      %5028 = vmatmul.f32.gmra.mxu0 %v4965
      %v5029 = vpop.f32.mrf.mxu0
      %v5030 = vadd.f32 %v4948, %v5029
      %5031 = vmatmul.f32.gmra.mxu0 %v4968
      %v5032 = vpop.f32.mrf.mxu0
      %v5033 = vadd.f32 %v4949, %v5032
      %5034 = vmatmul.f32.gmra.mxu0 %v4971
      %v5035 = vpop.f32.mrf.mxu0
      %v5036 = vadd.f32 %v4950, %v5035
      %5037 = vmatmul.f32.gmra.mxu0 %v4974
      %v5038 = vpop.f32.mrf.mxu0
      %v5039 = vadd.f32 %v4951, %v5038
      %5040 = vdwg.mxu0
      %v5041 = vsel %vm665, %v5018, -inf
      %5042 = vmax.xlane.f32.xlu0 %v5041
      %v5043 = vpop.xlane.xlu0 %5042
      %v5044 = vsel %vm665, %v5021, -inf
      %5045 = vmax.xlane.f32.xlu0 %v5044
      %v5046 = vpop.xlane.xlu0 %5045
      %v5047 = vsel %vm665, %v5024, -inf
      %5048 = vmax.xlane.f32.xlu0 %v5047
      %v5049 = vpop.xlane.xlu0 %5048
      %v5050 = vsel %vm665, %v5027, -inf
      %5051 = vmax.xlane.f32.xlu0 %v5050
      %v5052 = vpop.xlane.xlu0 %5051
      %v5053 = vsel %vm665, %v5030, -inf
      %5054 = vmax.xlane.f32.xlu0 %v5053
      %v5055 = vpop.xlane.xlu0 %5054
      %v5056 = vsel %vm665, %v5033, -inf
      %5057 = vmax.xlane.f32.xlu0 %v5056
      %v5058 = vpop.xlane.xlu0 %5057
      %v5059 = vsel %vm665, %v5036, -inf
      %5060 = vmax.xlane.f32.xlu0 %v5059
      %v5061 = vpop.xlane.xlu0 %5060
      %v5062 = vsel %vm665, %v5039, -inf
      %5063 = vmax.xlane.f32.xlu0 %v5062
      %v5064 = vpop.xlane.xlu0 %5063
      %v5065 = vsub.f32 %v5018, %v5043
      %v5066 = vsub.f32 %v5021, %v5046
      %v5067 = vsub.f32 %v5024, %v5049
      %v5068 = vsub.f32 %v5027, %v5052
      %v5069 = vsub.f32 %v5030, %v5055
      %v5070 = vsub.f32 %v5033, %v5058
      %v5071 = vsub.f32 %v5036, %v5061
      %v5072 = vsub.f32 %v5039, %v5064
      %v5073 = vmul.f32 %v5065, 1.442695
      %v5074 = vpow.pop %v5073
      %v5075 = vmul.f32 %v5066, 1.442695
      %v5076 = vpow.pop %v5075
      %v5077 = vmul.f32 %v5067, 1.442695
      %v5078 = vpow.pop %v5077
      %v5079 = vmul.f32 %v5068, 1.442695
      %v5080 = vpow.pop %v5079
      %v5081 = vmul.f32 %v5069, 1.442695
      %v5082 = vpow.pop %v5081
      %v5083 = vmul.f32 %v5070, 1.442695
      %v5084 = vpow.pop %v5083
      %v5085 = vmul.f32 %v5071, 1.442695
      %v5086 = vpow.pop %v5085
      %v5087 = vmul.f32 %v5072, 1.442695
      %v5088 = vpow.pop %v5087
      %v5089 = vsel %vm665, %v5074, 0.0
      %5090 = vadd.xlane.f32.xlu0 %v5089
      %v5091 = vpop.xlane.xlu0 %5090
      %v5092 = vsel %vm665, %v5076, 0.0
      %5093 = vadd.xlane.f32.xlu0 %v5092
      %v5094 = vpop.xlane.xlu0 %5093
      %v5095 = vsel %vm665, %v5078, 0.0
      %5096 = vadd.xlane.f32.xlu0 %v5095
      %v5097 = vpop.xlane.xlu0 %5096
      %v5098 = vsel %vm665, %v5080, 0.0
      %5099 = vadd.xlane.f32.xlu0 %v5098
      %v5100 = vpop.xlane.xlu0 %5099
      %v5101 = vsel %vm665, %v5082, 0.0
      %5102 = vadd.xlane.f32.xlu0 %v5101
      %v5103 = vpop.xlane.xlu0 %5102
      %v5104 = vsel %vm665, %v5084, 0.0
      %5105 = vadd.xlane.f32.xlu0 %v5104
      %v5106 = vpop.xlane.xlu0 %5105
      %v5107 = vsel %vm665, %v5086, 0.0
      %5108 = vadd.xlane.f32.xlu0 %v5107
      %v5109 = vpop.xlane.xlu0 %5108
      %v5110 = vsel %vm665, %v5088, 0.0
      %5111 = vadd.xlane.f32.xlu0 %v5110
      %v5112 = vpop.xlane.xlu0 %5111
      %v5113 = vrcp.pop %v5091
      %v5114 = vmul.f32 %v5091, %v5113
      %v5115 = vsub.f32 1.0, %v5114
      %v5116 = vmul.f32 %v5113, %v5115
      %v5117 = vadd.f32 %v5113, %v5116
      %vm5118 = vweird.f32 %v5091
      %vm5119 = vweird.f32 %v5113
      %vm5120 = vmor %vm5118, %vm5119
      %v5121 = vsel %vm5120, %v5113, %v5117
      %v5122 = vand.u32 2147483647, %v5091
      %vm5123 = vcmp.eq.f32.partialorder %v5122, 8.507059e+37
      %v5124 = vand.u32 %v5091, 2147483648
      %v5125 = vor.u32 1.1754944e-38, %v5124
      %v5126 = vsel %vm5123, %v5125, %v5121
      %v5127 = vmul.f32 %v5074, %v5126
      %v5128 = vrcp.pop %v5094
      %v5129 = vmul.f32 %v5094, %v5128
      %v5130 = vsub.f32 1.0, %v5129
      %v5131 = vmul.f32 %v5128, %v5130
      %v5132 = vadd.f32 %v5128, %v5131
      %vm5133 = vweird.f32 %v5094
      %vm5134 = vweird.f32 %v5128
      %vm5135 = vmor %vm5133, %vm5134
      %v5136 = vsel %vm5135, %v5128, %v5132
      %v5137 = vand.u32 2147483647, %v5094
      %vm5138 = vcmp.eq.f32.partialorder %v5137, 8.507059e+37
      %v5139 = vand.u32 %v5094, 2147483648
      %v5140 = vor.u32 1.1754944e-38, %v5139
      %v5141 = vsel %vm5138, %v5140, %v5136
      %v5142 = vmul.f32 %v5076, %v5141
      %v5143 = vrcp.pop %v5097
      %v5144 = vmul.f32 %v5097, %v5143
      %v5145 = vsub.f32 1.0, %v5144
      %v5146 = vmul.f32 %v5143, %v5145
      %v5147 = vadd.f32 %v5143, %v5146
      %vm5148 = vweird.f32 %v5097
      %vm5149 = vweird.f32 %v5143
      %vm5150 = vmor %vm5148, %vm5149
      %v5151 = vsel %vm5150, %v5143, %v5147
      %v5152 = vand.u32 2147483647, %v5097
      %vm5153 = vcmp.eq.f32.partialorder %v5152, 8.507059e+37
      %v5154 = vand.u32 %v5097, 2147483648
      %v5155 = vor.u32 1.1754944e-38, %v5154
      %v5156 = vsel %vm5153, %v5155, %v5151
      %v5157 = vmul.f32 %v5078, %v5156
      %v5158 = vrcp.pop %v5100
      %v5159 = vmul.f32 %v5100, %v5158
      %v5160 = vsub.f32 1.0, %v5159
      %v5161 = vmul.f32 %v5158, %v5160
      %v5162 = vadd.f32 %v5158, %v5161
      %vm5163 = vweird.f32 %v5100
      %vm5164 = vweird.f32 %v5158
      %vm5165 = vmor %vm5163, %vm5164
      %v5166 = vsel %vm5165, %v5158, %v5162
      %v5167 = vand.u32 2147483647, %v5100
      %vm5168 = vcmp.eq.f32.partialorder %v5167, 8.507059e+37
      %v5169 = vand.u32 %v5100, 2147483648
      %v5170 = vor.u32 1.1754944e-38, %v5169
      %v5171 = vsel %vm5168, %v5170, %v5166
      %v5172 = vmul.f32 %v5080, %v5171
      %v5173 = vrcp.pop %v5103
      %v5174 = vmul.f32 %v5103, %v5173
      %v5175 = vsub.f32 1.0, %v5174
      %v5176 = vmul.f32 %v5173, %v5175
      %v5177 = vadd.f32 %v5173, %v5176
      %vm5178 = vweird.f32 %v5103
      %vm5179 = vweird.f32 %v5173
      %vm5180 = vmor %vm5178, %vm5179
      %v5181 = vsel %vm5180, %v5173, %v5177
      %v5182 = vand.u32 2147483647, %v5103
      %vm5183 = vcmp.eq.f32.partialorder %v5182, 8.507059e+37
      %v5184 = vand.u32 %v5103, 2147483648
      %v5185 = vor.u32 1.1754944e-38, %v5184
      %v5186 = vsel %vm5183, %v5185, %v5181
      %v5187 = vmul.f32 %v5082, %v5186
      %v5188 = vrcp.pop %v5106
      %v5189 = vmul.f32 %v5106, %v5188
      %v5190 = vsub.f32 1.0, %v5189
      %v5191 = vmul.f32 %v5188, %v5190
      %v5192 = vadd.f32 %v5188, %v5191
      %vm5193 = vweird.f32 %v5106
      %vm5194 = vweird.f32 %v5188
      %vm5195 = vmor %vm5193, %vm5194
      %v5196 = vsel %vm5195, %v5188, %v5192
      %v5197 = vand.u32 2147483647, %v5106
      %vm5198 = vcmp.eq.f32.partialorder %v5197, 8.507059e+37
      %v5199 = vand.u32 %v5106, 2147483648
      %v5200 = vor.u32 1.1754944e-38, %v5199
      %v5201 = vsel %vm5198, %v5200, %v5196
      %v5202 = vmul.f32 %v5084, %v5201
      %v5203 = vrcp.pop %v5109
      %v5204 = vmul.f32 %v5109, %v5203
      %v5205 = vsub.f32 1.0, %v5204
      %v5206 = vmul.f32 %v5203, %v5205
      %v5207 = vadd.f32 %v5203, %v5206
      %vm5208 = vweird.f32 %v5109
      %vm5209 = vweird.f32 %v5203
      %vm5210 = vmor %vm5208, %vm5209
      %v5211 = vsel %vm5210, %v5203, %v5207
      %v5212 = vand.u32 2147483647, %v5109
      %vm5213 = vcmp.eq.f32.partialorder %v5212, 8.507059e+37
      %v5214 = vand.u32 %v5109, 2147483648
      %v5215 = vor.u32 1.1754944e-38, %v5214
      %v5216 = vsel %vm5213, %v5215, %v5211
      %v5217 = vmul.f32 %v5086, %v5216
      %v5218 = vrcp.pop %v5112
      %v5219 = vmul.f32 %v5112, %v5218
      %v5220 = vsub.f32 1.0, %v5219
      %v5221 = vmul.f32 %v5218, %v5220
      %v5222 = vadd.f32 %v5218, %v5221
      %vm5223 = vweird.f32 %v5112
      %vm5224 = vweird.f32 %v5218
      %vm5225 = vmor %vm5223, %vm5224
      %v5226 = vsel %vm5225, %v5218, %v5222
      %v5227 = vand.u32 2147483647, %v5112
      %vm5228 = vcmp.eq.f32.partialorder %v5227, 8.507059e+37
      %v5229 = vand.u32 %v5112, 2147483648
      %v5230 = vor.u32 1.1754944e-38, %v5229
      %v5231 = vsel %vm5228, %v5230, %v5226
      %v5232 = vmul.f32 %v5088, %v5231
      %v5234 = vsel %vm665, %v5127, 0
      %v5237 = vsel %vm665, %v5142, 0
      %v5240 = vsel %vm665, %v5157, 0
      %v5243 = vsel %vm665, %v5172, 0
      %v5246 = vsel %vm665, %v5187, 0
      %v5249 = vsel %vm665, %v5202, 0
      %v5252 = vsel %vm665, %v5217, 0
      %v5255 = vsel %vm665, %v5232, 0
      %5257 = vmatpush.msra.mxu0 0.0
      %5258 = vmatpush.msra.mxu0 0.0
      %5259 = vmatpush.msra.mxu0 0.0
      %5260 = vmatpush.msra.mxu0 0.0
      %5261 = vmatpush.msra.mxu0 0.0
      %5262 = vmatpush.msra.mxu0 0.0
      %5263 = vmatpush.msra.mxu0 0.0
      %5264 = vmatpush.msra.mxu0 0.0
      %5265 = vmatpush.msra.mxu0 %v4934
      %5266 = vmatpush.msra.mxu0 %v4931
      %5267 = vmatpush.msra.mxu0 %v4928
      %5268 = vmatpush.msra.mxu0 %v4925
      %5269 = vmatpush.msra.mxu0 %v4922
      %5270 = vmatpush.msra.mxu0 %v4919
      %5271 = vmatpush.msra.mxu0 %v4916
      %5272 = vmatpush.msra.mxu0 %v4913
      %5273 = vmatmul.f32.gmra.mxu0 %v5234
      %v5274 = vpop.f32.mrf.mxu0
      %v5275 = vadd.f32 0.0, %v5274
      %5276 = vmatmul.f32.gmra.mxu0 %v5237
      %v5277 = vpop.f32.mrf.mxu0
      %v5278 = vadd.f32 0.0, %v5277
      %5279 = vmatmul.f32.gmra.mxu0 %v5240
      %v5280 = vpop.f32.mrf.mxu0
      %v5281 = vadd.f32 0.0, %v5280
      %5282 = vmatmul.f32.gmra.mxu0 %v5243
      %v5283 = vpop.f32.mrf.mxu0
      %v5284 = vadd.f32 0.0, %v5283
      %5285 = vmatmul.f32.gmra.mxu0 %v5246
      %v5286 = vpop.f32.mrf.mxu0
      %v5287 = vadd.f32 0.0, %v5286
      %5288 = vmatmul.f32.gmra.mxu0 %v5249
      %v5289 = vpop.f32.mrf.mxu0
      %v5290 = vadd.f32 0.0, %v5289
      %5291 = vmatmul.f32.gmra.mxu0 %v5252
      %v5292 = vpop.f32.mrf.mxu0
      %v5293 = vadd.f32 0.0, %v5292
      %5294 = vmatmul.f32.gmra.mxu0 %v5255
      %v5295 = vpop.f32.mrf.mxu0
      %v5296 = vadd.f32 0.0, %v5295
      %5297 = vdwg.mxu0
      %v5298 = vld [vmem:[%s2796] sm:$0xff]
      %v5299 = vld [vmem:[%s2796 + $0x8] sm:$0xff]
      %v5300 = vld [vmem:[%s2796 + $0x10] sm:$0xff]
      %v5301 = vld [vmem:[%s2796 + $0x18] sm:$0xff]
      %v5303 = vsel %vm575, %v5275, 0
      %v5306 = vsel %vm575, %v5278, 0
      %v5309 = vsel %vm575, %v5281, 0
      %v5312 = vsel %vm575, %v5284, 0
      %v5315 = vsel %vm575, %v5287, 0
      %v5318 = vsel %vm575, %v5290, 0
      %v5321 = vsel %vm575, %v5293, 0
      %v5324 = vsel %vm575, %v5296, 0
      %5326 = vmatpush.msra.mxu0 0.0
      %5327 = vmatpush.msra.mxu0 0.0
      %5328 = vmatpush.msra.mxu0 0.0
      %5329 = vmatpush.msra.mxu0 0.0
      %5330 = vmatpush.msra.mxu0 0.0
      %5331 = vmatpush.msra.mxu0 0.0
      %5332 = vmatpush.msra.mxu0 0.0
      %5333 = vmatpush.msra.mxu0 0.0
      %5334 = vmatpush.msra.mxu0 0.0
      %5335 = vmatpush.msra.mxu0 0.0
      %5336 = vmatpush.msra.mxu0 0.0
      %5337 = vmatpush.msra.mxu0 0.0
      %5338 = vmatpush.msra.mxu0 %v5301
      %5339 = vmatpush.msra.mxu0 %v5300
      %5340 = vmatpush.msra.mxu0 %v5299
      %5341 = vmatpush.msra.mxu0 %v5298
      %5342 = vmatmul.f32.gmra.mxu0 %v5303
      %v5343 = vpop.f32.mrf.mxu0
      %v5344 = vadd.f32 0.0, %v5343
      %5345 = vmatmul.f32.gmra.mxu0 %v5306
      %v5346 = vpop.f32.mrf.mxu0
      %v5347 = vadd.f32 0.0, %v5346
      %5348 = vmatmul.f32.gmra.mxu0 %v5309
      %v5349 = vpop.f32.mrf.mxu0
      %v5350 = vadd.f32 0.0, %v5349
      %5351 = vmatmul.f32.gmra.mxu0 %v5312
      %v5352 = vpop.f32.mrf.mxu0
      %v5353 = vadd.f32 0.0, %v5352
      %5354 = vmatmul.f32.gmra.mxu0 %v5315
      %v5355 = vpop.f32.mrf.mxu0
      %v5356 = vadd.f32 0.0, %v5355
      %5357 = vmatmul.f32.gmra.mxu0 %v5318
      %v5358 = vpop.f32.mrf.mxu0
      %v5359 = vadd.f32 0.0, %v5358
      %5360 = vmatmul.f32.gmra.mxu0 %v5321
      %v5361 = vpop.f32.mrf.mxu0
      %v5362 = vadd.f32 0.0, %v5361
      %5363 = vmatmul.f32.gmra.mxu0 %v5324
      %v5364 = vpop.f32.mrf.mxu0
      %v5365 = vadd.f32 0.0, %v5364
      %5366 = vdwg.mxu0
      %v5367 = vadd.f32 %v4745, %v5344
      %v5368 = vadd.f32 %v4746, %v5347
      %v5369 = vadd.f32 %v4747, %v5350
      %v5370 = vadd.f32 %v4748, %v5353
      %v5371 = vadd.f32 %v4749, %v5356
      %v5372 = vadd.f32 %v4750, %v5359
      %v5373 = vadd.f32 %v4751, %v5362
      %v5374 = vadd.f32 %v4752, %v5365
      %v5375 = vld [vmem:[%s9] sm:$0x1]
      %v5377 = vperm.slane %v5375, 0
      %v5379 = vadd.f32 %v5367, %v5377
      %v5380 = vadd.f32 %v5368, %v5377
      %v5381 = vadd.f32 %v5369, %v5377
      %v5382 = vadd.f32 %v5370, %v5377
      %v5383 = vadd.f32 %v5371, %v5377
      %v5384 = vadd.f32 %v5372, %v5377
      %v5385 = vadd.f32 %v5373, %v5377
      %v5386 = vadd.f32 %v5374, %v5377
      %s5387 = scalar_lea.vmem %s366, 64
      %5388 = vst [vmem:[%s5387] sm:$0xff] %v5379
      %5389 = vst [vmem:[%s5387 + $0x8] sm:$0xff] %v5380
      %5390 = vst [vmem:[%s5387 + $0x10] sm:$0xff] %v5381
      %5391 = vst [vmem:[%s5387 + $0x18] sm:$0xff] %v5382
      %5392 = vst [vmem:[%s5387 + $0x20] sm:$0xff] %v5383
      %5393 = vst [vmem:[%s5387 + $0x28] sm:$0xff] %v5384
      %5394 = vst [vmem:[%s5387 + $0x30] sm:$0xff] %v5385
      %5395 = vst [vmem:[%s5387 + $0x38] sm:$0xff] %v5386
      %s5396 = scalar_lea.vmem %s359, 128
      %v5397 = vld [vmem:[%s5396] sm:$0xff]
      %v5398 = vld [vmem:[%s5396 + $0x8] sm:$0xff]
      %v5399 = vld [vmem:[%s5396 + $0x10] sm:$0xff]
      %v5400 = vld [vmem:[%s5396 + $0x18] sm:$0xff]
      %v5401 = vld [vmem:[%s5396 + $0x20] sm:$0xff]
      %v5402 = vld [vmem:[%s5396 + $0x28] sm:$0xff]
      %v5403 = vld [vmem:[%s5396 + $0x30] sm:$0xff]
      %v5404 = vld [vmem:[%s5396 + $0x38] sm:$0xff]
      %v5405 = vld [vmem:[%s1] sm:$0xff]
      %v5406 = vld [vmem:[%s1 + $0x8] sm:$0xff]
      %v5407 = vld [vmem:[%s1 + $0x10] sm:$0xff]
      %v5408 = vld [vmem:[%s1 + $0x18] sm:$0xff]
      %v5409 = vld [vmem:[%s1 + $0x20] sm:$0xff]
      %v5410 = vld [vmem:[%s1 + $0x28] sm:$0xff]
      %v5411 = vld [vmem:[%s1 + $0x30] sm:$0xff]
      %v5412 = vld [vmem:[%s1 + $0x38] sm:$0xff]
      %v5413 = vld [vmem:[%s1 + $0x40] sm:$0xff]
      %v5414 = vld [vmem:[%s1 + $0x48] sm:$0xff]
      %v5415 = vld [vmem:[%s1 + $0x50] sm:$0xff]
      %v5416 = vld [vmem:[%s1 + $0x58] sm:$0xff]
      %v5417 = vld [vmem:[%s1 + $0x60] sm:$0xff]
      %v5418 = vld [vmem:[%s1 + $0x68] sm:$0xff]
      %v5419 = vld [vmem:[%s1 + $0x70] sm:$0xff]
      %v5420 = vld [vmem:[%s1 + $0x78] sm:$0xff]
      %v5421 = vld [vmem:[%s4] sm:$0x1]
      %v5423 = vperm.slane %v5421, 0
      %5425 = vmatpush.msra.mxu0 %v5420
      %5426 = vmatpush.msra.mxu0 %v5419
      %5427 = vmatpush.msra.mxu0 %v5418
      %5428 = vmatpush.msra.mxu0 %v5417
      %5429 = vmatpush.msra.mxu0 %v5416
      %5430 = vmatpush.msra.mxu0 %v5415
      %5431 = vmatpush.msra.mxu0 %v5414
      %5432 = vmatpush.msra.mxu0 %v5413
      %5433 = vmatpush.msra.mxu0 %v5412
      %5434 = vmatpush.msra.mxu0 %v5411
      %5435 = vmatpush.msra.mxu0 %v5410
      %5436 = vmatpush.msra.mxu0 %v5409
      %5437 = vmatpush.msra.mxu0 %v5408
      %5438 = vmatpush.msra.mxu0 %v5407
      %5439 = vmatpush.msra.mxu0 %v5406
      %5440 = vmatpush.msra.mxu0 %v5405
      %5441 = vmatmul.f32.gmra.mxu0 %v5397
      %v5442 = vpop.f32.mrf.mxu0
      %v5443 = vadd.f32 %v5423, %v5442
      %5444 = vmatmul.f32.gmra.mxu0 %v5398
      %v5445 = vpop.f32.mrf.mxu0
      %v5446 = vadd.f32 %v5423, %v5445
      %5447 = vmatmul.f32.gmra.mxu0 %v5399
      %v5448 = vpop.f32.mrf.mxu0
      %v5449 = vadd.f32 %v5423, %v5448
      %5450 = vmatmul.f32.gmra.mxu0 %v5400
      %v5451 = vpop.f32.mrf.mxu0
      %v5452 = vadd.f32 %v5423, %v5451
      %5453 = vmatmul.f32.gmra.mxu0 %v5401
      %v5454 = vpop.f32.mrf.mxu0
      %v5455 = vadd.f32 %v5423, %v5454
      %5456 = vmatmul.f32.gmra.mxu0 %v5402
      %v5457 = vpop.f32.mrf.mxu0
      %v5458 = vadd.f32 %v5423, %v5457
      %5459 = vmatmul.f32.gmra.mxu0 %v5403
      %v5460 = vpop.f32.mrf.mxu0
      %v5461 = vadd.f32 %v5423, %v5460
      %5462 = vmatmul.f32.gmra.mxu0 %v5404
      %v5463 = vpop.f32.mrf.mxu0
      %v5464 = vadd.f32 %v5423, %v5463
      %5465 = vdwg.mxu0
      %v5466 = vld [vmem:[%s2] sm:$0xff]
      %v5467 = vld [vmem:[%s2 + $0x8] sm:$0xff]
      %v5468 = vld [vmem:[%s2 + $0x10] sm:$0xff]
      %v5469 = vld [vmem:[%s2 + $0x18] sm:$0xff]
      %v5470 = vld [vmem:[%s2 + $0x20] sm:$0xff]
      %v5471 = vld [vmem:[%s2 + $0x28] sm:$0xff]
      %v5472 = vld [vmem:[%s2 + $0x30] sm:$0xff]
      %v5473 = vld [vmem:[%s2 + $0x38] sm:$0xff]
      %v5474 = vld [vmem:[%s2 + $0x40] sm:$0xff]
      %v5475 = vld [vmem:[%s2 + $0x48] sm:$0xff]
      %v5476 = vld [vmem:[%s2 + $0x50] sm:$0xff]
      %v5477 = vld [vmem:[%s2 + $0x58] sm:$0xff]
      %v5478 = vld [vmem:[%s2 + $0x60] sm:$0xff]
      %v5479 = vld [vmem:[%s2 + $0x68] sm:$0xff]
      %v5480 = vld [vmem:[%s2 + $0x70] sm:$0xff]
      %v5481 = vld [vmem:[%s2 + $0x78] sm:$0xff]
      %v5482 = vld [vmem:[%s5] sm:$0x1]
      %v5484 = vperm.slane %v5482, 0
      %5486 = vmatpush.msra.mxu0 %v5481
      %5487 = vmatpush.msra.mxu0 %v5480
      %5488 = vmatpush.msra.mxu0 %v5479
      %5489 = vmatpush.msra.mxu0 %v5478
      %5490 = vmatpush.msra.mxu0 %v5477
      %5491 = vmatpush.msra.mxu0 %v5476
      %5492 = vmatpush.msra.mxu0 %v5475
      %5493 = vmatpush.msra.mxu0 %v5474
      %5494 = vmatpush.msra.mxu0 %v5473
      %5495 = vmatpush.msra.mxu0 %v5472
      %5496 = vmatpush.msra.mxu0 %v5471
      %5497 = vmatpush.msra.mxu0 %v5470
      %5498 = vmatpush.msra.mxu0 %v5469
      %5499 = vmatpush.msra.mxu0 %v5468
      %5500 = vmatpush.msra.mxu0 %v5467
      %5501 = vmatpush.msra.mxu0 %v5466
      %5502 = vmatmul.f32.gmra.mxu0 %v5397
      %v5503 = vpop.f32.mrf.mxu0
      %v5504 = vadd.f32 %v5484, %v5503
      %5505 = vmatmul.f32.gmra.mxu0 %v5398
      %v5506 = vpop.f32.mrf.mxu0
      %v5507 = vadd.f32 %v5484, %v5506
      %5508 = vmatmul.f32.gmra.mxu0 %v5399
      %v5509 = vpop.f32.mrf.mxu0
      %v5510 = vadd.f32 %v5484, %v5509
      %5511 = vmatmul.f32.gmra.mxu0 %v5400
      %v5512 = vpop.f32.mrf.mxu0
      %v5513 = vadd.f32 %v5484, %v5512
      %5514 = vmatmul.f32.gmra.mxu0 %v5401
      %v5515 = vpop.f32.mrf.mxu0
      %v5516 = vadd.f32 %v5484, %v5515
      %5517 = vmatmul.f32.gmra.mxu0 %v5402
      %v5518 = vpop.f32.mrf.mxu0
      %v5519 = vadd.f32 %v5484, %v5518
      %5520 = vmatmul.f32.gmra.mxu0 %v5403
      %v5521 = vpop.f32.mrf.mxu0
      %v5522 = vadd.f32 %v5484, %v5521
      %5523 = vmatmul.f32.gmra.mxu0 %v5404
      %v5524 = vpop.f32.mrf.mxu0
      %v5525 = vadd.f32 %v5484, %v5524
      %5526 = vdwg.mxu0
      %v5527 = vld [vmem:[%s3] sm:$0xff]
      %v5528 = vld [vmem:[%s3 + $0x8] sm:$0xff]
      %v5529 = vld [vmem:[%s3 + $0x10] sm:$0xff]
      %v5530 = vld [vmem:[%s3 + $0x18] sm:$0xff]
      %v5531 = vld [vmem:[%s3 + $0x20] sm:$0xff]
      %v5532 = vld [vmem:[%s3 + $0x28] sm:$0xff]
      %v5533 = vld [vmem:[%s3 + $0x30] sm:$0xff]
      %v5534 = vld [vmem:[%s3 + $0x38] sm:$0xff]
      %v5535 = vld [vmem:[%s3 + $0x40] sm:$0xff]
      %v5536 = vld [vmem:[%s3 + $0x48] sm:$0xff]
      %v5537 = vld [vmem:[%s3 + $0x50] sm:$0xff]
      %v5538 = vld [vmem:[%s3 + $0x58] sm:$0xff]
      %v5539 = vld [vmem:[%s3 + $0x60] sm:$0xff]
      %v5540 = vld [vmem:[%s3 + $0x68] sm:$0xff]
      %v5541 = vld [vmem:[%s3 + $0x70] sm:$0xff]
      %v5542 = vld [vmem:[%s3 + $0x78] sm:$0xff]
      %v5543 = vld [vmem:[%s6] sm:$0x1]
      %v5545 = vperm.slane %v5543, 0
      %5547 = vmatpush.msra.mxu0 %v5542
      %5548 = vmatpush.msra.mxu0 %v5541
      %5549 = vmatpush.msra.mxu0 %v5540
      %5550 = vmatpush.msra.mxu0 %v5539
      %5551 = vmatpush.msra.mxu0 %v5538
      %5552 = vmatpush.msra.mxu0 %v5537
      %5553 = vmatpush.msra.mxu0 %v5536
      %5554 = vmatpush.msra.mxu0 %v5535
      %5555 = vmatpush.msra.mxu0 %v5534
      %5556 = vmatpush.msra.mxu0 %v5533
      %5557 = vmatpush.msra.mxu0 %v5532
      %5558 = vmatpush.msra.mxu0 %v5531
      %5559 = vmatpush.msra.mxu0 %v5530
      %5560 = vmatpush.msra.mxu0 %v5529
      %5561 = vmatpush.msra.mxu0 %v5528
      %5562 = vmatpush.msra.mxu0 %v5527
      %5563 = vmatmul.f32.gmra.mxu0 %v5397
      %v5564 = vpop.f32.mrf.mxu0
      %v5565 = vadd.f32 %v5545, %v5564
      %5566 = vmatmul.f32.gmra.mxu0 %v5398
      %v5567 = vpop.f32.mrf.mxu0
      %v5568 = vadd.f32 %v5545, %v5567
      %5569 = vmatmul.f32.gmra.mxu0 %v5399
      %v5570 = vpop.f32.mrf.mxu0
      %v5571 = vadd.f32 %v5545, %v5570
      %5572 = vmatmul.f32.gmra.mxu0 %v5400
      %v5573 = vpop.f32.mrf.mxu0
      %v5574 = vadd.f32 %v5545, %v5573
      %5575 = vmatmul.f32.gmra.mxu0 %v5401
      %v5576 = vpop.f32.mrf.mxu0
      %v5577 = vadd.f32 %v5545, %v5576
      %5578 = vmatmul.f32.gmra.mxu0 %v5402
      %v5579 = vpop.f32.mrf.mxu0
      %v5580 = vadd.f32 %v5545, %v5579
      %5581 = vmatmul.f32.gmra.mxu0 %v5403
      %v5582 = vpop.f32.mrf.mxu0
      %v5583 = vadd.f32 %v5545, %v5582
      %5584 = vmatmul.f32.gmra.mxu0 %v5404
      %v5585 = vpop.f32.mrf.mxu0
      %v5586 = vadd.f32 %v5545, %v5585
      %5587 = vdwg.mxu0
      %v5588 = vmul.f32 %v5443, 0.17677669
      %v5589 = vmul.f32 %v5446, 0.17677669
      %v5590 = vmul.f32 %v5449, 0.17677669
      %v5591 = vmul.f32 %v5452, 0.17677669
      %v5592 = vmul.f32 %v5455, 0.17677669
      %v5593 = vmul.f32 %v5458, 0.17677669
      %v5594 = vmul.f32 %v5461, 0.17677669
      %v5595 = vmul.f32 %v5464, 0.17677669
      %v5596 = vld [vmem:[%s7] sm:$0xff]
      %v5597 = vld [vmem:[%s7 + $0x8] sm:$0xff]
      %v5598 = vld [vmem:[%s7 + $0x10] sm:$0xff]
      %v5599 = vld [vmem:[%s7 + $0x18] sm:$0xff]
      %v5600 = vld [vmem:[%s7 + $0x20] sm:$0xff]
      %v5601 = vld [vmem:[%s7 + $0x28] sm:$0xff]
      %v5602 = vld [vmem:[%s7 + $0x30] sm:$0xff]
      %v5603 = vld [vmem:[%s7 + $0x38] sm:$0xff]
      %v5605 = vsel %vm575, %v5588, 0
      %v5608 = vsel %vm575, %v5589, 0
      %v5611 = vsel %vm575, %v5590, 0
      %v5614 = vsel %vm575, %v5591, 0
      %v5617 = vsel %vm575, %v5592, 0
      %v5620 = vsel %vm575, %v5593, 0
      %v5623 = vsel %vm575, %v5594, 0
      %v5626 = vsel %vm575, %v5595, 0
      %v5629 = vsel %vm575, %v5504, 0
      %v5632 = vsel %vm575, %v5507, 0
      %v5635 = vsel %vm575, %v5510, 0
      %v5638 = vsel %vm575, %v5513, 0
      %v5641 = vsel %vm575, %v5516, 0
      %v5644 = vsel %vm575, %v5519, 0
      %v5647 = vsel %vm575, %v5522, 0
      %v5650 = vsel %vm575, %v5525, 0
      %5652 = vmatpush.xpose.msra.mxu0 0.0
      %5653 = vmatpush.xpose.msra.mxu0 0.0
      %5654 = vmatpush.xpose.msra.mxu0 0.0
      %5655 = vmatpush.xpose.msra.mxu0 0.0
      %5656 = vmatpush.xpose.msra.mxu0 0.0
      %5657 = vmatpush.xpose.msra.mxu0 0.0
      %5658 = vmatpush.xpose.msra.mxu0 0.0
      %5659 = vmatpush.xpose.msra.mxu0 0.0
      %5660 = vmatpush.xpose.msra.mxu0 %v5650
      %5661 = vmatpush.xpose.msra.mxu0 %v5647
      %5662 = vmatpush.xpose.msra.mxu0 %v5644
      %5663 = vmatpush.xpose.msra.mxu0 %v5641
      %5664 = vmatpush.xpose.msra.mxu0 %v5638
      %5665 = vmatpush.xpose.msra.mxu0 %v5635
      %5666 = vmatpush.xpose.msra.mxu0 %v5632
      %5667 = vmatpush.xpose.msra.mxu0 %v5629
      %5668 = vmatmul.f32.gmra.mxu0 %v5605
      %v5669 = vpop.f32.mrf.mxu0
      %v5670 = vadd.f32 %v5596, %v5669
      %5671 = vmatmul.f32.gmra.mxu0 %v5608
      %v5672 = vpop.f32.mrf.mxu0
      %v5673 = vadd.f32 %v5597, %v5672
      %5674 = vmatmul.f32.gmra.mxu0 %v5611
      %v5675 = vpop.f32.mrf.mxu0
      %v5676 = vadd.f32 %v5598, %v5675
      %5677 = vmatmul.f32.gmra.mxu0 %v5614
      %v5678 = vpop.f32.mrf.mxu0
      %v5679 = vadd.f32 %v5599, %v5678
      %5680 = vmatmul.f32.gmra.mxu0 %v5617
      %v5681 = vpop.f32.mrf.mxu0
      %v5682 = vadd.f32 %v5600, %v5681
      %5683 = vmatmul.f32.gmra.mxu0 %v5620
      %v5684 = vpop.f32.mrf.mxu0
      %v5685 = vadd.f32 %v5601, %v5684
      %5686 = vmatmul.f32.gmra.mxu0 %v5623
      %v5687 = vpop.f32.mrf.mxu0
      %v5688 = vadd.f32 %v5602, %v5687
      %5689 = vmatmul.f32.gmra.mxu0 %v5626
      %v5690 = vpop.f32.mrf.mxu0
      %v5691 = vadd.f32 %v5603, %v5690
      %5692 = vdwg.mxu0
      %v5693 = vsel %vm665, %v5670, -inf
      %5694 = vmax.xlane.f32.xlu0 %v5693
      %v5695 = vpop.xlane.xlu0 %5694
      %v5696 = vsel %vm665, %v5673, -inf
      %5697 = vmax.xlane.f32.xlu0 %v5696
      %v5698 = vpop.xlane.xlu0 %5697
      %v5699 = vsel %vm665, %v5676, -inf
      %5700 = vmax.xlane.f32.xlu0 %v5699
      %v5701 = vpop.xlane.xlu0 %5700
      %v5702 = vsel %vm665, %v5679, -inf
      %5703 = vmax.xlane.f32.xlu0 %v5702
      %v5704 = vpop.xlane.xlu0 %5703
      %v5705 = vsel %vm665, %v5682, -inf
      %5706 = vmax.xlane.f32.xlu0 %v5705
      %v5707 = vpop.xlane.xlu0 %5706
      %v5708 = vsel %vm665, %v5685, -inf
      %5709 = vmax.xlane.f32.xlu0 %v5708
      %v5710 = vpop.xlane.xlu0 %5709
      %v5711 = vsel %vm665, %v5688, -inf
      %5712 = vmax.xlane.f32.xlu0 %v5711
      %v5713 = vpop.xlane.xlu0 %5712
      %v5714 = vsel %vm665, %v5691, -inf
      %5715 = vmax.xlane.f32.xlu0 %v5714
      %v5716 = vpop.xlane.xlu0 %5715
      %v5717 = vsub.f32 %v5670, %v5695
      %v5718 = vsub.f32 %v5673, %v5698
      %v5719 = vsub.f32 %v5676, %v5701
      %v5720 = vsub.f32 %v5679, %v5704
      %v5721 = vsub.f32 %v5682, %v5707
      %v5722 = vsub.f32 %v5685, %v5710
      %v5723 = vsub.f32 %v5688, %v5713
      %v5724 = vsub.f32 %v5691, %v5716
      %v5725 = vmul.f32 %v5717, 1.442695
      %v5726 = vpow.pop %v5725
      %v5727 = vmul.f32 %v5718, 1.442695
      %v5728 = vpow.pop %v5727
      %v5729 = vmul.f32 %v5719, 1.442695
      %v5730 = vpow.pop %v5729
      %v5731 = vmul.f32 %v5720, 1.442695
      %v5732 = vpow.pop %v5731
      %v5733 = vmul.f32 %v5721, 1.442695
      %v5734 = vpow.pop %v5733
      %v5735 = vmul.f32 %v5722, 1.442695
      %v5736 = vpow.pop %v5735
      %v5737 = vmul.f32 %v5723, 1.442695
      %v5738 = vpow.pop %v5737
      %v5739 = vmul.f32 %v5724, 1.442695
      %v5740 = vpow.pop %v5739
      %v5741 = vsel %vm665, %v5726, 0.0
      %5742 = vadd.xlane.f32.xlu0 %v5741
      %v5743 = vpop.xlane.xlu0 %5742
      %v5744 = vsel %vm665, %v5728, 0.0
      %5745 = vadd.xlane.f32.xlu0 %v5744
      %v5746 = vpop.xlane.xlu0 %5745
      %v5747 = vsel %vm665, %v5730, 0.0
      %5748 = vadd.xlane.f32.xlu0 %v5747
      %v5749 = vpop.xlane.xlu0 %5748
      %v5750 = vsel %vm665, %v5732, 0.0
      %5751 = vadd.xlane.f32.xlu0 %v5750
      %v5752 = vpop.xlane.xlu0 %5751
      %v5753 = vsel %vm665, %v5734, 0.0
      %5754 = vadd.xlane.f32.xlu0 %v5753
      %v5755 = vpop.xlane.xlu0 %5754
      %v5756 = vsel %vm665, %v5736, 0.0
      %5757 = vadd.xlane.f32.xlu0 %v5756
      %v5758 = vpop.xlane.xlu0 %5757
      %v5759 = vsel %vm665, %v5738, 0.0
      %5760 = vadd.xlane.f32.xlu0 %v5759
      %v5761 = vpop.xlane.xlu0 %5760
      %v5762 = vsel %vm665, %v5740, 0.0
      %5763 = vadd.xlane.f32.xlu0 %v5762
      %v5764 = vpop.xlane.xlu0 %5763
      %v5765 = vrcp.pop %v5743
      %v5766 = vmul.f32 %v5743, %v5765
      %v5767 = vsub.f32 1.0, %v5766
      %v5768 = vmul.f32 %v5765, %v5767
      %v5769 = vadd.f32 %v5765, %v5768
      %vm5770 = vweird.f32 %v5743
      %vm5771 = vweird.f32 %v5765
      %vm5772 = vmor %vm5770, %vm5771
      %v5773 = vsel %vm5772, %v5765, %v5769
      %v5774 = vand.u32 2147483647, %v5743
      %vm5775 = vcmp.eq.f32.partialorder %v5774, 8.507059e+37
      %v5776 = vand.u32 %v5743, 2147483648
      %v5777 = vor.u32 1.1754944e-38, %v5776
      %v5778 = vsel %vm5775, %v5777, %v5773
      %v5779 = vmul.f32 %v5726, %v5778
      %v5780 = vrcp.pop %v5746
      %v5781 = vmul.f32 %v5746, %v5780
      %v5782 = vsub.f32 1.0, %v5781
      %v5783 = vmul.f32 %v5780, %v5782
      %v5784 = vadd.f32 %v5780, %v5783
      %vm5785 = vweird.f32 %v5746
      %vm5786 = vweird.f32 %v5780
      %vm5787 = vmor %vm5785, %vm5786
      %v5788 = vsel %vm5787, %v5780, %v5784
      %v5789 = vand.u32 2147483647, %v5746
      %vm5790 = vcmp.eq.f32.partialorder %v5789, 8.507059e+37
      %v5791 = vand.u32 %v5746, 2147483648
      %v5792 = vor.u32 1.1754944e-38, %v5791
      %v5793 = vsel %vm5790, %v5792, %v5788
      %v5794 = vmul.f32 %v5728, %v5793
      %v5795 = vrcp.pop %v5749
      %v5796 = vmul.f32 %v5749, %v5795
      %v5797 = vsub.f32 1.0, %v5796
      %v5798 = vmul.f32 %v5795, %v5797
      %v5799 = vadd.f32 %v5795, %v5798
      %vm5800 = vweird.f32 %v5749
      %vm5801 = vweird.f32 %v5795
      %vm5802 = vmor %vm5800, %vm5801
      %v5803 = vsel %vm5802, %v5795, %v5799
      %v5804 = vand.u32 2147483647, %v5749
      %vm5805 = vcmp.eq.f32.partialorder %v5804, 8.507059e+37
      %v5806 = vand.u32 %v5749, 2147483648
      %v5807 = vor.u32 1.1754944e-38, %v5806
      %v5808 = vsel %vm5805, %v5807, %v5803
      %v5809 = vmul.f32 %v5730, %v5808
      %v5810 = vrcp.pop %v5752
      %v5811 = vmul.f32 %v5752, %v5810
      %v5812 = vsub.f32 1.0, %v5811
      %v5813 = vmul.f32 %v5810, %v5812
      %v5814 = vadd.f32 %v5810, %v5813
      %vm5815 = vweird.f32 %v5752
      %vm5816 = vweird.f32 %v5810
      %vm5817 = vmor %vm5815, %vm5816
      %v5818 = vsel %vm5817, %v5810, %v5814
      %v5819 = vand.u32 2147483647, %v5752
      %vm5820 = vcmp.eq.f32.partialorder %v5819, 8.507059e+37
      %v5821 = vand.u32 %v5752, 2147483648
      %v5822 = vor.u32 1.1754944e-38, %v5821
      %v5823 = vsel %vm5820, %v5822, %v5818
      %v5824 = vmul.f32 %v5732, %v5823
      %v5825 = vrcp.pop %v5755
      %v5826 = vmul.f32 %v5755, %v5825
      %v5827 = vsub.f32 1.0, %v5826
      %v5828 = vmul.f32 %v5825, %v5827
      %v5829 = vadd.f32 %v5825, %v5828
      %vm5830 = vweird.f32 %v5755
      %vm5831 = vweird.f32 %v5825
      %vm5832 = vmor %vm5830, %vm5831
      %v5833 = vsel %vm5832, %v5825, %v5829
      %v5834 = vand.u32 2147483647, %v5755
      %vm5835 = vcmp.eq.f32.partialorder %v5834, 8.507059e+37
      %v5836 = vand.u32 %v5755, 2147483648
      %v5837 = vor.u32 1.1754944e-38, %v5836
      %v5838 = vsel %vm5835, %v5837, %v5833
      %v5839 = vmul.f32 %v5734, %v5838
      %v5840 = vrcp.pop %v5758
      %v5841 = vmul.f32 %v5758, %v5840
      %v5842 = vsub.f32 1.0, %v5841
      %v5843 = vmul.f32 %v5840, %v5842
      %v5844 = vadd.f32 %v5840, %v5843
      %vm5845 = vweird.f32 %v5758
      %vm5846 = vweird.f32 %v5840
      %vm5847 = vmor %vm5845, %vm5846
      %v5848 = vsel %vm5847, %v5840, %v5844
      %v5849 = vand.u32 2147483647, %v5758
      %vm5850 = vcmp.eq.f32.partialorder %v5849, 8.507059e+37
      %v5851 = vand.u32 %v5758, 2147483648
      %v5852 = vor.u32 1.1754944e-38, %v5851
      %v5853 = vsel %vm5850, %v5852, %v5848
      %v5854 = vmul.f32 %v5736, %v5853
      %v5855 = vrcp.pop %v5761
      %v5856 = vmul.f32 %v5761, %v5855
      %v5857 = vsub.f32 1.0, %v5856
      %v5858 = vmul.f32 %v5855, %v5857
      %v5859 = vadd.f32 %v5855, %v5858
      %vm5860 = vweird.f32 %v5761
      %vm5861 = vweird.f32 %v5855
      %vm5862 = vmor %vm5860, %vm5861
      %v5863 = vsel %vm5862, %v5855, %v5859
      %v5864 = vand.u32 2147483647, %v5761
      %vm5865 = vcmp.eq.f32.partialorder %v5864, 8.507059e+37
      %v5866 = vand.u32 %v5761, 2147483648
      %v5867 = vor.u32 1.1754944e-38, %v5866
      %v5868 = vsel %vm5865, %v5867, %v5863
      %v5869 = vmul.f32 %v5738, %v5868
      %v5870 = vrcp.pop %v5764
      %v5871 = vmul.f32 %v5764, %v5870
      %v5872 = vsub.f32 1.0, %v5871
      %v5873 = vmul.f32 %v5870, %v5872
      %v5874 = vadd.f32 %v5870, %v5873
      %vm5875 = vweird.f32 %v5764
      %vm5876 = vweird.f32 %v5870
      %vm5877 = vmor %vm5875, %vm5876
      %v5878 = vsel %vm5877, %v5870, %v5874
      %v5879 = vand.u32 2147483647, %v5764
      %vm5880 = vcmp.eq.f32.partialorder %v5879, 8.507059e+37
      %v5881 = vand.u32 %v5764, 2147483648
      %v5882 = vor.u32 1.1754944e-38, %v5881
      %v5883 = vsel %vm5880, %v5882, %v5878
      %v5884 = vmul.f32 %v5740, %v5883
      %v5886 = vsel %vm665, %v5779, 0
      %v5889 = vsel %vm665, %v5794, 0
      %v5892 = vsel %vm665, %v5809, 0
      %v5895 = vsel %vm665, %v5824, 0
      %v5898 = vsel %vm665, %v5839, 0
      %v5901 = vsel %vm665, %v5854, 0
      %v5904 = vsel %vm665, %v5869, 0
      %v5907 = vsel %vm665, %v5884, 0
      %5909 = vmatpush.msra.mxu0 0.0
      %5910 = vmatpush.msra.mxu0 0.0
      %5911 = vmatpush.msra.mxu0 0.0
      %5912 = vmatpush.msra.mxu0 0.0
      %5913 = vmatpush.msra.mxu0 0.0
      %5914 = vmatpush.msra.mxu0 0.0
      %5915 = vmatpush.msra.mxu0 0.0
      %5916 = vmatpush.msra.mxu0 0.0
      %5917 = vmatpush.msra.mxu0 %v5586
      %5918 = vmatpush.msra.mxu0 %v5583
      %5919 = vmatpush.msra.mxu0 %v5580
      %5920 = vmatpush.msra.mxu0 %v5577
      %5921 = vmatpush.msra.mxu0 %v5574
      %5922 = vmatpush.msra.mxu0 %v5571
      %5923 = vmatpush.msra.mxu0 %v5568
      %5924 = vmatpush.msra.mxu0 %v5565
      %5925 = vmatmul.f32.gmra.mxu0 %v5886
      %v5926 = vpop.f32.mrf.mxu0
      %v5927 = vadd.f32 0.0, %v5926
      %5928 = vmatmul.f32.gmra.mxu0 %v5889
      %v5929 = vpop.f32.mrf.mxu0
      %v5930 = vadd.f32 0.0, %v5929
      %5931 = vmatmul.f32.gmra.mxu0 %v5892
      %v5932 = vpop.f32.mrf.mxu0
      %v5933 = vadd.f32 0.0, %v5932
      %5934 = vmatmul.f32.gmra.mxu0 %v5895
      %v5935 = vpop.f32.mrf.mxu0
      %v5936 = vadd.f32 0.0, %v5935
      %5937 = vmatmul.f32.gmra.mxu0 %v5898
      %v5938 = vpop.f32.mrf.mxu0
      %v5939 = vadd.f32 0.0, %v5938
      %5940 = vmatmul.f32.gmra.mxu0 %v5901
      %v5941 = vpop.f32.mrf.mxu0
      %v5942 = vadd.f32 0.0, %v5941
      %5943 = vmatmul.f32.gmra.mxu0 %v5904
      %v5944 = vpop.f32.mrf.mxu0
      %v5945 = vadd.f32 0.0, %v5944
      %5946 = vmatmul.f32.gmra.mxu0 %v5907
      %v5947 = vpop.f32.mrf.mxu0
      %v5948 = vadd.f32 0.0, %v5947
      %5949 = vdwg.mxu0
      %v5950 = vld [vmem:[%s8] sm:$0xff]
      %v5951 = vld [vmem:[%s8 + $0x8] sm:$0xff]
      %v5952 = vld [vmem:[%s8 + $0x10] sm:$0xff]
      %v5953 = vld [vmem:[%s8 + $0x18] sm:$0xff]
      %v5954 = vld [vmem:[%s927] sm:$0xff]
      %v5955 = vld [vmem:[%s927 + $0x8] sm:$0xff]
      %v5956 = vld [vmem:[%s927 + $0x10] sm:$0xff]
      %v5957 = vld [vmem:[%s927 + $0x18] sm:$0xff]
      %v5958 = vld [vmem:[%s927 + $0x20] sm:$0xff]
      %v5959 = vld [vmem:[%s927 + $0x28] sm:$0xff]
      %v5960 = vld [vmem:[%s927 + $0x30] sm:$0xff]
      %v5961 = vld [vmem:[%s927 + $0x38] sm:$0xff]
      %v5962 = vld [vmem:[%s927 + $0x40] sm:$0xff]
      %v5963 = vld [vmem:[%s927 + $0x48] sm:$0xff]
      %v5964 = vld [vmem:[%s927 + $0x50] sm:$0xff]
      %v5965 = vld [vmem:[%s927 + $0x58] sm:$0xff]
      %v5966 = vld [vmem:[%s927 + $0x60] sm:$0xff]
      %v5967 = vld [vmem:[%s927 + $0x68] sm:$0xff]
      %v5968 = vld [vmem:[%s927 + $0x70] sm:$0xff]
      %v5969 = vld [vmem:[%s927 + $0x78] sm:$0xff]
      %v5970 = vld [vmem:[%s944] sm:$0x1]
      %v5972 = vperm.slane %v5970, 0
      %5974 = vmatpush.msra.mxu0 %v5969
      %5975 = vmatpush.msra.mxu0 %v5968
      %5976 = vmatpush.msra.mxu0 %v5967
      %5977 = vmatpush.msra.mxu0 %v5966
      %5978 = vmatpush.msra.mxu0 %v5965
      %5979 = vmatpush.msra.mxu0 %v5964
      %5980 = vmatpush.msra.mxu0 %v5963
      %5981 = vmatpush.msra.mxu0 %v5962
      %5982 = vmatpush.msra.mxu0 %v5961
      %5983 = vmatpush.msra.mxu0 %v5960
      %5984 = vmatpush.msra.mxu0 %v5959
      %5985 = vmatpush.msra.mxu0 %v5958
      %5986 = vmatpush.msra.mxu0 %v5957
      %5987 = vmatpush.msra.mxu0 %v5956
      %5988 = vmatpush.msra.mxu0 %v5955
      %5989 = vmatpush.msra.mxu0 %v5954
      %5990 = vmatmul.f32.gmra.mxu0 %v5397
      %v5991 = vpop.f32.mrf.mxu0
      %v5992 = vadd.f32 %v5972, %v5991
      %5993 = vmatmul.f32.gmra.mxu0 %v5398
      %v5994 = vpop.f32.mrf.mxu0
      %v5995 = vadd.f32 %v5972, %v5994
      %5996 = vmatmul.f32.gmra.mxu0 %v5399
      %v5997 = vpop.f32.mrf.mxu0
      %v5998 = vadd.f32 %v5972, %v5997
      %5999 = vmatmul.f32.gmra.mxu0 %v5400
      %v6000 = vpop.f32.mrf.mxu0
      %v6001 = vadd.f32 %v5972, %v6000
      %6002 = vmatmul.f32.gmra.mxu0 %v5401
      %v6003 = vpop.f32.mrf.mxu0
      %v6004 = vadd.f32 %v5972, %v6003
      %6005 = vmatmul.f32.gmra.mxu0 %v5402
      %v6006 = vpop.f32.mrf.mxu0
      %v6007 = vadd.f32 %v5972, %v6006
      %6008 = vmatmul.f32.gmra.mxu0 %v5403
      %v6009 = vpop.f32.mrf.mxu0
      %v6010 = vadd.f32 %v5972, %v6009
      %6011 = vmatmul.f32.gmra.mxu0 %v5404
      %v6012 = vpop.f32.mrf.mxu0
      %v6013 = vadd.f32 %v5972, %v6012
      %6014 = vdwg.mxu0
      %v6015 = vld [vmem:[%s990] sm:$0xff]
      %v6016 = vld [vmem:[%s990 + $0x8] sm:$0xff]
      %v6017 = vld [vmem:[%s990 + $0x10] sm:$0xff]
      %v6018 = vld [vmem:[%s990 + $0x18] sm:$0xff]
      %v6019 = vld [vmem:[%s990 + $0x20] sm:$0xff]
      %v6020 = vld [vmem:[%s990 + $0x28] sm:$0xff]
      %v6021 = vld [vmem:[%s990 + $0x30] sm:$0xff]
      %v6022 = vld [vmem:[%s990 + $0x38] sm:$0xff]
      %v6023 = vld [vmem:[%s990 + $0x40] sm:$0xff]
      %v6024 = vld [vmem:[%s990 + $0x48] sm:$0xff]
      %v6025 = vld [vmem:[%s990 + $0x50] sm:$0xff]
      %v6026 = vld [vmem:[%s990 + $0x58] sm:$0xff]
      %v6027 = vld [vmem:[%s990 + $0x60] sm:$0xff]
      %v6028 = vld [vmem:[%s990 + $0x68] sm:$0xff]
      %v6029 = vld [vmem:[%s990 + $0x70] sm:$0xff]
      %v6030 = vld [vmem:[%s990 + $0x78] sm:$0xff]
      %v6031 = vld [vmem:[%s1007] sm:$0x1]
      %v6033 = vperm.slane %v6031, 0
      %6035 = vmatpush.msra.mxu0 %v6030
      %6036 = vmatpush.msra.mxu0 %v6029
      %6037 = vmatpush.msra.mxu0 %v6028
      %6038 = vmatpush.msra.mxu0 %v6027
      %6039 = vmatpush.msra.mxu0 %v6026
      %6040 = vmatpush.msra.mxu0 %v6025
      %6041 = vmatpush.msra.mxu0 %v6024
      %6042 = vmatpush.msra.mxu0 %v6023
      %6043 = vmatpush.msra.mxu0 %v6022
      %6044 = vmatpush.msra.mxu0 %v6021
      %6045 = vmatpush.msra.mxu0 %v6020
      %6046 = vmatpush.msra.mxu0 %v6019
      %6047 = vmatpush.msra.mxu0 %v6018
      %6048 = vmatpush.msra.mxu0 %v6017
      %6049 = vmatpush.msra.mxu0 %v6016
      %6050 = vmatpush.msra.mxu0 %v6015
      %6051 = vmatmul.f32.gmra.mxu0 %v5397
      %v6052 = vpop.f32.mrf.mxu0
      %v6053 = vadd.f32 %v6033, %v6052
      %6054 = vmatmul.f32.gmra.mxu0 %v5398
      %v6055 = vpop.f32.mrf.mxu0
      %v6056 = vadd.f32 %v6033, %v6055
      %6057 = vmatmul.f32.gmra.mxu0 %v5399
      %v6058 = vpop.f32.mrf.mxu0
      %v6059 = vadd.f32 %v6033, %v6058
      %6060 = vmatmul.f32.gmra.mxu0 %v5400
      %v6061 = vpop.f32.mrf.mxu0
      %v6062 = vadd.f32 %v6033, %v6061
      %6063 = vmatmul.f32.gmra.mxu0 %v5401
      %v6064 = vpop.f32.mrf.mxu0
      %v6065 = vadd.f32 %v6033, %v6064
      %6066 = vmatmul.f32.gmra.mxu0 %v5402
      %v6067 = vpop.f32.mrf.mxu0
      %v6068 = vadd.f32 %v6033, %v6067
      %6069 = vmatmul.f32.gmra.mxu0 %v5403
      %v6070 = vpop.f32.mrf.mxu0
      %v6071 = vadd.f32 %v6033, %v6070
      %6072 = vmatmul.f32.gmra.mxu0 %v5404
      %v6073 = vpop.f32.mrf.mxu0
      %v6074 = vadd.f32 %v6033, %v6073
      %6075 = vdwg.mxu0
      %v6076 = vld [vmem:[%s1053] sm:$0xff]
      %v6077 = vld [vmem:[%s1053 + $0x8] sm:$0xff]
      %v6078 = vld [vmem:[%s1053 + $0x10] sm:$0xff]
      %v6079 = vld [vmem:[%s1053 + $0x18] sm:$0xff]
      %v6080 = vld [vmem:[%s1053 + $0x20] sm:$0xff]
      %v6081 = vld [vmem:[%s1053 + $0x28] sm:$0xff]
      %v6082 = vld [vmem:[%s1053 + $0x30] sm:$0xff]
      %v6083 = vld [vmem:[%s1053 + $0x38] sm:$0xff]
      %v6084 = vld [vmem:[%s1053 + $0x40] sm:$0xff]
      %v6085 = vld [vmem:[%s1053 + $0x48] sm:$0xff]
      %v6086 = vld [vmem:[%s1053 + $0x50] sm:$0xff]
      %v6087 = vld [vmem:[%s1053 + $0x58] sm:$0xff]
      %v6088 = vld [vmem:[%s1053 + $0x60] sm:$0xff]
      %v6089 = vld [vmem:[%s1053 + $0x68] sm:$0xff]
      %v6090 = vld [vmem:[%s1053 + $0x70] sm:$0xff]
      %v6091 = vld [vmem:[%s1053 + $0x78] sm:$0xff]
      %v6092 = vld [vmem:[%s1070] sm:$0x1]
      %v6094 = vperm.slane %v6092, 0
      %6096 = vmatpush.msra.mxu0 %v6091
      %6097 = vmatpush.msra.mxu0 %v6090
      %6098 = vmatpush.msra.mxu0 %v6089
      %6099 = vmatpush.msra.mxu0 %v6088
      %6100 = vmatpush.msra.mxu0 %v6087
      %6101 = vmatpush.msra.mxu0 %v6086
      %6102 = vmatpush.msra.mxu0 %v6085
      %6103 = vmatpush.msra.mxu0 %v6084
      %6104 = vmatpush.msra.mxu0 %v6083
      %6105 = vmatpush.msra.mxu0 %v6082
      %6106 = vmatpush.msra.mxu0 %v6081
      %6107 = vmatpush.msra.mxu0 %v6080
      %6108 = vmatpush.msra.mxu0 %v6079
      %6109 = vmatpush.msra.mxu0 %v6078
      %6110 = vmatpush.msra.mxu0 %v6077
      %6111 = vmatpush.msra.mxu0 %v6076
      %6112 = vmatmul.f32.gmra.mxu0 %v5397
      %v6113 = vpop.f32.mrf.mxu0
      %v6114 = vadd.f32 %v6094, %v6113
      %6115 = vmatmul.f32.gmra.mxu0 %v5398
      %v6116 = vpop.f32.mrf.mxu0
      %v6117 = vadd.f32 %v6094, %v6116
      %6118 = vmatmul.f32.gmra.mxu0 %v5399
      %v6119 = vpop.f32.mrf.mxu0
      %v6120 = vadd.f32 %v6094, %v6119
      %6121 = vmatmul.f32.gmra.mxu0 %v5400
      %v6122 = vpop.f32.mrf.mxu0
      %v6123 = vadd.f32 %v6094, %v6122
      %6124 = vmatmul.f32.gmra.mxu0 %v5401
      %v6125 = vpop.f32.mrf.mxu0
      %v6126 = vadd.f32 %v6094, %v6125
      %6127 = vmatmul.f32.gmra.mxu0 %v5402
      %v6128 = vpop.f32.mrf.mxu0
      %v6129 = vadd.f32 %v6094, %v6128
      %6130 = vmatmul.f32.gmra.mxu0 %v5403
      %v6131 = vpop.f32.mrf.mxu0
      %v6132 = vadd.f32 %v6094, %v6131
      %6133 = vmatmul.f32.gmra.mxu0 %v5404
      %v6134 = vpop.f32.mrf.mxu0
      %v6135 = vadd.f32 %v6094, %v6134
      %6136 = vdwg.mxu0
      %v6137 = vmul.f32 %v5992, 0.17677669
      %v6138 = vmul.f32 %v5995, 0.17677669
      %v6139 = vmul.f32 %v5998, 0.17677669
      %v6140 = vmul.f32 %v6001, 0.17677669
      %v6141 = vmul.f32 %v6004, 0.17677669
      %v6142 = vmul.f32 %v6007, 0.17677669
      %v6143 = vmul.f32 %v6010, 0.17677669
      %v6144 = vmul.f32 %v6013, 0.17677669
      %v6145 = vld [vmem:[%s1124] sm:$0xff]
      %v6146 = vld [vmem:[%s1124 + $0x8] sm:$0xff]
      %v6147 = vld [vmem:[%s1124 + $0x10] sm:$0xff]
      %v6148 = vld [vmem:[%s1124 + $0x18] sm:$0xff]
      %v6149 = vld [vmem:[%s1124 + $0x20] sm:$0xff]
      %v6150 = vld [vmem:[%s1124 + $0x28] sm:$0xff]
      %v6151 = vld [vmem:[%s1124 + $0x30] sm:$0xff]
      %v6152 = vld [vmem:[%s1124 + $0x38] sm:$0xff]
      %v6154 = vsel %vm575, %v6137, 0
      %v6157 = vsel %vm575, %v6138, 0
      %v6160 = vsel %vm575, %v6139, 0
      %v6163 = vsel %vm575, %v6140, 0
      %v6166 = vsel %vm575, %v6141, 0
      %v6169 = vsel %vm575, %v6142, 0
      %v6172 = vsel %vm575, %v6143, 0
      %v6175 = vsel %vm575, %v6144, 0
      %v6178 = vsel %vm575, %v6053, 0
      %v6181 = vsel %vm575, %v6056, 0
      %v6184 = vsel %vm575, %v6059, 0
      %v6187 = vsel %vm575, %v6062, 0
      %v6190 = vsel %vm575, %v6065, 0
      %v6193 = vsel %vm575, %v6068, 0
      %v6196 = vsel %vm575, %v6071, 0
      %v6199 = vsel %vm575, %v6074, 0
      %6201 = vmatpush.xpose.msra.mxu0 0.0
      %6202 = vmatpush.xpose.msra.mxu0 0.0
      %6203 = vmatpush.xpose.msra.mxu0 0.0
      %6204 = vmatpush.xpose.msra.mxu0 0.0
      %6205 = vmatpush.xpose.msra.mxu0 0.0
      %6206 = vmatpush.xpose.msra.mxu0 0.0
      %6207 = vmatpush.xpose.msra.mxu0 0.0
      %6208 = vmatpush.xpose.msra.mxu0 0.0
      %6209 = vmatpush.xpose.msra.mxu0 %v6199
      %6210 = vmatpush.xpose.msra.mxu0 %v6196
      %6211 = vmatpush.xpose.msra.mxu0 %v6193
      %6212 = vmatpush.xpose.msra.mxu0 %v6190
      %6213 = vmatpush.xpose.msra.mxu0 %v6187
      %6214 = vmatpush.xpose.msra.mxu0 %v6184
      %6215 = vmatpush.xpose.msra.mxu0 %v6181
      %6216 = vmatpush.xpose.msra.mxu0 %v6178
      %6217 = vmatmul.f32.gmra.mxu0 %v6154
      %v6218 = vpop.f32.mrf.mxu0
      %v6219 = vadd.f32 %v6145, %v6218
      %6220 = vmatmul.f32.gmra.mxu0 %v6157
      %v6221 = vpop.f32.mrf.mxu0
      %v6222 = vadd.f32 %v6146, %v6221
      %6223 = vmatmul.f32.gmra.mxu0 %v6160
      %v6224 = vpop.f32.mrf.mxu0
      %v6225 = vadd.f32 %v6147, %v6224
      %6226 = vmatmul.f32.gmra.mxu0 %v6163
      %v6227 = vpop.f32.mrf.mxu0
      %v6228 = vadd.f32 %v6148, %v6227
      %6229 = vmatmul.f32.gmra.mxu0 %v6166
      %v6230 = vpop.f32.mrf.mxu0
      %v6231 = vadd.f32 %v6149, %v6230
      %6232 = vmatmul.f32.gmra.mxu0 %v6169
      %v6233 = vpop.f32.mrf.mxu0
      %v6234 = vadd.f32 %v6150, %v6233
      %6235 = vmatmul.f32.gmra.mxu0 %v6172
      %v6236 = vpop.f32.mrf.mxu0
      %v6237 = vadd.f32 %v6151, %v6236
      %6238 = vmatmul.f32.gmra.mxu0 %v6175
      %v6239 = vpop.f32.mrf.mxu0
      %v6240 = vadd.f32 %v6152, %v6239
      %6241 = vdwg.mxu0
      %v6242 = vsel %vm665, %v6219, -inf
      %6243 = vmax.xlane.f32.xlu0 %v6242
      %v6244 = vpop.xlane.xlu0 %6243
      %v6245 = vsel %vm665, %v6222, -inf
      %6246 = vmax.xlane.f32.xlu0 %v6245
      %v6247 = vpop.xlane.xlu0 %6246
      %v6248 = vsel %vm665, %v6225, -inf
      %6249 = vmax.xlane.f32.xlu0 %v6248
      %v6250 = vpop.xlane.xlu0 %6249
      %v6251 = vsel %vm665, %v6228, -inf
      %6252 = vmax.xlane.f32.xlu0 %v6251
      %v6253 = vpop.xlane.xlu0 %6252
      %v6254 = vsel %vm665, %v6231, -inf
      %6255 = vmax.xlane.f32.xlu0 %v6254
      %v6256 = vpop.xlane.xlu0 %6255
      %v6257 = vsel %vm665, %v6234, -inf
      %6258 = vmax.xlane.f32.xlu0 %v6257
      %v6259 = vpop.xlane.xlu0 %6258
      %v6260 = vsel %vm665, %v6237, -inf
      %6261 = vmax.xlane.f32.xlu0 %v6260
      %v6262 = vpop.xlane.xlu0 %6261
      %v6263 = vsel %vm665, %v6240, -inf
      %6264 = vmax.xlane.f32.xlu0 %v6263
      %v6265 = vpop.xlane.xlu0 %6264
      %v6266 = vsub.f32 %v6219, %v6244
      %v6267 = vsub.f32 %v6222, %v6247
      %v6268 = vsub.f32 %v6225, %v6250
      %v6269 = vsub.f32 %v6228, %v6253
      %v6270 = vsub.f32 %v6231, %v6256
      %v6271 = vsub.f32 %v6234, %v6259
      %v6272 = vsub.f32 %v6237, %v6262
      %v6273 = vsub.f32 %v6240, %v6265
      %v6274 = vmul.f32 %v6266, 1.442695
      %v6275 = vpow.pop %v6274
      %v6276 = vmul.f32 %v6267, 1.442695
      %v6277 = vpow.pop %v6276
      %v6278 = vmul.f32 %v6268, 1.442695
      %v6279 = vpow.pop %v6278
      %v6280 = vmul.f32 %v6269, 1.442695
      %v6281 = vpow.pop %v6280
      %v6282 = vmul.f32 %v6270, 1.442695
      %v6283 = vpow.pop %v6282
      %v6284 = vmul.f32 %v6271, 1.442695
      %v6285 = vpow.pop %v6284
      %v6286 = vmul.f32 %v6272, 1.442695
      %v6287 = vpow.pop %v6286
      %v6288 = vmul.f32 %v6273, 1.442695
      %v6289 = vpow.pop %v6288
      %v6290 = vsel %vm665, %v6275, 0.0
      %6291 = vadd.xlane.f32.xlu0 %v6290
      %v6292 = vpop.xlane.xlu0 %6291
      %v6293 = vsel %vm665, %v6277, 0.0
      %6294 = vadd.xlane.f32.xlu0 %v6293
      %v6295 = vpop.xlane.xlu0 %6294
      %v6296 = vsel %vm665, %v6279, 0.0
      %6297 = vadd.xlane.f32.xlu0 %v6296
      %v6298 = vpop.xlane.xlu0 %6297
      %v6299 = vsel %vm665, %v6281, 0.0
      %6300 = vadd.xlane.f32.xlu0 %v6299
      %v6301 = vpop.xlane.xlu0 %6300
      %v6302 = vsel %vm665, %v6283, 0.0
      %6303 = vadd.xlane.f32.xlu0 %v6302
      %v6304 = vpop.xlane.xlu0 %6303
      %v6305 = vsel %vm665, %v6285, 0.0
      %6306 = vadd.xlane.f32.xlu0 %v6305
      %v6307 = vpop.xlane.xlu0 %6306
      %v6308 = vsel %vm665, %v6287, 0.0
      %6309 = vadd.xlane.f32.xlu0 %v6308
      %v6310 = vpop.xlane.xlu0 %6309
      %v6311 = vsel %vm665, %v6289, 0.0
      %6312 = vadd.xlane.f32.xlu0 %v6311
      %v6313 = vpop.xlane.xlu0 %6312
      %v6314 = vrcp.pop %v6292
      %v6315 = vmul.f32 %v6292, %v6314
      %v6316 = vsub.f32 1.0, %v6315
      %v6317 = vmul.f32 %v6314, %v6316
      %v6318 = vadd.f32 %v6314, %v6317
      %vm6319 = vweird.f32 %v6292
      %vm6320 = vweird.f32 %v6314
      %vm6321 = vmor %vm6319, %vm6320
      %v6322 = vsel %vm6321, %v6314, %v6318
      %v6323 = vand.u32 2147483647, %v6292
      %vm6324 = vcmp.eq.f32.partialorder %v6323, 8.507059e+37
      %v6325 = vand.u32 %v6292, 2147483648
      %v6326 = vor.u32 1.1754944e-38, %v6325
      %v6327 = vsel %vm6324, %v6326, %v6322
      %v6328 = vmul.f32 %v6275, %v6327
      %v6329 = vrcp.pop %v6295
      %v6330 = vmul.f32 %v6295, %v6329
      %v6331 = vsub.f32 1.0, %v6330
      %v6332 = vmul.f32 %v6329, %v6331
      %v6333 = vadd.f32 %v6329, %v6332
      %vm6334 = vweird.f32 %v6295
      %vm6335 = vweird.f32 %v6329
      %vm6336 = vmor %vm6334, %vm6335
      %v6337 = vsel %vm6336, %v6329, %v6333
      %v6338 = vand.u32 2147483647, %v6295
      %vm6339 = vcmp.eq.f32.partialorder %v6338, 8.507059e+37
      %v6340 = vand.u32 %v6295, 2147483648
      %v6341 = vor.u32 1.1754944e-38, %v6340
      %v6342 = vsel %vm6339, %v6341, %v6337
      %v6343 = vmul.f32 %v6277, %v6342
      %v6344 = vrcp.pop %v6298
      %v6345 = vmul.f32 %v6298, %v6344
      %v6346 = vsub.f32 1.0, %v6345
      %v6347 = vmul.f32 %v6344, %v6346
      %v6348 = vadd.f32 %v6344, %v6347
      %vm6349 = vweird.f32 %v6298
      %vm6350 = vweird.f32 %v6344
      %vm6351 = vmor %vm6349, %vm6350
      %v6352 = vsel %vm6351, %v6344, %v6348
      %v6353 = vand.u32 2147483647, %v6298
      %vm6354 = vcmp.eq.f32.partialorder %v6353, 8.507059e+37
      %v6355 = vand.u32 %v6298, 2147483648
      %v6356 = vor.u32 1.1754944e-38, %v6355
      %v6357 = vsel %vm6354, %v6356, %v6352
      %v6358 = vmul.f32 %v6279, %v6357
      %v6359 = vrcp.pop %v6301
      %v6360 = vmul.f32 %v6301, %v6359
      %v6361 = vsub.f32 1.0, %v6360
      %v6362 = vmul.f32 %v6359, %v6361
      %v6363 = vadd.f32 %v6359, %v6362
      %vm6364 = vweird.f32 %v6301
      %vm6365 = vweird.f32 %v6359
      %vm6366 = vmor %vm6364, %vm6365
      %v6367 = vsel %vm6366, %v6359, %v6363
      %v6368 = vand.u32 2147483647, %v6301
      %vm6369 = vcmp.eq.f32.partialorder %v6368, 8.507059e+37
      %v6370 = vand.u32 %v6301, 2147483648
      %v6371 = vor.u32 1.1754944e-38, %v6370
      %v6372 = vsel %vm6369, %v6371, %v6367
      %v6373 = vmul.f32 %v6281, %v6372
      %v6374 = vrcp.pop %v6304
      %v6375 = vmul.f32 %v6304, %v6374
      %v6376 = vsub.f32 1.0, %v6375
      %v6377 = vmul.f32 %v6374, %v6376
      %v6378 = vadd.f32 %v6374, %v6377
      %vm6379 = vweird.f32 %v6304
      %vm6380 = vweird.f32 %v6374
      %vm6381 = vmor %vm6379, %vm6380
      %v6382 = vsel %vm6381, %v6374, %v6378
      %v6383 = vand.u32 2147483647, %v6304
      %vm6384 = vcmp.eq.f32.partialorder %v6383, 8.507059e+37
      %v6385 = vand.u32 %v6304, 2147483648
      %v6386 = vor.u32 1.1754944e-38, %v6385
      %v6387 = vsel %vm6384, %v6386, %v6382
      %v6388 = vmul.f32 %v6283, %v6387
      %v6389 = vrcp.pop %v6307
      %v6390 = vmul.f32 %v6307, %v6389
      %v6391 = vsub.f32 1.0, %v6390
      %v6392 = vmul.f32 %v6389, %v6391
      %v6393 = vadd.f32 %v6389, %v6392
      %vm6394 = vweird.f32 %v6307
      %vm6395 = vweird.f32 %v6389
      %vm6396 = vmor %vm6394, %vm6395
      %v6397 = vsel %vm6396, %v6389, %v6393
      %v6398 = vand.u32 2147483647, %v6307
      %vm6399 = vcmp.eq.f32.partialorder %v6398, 8.507059e+37
      %v6400 = vand.u32 %v6307, 2147483648
      %v6401 = vor.u32 1.1754944e-38, %v6400
      %v6402 = vsel %vm6399, %v6401, %v6397
      %v6403 = vmul.f32 %v6285, %v6402
      %v6404 = vrcp.pop %v6310
      %v6405 = vmul.f32 %v6310, %v6404
      %v6406 = vsub.f32 1.0, %v6405
      %v6407 = vmul.f32 %v6404, %v6406
      %v6408 = vadd.f32 %v6404, %v6407
      %vm6409 = vweird.f32 %v6310
      %vm6410 = vweird.f32 %v6404
      %vm6411 = vmor %vm6409, %vm6410
      %v6412 = vsel %vm6411, %v6404, %v6408
      %v6413 = vand.u32 2147483647, %v6310
      %vm6414 = vcmp.eq.f32.partialorder %v6413, 8.507059e+37
      %v6415 = vand.u32 %v6310, 2147483648
      %v6416 = vor.u32 1.1754944e-38, %v6415
      %v6417 = vsel %vm6414, %v6416, %v6412
      %v6418 = vmul.f32 %v6287, %v6417
      %v6419 = vrcp.pop %v6313
      %v6420 = vmul.f32 %v6313, %v6419
      %v6421 = vsub.f32 1.0, %v6420
      %v6422 = vmul.f32 %v6419, %v6421
      %v6423 = vadd.f32 %v6419, %v6422
      %vm6424 = vweird.f32 %v6313
      %vm6425 = vweird.f32 %v6419
      %vm6426 = vmor %vm6424, %vm6425
      %v6427 = vsel %vm6426, %v6419, %v6423
      %v6428 = vand.u32 2147483647, %v6313
      %vm6429 = vcmp.eq.f32.partialorder %v6428, 8.507059e+37
      %v6430 = vand.u32 %v6313, 2147483648
      %v6431 = vor.u32 1.1754944e-38, %v6430
      %v6432 = vsel %vm6429, %v6431, %v6427
      %v6433 = vmul.f32 %v6289, %v6432
      %v6435 = vsel %vm665, %v6328, 0
      %v6438 = vsel %vm665, %v6343, 0
      %v6441 = vsel %vm665, %v6358, 0
      %v6444 = vsel %vm665, %v6373, 0
      %v6447 = vsel %vm665, %v6388, 0
      %v6450 = vsel %vm665, %v6403, 0
      %v6453 = vsel %vm665, %v6418, 0
      %v6456 = vsel %vm665, %v6433, 0
      %6458 = vmatpush.msra.mxu0 0.0
      %6459 = vmatpush.msra.mxu0 0.0
      %6460 = vmatpush.msra.mxu0 0.0
      %6461 = vmatpush.msra.mxu0 0.0
      %6462 = vmatpush.msra.mxu0 0.0
      %6463 = vmatpush.msra.mxu0 0.0
      %6464 = vmatpush.msra.mxu0 0.0
      %6465 = vmatpush.msra.mxu0 0.0
      %6466 = vmatpush.msra.mxu0 %v6135
      %6467 = vmatpush.msra.mxu0 %v6132
      %6468 = vmatpush.msra.mxu0 %v6129
      %6469 = vmatpush.msra.mxu0 %v6126
      %6470 = vmatpush.msra.mxu0 %v6123
      %6471 = vmatpush.msra.mxu0 %v6120
      %6472 = vmatpush.msra.mxu0 %v6117
      %6473 = vmatpush.msra.mxu0 %v6114
      %6474 = vmatmul.f32.gmra.mxu0 %v6435
      %v6475 = vpop.f32.mrf.mxu0
      %v6476 = vadd.f32 0.0, %v6475
      %6477 = vmatmul.f32.gmra.mxu0 %v6438
      %v6478 = vpop.f32.mrf.mxu0
      %v6479 = vadd.f32 0.0, %v6478
      %6480 = vmatmul.f32.gmra.mxu0 %v6441
      %v6481 = vpop.f32.mrf.mxu0
      %v6482 = vadd.f32 0.0, %v6481
      %6483 = vmatmul.f32.gmra.mxu0 %v6444
      %v6484 = vpop.f32.mrf.mxu0
      %v6485 = vadd.f32 0.0, %v6484
      %6486 = vmatmul.f32.gmra.mxu0 %v6447
      %v6487 = vpop.f32.mrf.mxu0
      %v6488 = vadd.f32 0.0, %v6487
      %6489 = vmatmul.f32.gmra.mxu0 %v6450
      %v6490 = vpop.f32.mrf.mxu0
      %v6491 = vadd.f32 0.0, %v6490
      %6492 = vmatmul.f32.gmra.mxu0 %v6453
      %v6493 = vpop.f32.mrf.mxu0
      %v6494 = vadd.f32 0.0, %v6493
      %6495 = vmatmul.f32.gmra.mxu0 %v6456
      %v6496 = vpop.f32.mrf.mxu0
      %v6497 = vadd.f32 0.0, %v6496
      %6498 = vdwg.mxu0
      %v6499 = vld [vmem:[%s1479] sm:$0xff]
      %v6500 = vld [vmem:[%s1479 + $0x8] sm:$0xff]
      %v6501 = vld [vmem:[%s1479 + $0x10] sm:$0xff]
      %v6502 = vld [vmem:[%s1479 + $0x18] sm:$0xff]
      %v6504 = vsel %vm575, %v6476, 0
      %v6507 = vsel %vm575, %v6479, 0
      %v6510 = vsel %vm575, %v6482, 0
      %v6513 = vsel %vm575, %v6485, 0
      %v6516 = vsel %vm575, %v6488, 0
      %v6519 = vsel %vm575, %v6491, 0
      %v6522 = vsel %vm575, %v6494, 0
      %v6525 = vsel %vm575, %v6497, 0
      %6527 = vmatpush.msra.mxu0 0.0
      %6528 = vmatpush.msra.mxu0 0.0
      %6529 = vmatpush.msra.mxu0 0.0
      %6530 = vmatpush.msra.mxu0 0.0
      %6531 = vmatpush.msra.mxu0 0.0
      %6532 = vmatpush.msra.mxu0 0.0
      %6533 = vmatpush.msra.mxu0 0.0
      %6534 = vmatpush.msra.mxu0 0.0
      %6535 = vmatpush.msra.mxu0 0.0
      %6536 = vmatpush.msra.mxu0 0.0
      %6537 = vmatpush.msra.mxu0 0.0
      %6538 = vmatpush.msra.mxu0 0.0
      %6539 = vmatpush.msra.mxu0 %v6502
      %6540 = vmatpush.msra.mxu0 %v6501
      %6541 = vmatpush.msra.mxu0 %v6500
      %6542 = vmatpush.msra.mxu0 %v6499
      %6543 = vmatmul.f32.gmra.mxu0 %v6504
      %v6544 = vpop.f32.mrf.mxu0
      %v6545 = vadd.f32 0.0, %v6544
      %6546 = vmatmul.f32.gmra.mxu0 %v6507
      %v6547 = vpop.f32.mrf.mxu0
      %v6548 = vadd.f32 0.0, %v6547
      %6549 = vmatmul.f32.gmra.mxu0 %v6510
      %v6550 = vpop.f32.mrf.mxu0
      %v6551 = vadd.f32 0.0, %v6550
      %6552 = vmatmul.f32.gmra.mxu0 %v6513
      %v6553 = vpop.f32.mrf.mxu0
      %v6554 = vadd.f32 0.0, %v6553
      %6555 = vmatmul.f32.gmra.mxu0 %v6516
      %v6556 = vpop.f32.mrf.mxu0
      %v6557 = vadd.f32 0.0, %v6556
      %6558 = vmatmul.f32.gmra.mxu0 %v6519
      %v6559 = vpop.f32.mrf.mxu0
      %v6560 = vadd.f32 0.0, %v6559
      %6561 = vmatmul.f32.gmra.mxu0 %v6522
      %v6562 = vpop.f32.mrf.mxu0
      %v6563 = vadd.f32 0.0, %v6562
      %6564 = vmatmul.f32.gmra.mxu0 %v6525
      %v6565 = vpop.f32.mrf.mxu0
      %v6566 = vadd.f32 0.0, %v6565
      %6567 = vdwg.mxu0
      %v6569 = vsel %vm575, %v5927, 0
      %v6572 = vsel %vm575, %v5930, 0
      %v6575 = vsel %vm575, %v5933, 0
      %v6578 = vsel %vm575, %v5936, 0
      %v6581 = vsel %vm575, %v5939, 0
      %v6584 = vsel %vm575, %v5942, 0
      %v6587 = vsel %vm575, %v5945, 0
      %v6590 = vsel %vm575, %v5948, 0
      %6592 = vmatpush.msra.mxu0 0.0
      %6593 = vmatpush.msra.mxu0 0.0
      %6594 = vmatpush.msra.mxu0 0.0
      %6595 = vmatpush.msra.mxu0 0.0
      %6596 = vmatpush.msra.mxu0 0.0
      %6597 = vmatpush.msra.mxu0 0.0
      %6598 = vmatpush.msra.mxu0 0.0
      %6599 = vmatpush.msra.mxu0 0.0
      %6600 = vmatpush.msra.mxu0 0.0
      %6601 = vmatpush.msra.mxu0 0.0
      %6602 = vmatpush.msra.mxu0 0.0
      %6603 = vmatpush.msra.mxu0 0.0
      %6604 = vmatpush.msra.mxu0 %v5953
      %6605 = vmatpush.msra.mxu0 %v5952
      %6606 = vmatpush.msra.mxu0 %v5951
      %6607 = vmatpush.msra.mxu0 %v5950
      %6608 = vmatmul.f32.gmra.mxu0 %v6569
      %v6609 = vpop.f32.mrf.mxu0
      %v6610 = vadd.f32 %v6545, %v6609
      %6611 = vmatmul.f32.gmra.mxu0 %v6572
      %v6612 = vpop.f32.mrf.mxu0
      %v6613 = vadd.f32 %v6548, %v6612
      %6614 = vmatmul.f32.gmra.mxu0 %v6575
      %v6615 = vpop.f32.mrf.mxu0
      %v6616 = vadd.f32 %v6551, %v6615
      %6617 = vmatmul.f32.gmra.mxu0 %v6578
      %v6618 = vpop.f32.mrf.mxu0
      %v6619 = vadd.f32 %v6554, %v6618
      %6620 = vmatmul.f32.gmra.mxu0 %v6581
      %v6621 = vpop.f32.mrf.mxu0
      %v6622 = vadd.f32 %v6557, %v6621
      %6623 = vmatmul.f32.gmra.mxu0 %v6584
      %v6624 = vpop.f32.mrf.mxu0
      %v6625 = vadd.f32 %v6560, %v6624
      %6626 = vmatmul.f32.gmra.mxu0 %v6587
      %v6627 = vpop.f32.mrf.mxu0
      %v6628 = vadd.f32 %v6563, %v6627
      %6629 = vmatmul.f32.gmra.mxu0 %v6590
      %v6630 = vpop.f32.mrf.mxu0
      %v6631 = vadd.f32 %v6566, %v6630
      %6632 = vdwg.mxu0
      %v6633 = vld [vmem:[%s1614] sm:$0xff]
      %v6634 = vld [vmem:[%s1614 + $0x8] sm:$0xff]
      %v6635 = vld [vmem:[%s1614 + $0x10] sm:$0xff]
      %v6636 = vld [vmem:[%s1614 + $0x18] sm:$0xff]
      %v6637 = vld [vmem:[%s1614 + $0x20] sm:$0xff]
      %v6638 = vld [vmem:[%s1614 + $0x28] sm:$0xff]
      %v6639 = vld [vmem:[%s1614 + $0x30] sm:$0xff]
      %v6640 = vld [vmem:[%s1614 + $0x38] sm:$0xff]
      %v6641 = vld [vmem:[%s1614 + $0x40] sm:$0xff]
      %v6642 = vld [vmem:[%s1614 + $0x48] sm:$0xff]
      %v6643 = vld [vmem:[%s1614 + $0x50] sm:$0xff]
      %v6644 = vld [vmem:[%s1614 + $0x58] sm:$0xff]
      %v6645 = vld [vmem:[%s1614 + $0x60] sm:$0xff]
      %v6646 = vld [vmem:[%s1614 + $0x68] sm:$0xff]
      %v6647 = vld [vmem:[%s1614 + $0x70] sm:$0xff]
      %v6648 = vld [vmem:[%s1614 + $0x78] sm:$0xff]
      %v6649 = vld [vmem:[%s1631] sm:$0x1]
      %v6651 = vperm.slane %v6649, 0
      %6653 = vmatpush.msra.mxu0 %v6648
      %6654 = vmatpush.msra.mxu0 %v6647
      %6655 = vmatpush.msra.mxu0 %v6646
      %6656 = vmatpush.msra.mxu0 %v6645
      %6657 = vmatpush.msra.mxu0 %v6644
      %6658 = vmatpush.msra.mxu0 %v6643
      %6659 = vmatpush.msra.mxu0 %v6642
      %6660 = vmatpush.msra.mxu0 %v6641
      %6661 = vmatpush.msra.mxu0 %v6640
      %6662 = vmatpush.msra.mxu0 %v6639
      %6663 = vmatpush.msra.mxu0 %v6638
      %6664 = vmatpush.msra.mxu0 %v6637
      %6665 = vmatpush.msra.mxu0 %v6636
      %6666 = vmatpush.msra.mxu0 %v6635
      %6667 = vmatpush.msra.mxu0 %v6634
      %6668 = vmatpush.msra.mxu0 %v6633
      %6669 = vmatmul.f32.gmra.mxu0 %v5397
      %v6670 = vpop.f32.mrf.mxu0
      %v6671 = vadd.f32 %v6651, %v6670
      %6672 = vmatmul.f32.gmra.mxu0 %v5398
      %v6673 = vpop.f32.mrf.mxu0
      %v6674 = vadd.f32 %v6651, %v6673
      %6675 = vmatmul.f32.gmra.mxu0 %v5399
      %v6676 = vpop.f32.mrf.mxu0
      %v6677 = vadd.f32 %v6651, %v6676
      %6678 = vmatmul.f32.gmra.mxu0 %v5400
      %v6679 = vpop.f32.mrf.mxu0
      %v6680 = vadd.f32 %v6651, %v6679
      %6681 = vmatmul.f32.gmra.mxu0 %v5401
      %v6682 = vpop.f32.mrf.mxu0
      %v6683 = vadd.f32 %v6651, %v6682
      %6684 = vmatmul.f32.gmra.mxu0 %v5402
      %v6685 = vpop.f32.mrf.mxu0
      %v6686 = vadd.f32 %v6651, %v6685
      %6687 = vmatmul.f32.gmra.mxu0 %v5403
      %v6688 = vpop.f32.mrf.mxu0
      %v6689 = vadd.f32 %v6651, %v6688
      %6690 = vmatmul.f32.gmra.mxu0 %v5404
      %v6691 = vpop.f32.mrf.mxu0
      %v6692 = vadd.f32 %v6651, %v6691
      %6693 = vdwg.mxu0
      %v6694 = vld [vmem:[%s1677] sm:$0xff]
      %v6695 = vld [vmem:[%s1677 + $0x8] sm:$0xff]
      %v6696 = vld [vmem:[%s1677 + $0x10] sm:$0xff]
      %v6697 = vld [vmem:[%s1677 + $0x18] sm:$0xff]
      %v6698 = vld [vmem:[%s1677 + $0x20] sm:$0xff]
      %v6699 = vld [vmem:[%s1677 + $0x28] sm:$0xff]
      %v6700 = vld [vmem:[%s1677 + $0x30] sm:$0xff]
      %v6701 = vld [vmem:[%s1677 + $0x38] sm:$0xff]
      %v6702 = vld [vmem:[%s1677 + $0x40] sm:$0xff]
      %v6703 = vld [vmem:[%s1677 + $0x48] sm:$0xff]
      %v6704 = vld [vmem:[%s1677 + $0x50] sm:$0xff]
      %v6705 = vld [vmem:[%s1677 + $0x58] sm:$0xff]
      %v6706 = vld [vmem:[%s1677 + $0x60] sm:$0xff]
      %v6707 = vld [vmem:[%s1677 + $0x68] sm:$0xff]
      %v6708 = vld [vmem:[%s1677 + $0x70] sm:$0xff]
      %v6709 = vld [vmem:[%s1677 + $0x78] sm:$0xff]
      %v6710 = vld [vmem:[%s1694] sm:$0x1]
      %v6712 = vperm.slane %v6710, 0
      %6714 = vmatpush.msra.mxu0 %v6709
      %6715 = vmatpush.msra.mxu0 %v6708
      %6716 = vmatpush.msra.mxu0 %v6707
      %6717 = vmatpush.msra.mxu0 %v6706
      %6718 = vmatpush.msra.mxu0 %v6705
      %6719 = vmatpush.msra.mxu0 %v6704
      %6720 = vmatpush.msra.mxu0 %v6703
      %6721 = vmatpush.msra.mxu0 %v6702
      %6722 = vmatpush.msra.mxu0 %v6701
      %6723 = vmatpush.msra.mxu0 %v6700
      %6724 = vmatpush.msra.mxu0 %v6699
      %6725 = vmatpush.msra.mxu0 %v6698
      %6726 = vmatpush.msra.mxu0 %v6697
      %6727 = vmatpush.msra.mxu0 %v6696
      %6728 = vmatpush.msra.mxu0 %v6695
      %6729 = vmatpush.msra.mxu0 %v6694
      %6730 = vmatmul.f32.gmra.mxu0 %v5397
      %v6731 = vpop.f32.mrf.mxu0
      %v6732 = vadd.f32 %v6712, %v6731
      %6733 = vmatmul.f32.gmra.mxu0 %v5398
      %v6734 = vpop.f32.mrf.mxu0
      %v6735 = vadd.f32 %v6712, %v6734
      %6736 = vmatmul.f32.gmra.mxu0 %v5399
      %v6737 = vpop.f32.mrf.mxu0
      %v6738 = vadd.f32 %v6712, %v6737
      %6739 = vmatmul.f32.gmra.mxu0 %v5400
      %v6740 = vpop.f32.mrf.mxu0
      %v6741 = vadd.f32 %v6712, %v6740
      %6742 = vmatmul.f32.gmra.mxu0 %v5401
      %v6743 = vpop.f32.mrf.mxu0
      %v6744 = vadd.f32 %v6712, %v6743
      %6745 = vmatmul.f32.gmra.mxu0 %v5402
      %v6746 = vpop.f32.mrf.mxu0
      %v6747 = vadd.f32 %v6712, %v6746
      %6748 = vmatmul.f32.gmra.mxu0 %v5403
      %v6749 = vpop.f32.mrf.mxu0
      %v6750 = vadd.f32 %v6712, %v6749
      %6751 = vmatmul.f32.gmra.mxu0 %v5404
      %v6752 = vpop.f32.mrf.mxu0
      %v6753 = vadd.f32 %v6712, %v6752
      %6754 = vdwg.mxu0
      %v6755 = vld [vmem:[%s1740] sm:$0xff]
      %v6756 = vld [vmem:[%s1740 + $0x8] sm:$0xff]
      %v6757 = vld [vmem:[%s1740 + $0x10] sm:$0xff]
      %v6758 = vld [vmem:[%s1740 + $0x18] sm:$0xff]
      %v6759 = vld [vmem:[%s1740 + $0x20] sm:$0xff]
      %v6760 = vld [vmem:[%s1740 + $0x28] sm:$0xff]
      %v6761 = vld [vmem:[%s1740 + $0x30] sm:$0xff]
      %v6762 = vld [vmem:[%s1740 + $0x38] sm:$0xff]
      %v6763 = vld [vmem:[%s1740 + $0x40] sm:$0xff]
      %v6764 = vld [vmem:[%s1740 + $0x48] sm:$0xff]
      %v6765 = vld [vmem:[%s1740 + $0x50] sm:$0xff]
      %v6766 = vld [vmem:[%s1740 + $0x58] sm:$0xff]
      %v6767 = vld [vmem:[%s1740 + $0x60] sm:$0xff]
      %v6768 = vld [vmem:[%s1740 + $0x68] sm:$0xff]
      %v6769 = vld [vmem:[%s1740 + $0x70] sm:$0xff]
      %v6770 = vld [vmem:[%s1740 + $0x78] sm:$0xff]
      %v6771 = vld [vmem:[%s1757] sm:$0x1]
      %v6773 = vperm.slane %v6771, 0
      %6775 = vmatpush.msra.mxu0 %v6770
      %6776 = vmatpush.msra.mxu0 %v6769
      %6777 = vmatpush.msra.mxu0 %v6768
      %6778 = vmatpush.msra.mxu0 %v6767
      %6779 = vmatpush.msra.mxu0 %v6766
      %6780 = vmatpush.msra.mxu0 %v6765
      %6781 = vmatpush.msra.mxu0 %v6764
      %6782 = vmatpush.msra.mxu0 %v6763
      %6783 = vmatpush.msra.mxu0 %v6762
      %6784 = vmatpush.msra.mxu0 %v6761
      %6785 = vmatpush.msra.mxu0 %v6760
      %6786 = vmatpush.msra.mxu0 %v6759
      %6787 = vmatpush.msra.mxu0 %v6758
      %6788 = vmatpush.msra.mxu0 %v6757
      %6789 = vmatpush.msra.mxu0 %v6756
      %6790 = vmatpush.msra.mxu0 %v6755
      %6791 = vmatmul.f32.gmra.mxu0 %v5397
      %v6792 = vpop.f32.mrf.mxu0
      %v6793 = vadd.f32 %v6773, %v6792
      %6794 = vmatmul.f32.gmra.mxu0 %v5398
      %v6795 = vpop.f32.mrf.mxu0
      %v6796 = vadd.f32 %v6773, %v6795
      %6797 = vmatmul.f32.gmra.mxu0 %v5399
      %v6798 = vpop.f32.mrf.mxu0
      %v6799 = vadd.f32 %v6773, %v6798
      %6800 = vmatmul.f32.gmra.mxu0 %v5400
      %v6801 = vpop.f32.mrf.mxu0
      %v6802 = vadd.f32 %v6773, %v6801
      %6803 = vmatmul.f32.gmra.mxu0 %v5401
      %v6804 = vpop.f32.mrf.mxu0
      %v6805 = vadd.f32 %v6773, %v6804
      %6806 = vmatmul.f32.gmra.mxu0 %v5402
      %v6807 = vpop.f32.mrf.mxu0
      %v6808 = vadd.f32 %v6773, %v6807
      %6809 = vmatmul.f32.gmra.mxu0 %v5403
      %v6810 = vpop.f32.mrf.mxu0
      %v6811 = vadd.f32 %v6773, %v6810
      %6812 = vmatmul.f32.gmra.mxu0 %v5404
      %v6813 = vpop.f32.mrf.mxu0
      %v6814 = vadd.f32 %v6773, %v6813
      %6815 = vdwg.mxu0
      %v6816 = vmul.f32 %v6671, 0.17677669
      %v6817 = vmul.f32 %v6674, 0.17677669
      %v6818 = vmul.f32 %v6677, 0.17677669
      %v6819 = vmul.f32 %v6680, 0.17677669
      %v6820 = vmul.f32 %v6683, 0.17677669
      %v6821 = vmul.f32 %v6686, 0.17677669
      %v6822 = vmul.f32 %v6689, 0.17677669
      %v6823 = vmul.f32 %v6692, 0.17677669
      %v6824 = vld [vmem:[%s1811] sm:$0xff]
      %v6825 = vld [vmem:[%s1811 + $0x8] sm:$0xff]
      %v6826 = vld [vmem:[%s1811 + $0x10] sm:$0xff]
      %v6827 = vld [vmem:[%s1811 + $0x18] sm:$0xff]
      %v6828 = vld [vmem:[%s1811 + $0x20] sm:$0xff]
      %v6829 = vld [vmem:[%s1811 + $0x28] sm:$0xff]
      %v6830 = vld [vmem:[%s1811 + $0x30] sm:$0xff]
      %v6831 = vld [vmem:[%s1811 + $0x38] sm:$0xff]
      %v6833 = vsel %vm575, %v6816, 0
      %v6836 = vsel %vm575, %v6817, 0
      %v6839 = vsel %vm575, %v6818, 0
      %v6842 = vsel %vm575, %v6819, 0
      %v6845 = vsel %vm575, %v6820, 0
      %v6848 = vsel %vm575, %v6821, 0
      %v6851 = vsel %vm575, %v6822, 0
      %v6854 = vsel %vm575, %v6823, 0
      %v6857 = vsel %vm575, %v6732, 0
      %v6860 = vsel %vm575, %v6735, 0
      %v6863 = vsel %vm575, %v6738, 0
      %v6866 = vsel %vm575, %v6741, 0
      %v6869 = vsel %vm575, %v6744, 0
      %v6872 = vsel %vm575, %v6747, 0
      %v6875 = vsel %vm575, %v6750, 0
      %v6878 = vsel %vm575, %v6753, 0
      %6880 = vmatpush.xpose.msra.mxu0 0.0
      %6881 = vmatpush.xpose.msra.mxu0 0.0
      %6882 = vmatpush.xpose.msra.mxu0 0.0
      %6883 = vmatpush.xpose.msra.mxu0 0.0
      %6884 = vmatpush.xpose.msra.mxu0 0.0
      %6885 = vmatpush.xpose.msra.mxu0 0.0
      %6886 = vmatpush.xpose.msra.mxu0 0.0
      %6887 = vmatpush.xpose.msra.mxu0 0.0
      %6888 = vmatpush.xpose.msra.mxu0 %v6878
      %6889 = vmatpush.xpose.msra.mxu0 %v6875
      %6890 = vmatpush.xpose.msra.mxu0 %v6872
      %6891 = vmatpush.xpose.msra.mxu0 %v6869
      %6892 = vmatpush.xpose.msra.mxu0 %v6866
      %6893 = vmatpush.xpose.msra.mxu0 %v6863
      %6894 = vmatpush.xpose.msra.mxu0 %v6860
      %6895 = vmatpush.xpose.msra.mxu0 %v6857
      %6896 = vmatmul.f32.gmra.mxu0 %v6833
      %v6897 = vpop.f32.mrf.mxu0
      %v6898 = vadd.f32 %v6824, %v6897
      %6899 = vmatmul.f32.gmra.mxu0 %v6836
      %v6900 = vpop.f32.mrf.mxu0
      %v6901 = vadd.f32 %v6825, %v6900
      %6902 = vmatmul.f32.gmra.mxu0 %v6839
      %v6903 = vpop.f32.mrf.mxu0
      %v6904 = vadd.f32 %v6826, %v6903
      %6905 = vmatmul.f32.gmra.mxu0 %v6842
      %v6906 = vpop.f32.mrf.mxu0
      %v6907 = vadd.f32 %v6827, %v6906
      %6908 = vmatmul.f32.gmra.mxu0 %v6845
      %v6909 = vpop.f32.mrf.mxu0
      %v6910 = vadd.f32 %v6828, %v6909
      %6911 = vmatmul.f32.gmra.mxu0 %v6848
      %v6912 = vpop.f32.mrf.mxu0
      %v6913 = vadd.f32 %v6829, %v6912
      %6914 = vmatmul.f32.gmra.mxu0 %v6851
      %v6915 = vpop.f32.mrf.mxu0
      %v6916 = vadd.f32 %v6830, %v6915
      %6917 = vmatmul.f32.gmra.mxu0 %v6854
      %v6918 = vpop.f32.mrf.mxu0
      %v6919 = vadd.f32 %v6831, %v6918
      %6920 = vdwg.mxu0
      %v6921 = vsel %vm665, %v6898, -inf
      %6922 = vmax.xlane.f32.xlu0 %v6921
      %v6923 = vpop.xlane.xlu0 %6922
      %v6924 = vsel %vm665, %v6901, -inf
      %6925 = vmax.xlane.f32.xlu0 %v6924
      %v6926 = vpop.xlane.xlu0 %6925
      %v6927 = vsel %vm665, %v6904, -inf
      %6928 = vmax.xlane.f32.xlu0 %v6927
      %v6929 = vpop.xlane.xlu0 %6928
      %v6930 = vsel %vm665, %v6907, -inf
      %6931 = vmax.xlane.f32.xlu0 %v6930
      %v6932 = vpop.xlane.xlu0 %6931
      %v6933 = vsel %vm665, %v6910, -inf
      %6934 = vmax.xlane.f32.xlu0 %v6933
      %v6935 = vpop.xlane.xlu0 %6934
      %v6936 = vsel %vm665, %v6913, -inf
      %6937 = vmax.xlane.f32.xlu0 %v6936
      %v6938 = vpop.xlane.xlu0 %6937
      %v6939 = vsel %vm665, %v6916, -inf
      %6940 = vmax.xlane.f32.xlu0 %v6939
      %v6941 = vpop.xlane.xlu0 %6940
      %v6942 = vsel %vm665, %v6919, -inf
      %6943 = vmax.xlane.f32.xlu0 %v6942
      %v6944 = vpop.xlane.xlu0 %6943
      %v6945 = vsub.f32 %v6898, %v6923
      %v6946 = vsub.f32 %v6901, %v6926
      %v6947 = vsub.f32 %v6904, %v6929
      %v6948 = vsub.f32 %v6907, %v6932
      %v6949 = vsub.f32 %v6910, %v6935
      %v6950 = vsub.f32 %v6913, %v6938
      %v6951 = vsub.f32 %v6916, %v6941
      %v6952 = vsub.f32 %v6919, %v6944
      %v6953 = vmul.f32 %v6945, 1.442695
      %v6954 = vpow.pop %v6953
      %v6955 = vmul.f32 %v6946, 1.442695
      %v6956 = vpow.pop %v6955
      %v6957 = vmul.f32 %v6947, 1.442695
      %v6958 = vpow.pop %v6957
      %v6959 = vmul.f32 %v6948, 1.442695
      %v6960 = vpow.pop %v6959
      %v6961 = vmul.f32 %v6949, 1.442695
      %v6962 = vpow.pop %v6961
      %v6963 = vmul.f32 %v6950, 1.442695
      %v6964 = vpow.pop %v6963
      %v6965 = vmul.f32 %v6951, 1.442695
      %v6966 = vpow.pop %v6965
      %v6967 = vmul.f32 %v6952, 1.442695
      %v6968 = vpow.pop %v6967
      %v6969 = vsel %vm665, %v6954, 0.0
      %6970 = vadd.xlane.f32.xlu0 %v6969
      %v6971 = vpop.xlane.xlu0 %6970
      %v6972 = vsel %vm665, %v6956, 0.0
      %6973 = vadd.xlane.f32.xlu0 %v6972
      %v6974 = vpop.xlane.xlu0 %6973
      %v6975 = vsel %vm665, %v6958, 0.0
      %6976 = vadd.xlane.f32.xlu0 %v6975
      %v6977 = vpop.xlane.xlu0 %6976
      %v6978 = vsel %vm665, %v6960, 0.0
      %6979 = vadd.xlane.f32.xlu0 %v6978
      %v6980 = vpop.xlane.xlu0 %6979
      %v6981 = vsel %vm665, %v6962, 0.0
      %6982 = vadd.xlane.f32.xlu0 %v6981
      %v6983 = vpop.xlane.xlu0 %6982
      %v6984 = vsel %vm665, %v6964, 0.0
      %6985 = vadd.xlane.f32.xlu0 %v6984
      %v6986 = vpop.xlane.xlu0 %6985
      %v6987 = vsel %vm665, %v6966, 0.0
      %6988 = vadd.xlane.f32.xlu0 %v6987
      %v6989 = vpop.xlane.xlu0 %6988
      %v6990 = vsel %vm665, %v6968, 0.0
      %6991 = vadd.xlane.f32.xlu0 %v6990
      %v6992 = vpop.xlane.xlu0 %6991
      %v6993 = vrcp.pop %v6971
      %v6994 = vmul.f32 %v6971, %v6993
      %v6995 = vsub.f32 1.0, %v6994
      %v6996 = vmul.f32 %v6993, %v6995
      %v6997 = vadd.f32 %v6993, %v6996
      %vm6998 = vweird.f32 %v6971
      %vm6999 = vweird.f32 %v6993
      %vm7000 = vmor %vm6998, %vm6999
      %v7001 = vsel %vm7000, %v6993, %v6997
      %v7002 = vand.u32 2147483647, %v6971
      %vm7003 = vcmp.eq.f32.partialorder %v7002, 8.507059e+37
      %v7004 = vand.u32 %v6971, 2147483648
      %v7005 = vor.u32 1.1754944e-38, %v7004
      %v7006 = vsel %vm7003, %v7005, %v7001
      %v7007 = vmul.f32 %v6954, %v7006
      %v7008 = vrcp.pop %v6974
      %v7009 = vmul.f32 %v6974, %v7008
      %v7010 = vsub.f32 1.0, %v7009
      %v7011 = vmul.f32 %v7008, %v7010
      %v7012 = vadd.f32 %v7008, %v7011
      %vm7013 = vweird.f32 %v6974
      %vm7014 = vweird.f32 %v7008
      %vm7015 = vmor %vm7013, %vm7014
      %v7016 = vsel %vm7015, %v7008, %v7012
      %v7017 = vand.u32 2147483647, %v6974
      %vm7018 = vcmp.eq.f32.partialorder %v7017, 8.507059e+37
      %v7019 = vand.u32 %v6974, 2147483648
      %v7020 = vor.u32 1.1754944e-38, %v7019
      %v7021 = vsel %vm7018, %v7020, %v7016
      %v7022 = vmul.f32 %v6956, %v7021
      %v7023 = vrcp.pop %v6977
      %v7024 = vmul.f32 %v6977, %v7023
      %v7025 = vsub.f32 1.0, %v7024
      %v7026 = vmul.f32 %v7023, %v7025
      %v7027 = vadd.f32 %v7023, %v7026
      %vm7028 = vweird.f32 %v6977
      %vm7029 = vweird.f32 %v7023
      %vm7030 = vmor %vm7028, %vm7029
      %v7031 = vsel %vm7030, %v7023, %v7027
      %v7032 = vand.u32 2147483647, %v6977
      %vm7033 = vcmp.eq.f32.partialorder %v7032, 8.507059e+37
      %v7034 = vand.u32 %v6977, 2147483648
      %v7035 = vor.u32 1.1754944e-38, %v7034
      %v7036 = vsel %vm7033, %v7035, %v7031
      %v7037 = vmul.f32 %v6958, %v7036
      %v7038 = vrcp.pop %v6980
      %v7039 = vmul.f32 %v6980, %v7038
      %v7040 = vsub.f32 1.0, %v7039
      %v7041 = vmul.f32 %v7038, %v7040
      %v7042 = vadd.f32 %v7038, %v7041
      %vm7043 = vweird.f32 %v6980
      %vm7044 = vweird.f32 %v7038
      %vm7045 = vmor %vm7043, %vm7044
      %v7046 = vsel %vm7045, %v7038, %v7042
      %v7047 = vand.u32 2147483647, %v6980
      %vm7048 = vcmp.eq.f32.partialorder %v7047, 8.507059e+37
      %v7049 = vand.u32 %v6980, 2147483648
      %v7050 = vor.u32 1.1754944e-38, %v7049
      %v7051 = vsel %vm7048, %v7050, %v7046
      %v7052 = vmul.f32 %v6960, %v7051
      %v7053 = vrcp.pop %v6983
      %v7054 = vmul.f32 %v6983, %v7053
      %v7055 = vsub.f32 1.0, %v7054
      %v7056 = vmul.f32 %v7053, %v7055
      %v7057 = vadd.f32 %v7053, %v7056
      %vm7058 = vweird.f32 %v6983
      %vm7059 = vweird.f32 %v7053
      %vm7060 = vmor %vm7058, %vm7059
      %v7061 = vsel %vm7060, %v7053, %v7057
      %v7062 = vand.u32 2147483647, %v6983
      %vm7063 = vcmp.eq.f32.partialorder %v7062, 8.507059e+37
      %v7064 = vand.u32 %v6983, 2147483648
      %v7065 = vor.u32 1.1754944e-38, %v7064
      %v7066 = vsel %vm7063, %v7065, %v7061
      %v7067 = vmul.f32 %v6962, %v7066
      %v7068 = vrcp.pop %v6986
      %v7069 = vmul.f32 %v6986, %v7068
      %v7070 = vsub.f32 1.0, %v7069
      %v7071 = vmul.f32 %v7068, %v7070
      %v7072 = vadd.f32 %v7068, %v7071
      %vm7073 = vweird.f32 %v6986
      %vm7074 = vweird.f32 %v7068
      %vm7075 = vmor %vm7073, %vm7074
      %v7076 = vsel %vm7075, %v7068, %v7072
      %v7077 = vand.u32 2147483647, %v6986
      %vm7078 = vcmp.eq.f32.partialorder %v7077, 8.507059e+37
      %v7079 = vand.u32 %v6986, 2147483648
      %v7080 = vor.u32 1.1754944e-38, %v7079
      %v7081 = vsel %vm7078, %v7080, %v7076
      %v7082 = vmul.f32 %v6964, %v7081
      %v7083 = vrcp.pop %v6989
      %v7084 = vmul.f32 %v6989, %v7083
      %v7085 = vsub.f32 1.0, %v7084
      %v7086 = vmul.f32 %v7083, %v7085
      %v7087 = vadd.f32 %v7083, %v7086
      %vm7088 = vweird.f32 %v6989
      %vm7089 = vweird.f32 %v7083
      %vm7090 = vmor %vm7088, %vm7089
      %v7091 = vsel %vm7090, %v7083, %v7087
      %v7092 = vand.u32 2147483647, %v6989
      %vm7093 = vcmp.eq.f32.partialorder %v7092, 8.507059e+37
      %v7094 = vand.u32 %v6989, 2147483648
      %v7095 = vor.u32 1.1754944e-38, %v7094
      %v7096 = vsel %vm7093, %v7095, %v7091
      %v7097 = vmul.f32 %v6966, %v7096
      %v7098 = vrcp.pop %v6992
      %v7099 = vmul.f32 %v6992, %v7098
      %v7100 = vsub.f32 1.0, %v7099
      %v7101 = vmul.f32 %v7098, %v7100
      %v7102 = vadd.f32 %v7098, %v7101
      %vm7103 = vweird.f32 %v6992
      %vm7104 = vweird.f32 %v7098
      %vm7105 = vmor %vm7103, %vm7104
      %v7106 = vsel %vm7105, %v7098, %v7102
      %v7107 = vand.u32 2147483647, %v6992
      %vm7108 = vcmp.eq.f32.partialorder %v7107, 8.507059e+37
      %v7109 = vand.u32 %v6992, 2147483648
      %v7110 = vor.u32 1.1754944e-38, %v7109
      %v7111 = vsel %vm7108, %v7110, %v7106
      %v7112 = vmul.f32 %v6968, %v7111
      %v7114 = vsel %vm665, %v7007, 0
      %v7117 = vsel %vm665, %v7022, 0
      %v7120 = vsel %vm665, %v7037, 0
      %v7123 = vsel %vm665, %v7052, 0
      %v7126 = vsel %vm665, %v7067, 0
      %v7129 = vsel %vm665, %v7082, 0
      %v7132 = vsel %vm665, %v7097, 0
      %v7135 = vsel %vm665, %v7112, 0
      %7137 = vmatpush.msra.mxu0 0.0
      %7138 = vmatpush.msra.mxu0 0.0
      %7139 = vmatpush.msra.mxu0 0.0
      %7140 = vmatpush.msra.mxu0 0.0
      %7141 = vmatpush.msra.mxu0 0.0
      %7142 = vmatpush.msra.mxu0 0.0
      %7143 = vmatpush.msra.mxu0 0.0
      %7144 = vmatpush.msra.mxu0 0.0
      %7145 = vmatpush.msra.mxu0 %v6814
      %7146 = vmatpush.msra.mxu0 %v6811
      %7147 = vmatpush.msra.mxu0 %v6808
      %7148 = vmatpush.msra.mxu0 %v6805
      %7149 = vmatpush.msra.mxu0 %v6802
      %7150 = vmatpush.msra.mxu0 %v6799
      %7151 = vmatpush.msra.mxu0 %v6796
      %7152 = vmatpush.msra.mxu0 %v6793
      %7153 = vmatmul.f32.gmra.mxu0 %v7114
      %v7154 = vpop.f32.mrf.mxu0
      %v7155 = vadd.f32 0.0, %v7154
      %7156 = vmatmul.f32.gmra.mxu0 %v7117
      %v7157 = vpop.f32.mrf.mxu0
      %v7158 = vadd.f32 0.0, %v7157
      %7159 = vmatmul.f32.gmra.mxu0 %v7120
      %v7160 = vpop.f32.mrf.mxu0
      %v7161 = vadd.f32 0.0, %v7160
      %7162 = vmatmul.f32.gmra.mxu0 %v7123
      %v7163 = vpop.f32.mrf.mxu0
      %v7164 = vadd.f32 0.0, %v7163
      %7165 = vmatmul.f32.gmra.mxu0 %v7126
      %v7166 = vpop.f32.mrf.mxu0
      %v7167 = vadd.f32 0.0, %v7166
      %7168 = vmatmul.f32.gmra.mxu0 %v7129
      %v7169 = vpop.f32.mrf.mxu0
      %v7170 = vadd.f32 0.0, %v7169
      %7171 = vmatmul.f32.gmra.mxu0 %v7132
      %v7172 = vpop.f32.mrf.mxu0
      %v7173 = vadd.f32 0.0, %v7172
      %7174 = vmatmul.f32.gmra.mxu0 %v7135
      %v7175 = vpop.f32.mrf.mxu0
      %v7176 = vadd.f32 0.0, %v7175
      %7177 = vdwg.mxu0
      %v7178 = vld [vmem:[%s2166] sm:$0xff]
      %v7179 = vld [vmem:[%s2166 + $0x8] sm:$0xff]
      %v7180 = vld [vmem:[%s2166 + $0x10] sm:$0xff]
      %v7181 = vld [vmem:[%s2166 + $0x18] sm:$0xff]
      %v7183 = vsel %vm575, %v7155, 0
      %v7186 = vsel %vm575, %v7158, 0
      %v7189 = vsel %vm575, %v7161, 0
      %v7192 = vsel %vm575, %v7164, 0
      %v7195 = vsel %vm575, %v7167, 0
      %v7198 = vsel %vm575, %v7170, 0
      %v7201 = vsel %vm575, %v7173, 0
      %v7204 = vsel %vm575, %v7176, 0
      %7206 = vmatpush.msra.mxu0 0.0
      %7207 = vmatpush.msra.mxu0 0.0
      %7208 = vmatpush.msra.mxu0 0.0
      %7209 = vmatpush.msra.mxu0 0.0
      %7210 = vmatpush.msra.mxu0 0.0
      %7211 = vmatpush.msra.mxu0 0.0
      %7212 = vmatpush.msra.mxu0 0.0
      %7213 = vmatpush.msra.mxu0 0.0
      %7214 = vmatpush.msra.mxu0 0.0
      %7215 = vmatpush.msra.mxu0 0.0
      %7216 = vmatpush.msra.mxu0 0.0
      %7217 = vmatpush.msra.mxu0 0.0
      %7218 = vmatpush.msra.mxu0 %v7181
      %7219 = vmatpush.msra.mxu0 %v7180
      %7220 = vmatpush.msra.mxu0 %v7179
      %7221 = vmatpush.msra.mxu0 %v7178
      %7222 = vmatmul.f32.gmra.mxu0 %v7183
      %v7223 = vpop.f32.mrf.mxu0
      %v7224 = vadd.f32 0.0, %v7223
      %7225 = vmatmul.f32.gmra.mxu0 %v7186
      %v7226 = vpop.f32.mrf.mxu0
      %v7227 = vadd.f32 0.0, %v7226
      %7228 = vmatmul.f32.gmra.mxu0 %v7189
      %v7229 = vpop.f32.mrf.mxu0
      %v7230 = vadd.f32 0.0, %v7229
      %7231 = vmatmul.f32.gmra.mxu0 %v7192
      %v7232 = vpop.f32.mrf.mxu0
      %v7233 = vadd.f32 0.0, %v7232
      %7234 = vmatmul.f32.gmra.mxu0 %v7195
      %v7235 = vpop.f32.mrf.mxu0
      %v7236 = vadd.f32 0.0, %v7235
      %7237 = vmatmul.f32.gmra.mxu0 %v7198
      %v7238 = vpop.f32.mrf.mxu0
      %v7239 = vadd.f32 0.0, %v7238
      %7240 = vmatmul.f32.gmra.mxu0 %v7201
      %v7241 = vpop.f32.mrf.mxu0
      %v7242 = vadd.f32 0.0, %v7241
      %7243 = vmatmul.f32.gmra.mxu0 %v7204
      %v7244 = vpop.f32.mrf.mxu0
      %v7245 = vadd.f32 0.0, %v7244
      %7246 = vdwg.mxu0
      %v7247 = vadd.f32 %v6610, %v7224
      %v7248 = vadd.f32 %v6613, %v7227
      %v7249 = vadd.f32 %v6616, %v7230
      %v7250 = vadd.f32 %v6619, %v7233
      %v7251 = vadd.f32 %v6622, %v7236
      %v7252 = vadd.f32 %v6625, %v7239
      %v7253 = vadd.f32 %v6628, %v7242
      %v7254 = vadd.f32 %v6631, %v7245
      %v7255 = vld [vmem:[%s2244] sm:$0xff]
      %v7256 = vld [vmem:[%s2244 + $0x8] sm:$0xff]
      %v7257 = vld [vmem:[%s2244 + $0x10] sm:$0xff]
      %v7258 = vld [vmem:[%s2244 + $0x18] sm:$0xff]
      %v7259 = vld [vmem:[%s2244 + $0x20] sm:$0xff]
      %v7260 = vld [vmem:[%s2244 + $0x28] sm:$0xff]
      %v7261 = vld [vmem:[%s2244 + $0x30] sm:$0xff]
      %v7262 = vld [vmem:[%s2244 + $0x38] sm:$0xff]
      %v7263 = vld [vmem:[%s2244 + $0x40] sm:$0xff]
      %v7264 = vld [vmem:[%s2244 + $0x48] sm:$0xff]
      %v7265 = vld [vmem:[%s2244 + $0x50] sm:$0xff]
      %v7266 = vld [vmem:[%s2244 + $0x58] sm:$0xff]
      %v7267 = vld [vmem:[%s2244 + $0x60] sm:$0xff]
      %v7268 = vld [vmem:[%s2244 + $0x68] sm:$0xff]
      %v7269 = vld [vmem:[%s2244 + $0x70] sm:$0xff]
      %v7270 = vld [vmem:[%s2244 + $0x78] sm:$0xff]
      %v7271 = vld [vmem:[%s2261] sm:$0x1]
      %v7273 = vperm.slane %v7271, 0
      %7275 = vmatpush.msra.mxu0 %v7270
      %7276 = vmatpush.msra.mxu0 %v7269
      %7277 = vmatpush.msra.mxu0 %v7268
      %7278 = vmatpush.msra.mxu0 %v7267
      %7279 = vmatpush.msra.mxu0 %v7266
      %7280 = vmatpush.msra.mxu0 %v7265
      %7281 = vmatpush.msra.mxu0 %v7264
      %7282 = vmatpush.msra.mxu0 %v7263
      %7283 = vmatpush.msra.mxu0 %v7262
      %7284 = vmatpush.msra.mxu0 %v7261
      %7285 = vmatpush.msra.mxu0 %v7260
      %7286 = vmatpush.msra.mxu0 %v7259
      %7287 = vmatpush.msra.mxu0 %v7258
      %7288 = vmatpush.msra.mxu0 %v7257
      %7289 = vmatpush.msra.mxu0 %v7256
      %7290 = vmatpush.msra.mxu0 %v7255
      %7291 = vmatmul.f32.gmra.mxu0 %v5397
      %v7292 = vpop.f32.mrf.mxu0
      %v7293 = vadd.f32 %v7273, %v7292
      %7294 = vmatmul.f32.gmra.mxu0 %v5398
      %v7295 = vpop.f32.mrf.mxu0
      %v7296 = vadd.f32 %v7273, %v7295
      %7297 = vmatmul.f32.gmra.mxu0 %v5399
      %v7298 = vpop.f32.mrf.mxu0
      %v7299 = vadd.f32 %v7273, %v7298
      %7300 = vmatmul.f32.gmra.mxu0 %v5400
      %v7301 = vpop.f32.mrf.mxu0
      %v7302 = vadd.f32 %v7273, %v7301
      %7303 = vmatmul.f32.gmra.mxu0 %v5401
      %v7304 = vpop.f32.mrf.mxu0
      %v7305 = vadd.f32 %v7273, %v7304
      %7306 = vmatmul.f32.gmra.mxu0 %v5402
      %v7307 = vpop.f32.mrf.mxu0
      %v7308 = vadd.f32 %v7273, %v7307
      %7309 = vmatmul.f32.gmra.mxu0 %v5403
      %v7310 = vpop.f32.mrf.mxu0
      %v7311 = vadd.f32 %v7273, %v7310
      %7312 = vmatmul.f32.gmra.mxu0 %v5404
      %v7313 = vpop.f32.mrf.mxu0
      %v7314 = vadd.f32 %v7273, %v7313
      %7315 = vdwg.mxu0
      %v7316 = vld [vmem:[%s2307] sm:$0xff]
      %v7317 = vld [vmem:[%s2307 + $0x8] sm:$0xff]
      %v7318 = vld [vmem:[%s2307 + $0x10] sm:$0xff]
      %v7319 = vld [vmem:[%s2307 + $0x18] sm:$0xff]
      %v7320 = vld [vmem:[%s2307 + $0x20] sm:$0xff]
      %v7321 = vld [vmem:[%s2307 + $0x28] sm:$0xff]
      %v7322 = vld [vmem:[%s2307 + $0x30] sm:$0xff]
      %v7323 = vld [vmem:[%s2307 + $0x38] sm:$0xff]
      %v7324 = vld [vmem:[%s2307 + $0x40] sm:$0xff]
      %v7325 = vld [vmem:[%s2307 + $0x48] sm:$0xff]
      %v7326 = vld [vmem:[%s2307 + $0x50] sm:$0xff]
      %v7327 = vld [vmem:[%s2307 + $0x58] sm:$0xff]
      %v7328 = vld [vmem:[%s2307 + $0x60] sm:$0xff]
      %v7329 = vld [vmem:[%s2307 + $0x68] sm:$0xff]
      %v7330 = vld [vmem:[%s2307 + $0x70] sm:$0xff]
      %v7331 = vld [vmem:[%s2307 + $0x78] sm:$0xff]
      %v7332 = vld [vmem:[%s2324] sm:$0x1]
      %v7334 = vperm.slane %v7332, 0
      %7336 = vmatpush.msra.mxu0 %v7331
      %7337 = vmatpush.msra.mxu0 %v7330
      %7338 = vmatpush.msra.mxu0 %v7329
      %7339 = vmatpush.msra.mxu0 %v7328
      %7340 = vmatpush.msra.mxu0 %v7327
      %7341 = vmatpush.msra.mxu0 %v7326
      %7342 = vmatpush.msra.mxu0 %v7325
      %7343 = vmatpush.msra.mxu0 %v7324
      %7344 = vmatpush.msra.mxu0 %v7323
      %7345 = vmatpush.msra.mxu0 %v7322
      %7346 = vmatpush.msra.mxu0 %v7321
      %7347 = vmatpush.msra.mxu0 %v7320
      %7348 = vmatpush.msra.mxu0 %v7319
      %7349 = vmatpush.msra.mxu0 %v7318
      %7350 = vmatpush.msra.mxu0 %v7317
      %7351 = vmatpush.msra.mxu0 %v7316
      %7352 = vmatmul.f32.gmra.mxu0 %v5397
      %v7353 = vpop.f32.mrf.mxu0
      %v7354 = vadd.f32 %v7334, %v7353
      %7355 = vmatmul.f32.gmra.mxu0 %v5398
      %v7356 = vpop.f32.mrf.mxu0
      %v7357 = vadd.f32 %v7334, %v7356
      %7358 = vmatmul.f32.gmra.mxu0 %v5399
      %v7359 = vpop.f32.mrf.mxu0
      %v7360 = vadd.f32 %v7334, %v7359
      %7361 = vmatmul.f32.gmra.mxu0 %v5400
      %v7362 = vpop.f32.mrf.mxu0
      %v7363 = vadd.f32 %v7334, %v7362
      %7364 = vmatmul.f32.gmra.mxu0 %v5401
      %v7365 = vpop.f32.mrf.mxu0
      %v7366 = vadd.f32 %v7334, %v7365
      %7367 = vmatmul.f32.gmra.mxu0 %v5402
      %v7368 = vpop.f32.mrf.mxu0
      %v7369 = vadd.f32 %v7334, %v7368
      %7370 = vmatmul.f32.gmra.mxu0 %v5403
      %v7371 = vpop.f32.mrf.mxu0
      %v7372 = vadd.f32 %v7334, %v7371
      %7373 = vmatmul.f32.gmra.mxu0 %v5404
      %v7374 = vpop.f32.mrf.mxu0
      %v7375 = vadd.f32 %v7334, %v7374
      %7376 = vdwg.mxu0
      %v7377 = vld [vmem:[%s2370] sm:$0xff]
      %v7378 = vld [vmem:[%s2370 + $0x8] sm:$0xff]
      %v7379 = vld [vmem:[%s2370 + $0x10] sm:$0xff]
      %v7380 = vld [vmem:[%s2370 + $0x18] sm:$0xff]
      %v7381 = vld [vmem:[%s2370 + $0x20] sm:$0xff]
      %v7382 = vld [vmem:[%s2370 + $0x28] sm:$0xff]
      %v7383 = vld [vmem:[%s2370 + $0x30] sm:$0xff]
      %v7384 = vld [vmem:[%s2370 + $0x38] sm:$0xff]
      %v7385 = vld [vmem:[%s2370 + $0x40] sm:$0xff]
      %v7386 = vld [vmem:[%s2370 + $0x48] sm:$0xff]
      %v7387 = vld [vmem:[%s2370 + $0x50] sm:$0xff]
      %v7388 = vld [vmem:[%s2370 + $0x58] sm:$0xff]
      %v7389 = vld [vmem:[%s2370 + $0x60] sm:$0xff]
      %v7390 = vld [vmem:[%s2370 + $0x68] sm:$0xff]
      %v7391 = vld [vmem:[%s2370 + $0x70] sm:$0xff]
      %v7392 = vld [vmem:[%s2370 + $0x78] sm:$0xff]
      %v7393 = vld [vmem:[%s2387] sm:$0x1]
      %v7395 = vperm.slane %v7393, 0
      %7397 = vmatpush.msra.mxu0 %v7392
      %7398 = vmatpush.msra.mxu0 %v7391
      %7399 = vmatpush.msra.mxu0 %v7390
      %7400 = vmatpush.msra.mxu0 %v7389
      %7401 = vmatpush.msra.mxu0 %v7388
      %7402 = vmatpush.msra.mxu0 %v7387
      %7403 = vmatpush.msra.mxu0 %v7386
      %7404 = vmatpush.msra.mxu0 %v7385
      %7405 = vmatpush.msra.mxu0 %v7384
      %7406 = vmatpush.msra.mxu0 %v7383
      %7407 = vmatpush.msra.mxu0 %v7382
      %7408 = vmatpush.msra.mxu0 %v7381
      %7409 = vmatpush.msra.mxu0 %v7380
      %7410 = vmatpush.msra.mxu0 %v7379
      %7411 = vmatpush.msra.mxu0 %v7378
      %7412 = vmatpush.msra.mxu0 %v7377
      %7413 = vmatmul.f32.gmra.mxu0 %v5397
      %v7414 = vpop.f32.mrf.mxu0
      %v7415 = vadd.f32 %v7395, %v7414
      %7416 = vmatmul.f32.gmra.mxu0 %v5398
      %v7417 = vpop.f32.mrf.mxu0
      %v7418 = vadd.f32 %v7395, %v7417
      %7419 = vmatmul.f32.gmra.mxu0 %v5399
      %v7420 = vpop.f32.mrf.mxu0
      %v7421 = vadd.f32 %v7395, %v7420
      %7422 = vmatmul.f32.gmra.mxu0 %v5400
      %v7423 = vpop.f32.mrf.mxu0
      %v7424 = vadd.f32 %v7395, %v7423
      %7425 = vmatmul.f32.gmra.mxu0 %v5401
      %v7426 = vpop.f32.mrf.mxu0
      %v7427 = vadd.f32 %v7395, %v7426
      %7428 = vmatmul.f32.gmra.mxu0 %v5402
      %v7429 = vpop.f32.mrf.mxu0
      %v7430 = vadd.f32 %v7395, %v7429
      %7431 = vmatmul.f32.gmra.mxu0 %v5403
      %v7432 = vpop.f32.mrf.mxu0
      %v7433 = vadd.f32 %v7395, %v7432
      %7434 = vmatmul.f32.gmra.mxu0 %v5404
      %v7435 = vpop.f32.mrf.mxu0
      %v7436 = vadd.f32 %v7395, %v7435
      %7437 = vdwg.mxu0
      %v7438 = vmul.f32 %v7293, 0.17677669
      %v7439 = vmul.f32 %v7296, 0.17677669
      %v7440 = vmul.f32 %v7299, 0.17677669
      %v7441 = vmul.f32 %v7302, 0.17677669
      %v7442 = vmul.f32 %v7305, 0.17677669
      %v7443 = vmul.f32 %v7308, 0.17677669
      %v7444 = vmul.f32 %v7311, 0.17677669
      %v7445 = vmul.f32 %v7314, 0.17677669
      %v7446 = vld [vmem:[%s2441] sm:$0xff]
      %v7447 = vld [vmem:[%s2441 + $0x8] sm:$0xff]
      %v7448 = vld [vmem:[%s2441 + $0x10] sm:$0xff]
      %v7449 = vld [vmem:[%s2441 + $0x18] sm:$0xff]
      %v7450 = vld [vmem:[%s2441 + $0x20] sm:$0xff]
      %v7451 = vld [vmem:[%s2441 + $0x28] sm:$0xff]
      %v7452 = vld [vmem:[%s2441 + $0x30] sm:$0xff]
      %v7453 = vld [vmem:[%s2441 + $0x38] sm:$0xff]
      %v7455 = vsel %vm575, %v7438, 0
      %v7458 = vsel %vm575, %v7439, 0
      %v7461 = vsel %vm575, %v7440, 0
      %v7464 = vsel %vm575, %v7441, 0
      %v7467 = vsel %vm575, %v7442, 0
      %v7470 = vsel %vm575, %v7443, 0
      %v7473 = vsel %vm575, %v7444, 0
      %v7476 = vsel %vm575, %v7445, 0
      %v7479 = vsel %vm575, %v7354, 0
      %v7482 = vsel %vm575, %v7357, 0
      %v7485 = vsel %vm575, %v7360, 0
      %v7488 = vsel %vm575, %v7363, 0
      %v7491 = vsel %vm575, %v7366, 0
      %v7494 = vsel %vm575, %v7369, 0
      %v7497 = vsel %vm575, %v7372, 0
      %v7500 = vsel %vm575, %v7375, 0
      %7502 = vmatpush.xpose.msra.mxu0 0.0
      %7503 = vmatpush.xpose.msra.mxu0 0.0
      %7504 = vmatpush.xpose.msra.mxu0 0.0
      %7505 = vmatpush.xpose.msra.mxu0 0.0
      %7506 = vmatpush.xpose.msra.mxu0 0.0
      %7507 = vmatpush.xpose.msra.mxu0 0.0
      %7508 = vmatpush.xpose.msra.mxu0 0.0
      %7509 = vmatpush.xpose.msra.mxu0 0.0
      %7510 = vmatpush.xpose.msra.mxu0 %v7500
      %7511 = vmatpush.xpose.msra.mxu0 %v7497
      %7512 = vmatpush.xpose.msra.mxu0 %v7494
      %7513 = vmatpush.xpose.msra.mxu0 %v7491
      %7514 = vmatpush.xpose.msra.mxu0 %v7488
      %7515 = vmatpush.xpose.msra.mxu0 %v7485
      %7516 = vmatpush.xpose.msra.mxu0 %v7482
      %7517 = vmatpush.xpose.msra.mxu0 %v7479
      %7518 = vmatmul.f32.gmra.mxu0 %v7455
      %v7519 = vpop.f32.mrf.mxu0
      %v7520 = vadd.f32 %v7446, %v7519
      %7521 = vmatmul.f32.gmra.mxu0 %v7458
      %v7522 = vpop.f32.mrf.mxu0
      %v7523 = vadd.f32 %v7447, %v7522
      %7524 = vmatmul.f32.gmra.mxu0 %v7461
      %v7525 = vpop.f32.mrf.mxu0
      %v7526 = vadd.f32 %v7448, %v7525
      %7527 = vmatmul.f32.gmra.mxu0 %v7464
      %v7528 = vpop.f32.mrf.mxu0
      %v7529 = vadd.f32 %v7449, %v7528
      %7530 = vmatmul.f32.gmra.mxu0 %v7467
      %v7531 = vpop.f32.mrf.mxu0
      %v7532 = vadd.f32 %v7450, %v7531
      %7533 = vmatmul.f32.gmra.mxu0 %v7470
      %v7534 = vpop.f32.mrf.mxu0
      %v7535 = vadd.f32 %v7451, %v7534
      %7536 = vmatmul.f32.gmra.mxu0 %v7473
      %v7537 = vpop.f32.mrf.mxu0
      %v7538 = vadd.f32 %v7452, %v7537
      %7539 = vmatmul.f32.gmra.mxu0 %v7476
      %v7540 = vpop.f32.mrf.mxu0
      %v7541 = vadd.f32 %v7453, %v7540
      %7542 = vdwg.mxu0
      %v7543 = vsel %vm665, %v7520, -inf
      %7544 = vmax.xlane.f32.xlu0 %v7543
      %v7545 = vpop.xlane.xlu0 %7544
      %v7546 = vsel %vm665, %v7523, -inf
      %7547 = vmax.xlane.f32.xlu0 %v7546
      %v7548 = vpop.xlane.xlu0 %7547
      %v7549 = vsel %vm665, %v7526, -inf
      %7550 = vmax.xlane.f32.xlu0 %v7549
      %v7551 = vpop.xlane.xlu0 %7550
      %v7552 = vsel %vm665, %v7529, -inf
      %7553 = vmax.xlane.f32.xlu0 %v7552
      %v7554 = vpop.xlane.xlu0 %7553
      %v7555 = vsel %vm665, %v7532, -inf
      %7556 = vmax.xlane.f32.xlu0 %v7555
      %v7557 = vpop.xlane.xlu0 %7556
      %v7558 = vsel %vm665, %v7535, -inf
      %7559 = vmax.xlane.f32.xlu0 %v7558
      %v7560 = vpop.xlane.xlu0 %7559
      %v7561 = vsel %vm665, %v7538, -inf
      %7562 = vmax.xlane.f32.xlu0 %v7561
      %v7563 = vpop.xlane.xlu0 %7562
      %v7564 = vsel %vm665, %v7541, -inf
      %7565 = vmax.xlane.f32.xlu0 %v7564
      %v7566 = vpop.xlane.xlu0 %7565
      %v7567 = vsub.f32 %v7520, %v7545
      %v7568 = vsub.f32 %v7523, %v7548
      %v7569 = vsub.f32 %v7526, %v7551
      %v7570 = vsub.f32 %v7529, %v7554
      %v7571 = vsub.f32 %v7532, %v7557
      %v7572 = vsub.f32 %v7535, %v7560
      %v7573 = vsub.f32 %v7538, %v7563
      %v7574 = vsub.f32 %v7541, %v7566
      %v7575 = vmul.f32 %v7567, 1.442695
      %v7576 = vpow.pop %v7575
      %v7577 = vmul.f32 %v7568, 1.442695
      %v7578 = vpow.pop %v7577
      %v7579 = vmul.f32 %v7569, 1.442695
      %v7580 = vpow.pop %v7579
      %v7581 = vmul.f32 %v7570, 1.442695
      %v7582 = vpow.pop %v7581
      %v7583 = vmul.f32 %v7571, 1.442695
      %v7584 = vpow.pop %v7583
      %v7585 = vmul.f32 %v7572, 1.442695
      %v7586 = vpow.pop %v7585
      %v7587 = vmul.f32 %v7573, 1.442695
      %v7588 = vpow.pop %v7587
      %v7589 = vmul.f32 %v7574, 1.442695
      %v7590 = vpow.pop %v7589
      %v7591 = vsel %vm665, %v7576, 0.0
      %7592 = vadd.xlane.f32.xlu0 %v7591
      %v7593 = vpop.xlane.xlu0 %7592
      %v7594 = vsel %vm665, %v7578, 0.0
      %7595 = vadd.xlane.f32.xlu0 %v7594
      %v7596 = vpop.xlane.xlu0 %7595
      %v7597 = vsel %vm665, %v7580, 0.0
      %7598 = vadd.xlane.f32.xlu0 %v7597
      %v7599 = vpop.xlane.xlu0 %7598
      %v7600 = vsel %vm665, %v7582, 0.0
      %7601 = vadd.xlane.f32.xlu0 %v7600
      %v7602 = vpop.xlane.xlu0 %7601
      %v7603 = vsel %vm665, %v7584, 0.0
      %7604 = vadd.xlane.f32.xlu0 %v7603
      %v7605 = vpop.xlane.xlu0 %7604
      %v7606 = vsel %vm665, %v7586, 0.0
      %7607 = vadd.xlane.f32.xlu0 %v7606
      %v7608 = vpop.xlane.xlu0 %7607
      %v7609 = vsel %vm665, %v7588, 0.0
      %7610 = vadd.xlane.f32.xlu0 %v7609
      %v7611 = vpop.xlane.xlu0 %7610
      %v7612 = vsel %vm665, %v7590, 0.0
      %7613 = vadd.xlane.f32.xlu0 %v7612
      %v7614 = vpop.xlane.xlu0 %7613
      %v7615 = vrcp.pop %v7593
      %v7616 = vmul.f32 %v7593, %v7615
      %v7617 = vsub.f32 1.0, %v7616
      %v7618 = vmul.f32 %v7615, %v7617
      %v7619 = vadd.f32 %v7615, %v7618
      %vm7620 = vweird.f32 %v7593
      %vm7621 = vweird.f32 %v7615
      %vm7622 = vmor %vm7620, %vm7621
      %v7623 = vsel %vm7622, %v7615, %v7619
      %v7624 = vand.u32 2147483647, %v7593
      %vm7625 = vcmp.eq.f32.partialorder %v7624, 8.507059e+37
      %v7626 = vand.u32 %v7593, 2147483648
      %v7627 = vor.u32 1.1754944e-38, %v7626
      %v7628 = vsel %vm7625, %v7627, %v7623
      %v7629 = vmul.f32 %v7576, %v7628
      %v7630 = vrcp.pop %v7596
      %v7631 = vmul.f32 %v7596, %v7630
      %v7632 = vsub.f32 1.0, %v7631
      %v7633 = vmul.f32 %v7630, %v7632
      %v7634 = vadd.f32 %v7630, %v7633
      %vm7635 = vweird.f32 %v7596
      %vm7636 = vweird.f32 %v7630
      %vm7637 = vmor %vm7635, %vm7636
      %v7638 = vsel %vm7637, %v7630, %v7634
      %v7639 = vand.u32 2147483647, %v7596
      %vm7640 = vcmp.eq.f32.partialorder %v7639, 8.507059e+37
      %v7641 = vand.u32 %v7596, 2147483648
      %v7642 = vor.u32 1.1754944e-38, %v7641
      %v7643 = vsel %vm7640, %v7642, %v7638
      %v7644 = vmul.f32 %v7578, %v7643
      %v7645 = vrcp.pop %v7599
      %v7646 = vmul.f32 %v7599, %v7645
      %v7647 = vsub.f32 1.0, %v7646
      %v7648 = vmul.f32 %v7645, %v7647
      %v7649 = vadd.f32 %v7645, %v7648
      %vm7650 = vweird.f32 %v7599
      %vm7651 = vweird.f32 %v7645
      %vm7652 = vmor %vm7650, %vm7651
      %v7653 = vsel %vm7652, %v7645, %v7649
      %v7654 = vand.u32 2147483647, %v7599
      %vm7655 = vcmp.eq.f32.partialorder %v7654, 8.507059e+37
      %v7656 = vand.u32 %v7599, 2147483648
      %v7657 = vor.u32 1.1754944e-38, %v7656
      %v7658 = vsel %vm7655, %v7657, %v7653
      %v7659 = vmul.f32 %v7580, %v7658
      %v7660 = vrcp.pop %v7602
      %v7661 = vmul.f32 %v7602, %v7660
      %v7662 = vsub.f32 1.0, %v7661
      %v7663 = vmul.f32 %v7660, %v7662
      %v7664 = vadd.f32 %v7660, %v7663
      %vm7665 = vweird.f32 %v7602
      %vm7666 = vweird.f32 %v7660
      %vm7667 = vmor %vm7665, %vm7666
      %v7668 = vsel %vm7667, %v7660, %v7664
      %v7669 = vand.u32 2147483647, %v7602
      %vm7670 = vcmp.eq.f32.partialorder %v7669, 8.507059e+37
      %v7671 = vand.u32 %v7602, 2147483648
      %v7672 = vor.u32 1.1754944e-38, %v7671
      %v7673 = vsel %vm7670, %v7672, %v7668
      %v7674 = vmul.f32 %v7582, %v7673
      %v7675 = vrcp.pop %v7605
      %v7676 = vmul.f32 %v7605, %v7675
      %v7677 = vsub.f32 1.0, %v7676
      %v7678 = vmul.f32 %v7675, %v7677
      %v7679 = vadd.f32 %v7675, %v7678
      %vm7680 = vweird.f32 %v7605
      %vm7681 = vweird.f32 %v7675
      %vm7682 = vmor %vm7680, %vm7681
      %v7683 = vsel %vm7682, %v7675, %v7679
      %v7684 = vand.u32 2147483647, %v7605
      %vm7685 = vcmp.eq.f32.partialorder %v7684, 8.507059e+37
      %v7686 = vand.u32 %v7605, 2147483648
      %v7687 = vor.u32 1.1754944e-38, %v7686
      %v7688 = vsel %vm7685, %v7687, %v7683
      %v7689 = vmul.f32 %v7584, %v7688
      %v7690 = vrcp.pop %v7608
      %v7691 = vmul.f32 %v7608, %v7690
      %v7692 = vsub.f32 1.0, %v7691
      %v7693 = vmul.f32 %v7690, %v7692
      %v7694 = vadd.f32 %v7690, %v7693
      %vm7695 = vweird.f32 %v7608
      %vm7696 = vweird.f32 %v7690
      %vm7697 = vmor %vm7695, %vm7696
      %v7698 = vsel %vm7697, %v7690, %v7694
      %v7699 = vand.u32 2147483647, %v7608
      %vm7700 = vcmp.eq.f32.partialorder %v7699, 8.507059e+37
      %v7701 = vand.u32 %v7608, 2147483648
      %v7702 = vor.u32 1.1754944e-38, %v7701
      %v7703 = vsel %vm7700, %v7702, %v7698
      %v7704 = vmul.f32 %v7586, %v7703
      %v7705 = vrcp.pop %v7611
      %v7706 = vmul.f32 %v7611, %v7705
      %v7707 = vsub.f32 1.0, %v7706
      %v7708 = vmul.f32 %v7705, %v7707
      %v7709 = vadd.f32 %v7705, %v7708
      %vm7710 = vweird.f32 %v7611
      %vm7711 = vweird.f32 %v7705
      %vm7712 = vmor %vm7710, %vm7711
      %v7713 = vsel %vm7712, %v7705, %v7709
      %v7714 = vand.u32 2147483647, %v7611
      %vm7715 = vcmp.eq.f32.partialorder %v7714, 8.507059e+37
      %v7716 = vand.u32 %v7611, 2147483648
      %v7717 = vor.u32 1.1754944e-38, %v7716
      %v7718 = vsel %vm7715, %v7717, %v7713
      %v7719 = vmul.f32 %v7588, %v7718
      %v7720 = vrcp.pop %v7614
      %v7721 = vmul.f32 %v7614, %v7720
      %v7722 = vsub.f32 1.0, %v7721
      %v7723 = vmul.f32 %v7720, %v7722
      %v7724 = vadd.f32 %v7720, %v7723
      %vm7725 = vweird.f32 %v7614
      %vm7726 = vweird.f32 %v7720
      %vm7727 = vmor %vm7725, %vm7726
      %v7728 = vsel %vm7727, %v7720, %v7724
      %v7729 = vand.u32 2147483647, %v7614
      %vm7730 = vcmp.eq.f32.partialorder %v7729, 8.507059e+37
      %v7731 = vand.u32 %v7614, 2147483648
      %v7732 = vor.u32 1.1754944e-38, %v7731
      %v7733 = vsel %vm7730, %v7732, %v7728
      %v7734 = vmul.f32 %v7590, %v7733
      %v7736 = vsel %vm665, %v7629, 0
      %v7739 = vsel %vm665, %v7644, 0
      %v7742 = vsel %vm665, %v7659, 0
      %v7745 = vsel %vm665, %v7674, 0
      %v7748 = vsel %vm665, %v7689, 0
      %v7751 = vsel %vm665, %v7704, 0
      %v7754 = vsel %vm665, %v7719, 0
      %v7757 = vsel %vm665, %v7734, 0
      %7759 = vmatpush.msra.mxu0 0.0
      %7760 = vmatpush.msra.mxu0 0.0
      %7761 = vmatpush.msra.mxu0 0.0
      %7762 = vmatpush.msra.mxu0 0.0
      %7763 = vmatpush.msra.mxu0 0.0
      %7764 = vmatpush.msra.mxu0 0.0
      %7765 = vmatpush.msra.mxu0 0.0
      %7766 = vmatpush.msra.mxu0 0.0
      %7767 = vmatpush.msra.mxu0 %v7436
      %7768 = vmatpush.msra.mxu0 %v7433
      %7769 = vmatpush.msra.mxu0 %v7430
      %7770 = vmatpush.msra.mxu0 %v7427
      %7771 = vmatpush.msra.mxu0 %v7424
      %7772 = vmatpush.msra.mxu0 %v7421
      %7773 = vmatpush.msra.mxu0 %v7418
      %7774 = vmatpush.msra.mxu0 %v7415
      %7775 = vmatmul.f32.gmra.mxu0 %v7736
      %v7776 = vpop.f32.mrf.mxu0
      %v7777 = vadd.f32 0.0, %v7776
      %7778 = vmatmul.f32.gmra.mxu0 %v7739
      %v7779 = vpop.f32.mrf.mxu0
      %v7780 = vadd.f32 0.0, %v7779
      %7781 = vmatmul.f32.gmra.mxu0 %v7742
      %v7782 = vpop.f32.mrf.mxu0
      %v7783 = vadd.f32 0.0, %v7782
      %7784 = vmatmul.f32.gmra.mxu0 %v7745
      %v7785 = vpop.f32.mrf.mxu0
      %v7786 = vadd.f32 0.0, %v7785
      %7787 = vmatmul.f32.gmra.mxu0 %v7748
      %v7788 = vpop.f32.mrf.mxu0
      %v7789 = vadd.f32 0.0, %v7788
      %7790 = vmatmul.f32.gmra.mxu0 %v7751
      %v7791 = vpop.f32.mrf.mxu0
      %v7792 = vadd.f32 0.0, %v7791
      %7793 = vmatmul.f32.gmra.mxu0 %v7754
      %v7794 = vpop.f32.mrf.mxu0
      %v7795 = vadd.f32 0.0, %v7794
      %7796 = vmatmul.f32.gmra.mxu0 %v7757
      %v7797 = vpop.f32.mrf.mxu0
      %v7798 = vadd.f32 0.0, %v7797
      %7799 = vdwg.mxu0
      %v7800 = vld [vmem:[%s2796] sm:$0xff]
      %v7801 = vld [vmem:[%s2796 + $0x8] sm:$0xff]
      %v7802 = vld [vmem:[%s2796 + $0x10] sm:$0xff]
      %v7803 = vld [vmem:[%s2796 + $0x18] sm:$0xff]
      %v7805 = vsel %vm575, %v7777, 0
      %v7808 = vsel %vm575, %v7780, 0
      %v7811 = vsel %vm575, %v7783, 0
      %v7814 = vsel %vm575, %v7786, 0
      %v7817 = vsel %vm575, %v7789, 0
      %v7820 = vsel %vm575, %v7792, 0
      %v7823 = vsel %vm575, %v7795, 0
      %v7826 = vsel %vm575, %v7798, 0
      %7828 = vmatpush.msra.mxu0 0.0
      %7829 = vmatpush.msra.mxu0 0.0
      %7830 = vmatpush.msra.mxu0 0.0
      %7831 = vmatpush.msra.mxu0 0.0
      %7832 = vmatpush.msra.mxu0 0.0
      %7833 = vmatpush.msra.mxu0 0.0
      %7834 = vmatpush.msra.mxu0 0.0
      %7835 = vmatpush.msra.mxu0 0.0
      %7836 = vmatpush.msra.mxu0 0.0
      %7837 = vmatpush.msra.mxu0 0.0
      %7838 = vmatpush.msra.mxu0 0.0
      %7839 = vmatpush.msra.mxu0 0.0
      %7840 = vmatpush.msra.mxu0 %v7803
      %7841 = vmatpush.msra.mxu0 %v7802
      %7842 = vmatpush.msra.mxu0 %v7801
      %7843 = vmatpush.msra.mxu0 %v7800
      %7844 = vmatmul.f32.gmra.mxu0 %v7805
      %v7845 = vpop.f32.mrf.mxu0
      %v7846 = vadd.f32 0.0, %v7845
      %7847 = vmatmul.f32.gmra.mxu0 %v7808
      %v7848 = vpop.f32.mrf.mxu0
      %v7849 = vadd.f32 0.0, %v7848
      %7850 = vmatmul.f32.gmra.mxu0 %v7811
      %v7851 = vpop.f32.mrf.mxu0
      %v7852 = vadd.f32 0.0, %v7851
      %7853 = vmatmul.f32.gmra.mxu0 %v7814
      %v7854 = vpop.f32.mrf.mxu0
      %v7855 = vadd.f32 0.0, %v7854
      %7856 = vmatmul.f32.gmra.mxu0 %v7817
      %v7857 = vpop.f32.mrf.mxu0
      %v7858 = vadd.f32 0.0, %v7857
      %7859 = vmatmul.f32.gmra.mxu0 %v7820
      %v7860 = vpop.f32.mrf.mxu0
      %v7861 = vadd.f32 0.0, %v7860
      %7862 = vmatmul.f32.gmra.mxu0 %v7823
      %v7863 = vpop.f32.mrf.mxu0
      %v7864 = vadd.f32 0.0, %v7863
      %7865 = vmatmul.f32.gmra.mxu0 %v7826
      %v7866 = vpop.f32.mrf.mxu0
      %v7867 = vadd.f32 0.0, %v7866
      %7868 = vdwg.mxu0
      %v7869 = vadd.f32 %v7247, %v7846
      %v7870 = vadd.f32 %v7248, %v7849
      %v7871 = vadd.f32 %v7249, %v7852
      %v7872 = vadd.f32 %v7250, %v7855
      %v7873 = vadd.f32 %v7251, %v7858
      %v7874 = vadd.f32 %v7252, %v7861
      %v7875 = vadd.f32 %v7253, %v7864
      %v7876 = vadd.f32 %v7254, %v7867
      %v7877 = vld [vmem:[%s9] sm:$0x1]
      %v7879 = vperm.slane %v7877, 0
      %v7881 = vadd.f32 %v7869, %v7879
      %v7882 = vadd.f32 %v7870, %v7879
      %v7883 = vadd.f32 %v7871, %v7879
      %v7884 = vadd.f32 %v7872, %v7879
      %v7885 = vadd.f32 %v7873, %v7879
      %v7886 = vadd.f32 %v7874, %v7879
      %v7887 = vadd.f32 %v7875, %v7879
      %v7888 = vadd.f32 %v7876, %v7879
      %s7889 = scalar_lea.vmem %s366, 128
      %7890 = vst [vmem:[%s7889] sm:$0xff] %v7881
      %7891 = vst [vmem:[%s7889 + $0x8] sm:$0xff] %v7882
      %7892 = vst [vmem:[%s7889 + $0x10] sm:$0xff] %v7883
      %7893 = vst [vmem:[%s7889 + $0x18] sm:$0xff] %v7884
      %7894 = vst [vmem:[%s7889 + $0x20] sm:$0xff] %v7885
      %7895 = vst [vmem:[%s7889 + $0x28] sm:$0xff] %v7886
      %7896 = vst [vmem:[%s7889 + $0x30] sm:$0xff] %v7887
      %7897 = vst [vmem:[%s7889 + $0x38] sm:$0xff] %v7888
      %s7898 = scalar_lea.vmem %s359, 192
      %v7899 = vld [vmem:[%s7898] sm:$0xff]
      %v7900 = vld [vmem:[%s7898 + $0x8] sm:$0xff]
      %v7901 = vld [vmem:[%s7898 + $0x10] sm:$0xff]
      %v7902 = vld [vmem:[%s7898 + $0x18] sm:$0xff]
      %v7903 = vld [vmem:[%s7898 + $0x20] sm:$0xff]
      %v7904 = vld [vmem:[%s7898 + $0x28] sm:$0xff]
      %v7905 = vld [vmem:[%s7898 + $0x30] sm:$0xff]
      %v7906 = vld [vmem:[%s7898 + $0x38] sm:$0xff]
      %v7907 = vld [vmem:[%s1] sm:$0xff]
      %v7908 = vld [vmem:[%s1 + $0x8] sm:$0xff]
      %v7909 = vld [vmem:[%s1 + $0x10] sm:$0xff]
      %v7910 = vld [vmem:[%s1 + $0x18] sm:$0xff]
      %v7911 = vld [vmem:[%s1 + $0x20] sm:$0xff]
      %v7912 = vld [vmem:[%s1 + $0x28] sm:$0xff]
      %v7913 = vld [vmem:[%s1 + $0x30] sm:$0xff]
      %v7914 = vld [vmem:[%s1 + $0x38] sm:$0xff]
      %v7915 = vld [vmem:[%s1 + $0x40] sm:$0xff]
      %v7916 = vld [vmem:[%s1 + $0x48] sm:$0xff]
      %v7917 = vld [vmem:[%s1 + $0x50] sm:$0xff]
      %v7918 = vld [vmem:[%s1 + $0x58] sm:$0xff]
      %v7919 = vld [vmem:[%s1 + $0x60] sm:$0xff]
      %v7920 = vld [vmem:[%s1 + $0x68] sm:$0xff]
      %v7921 = vld [vmem:[%s1 + $0x70] sm:$0xff]
      %v7922 = vld [vmem:[%s1 + $0x78] sm:$0xff]
      %v7923 = vld [vmem:[%s4] sm:$0x1]
      %v7925 = vperm.slane %v7923, 0
      %7927 = vmatpush.msra.mxu0 %v7922
      %7928 = vmatpush.msra.mxu0 %v7921
      %7929 = vmatpush.msra.mxu0 %v7920
      %7930 = vmatpush.msra.mxu0 %v7919
      %7931 = vmatpush.msra.mxu0 %v7918
      %7932 = vmatpush.msra.mxu0 %v7917
      %7933 = vmatpush.msra.mxu0 %v7916
      %7934 = vmatpush.msra.mxu0 %v7915
      %7935 = vmatpush.msra.mxu0 %v7914
      %7936 = vmatpush.msra.mxu0 %v7913
      %7937 = vmatpush.msra.mxu0 %v7912
      %7938 = vmatpush.msra.mxu0 %v7911
      %7939 = vmatpush.msra.mxu0 %v7910
      %7940 = vmatpush.msra.mxu0 %v7909
      %7941 = vmatpush.msra.mxu0 %v7908
      %7942 = vmatpush.msra.mxu0 %v7907
      %7943 = vmatmul.f32.gmra.mxu0 %v7899
      %v7944 = vpop.f32.mrf.mxu0
      %v7945 = vadd.f32 %v7925, %v7944
      %7946 = vmatmul.f32.gmra.mxu0 %v7900
      %v7947 = vpop.f32.mrf.mxu0
      %v7948 = vadd.f32 %v7925, %v7947
      %7949 = vmatmul.f32.gmra.mxu0 %v7901
      %v7950 = vpop.f32.mrf.mxu0
      %v7951 = vadd.f32 %v7925, %v7950
      %7952 = vmatmul.f32.gmra.mxu0 %v7902
      %v7953 = vpop.f32.mrf.mxu0
      %v7954 = vadd.f32 %v7925, %v7953
      %7955 = vmatmul.f32.gmra.mxu0 %v7903
      %v7956 = vpop.f32.mrf.mxu0
      %v7957 = vadd.f32 %v7925, %v7956
      %7958 = vmatmul.f32.gmra.mxu0 %v7904
      %v7959 = vpop.f32.mrf.mxu0
      %v7960 = vadd.f32 %v7925, %v7959
      %7961 = vmatmul.f32.gmra.mxu0 %v7905
      %v7962 = vpop.f32.mrf.mxu0
      %v7963 = vadd.f32 %v7925, %v7962
      %7964 = vmatmul.f32.gmra.mxu0 %v7906
      %v7965 = vpop.f32.mrf.mxu0
      %v7966 = vadd.f32 %v7925, %v7965
      %7967 = vdwg.mxu0
      %v7968 = vld [vmem:[%s2] sm:$0xff]
      %v7969 = vld [vmem:[%s2 + $0x8] sm:$0xff]
      %v7970 = vld [vmem:[%s2 + $0x10] sm:$0xff]
      %v7971 = vld [vmem:[%s2 + $0x18] sm:$0xff]
      %v7972 = vld [vmem:[%s2 + $0x20] sm:$0xff]
      %v7973 = vld [vmem:[%s2 + $0x28] sm:$0xff]
      %v7974 = vld [vmem:[%s2 + $0x30] sm:$0xff]
      %v7975 = vld [vmem:[%s2 + $0x38] sm:$0xff]
      %v7976 = vld [vmem:[%s2 + $0x40] sm:$0xff]
      %v7977 = vld [vmem:[%s2 + $0x48] sm:$0xff]
      %v7978 = vld [vmem:[%s2 + $0x50] sm:$0xff]
      %v7979 = vld [vmem:[%s2 + $0x58] sm:$0xff]
      %v7980 = vld [vmem:[%s2 + $0x60] sm:$0xff]
      %v7981 = vld [vmem:[%s2 + $0x68] sm:$0xff]
      %v7982 = vld [vmem:[%s2 + $0x70] sm:$0xff]
      %v7983 = vld [vmem:[%s2 + $0x78] sm:$0xff]
      %v7984 = vld [vmem:[%s5] sm:$0x1]
      %v7986 = vperm.slane %v7984, 0
      %7988 = vmatpush.msra.mxu0 %v7983
      %7989 = vmatpush.msra.mxu0 %v7982
      %7990 = vmatpush.msra.mxu0 %v7981
      %7991 = vmatpush.msra.mxu0 %v7980
      %7992 = vmatpush.msra.mxu0 %v7979
      %7993 = vmatpush.msra.mxu0 %v7978
      %7994 = vmatpush.msra.mxu0 %v7977
      %7995 = vmatpush.msra.mxu0 %v7976
      %7996 = vmatpush.msra.mxu0 %v7975
      %7997 = vmatpush.msra.mxu0 %v7974
      %7998 = vmatpush.msra.mxu0 %v7973
      %7999 = vmatpush.msra.mxu0 %v7972
      %8000 = vmatpush.msra.mxu0 %v7971
      %8001 = vmatpush.msra.mxu0 %v7970
      %8002 = vmatpush.msra.mxu0 %v7969
      %8003 = vmatpush.msra.mxu0 %v7968
      %8004 = vmatmul.f32.gmra.mxu0 %v7899
      %v8005 = vpop.f32.mrf.mxu0
      %v8006 = vadd.f32 %v7986, %v8005
      %8007 = vmatmul.f32.gmra.mxu0 %v7900
      %v8008 = vpop.f32.mrf.mxu0
      %v8009 = vadd.f32 %v7986, %v8008
      %8010 = vmatmul.f32.gmra.mxu0 %v7901
      %v8011 = vpop.f32.mrf.mxu0
      %v8012 = vadd.f32 %v7986, %v8011
      %8013 = vmatmul.f32.gmra.mxu0 %v7902
      %v8014 = vpop.f32.mrf.mxu0
      %v8015 = vadd.f32 %v7986, %v8014
      %8016 = vmatmul.f32.gmra.mxu0 %v7903
      %v8017 = vpop.f32.mrf.mxu0
      %v8018 = vadd.f32 %v7986, %v8017
      %8019 = vmatmul.f32.gmra.mxu0 %v7904
      %v8020 = vpop.f32.mrf.mxu0
      %v8021 = vadd.f32 %v7986, %v8020
      %8022 = vmatmul.f32.gmra.mxu0 %v7905
      %v8023 = vpop.f32.mrf.mxu0
      %v8024 = vadd.f32 %v7986, %v8023
      %8025 = vmatmul.f32.gmra.mxu0 %v7906
      %v8026 = vpop.f32.mrf.mxu0
      %v8027 = vadd.f32 %v7986, %v8026
      %8028 = vdwg.mxu0
      %v8029 = vld [vmem:[%s3] sm:$0xff]
      %v8030 = vld [vmem:[%s3 + $0x8] sm:$0xff]
      %v8031 = vld [vmem:[%s3 + $0x10] sm:$0xff]
      %v8032 = vld [vmem:[%s3 + $0x18] sm:$0xff]
      %v8033 = vld [vmem:[%s3 + $0x20] sm:$0xff]
      %v8034 = vld [vmem:[%s3 + $0x28] sm:$0xff]
      %v8035 = vld [vmem:[%s3 + $0x30] sm:$0xff]
      %v8036 = vld [vmem:[%s3 + $0x38] sm:$0xff]
      %v8037 = vld [vmem:[%s3 + $0x40] sm:$0xff]
      %v8038 = vld [vmem:[%s3 + $0x48] sm:$0xff]
      %v8039 = vld [vmem:[%s3 + $0x50] sm:$0xff]
      %v8040 = vld [vmem:[%s3 + $0x58] sm:$0xff]
      %v8041 = vld [vmem:[%s3 + $0x60] sm:$0xff]
      %v8042 = vld [vmem:[%s3 + $0x68] sm:$0xff]
      %v8043 = vld [vmem:[%s3 + $0x70] sm:$0xff]
      %v8044 = vld [vmem:[%s3 + $0x78] sm:$0xff]
      %v8045 = vld [vmem:[%s6] sm:$0x1]
      %v8047 = vperm.slane %v8045, 0
      %8049 = vmatpush.msra.mxu0 %v8044
      %8050 = vmatpush.msra.mxu0 %v8043
      %8051 = vmatpush.msra.mxu0 %v8042
      %8052 = vmatpush.msra.mxu0 %v8041
      %8053 = vmatpush.msra.mxu0 %v8040
      %8054 = vmatpush.msra.mxu0 %v8039
      %8055 = vmatpush.msra.mxu0 %v8038
      %8056 = vmatpush.msra.mxu0 %v8037
      %8057 = vmatpush.msra.mxu0 %v8036
      %8058 = vmatpush.msra.mxu0 %v8035
      %8059 = vmatpush.msra.mxu0 %v8034
      %8060 = vmatpush.msra.mxu0 %v8033
      %8061 = vmatpush.msra.mxu0 %v8032
      %8062 = vmatpush.msra.mxu0 %v8031
      %8063 = vmatpush.msra.mxu0 %v8030
      %8064 = vmatpush.msra.mxu0 %v8029
      %8065 = vmatmul.f32.gmra.mxu0 %v7899
      %v8066 = vpop.f32.mrf.mxu0
      %v8067 = vadd.f32 %v8047, %v8066
      %8068 = vmatmul.f32.gmra.mxu0 %v7900
      %v8069 = vpop.f32.mrf.mxu0
      %v8070 = vadd.f32 %v8047, %v8069
      %8071 = vmatmul.f32.gmra.mxu0 %v7901
      %v8072 = vpop.f32.mrf.mxu0
      %v8073 = vadd.f32 %v8047, %v8072
      %8074 = vmatmul.f32.gmra.mxu0 %v7902
      %v8075 = vpop.f32.mrf.mxu0
      %v8076 = vadd.f32 %v8047, %v8075
      %8077 = vmatmul.f32.gmra.mxu0 %v7903
      %v8078 = vpop.f32.mrf.mxu0
      %v8079 = vadd.f32 %v8047, %v8078
      %8080 = vmatmul.f32.gmra.mxu0 %v7904
      %v8081 = vpop.f32.mrf.mxu0
      %v8082 = vadd.f32 %v8047, %v8081
      %8083 = vmatmul.f32.gmra.mxu0 %v7905
      %v8084 = vpop.f32.mrf.mxu0
      %v8085 = vadd.f32 %v8047, %v8084
      %8086 = vmatmul.f32.gmra.mxu0 %v7906
      %v8087 = vpop.f32.mrf.mxu0
      %v8088 = vadd.f32 %v8047, %v8087
      %8089 = vdwg.mxu0
      %v8090 = vmul.f32 %v7945, 0.17677669
      %v8091 = vmul.f32 %v7948, 0.17677669
      %v8092 = vmul.f32 %v7951, 0.17677669
      %v8093 = vmul.f32 %v7954, 0.17677669
      %v8094 = vmul.f32 %v7957, 0.17677669
      %v8095 = vmul.f32 %v7960, 0.17677669
      %v8096 = vmul.f32 %v7963, 0.17677669
      %v8097 = vmul.f32 %v7966, 0.17677669
      %v8098 = vld [vmem:[%s7] sm:$0xff]
      %v8099 = vld [vmem:[%s7 + $0x8] sm:$0xff]
      %v8100 = vld [vmem:[%s7 + $0x10] sm:$0xff]
      %v8101 = vld [vmem:[%s7 + $0x18] sm:$0xff]
      %v8102 = vld [vmem:[%s7 + $0x20] sm:$0xff]
      %v8103 = vld [vmem:[%s7 + $0x28] sm:$0xff]
      %v8104 = vld [vmem:[%s7 + $0x30] sm:$0xff]
      %v8105 = vld [vmem:[%s7 + $0x38] sm:$0xff]
      %v8107 = vsel %vm575, %v8090, 0
      %v8110 = vsel %vm575, %v8091, 0
      %v8113 = vsel %vm575, %v8092, 0
      %v8116 = vsel %vm575, %v8093, 0
      %v8119 = vsel %vm575, %v8094, 0
      %v8122 = vsel %vm575, %v8095, 0
      %v8125 = vsel %vm575, %v8096, 0
      %v8128 = vsel %vm575, %v8097, 0
      %v8131 = vsel %vm575, %v8006, 0
      %v8134 = vsel %vm575, %v8009, 0
      %v8137 = vsel %vm575, %v8012, 0
      %v8140 = vsel %vm575, %v8015, 0
      %v8143 = vsel %vm575, %v8018, 0
      %v8146 = vsel %vm575, %v8021, 0
      %v8149 = vsel %vm575, %v8024, 0
      %v8152 = vsel %vm575, %v8027, 0
      %8154 = vmatpush.xpose.msra.mxu0 0.0
      %8155 = vmatpush.xpose.msra.mxu0 0.0
      %8156 = vmatpush.xpose.msra.mxu0 0.0
      %8157 = vmatpush.xpose.msra.mxu0 0.0
      %8158 = vmatpush.xpose.msra.mxu0 0.0
      %8159 = vmatpush.xpose.msra.mxu0 0.0
      %8160 = vmatpush.xpose.msra.mxu0 0.0
      %8161 = vmatpush.xpose.msra.mxu0 0.0
      %8162 = vmatpush.xpose.msra.mxu0 %v8152
      %8163 = vmatpush.xpose.msra.mxu0 %v8149
      %8164 = vmatpush.xpose.msra.mxu0 %v8146
      %8165 = vmatpush.xpose.msra.mxu0 %v8143
      %8166 = vmatpush.xpose.msra.mxu0 %v8140
      %8167 = vmatpush.xpose.msra.mxu0 %v8137
      %8168 = vmatpush.xpose.msra.mxu0 %v8134
      %8169 = vmatpush.xpose.msra.mxu0 %v8131
      %8170 = vmatmul.f32.gmra.mxu0 %v8107
      %v8171 = vpop.f32.mrf.mxu0
      %v8172 = vadd.f32 %v8098, %v8171
      %8173 = vmatmul.f32.gmra.mxu0 %v8110
      %v8174 = vpop.f32.mrf.mxu0
      %v8175 = vadd.f32 %v8099, %v8174
      %8176 = vmatmul.f32.gmra.mxu0 %v8113
      %v8177 = vpop.f32.mrf.mxu0
      %v8178 = vadd.f32 %v8100, %v8177
      %8179 = vmatmul.f32.gmra.mxu0 %v8116
      %v8180 = vpop.f32.mrf.mxu0
      %v8181 = vadd.f32 %v8101, %v8180
      %8182 = vmatmul.f32.gmra.mxu0 %v8119
      %v8183 = vpop.f32.mrf.mxu0
      %v8184 = vadd.f32 %v8102, %v8183
      %8185 = vmatmul.f32.gmra.mxu0 %v8122
      %v8186 = vpop.f32.mrf.mxu0
      %v8187 = vadd.f32 %v8103, %v8186
      %8188 = vmatmul.f32.gmra.mxu0 %v8125
      %v8189 = vpop.f32.mrf.mxu0
      %v8190 = vadd.f32 %v8104, %v8189
      %8191 = vmatmul.f32.gmra.mxu0 %v8128
      %v8192 = vpop.f32.mrf.mxu0
      %v8193 = vadd.f32 %v8105, %v8192
      %8194 = vdwg.mxu0
      %v8195 = vsel %vm665, %v8172, -inf
      %8196 = vmax.xlane.f32.xlu0 %v8195
      %v8197 = vpop.xlane.xlu0 %8196
      %v8198 = vsel %vm665, %v8175, -inf
      %8199 = vmax.xlane.f32.xlu0 %v8198
      %v8200 = vpop.xlane.xlu0 %8199
      %v8201 = vsel %vm665, %v8178, -inf
      %8202 = vmax.xlane.f32.xlu0 %v8201
      %v8203 = vpop.xlane.xlu0 %8202
      %v8204 = vsel %vm665, %v8181, -inf
      %8205 = vmax.xlane.f32.xlu0 %v8204
      %v8206 = vpop.xlane.xlu0 %8205
      %v8207 = vsel %vm665, %v8184, -inf
      %8208 = vmax.xlane.f32.xlu0 %v8207
      %v8209 = vpop.xlane.xlu0 %8208
      %v8210 = vsel %vm665, %v8187, -inf
      %8211 = vmax.xlane.f32.xlu0 %v8210
      %v8212 = vpop.xlane.xlu0 %8211
      %v8213 = vsel %vm665, %v8190, -inf
      %8214 = vmax.xlane.f32.xlu0 %v8213
      %v8215 = vpop.xlane.xlu0 %8214
      %v8216 = vsel %vm665, %v8193, -inf
      %8217 = vmax.xlane.f32.xlu0 %v8216
      %v8218 = vpop.xlane.xlu0 %8217
      %v8219 = vsub.f32 %v8172, %v8197
      %v8220 = vsub.f32 %v8175, %v8200
      %v8221 = vsub.f32 %v8178, %v8203
      %v8222 = vsub.f32 %v8181, %v8206
      %v8223 = vsub.f32 %v8184, %v8209
      %v8224 = vsub.f32 %v8187, %v8212
      %v8225 = vsub.f32 %v8190, %v8215
      %v8226 = vsub.f32 %v8193, %v8218
      %v8227 = vmul.f32 %v8219, 1.442695
      %v8228 = vpow.pop %v8227
      %v8229 = vmul.f32 %v8220, 1.442695
      %v8230 = vpow.pop %v8229
      %v8231 = vmul.f32 %v8221, 1.442695
      %v8232 = vpow.pop %v8231
      %v8233 = vmul.f32 %v8222, 1.442695
      %v8234 = vpow.pop %v8233
      %v8235 = vmul.f32 %v8223, 1.442695
      %v8236 = vpow.pop %v8235
      %v8237 = vmul.f32 %v8224, 1.442695
      %v8238 = vpow.pop %v8237
      %v8239 = vmul.f32 %v8225, 1.442695
      %v8240 = vpow.pop %v8239
      %v8241 = vmul.f32 %v8226, 1.442695
      %v8242 = vpow.pop %v8241
      %v8243 = vsel %vm665, %v8228, 0.0
      %8244 = vadd.xlane.f32.xlu0 %v8243
      %v8245 = vpop.xlane.xlu0 %8244
      %v8246 = vsel %vm665, %v8230, 0.0
      %8247 = vadd.xlane.f32.xlu0 %v8246
      %v8248 = vpop.xlane.xlu0 %8247
      %v8249 = vsel %vm665, %v8232, 0.0
      %8250 = vadd.xlane.f32.xlu0 %v8249
      %v8251 = vpop.xlane.xlu0 %8250
      %v8252 = vsel %vm665, %v8234, 0.0
      %8253 = vadd.xlane.f32.xlu0 %v8252
      %v8254 = vpop.xlane.xlu0 %8253
      %v8255 = vsel %vm665, %v8236, 0.0
      %8256 = vadd.xlane.f32.xlu0 %v8255
      %v8257 = vpop.xlane.xlu0 %8256
      %v8258 = vsel %vm665, %v8238, 0.0
      %8259 = vadd.xlane.f32.xlu0 %v8258
      %v8260 = vpop.xlane.xlu0 %8259
      %v8261 = vsel %vm665, %v8240, 0.0
      %8262 = vadd.xlane.f32.xlu0 %v8261
      %v8263 = vpop.xlane.xlu0 %8262
      %v8264 = vsel %vm665, %v8242, 0.0
      %8265 = vadd.xlane.f32.xlu0 %v8264
      %v8266 = vpop.xlane.xlu0 %8265
      %v8267 = vrcp.pop %v8245
      %v8268 = vmul.f32 %v8245, %v8267
      %v8269 = vsub.f32 1.0, %v8268
      %v8270 = vmul.f32 %v8267, %v8269
      %v8271 = vadd.f32 %v8267, %v8270
      %vm8272 = vweird.f32 %v8245
      %vm8273 = vweird.f32 %v8267
      %vm8274 = vmor %vm8272, %vm8273
      %v8275 = vsel %vm8274, %v8267, %v8271
      %v8276 = vand.u32 2147483647, %v8245
      %vm8277 = vcmp.eq.f32.partialorder %v8276, 8.507059e+37
      %v8278 = vand.u32 %v8245, 2147483648
      %v8279 = vor.u32 1.1754944e-38, %v8278
      %v8280 = vsel %vm8277, %v8279, %v8275
      %v8281 = vmul.f32 %v8228, %v8280
      %v8282 = vrcp.pop %v8248
      %v8283 = vmul.f32 %v8248, %v8282
      %v8284 = vsub.f32 1.0, %v8283
      %v8285 = vmul.f32 %v8282, %v8284
      %v8286 = vadd.f32 %v8282, %v8285
      %vm8287 = vweird.f32 %v8248
      %vm8288 = vweird.f32 %v8282
      %vm8289 = vmor %vm8287, %vm8288
      %v8290 = vsel %vm8289, %v8282, %v8286
      %v8291 = vand.u32 2147483647, %v8248
      %vm8292 = vcmp.eq.f32.partialorder %v8291, 8.507059e+37
      %v8293 = vand.u32 %v8248, 2147483648
      %v8294 = vor.u32 1.1754944e-38, %v8293
      %v8295 = vsel %vm8292, %v8294, %v8290
      %v8296 = vmul.f32 %v8230, %v8295
      %v8297 = vrcp.pop %v8251
      %v8298 = vmul.f32 %v8251, %v8297
      %v8299 = vsub.f32 1.0, %v8298
      %v8300 = vmul.f32 %v8297, %v8299
      %v8301 = vadd.f32 %v8297, %v8300
      %vm8302 = vweird.f32 %v8251
      %vm8303 = vweird.f32 %v8297
      %vm8304 = vmor %vm8302, %vm8303
      %v8305 = vsel %vm8304, %v8297, %v8301
      %v8306 = vand.u32 2147483647, %v8251
      %vm8307 = vcmp.eq.f32.partialorder %v8306, 8.507059e+37
      %v8308 = vand.u32 %v8251, 2147483648
      %v8309 = vor.u32 1.1754944e-38, %v8308
      %v8310 = vsel %vm8307, %v8309, %v8305
      %v8311 = vmul.f32 %v8232, %v8310
      %v8312 = vrcp.pop %v8254
      %v8313 = vmul.f32 %v8254, %v8312
      %v8314 = vsub.f32 1.0, %v8313
      %v8315 = vmul.f32 %v8312, %v8314
      %v8316 = vadd.f32 %v8312, %v8315
      %vm8317 = vweird.f32 %v8254
      %vm8318 = vweird.f32 %v8312
      %vm8319 = vmor %vm8317, %vm8318
      %v8320 = vsel %vm8319, %v8312, %v8316
      %v8321 = vand.u32 2147483647, %v8254
      %vm8322 = vcmp.eq.f32.partialorder %v8321, 8.507059e+37
      %v8323 = vand.u32 %v8254, 2147483648
      %v8324 = vor.u32 1.1754944e-38, %v8323
      %v8325 = vsel %vm8322, %v8324, %v8320
      %v8326 = vmul.f32 %v8234, %v8325
      %v8327 = vrcp.pop %v8257
      %v8328 = vmul.f32 %v8257, %v8327
      %v8329 = vsub.f32 1.0, %v8328
      %v8330 = vmul.f32 %v8327, %v8329
      %v8331 = vadd.f32 %v8327, %v8330
      %vm8332 = vweird.f32 %v8257
      %vm8333 = vweird.f32 %v8327
      %vm8334 = vmor %vm8332, %vm8333
      %v8335 = vsel %vm8334, %v8327, %v8331
      %v8336 = vand.u32 2147483647, %v8257
      %vm8337 = vcmp.eq.f32.partialorder %v8336, 8.507059e+37
      %v8338 = vand.u32 %v8257, 2147483648
      %v8339 = vor.u32 1.1754944e-38, %v8338
      %v8340 = vsel %vm8337, %v8339, %v8335
      %v8341 = vmul.f32 %v8236, %v8340
      %v8342 = vrcp.pop %v8260
      %v8343 = vmul.f32 %v8260, %v8342
      %v8344 = vsub.f32 1.0, %v8343
      %v8345 = vmul.f32 %v8342, %v8344
      %v8346 = vadd.f32 %v8342, %v8345
      %vm8347 = vweird.f32 %v8260
      %vm8348 = vweird.f32 %v8342
      %vm8349 = vmor %vm8347, %vm8348
      %v8350 = vsel %vm8349, %v8342, %v8346
      %v8351 = vand.u32 2147483647, %v8260
      %vm8352 = vcmp.eq.f32.partialorder %v8351, 8.507059e+37
      %v8353 = vand.u32 %v8260, 2147483648
      %v8354 = vor.u32 1.1754944e-38, %v8353
      %v8355 = vsel %vm8352, %v8354, %v8350
      %v8356 = vmul.f32 %v8238, %v8355
      %v8357 = vrcp.pop %v8263
      %v8358 = vmul.f32 %v8263, %v8357
      %v8359 = vsub.f32 1.0, %v8358
      %v8360 = vmul.f32 %v8357, %v8359
      %v8361 = vadd.f32 %v8357, %v8360
      %vm8362 = vweird.f32 %v8263
      %vm8363 = vweird.f32 %v8357
      %vm8364 = vmor %vm8362, %vm8363
      %v8365 = vsel %vm8364, %v8357, %v8361
      %v8366 = vand.u32 2147483647, %v8263
      %vm8367 = vcmp.eq.f32.partialorder %v8366, 8.507059e+37
      %v8368 = vand.u32 %v8263, 2147483648
      %v8369 = vor.u32 1.1754944e-38, %v8368
      %v8370 = vsel %vm8367, %v8369, %v8365
      %v8371 = vmul.f32 %v8240, %v8370
      %v8372 = vrcp.pop %v8266
      %v8373 = vmul.f32 %v8266, %v8372
      %v8374 = vsub.f32 1.0, %v8373
      %v8375 = vmul.f32 %v8372, %v8374
      %v8376 = vadd.f32 %v8372, %v8375
      %vm8377 = vweird.f32 %v8266
      %vm8378 = vweird.f32 %v8372
      %vm8379 = vmor %vm8377, %vm8378
      %v8380 = vsel %vm8379, %v8372, %v8376
      %v8381 = vand.u32 2147483647, %v8266
      %vm8382 = vcmp.eq.f32.partialorder %v8381, 8.507059e+37
      %v8383 = vand.u32 %v8266, 2147483648
      %v8384 = vor.u32 1.1754944e-38, %v8383
      %v8385 = vsel %vm8382, %v8384, %v8380
      %v8386 = vmul.f32 %v8242, %v8385
      %v8388 = vsel %vm665, %v8281, 0
      %v8391 = vsel %vm665, %v8296, 0
      %v8394 = vsel %vm665, %v8311, 0
      %v8397 = vsel %vm665, %v8326, 0
      %v8400 = vsel %vm665, %v8341, 0
      %v8403 = vsel %vm665, %v8356, 0
      %v8406 = vsel %vm665, %v8371, 0
      %v8409 = vsel %vm665, %v8386, 0
      %8411 = vmatpush.msra.mxu0 0.0
      %8412 = vmatpush.msra.mxu0 0.0
      %8413 = vmatpush.msra.mxu0 0.0
      %8414 = vmatpush.msra.mxu0 0.0
      %8415 = vmatpush.msra.mxu0 0.0
      %8416 = vmatpush.msra.mxu0 0.0
      %8417 = vmatpush.msra.mxu0 0.0
      %8418 = vmatpush.msra.mxu0 0.0
      %8419 = vmatpush.msra.mxu0 %v8088
      %8420 = vmatpush.msra.mxu0 %v8085
      %8421 = vmatpush.msra.mxu0 %v8082
      %8422 = vmatpush.msra.mxu0 %v8079
      %8423 = vmatpush.msra.mxu0 %v8076
      %8424 = vmatpush.msra.mxu0 %v8073
      %8425 = vmatpush.msra.mxu0 %v8070
      %8426 = vmatpush.msra.mxu0 %v8067
      %8427 = vmatmul.f32.gmra.mxu0 %v8388
      %v8428 = vpop.f32.mrf.mxu0
      %v8429 = vadd.f32 0.0, %v8428
      %8430 = vmatmul.f32.gmra.mxu0 %v8391
      %v8431 = vpop.f32.mrf.mxu0
      %v8432 = vadd.f32 0.0, %v8431
      %8433 = vmatmul.f32.gmra.mxu0 %v8394
      %v8434 = vpop.f32.mrf.mxu0
      %v8435 = vadd.f32 0.0, %v8434
      %8436 = vmatmul.f32.gmra.mxu0 %v8397
      %v8437 = vpop.f32.mrf.mxu0
      %v8438 = vadd.f32 0.0, %v8437
      %8439 = vmatmul.f32.gmra.mxu0 %v8400
      %v8440 = vpop.f32.mrf.mxu0
      %v8441 = vadd.f32 0.0, %v8440
      %8442 = vmatmul.f32.gmra.mxu0 %v8403
      %v8443 = vpop.f32.mrf.mxu0
      %v8444 = vadd.f32 0.0, %v8443
      %8445 = vmatmul.f32.gmra.mxu0 %v8406
      %v8446 = vpop.f32.mrf.mxu0
      %v8447 = vadd.f32 0.0, %v8446
      %8448 = vmatmul.f32.gmra.mxu0 %v8409
      %v8449 = vpop.f32.mrf.mxu0
      %v8450 = vadd.f32 0.0, %v8449
      %8451 = vdwg.mxu0
      %v8452 = vld [vmem:[%s8] sm:$0xff]
      %v8453 = vld [vmem:[%s8 + $0x8] sm:$0xff]
      %v8454 = vld [vmem:[%s8 + $0x10] sm:$0xff]
      %v8455 = vld [vmem:[%s8 + $0x18] sm:$0xff]
      %v8456 = vld [vmem:[%s927] sm:$0xff]
      %v8457 = vld [vmem:[%s927 + $0x8] sm:$0xff]
      %v8458 = vld [vmem:[%s927 + $0x10] sm:$0xff]
      %v8459 = vld [vmem:[%s927 + $0x18] sm:$0xff]
      %v8460 = vld [vmem:[%s927 + $0x20] sm:$0xff]
      %v8461 = vld [vmem:[%s927 + $0x28] sm:$0xff]
      %v8462 = vld [vmem:[%s927 + $0x30] sm:$0xff]
      %v8463 = vld [vmem:[%s927 + $0x38] sm:$0xff]
      %v8464 = vld [vmem:[%s927 + $0x40] sm:$0xff]
      %v8465 = vld [vmem:[%s927 + $0x48] sm:$0xff]
      %v8466 = vld [vmem:[%s927 + $0x50] sm:$0xff]
      %v8467 = vld [vmem:[%s927 + $0x58] sm:$0xff]
      %v8468 = vld [vmem:[%s927 + $0x60] sm:$0xff]
      %v8469 = vld [vmem:[%s927 + $0x68] sm:$0xff]
      %v8470 = vld [vmem:[%s927 + $0x70] sm:$0xff]
      %v8471 = vld [vmem:[%s927 + $0x78] sm:$0xff]
      %v8472 = vld [vmem:[%s944] sm:$0x1]
      %v8474 = vperm.slane %v8472, 0
      %8476 = vmatpush.msra.mxu0 %v8471
      %8477 = vmatpush.msra.mxu0 %v8470
      %8478 = vmatpush.msra.mxu0 %v8469
      %8479 = vmatpush.msra.mxu0 %v8468
      %8480 = vmatpush.msra.mxu0 %v8467
      %8481 = vmatpush.msra.mxu0 %v8466
      %8482 = vmatpush.msra.mxu0 %v8465
      %8483 = vmatpush.msra.mxu0 %v8464
      %8484 = vmatpush.msra.mxu0 %v8463
      %8485 = vmatpush.msra.mxu0 %v8462
      %8486 = vmatpush.msra.mxu0 %v8461
      %8487 = vmatpush.msra.mxu0 %v8460
      %8488 = vmatpush.msra.mxu0 %v8459
      %8489 = vmatpush.msra.mxu0 %v8458
      %8490 = vmatpush.msra.mxu0 %v8457
      %8491 = vmatpush.msra.mxu0 %v8456
      %8492 = vmatmul.f32.gmra.mxu0 %v7899
      %v8493 = vpop.f32.mrf.mxu0
      %v8494 = vadd.f32 %v8474, %v8493
      %8495 = vmatmul.f32.gmra.mxu0 %v7900
      %v8496 = vpop.f32.mrf.mxu0
      %v8497 = vadd.f32 %v8474, %v8496
      %8498 = vmatmul.f32.gmra.mxu0 %v7901
      %v8499 = vpop.f32.mrf.mxu0
      %v8500 = vadd.f32 %v8474, %v8499
      %8501 = vmatmul.f32.gmra.mxu0 %v7902
      %v8502 = vpop.f32.mrf.mxu0
      %v8503 = vadd.f32 %v8474, %v8502
      %8504 = vmatmul.f32.gmra.mxu0 %v7903
      %v8505 = vpop.f32.mrf.mxu0
      %v8506 = vadd.f32 %v8474, %v8505
      %8507 = vmatmul.f32.gmra.mxu0 %v7904
      %v8508 = vpop.f32.mrf.mxu0
      %v8509 = vadd.f32 %v8474, %v8508
      %8510 = vmatmul.f32.gmra.mxu0 %v7905
      %v8511 = vpop.f32.mrf.mxu0
      %v8512 = vadd.f32 %v8474, %v8511
      %8513 = vmatmul.f32.gmra.mxu0 %v7906
      %v8514 = vpop.f32.mrf.mxu0
      %v8515 = vadd.f32 %v8474, %v8514
      %8516 = vdwg.mxu0
      %v8517 = vld [vmem:[%s990] sm:$0xff]
      %v8518 = vld [vmem:[%s990 + $0x8] sm:$0xff]
      %v8519 = vld [vmem:[%s990 + $0x10] sm:$0xff]
      %v8520 = vld [vmem:[%s990 + $0x18] sm:$0xff]
      %v8521 = vld [vmem:[%s990 + $0x20] sm:$0xff]
      %v8522 = vld [vmem:[%s990 + $0x28] sm:$0xff]
      %v8523 = vld [vmem:[%s990 + $0x30] sm:$0xff]
      %v8524 = vld [vmem:[%s990 + $0x38] sm:$0xff]
      %v8525 = vld [vmem:[%s990 + $0x40] sm:$0xff]
      %v8526 = vld [vmem:[%s990 + $0x48] sm:$0xff]
      %v8527 = vld [vmem:[%s990 + $0x50] sm:$0xff]
      %v8528 = vld [vmem:[%s990 + $0x58] sm:$0xff]
      %v8529 = vld [vmem:[%s990 + $0x60] sm:$0xff]
      %v8530 = vld [vmem:[%s990 + $0x68] sm:$0xff]
      %v8531 = vld [vmem:[%s990 + $0x70] sm:$0xff]
      %v8532 = vld [vmem:[%s990 + $0x78] sm:$0xff]
      %v8533 = vld [vmem:[%s1007] sm:$0x1]
      %v8535 = vperm.slane %v8533, 0
      %8537 = vmatpush.msra.mxu0 %v8532
      %8538 = vmatpush.msra.mxu0 %v8531
      %8539 = vmatpush.msra.mxu0 %v8530
      %8540 = vmatpush.msra.mxu0 %v8529
      %8541 = vmatpush.msra.mxu0 %v8528
      %8542 = vmatpush.msra.mxu0 %v8527
      %8543 = vmatpush.msra.mxu0 %v8526
      %8544 = vmatpush.msra.mxu0 %v8525
      %8545 = vmatpush.msra.mxu0 %v8524
      %8546 = vmatpush.msra.mxu0 %v8523
      %8547 = vmatpush.msra.mxu0 %v8522
      %8548 = vmatpush.msra.mxu0 %v8521
      %8549 = vmatpush.msra.mxu0 %v8520
      %8550 = vmatpush.msra.mxu0 %v8519
      %8551 = vmatpush.msra.mxu0 %v8518
      %8552 = vmatpush.msra.mxu0 %v8517
      %8553 = vmatmul.f32.gmra.mxu0 %v7899
      %v8554 = vpop.f32.mrf.mxu0
      %v8555 = vadd.f32 %v8535, %v8554
      %8556 = vmatmul.f32.gmra.mxu0 %v7900
      %v8557 = vpop.f32.mrf.mxu0
      %v8558 = vadd.f32 %v8535, %v8557
      %8559 = vmatmul.f32.gmra.mxu0 %v7901
      %v8560 = vpop.f32.mrf.mxu0
      %v8561 = vadd.f32 %v8535, %v8560
      %8562 = vmatmul.f32.gmra.mxu0 %v7902
      %v8563 = vpop.f32.mrf.mxu0
      %v8564 = vadd.f32 %v8535, %v8563
      %8565 = vmatmul.f32.gmra.mxu0 %v7903
      %v8566 = vpop.f32.mrf.mxu0
      %v8567 = vadd.f32 %v8535, %v8566
      %8568 = vmatmul.f32.gmra.mxu0 %v7904
      %v8569 = vpop.f32.mrf.mxu0
      %v8570 = vadd.f32 %v8535, %v8569
      %8571 = vmatmul.f32.gmra.mxu0 %v7905
      %v8572 = vpop.f32.mrf.mxu0
      %v8573 = vadd.f32 %v8535, %v8572
      %8574 = vmatmul.f32.gmra.mxu0 %v7906
      %v8575 = vpop.f32.mrf.mxu0
      %v8576 = vadd.f32 %v8535, %v8575
      %8577 = vdwg.mxu0
      %v8578 = vld [vmem:[%s1053] sm:$0xff]
      %v8579 = vld [vmem:[%s1053 + $0x8] sm:$0xff]
      %v8580 = vld [vmem:[%s1053 + $0x10] sm:$0xff]
      %v8581 = vld [vmem:[%s1053 + $0x18] sm:$0xff]
      %v8582 = vld [vmem:[%s1053 + $0x20] sm:$0xff]
      %v8583 = vld [vmem:[%s1053 + $0x28] sm:$0xff]
      %v8584 = vld [vmem:[%s1053 + $0x30] sm:$0xff]
      %v8585 = vld [vmem:[%s1053 + $0x38] sm:$0xff]
      %v8586 = vld [vmem:[%s1053 + $0x40] sm:$0xff]
      %v8587 = vld [vmem:[%s1053 + $0x48] sm:$0xff]
      %v8588 = vld [vmem:[%s1053 + $0x50] sm:$0xff]
      %v8589 = vld [vmem:[%s1053 + $0x58] sm:$0xff]
      %v8590 = vld [vmem:[%s1053 + $0x60] sm:$0xff]
      %v8591 = vld [vmem:[%s1053 + $0x68] sm:$0xff]
      %v8592 = vld [vmem:[%s1053 + $0x70] sm:$0xff]
      %v8593 = vld [vmem:[%s1053 + $0x78] sm:$0xff]
      %v8594 = vld [vmem:[%s1070] sm:$0x1]
      %v8596 = vperm.slane %v8594, 0
      %8598 = vmatpush.msra.mxu0 %v8593
      %8599 = vmatpush.msra.mxu0 %v8592
      %8600 = vmatpush.msra.mxu0 %v8591
      %8601 = vmatpush.msra.mxu0 %v8590
      %8602 = vmatpush.msra.mxu0 %v8589
      %8603 = vmatpush.msra.mxu0 %v8588
      %8604 = vmatpush.msra.mxu0 %v8587
      %8605 = vmatpush.msra.mxu0 %v8586
      %8606 = vmatpush.msra.mxu0 %v8585
      %8607 = vmatpush.msra.mxu0 %v8584
      %8608 = vmatpush.msra.mxu0 %v8583
      %8609 = vmatpush.msra.mxu0 %v8582
      %8610 = vmatpush.msra.mxu0 %v8581
      %8611 = vmatpush.msra.mxu0 %v8580
      %8612 = vmatpush.msra.mxu0 %v8579
      %8613 = vmatpush.msra.mxu0 %v8578
      %8614 = vmatmul.f32.gmra.mxu0 %v7899
      %v8615 = vpop.f32.mrf.mxu0
      %v8616 = vadd.f32 %v8596, %v8615
      %8617 = vmatmul.f32.gmra.mxu0 %v7900
      %v8618 = vpop.f32.mrf.mxu0
      %v8619 = vadd.f32 %v8596, %v8618
      %8620 = vmatmul.f32.gmra.mxu0 %v7901
      %v8621 = vpop.f32.mrf.mxu0
      %v8622 = vadd.f32 %v8596, %v8621
      %8623 = vmatmul.f32.gmra.mxu0 %v7902
      %v8624 = vpop.f32.mrf.mxu0
      %v8625 = vadd.f32 %v8596, %v8624
      %8626 = vmatmul.f32.gmra.mxu0 %v7903
      %v8627 = vpop.f32.mrf.mxu0
      %v8628 = vadd.f32 %v8596, %v8627
      %8629 = vmatmul.f32.gmra.mxu0 %v7904
      %v8630 = vpop.f32.mrf.mxu0
      %v8631 = vadd.f32 %v8596, %v8630
      %8632 = vmatmul.f32.gmra.mxu0 %v7905
      %v8633 = vpop.f32.mrf.mxu0
      %v8634 = vadd.f32 %v8596, %v8633
      %8635 = vmatmul.f32.gmra.mxu0 %v7906
      %v8636 = vpop.f32.mrf.mxu0
      %v8637 = vadd.f32 %v8596, %v8636
      %8638 = vdwg.mxu0
      %v8639 = vmul.f32 %v8494, 0.17677669
      %v8640 = vmul.f32 %v8497, 0.17677669
      %v8641 = vmul.f32 %v8500, 0.17677669
      %v8642 = vmul.f32 %v8503, 0.17677669
      %v8643 = vmul.f32 %v8506, 0.17677669
      %v8644 = vmul.f32 %v8509, 0.17677669
      %v8645 = vmul.f32 %v8512, 0.17677669
      %v8646 = vmul.f32 %v8515, 0.17677669
      %v8647 = vld [vmem:[%s1124] sm:$0xff]
      %v8648 = vld [vmem:[%s1124 + $0x8] sm:$0xff]
      %v8649 = vld [vmem:[%s1124 + $0x10] sm:$0xff]
      %v8650 = vld [vmem:[%s1124 + $0x18] sm:$0xff]
      %v8651 = vld [vmem:[%s1124 + $0x20] sm:$0xff]
      %v8652 = vld [vmem:[%s1124 + $0x28] sm:$0xff]
      %v8653 = vld [vmem:[%s1124 + $0x30] sm:$0xff]
      %v8654 = vld [vmem:[%s1124 + $0x38] sm:$0xff]
      %v8656 = vsel %vm575, %v8639, 0
      %v8659 = vsel %vm575, %v8640, 0
      %v8662 = vsel %vm575, %v8641, 0
      %v8665 = vsel %vm575, %v8642, 0
      %v8668 = vsel %vm575, %v8643, 0
      %v8671 = vsel %vm575, %v8644, 0
      %v8674 = vsel %vm575, %v8645, 0
      %v8677 = vsel %vm575, %v8646, 0
      %v8680 = vsel %vm575, %v8555, 0
      %v8683 = vsel %vm575, %v8558, 0
      %v8686 = vsel %vm575, %v8561, 0
      %v8689 = vsel %vm575, %v8564, 0
      %v8692 = vsel %vm575, %v8567, 0
      %v8695 = vsel %vm575, %v8570, 0
      %v8698 = vsel %vm575, %v8573, 0
      %v8701 = vsel %vm575, %v8576, 0
      %8703 = vmatpush.xpose.msra.mxu0 0.0
      %8704 = vmatpush.xpose.msra.mxu0 0.0
      %8705 = vmatpush.xpose.msra.mxu0 0.0
      %8706 = vmatpush.xpose.msra.mxu0 0.0
      %8707 = vmatpush.xpose.msra.mxu0 0.0
      %8708 = vmatpush.xpose.msra.mxu0 0.0
      %8709 = vmatpush.xpose.msra.mxu0 0.0
      %8710 = vmatpush.xpose.msra.mxu0 0.0
      %8711 = vmatpush.xpose.msra.mxu0 %v8701
      %8712 = vmatpush.xpose.msra.mxu0 %v8698
      %8713 = vmatpush.xpose.msra.mxu0 %v8695
      %8714 = vmatpush.xpose.msra.mxu0 %v8692
      %8715 = vmatpush.xpose.msra.mxu0 %v8689
      %8716 = vmatpush.xpose.msra.mxu0 %v8686
      %8717 = vmatpush.xpose.msra.mxu0 %v8683
      %8718 = vmatpush.xpose.msra.mxu0 %v8680
      %8719 = vmatmul.f32.gmra.mxu0 %v8656
      %v8720 = vpop.f32.mrf.mxu0
      %v8721 = vadd.f32 %v8647, %v8720
      %8722 = vmatmul.f32.gmra.mxu0 %v8659
      %v8723 = vpop.f32.mrf.mxu0
      %v8724 = vadd.f32 %v8648, %v8723
      %8725 = vmatmul.f32.gmra.mxu0 %v8662
      %v8726 = vpop.f32.mrf.mxu0
      %v8727 = vadd.f32 %v8649, %v8726
      %8728 = vmatmul.f32.gmra.mxu0 %v8665
      %v8729 = vpop.f32.mrf.mxu0
      %v8730 = vadd.f32 %v8650, %v8729
      %8731 = vmatmul.f32.gmra.mxu0 %v8668
      %v8732 = vpop.f32.mrf.mxu0
      %v8733 = vadd.f32 %v8651, %v8732
      %8734 = vmatmul.f32.gmra.mxu0 %v8671
      %v8735 = vpop.f32.mrf.mxu0
      %v8736 = vadd.f32 %v8652, %v8735
      %8737 = vmatmul.f32.gmra.mxu0 %v8674
      %v8738 = vpop.f32.mrf.mxu0
      %v8739 = vadd.f32 %v8653, %v8738
      %8740 = vmatmul.f32.gmra.mxu0 %v8677
      %v8741 = vpop.f32.mrf.mxu0
      %v8742 = vadd.f32 %v8654, %v8741
      %8743 = vdwg.mxu0
      %v8744 = vsel %vm665, %v8721, -inf
      %8745 = vmax.xlane.f32.xlu0 %v8744
      %v8746 = vpop.xlane.xlu0 %8745
      %v8747 = vsel %vm665, %v8724, -inf
      %8748 = vmax.xlane.f32.xlu0 %v8747
      %v8749 = vpop.xlane.xlu0 %8748
      %v8750 = vsel %vm665, %v8727, -inf
      %8751 = vmax.xlane.f32.xlu0 %v8750
      %v8752 = vpop.xlane.xlu0 %8751
      %v8753 = vsel %vm665, %v8730, -inf
      %8754 = vmax.xlane.f32.xlu0 %v8753
      %v8755 = vpop.xlane.xlu0 %8754
      %v8756 = vsel %vm665, %v8733, -inf
      %8757 = vmax.xlane.f32.xlu0 %v8756
      %v8758 = vpop.xlane.xlu0 %8757
      %v8759 = vsel %vm665, %v8736, -inf
      %8760 = vmax.xlane.f32.xlu0 %v8759
      %v8761 = vpop.xlane.xlu0 %8760
      %v8762 = vsel %vm665, %v8739, -inf
      %8763 = vmax.xlane.f32.xlu0 %v8762
      %v8764 = vpop.xlane.xlu0 %8763
      %v8765 = vsel %vm665, %v8742, -inf
      %8766 = vmax.xlane.f32.xlu0 %v8765
      %v8767 = vpop.xlane.xlu0 %8766
      %v8768 = vsub.f32 %v8721, %v8746
      %v8769 = vsub.f32 %v8724, %v8749
      %v8770 = vsub.f32 %v8727, %v8752
      %v8771 = vsub.f32 %v8730, %v8755
      %v8772 = vsub.f32 %v8733, %v8758
      %v8773 = vsub.f32 %v8736, %v8761
      %v8774 = vsub.f32 %v8739, %v8764
      %v8775 = vsub.f32 %v8742, %v8767
      %v8776 = vmul.f32 %v8768, 1.442695
      %v8777 = vpow.pop %v8776
      %v8778 = vmul.f32 %v8769, 1.442695
      %v8779 = vpow.pop %v8778
      %v8780 = vmul.f32 %v8770, 1.442695
      %v8781 = vpow.pop %v8780
      %v8782 = vmul.f32 %v8771, 1.442695
      %v8783 = vpow.pop %v8782
      %v8784 = vmul.f32 %v8772, 1.442695
      %v8785 = vpow.pop %v8784
      %v8786 = vmul.f32 %v8773, 1.442695
      %v8787 = vpow.pop %v8786
      %v8788 = vmul.f32 %v8774, 1.442695
      %v8789 = vpow.pop %v8788
      %v8790 = vmul.f32 %v8775, 1.442695
      %v8791 = vpow.pop %v8790
      %v8792 = vsel %vm665, %v8777, 0.0
      %8793 = vadd.xlane.f32.xlu0 %v8792
      %v8794 = vpop.xlane.xlu0 %8793
      %v8795 = vsel %vm665, %v8779, 0.0
      %8796 = vadd.xlane.f32.xlu0 %v8795
      %v8797 = vpop.xlane.xlu0 %8796
      %v8798 = vsel %vm665, %v8781, 0.0
      %8799 = vadd.xlane.f32.xlu0 %v8798
      %v8800 = vpop.xlane.xlu0 %8799
      %v8801 = vsel %vm665, %v8783, 0.0
      %8802 = vadd.xlane.f32.xlu0 %v8801
      %v8803 = vpop.xlane.xlu0 %8802
      %v8804 = vsel %vm665, %v8785, 0.0
      %8805 = vadd.xlane.f32.xlu0 %v8804
      %v8806 = vpop.xlane.xlu0 %8805
      %v8807 = vsel %vm665, %v8787, 0.0
      %8808 = vadd.xlane.f32.xlu0 %v8807
      %v8809 = vpop.xlane.xlu0 %8808
      %v8810 = vsel %vm665, %v8789, 0.0
      %8811 = vadd.xlane.f32.xlu0 %v8810
      %v8812 = vpop.xlane.xlu0 %8811
      %v8813 = vsel %vm665, %v8791, 0.0
      %8814 = vadd.xlane.f32.xlu0 %v8813
      %v8815 = vpop.xlane.xlu0 %8814
      %v8816 = vrcp.pop %v8794
      %v8817 = vmul.f32 %v8794, %v8816
      %v8818 = vsub.f32 1.0, %v8817
      %v8819 = vmul.f32 %v8816, %v8818
      %v8820 = vadd.f32 %v8816, %v8819
      %vm8821 = vweird.f32 %v8794
      %vm8822 = vweird.f32 %v8816
      %vm8823 = vmor %vm8821, %vm8822
      %v8824 = vsel %vm8823, %v8816, %v8820
      %v8825 = vand.u32 2147483647, %v8794
      %vm8826 = vcmp.eq.f32.partialorder %v8825, 8.507059e+37
      %v8827 = vand.u32 %v8794, 2147483648
      %v8828 = vor.u32 1.1754944e-38, %v8827
      %v8829 = vsel %vm8826, %v8828, %v8824
      %v8830 = vmul.f32 %v8777, %v8829
      %v8831 = vrcp.pop %v8797
      %v8832 = vmul.f32 %v8797, %v8831
      %v8833 = vsub.f32 1.0, %v8832
      %v8834 = vmul.f32 %v8831, %v8833
      %v8835 = vadd.f32 %v8831, %v8834
      %vm8836 = vweird.f32 %v8797
      %vm8837 = vweird.f32 %v8831
      %vm8838 = vmor %vm8836, %vm8837
      %v8839 = vsel %vm8838, %v8831, %v8835
      %v8840 = vand.u32 2147483647, %v8797
      %vm8841 = vcmp.eq.f32.partialorder %v8840, 8.507059e+37
      %v8842 = vand.u32 %v8797, 2147483648
      %v8843 = vor.u32 1.1754944e-38, %v8842
      %v8844 = vsel %vm8841, %v8843, %v8839
      %v8845 = vmul.f32 %v8779, %v8844
      %v8846 = vrcp.pop %v8800
      %v8847 = vmul.f32 %v8800, %v8846
      %v8848 = vsub.f32 1.0, %v8847
      %v8849 = vmul.f32 %v8846, %v8848
      %v8850 = vadd.f32 %v8846, %v8849
      %vm8851 = vweird.f32 %v8800
      %vm8852 = vweird.f32 %v8846
      %vm8853 = vmor %vm8851, %vm8852
      %v8854 = vsel %vm8853, %v8846, %v8850
      %v8855 = vand.u32 2147483647, %v8800
      %vm8856 = vcmp.eq.f32.partialorder %v8855, 8.507059e+37
      %v8857 = vand.u32 %v8800, 2147483648
      %v8858 = vor.u32 1.1754944e-38, %v8857
      %v8859 = vsel %vm8856, %v8858, %v8854
      %v8860 = vmul.f32 %v8781, %v8859
      %v8861 = vrcp.pop %v8803
      %v8862 = vmul.f32 %v8803, %v8861
      %v8863 = vsub.f32 1.0, %v8862
      %v8864 = vmul.f32 %v8861, %v8863
      %v8865 = vadd.f32 %v8861, %v8864
      %vm8866 = vweird.f32 %v8803
      %vm8867 = vweird.f32 %v8861
      %vm8868 = vmor %vm8866, %vm8867
      %v8869 = vsel %vm8868, %v8861, %v8865
      %v8870 = vand.u32 2147483647, %v8803
      %vm8871 = vcmp.eq.f32.partialorder %v8870, 8.507059e+37
      %v8872 = vand.u32 %v8803, 2147483648
      %v8873 = vor.u32 1.1754944e-38, %v8872
      %v8874 = vsel %vm8871, %v8873, %v8869
      %v8875 = vmul.f32 %v8783, %v8874
      %v8876 = vrcp.pop %v8806
      %v8877 = vmul.f32 %v8806, %v8876
      %v8878 = vsub.f32 1.0, %v8877
      %v8879 = vmul.f32 %v8876, %v8878
      %v8880 = vadd.f32 %v8876, %v8879
      %vm8881 = vweird.f32 %v8806
      %vm8882 = vweird.f32 %v8876
      %vm8883 = vmor %vm8881, %vm8882
      %v8884 = vsel %vm8883, %v8876, %v8880
      %v8885 = vand.u32 2147483647, %v8806
      %vm8886 = vcmp.eq.f32.partialorder %v8885, 8.507059e+37
      %v8887 = vand.u32 %v8806, 2147483648
      %v8888 = vor.u32 1.1754944e-38, %v8887
      %v8889 = vsel %vm8886, %v8888, %v8884
      %v8890 = vmul.f32 %v8785, %v8889
      %v8891 = vrcp.pop %v8809
      %v8892 = vmul.f32 %v8809, %v8891
      %v8893 = vsub.f32 1.0, %v8892
      %v8894 = vmul.f32 %v8891, %v8893
      %v8895 = vadd.f32 %v8891, %v8894
      %vm8896 = vweird.f32 %v8809
      %vm8897 = vweird.f32 %v8891
      %vm8898 = vmor %vm8896, %vm8897
      %v8899 = vsel %vm8898, %v8891, %v8895
      %v8900 = vand.u32 2147483647, %v8809
      %vm8901 = vcmp.eq.f32.partialorder %v8900, 8.507059e+37
      %v8902 = vand.u32 %v8809, 2147483648
      %v8903 = vor.u32 1.1754944e-38, %v8902
      %v8904 = vsel %vm8901, %v8903, %v8899
      %v8905 = vmul.f32 %v8787, %v8904
      %v8906 = vrcp.pop %v8812
      %v8907 = vmul.f32 %v8812, %v8906
      %v8908 = vsub.f32 1.0, %v8907
      %v8909 = vmul.f32 %v8906, %v8908
      %v8910 = vadd.f32 %v8906, %v8909
      %vm8911 = vweird.f32 %v8812
      %vm8912 = vweird.f32 %v8906
      %vm8913 = vmor %vm8911, %vm8912
      %v8914 = vsel %vm8913, %v8906, %v8910
      %v8915 = vand.u32 2147483647, %v8812
      %vm8916 = vcmp.eq.f32.partialorder %v8915, 8.507059e+37
      %v8917 = vand.u32 %v8812, 2147483648
      %v8918 = vor.u32 1.1754944e-38, %v8917
      %v8919 = vsel %vm8916, %v8918, %v8914
      %v8920 = vmul.f32 %v8789, %v8919
      %v8921 = vrcp.pop %v8815
      %v8922 = vmul.f32 %v8815, %v8921
      %v8923 = vsub.f32 1.0, %v8922
      %v8924 = vmul.f32 %v8921, %v8923
      %v8925 = vadd.f32 %v8921, %v8924
      %vm8926 = vweird.f32 %v8815
      %vm8927 = vweird.f32 %v8921
      %vm8928 = vmor %vm8926, %vm8927
      %v8929 = vsel %vm8928, %v8921, %v8925
      %v8930 = vand.u32 2147483647, %v8815
      %vm8931 = vcmp.eq.f32.partialorder %v8930, 8.507059e+37
      %v8932 = vand.u32 %v8815, 2147483648
      %v8933 = vor.u32 1.1754944e-38, %v8932
      %v8934 = vsel %vm8931, %v8933, %v8929
      %v8935 = vmul.f32 %v8791, %v8934
      %v8937 = vsel %vm665, %v8830, 0
      %v8940 = vsel %vm665, %v8845, 0
      %v8943 = vsel %vm665, %v8860, 0
      %v8946 = vsel %vm665, %v8875, 0
      %v8949 = vsel %vm665, %v8890, 0
      %v8952 = vsel %vm665, %v8905, 0
      %v8955 = vsel %vm665, %v8920, 0
      %v8958 = vsel %vm665, %v8935, 0
      %8960 = vmatpush.msra.mxu0 0.0
      %8961 = vmatpush.msra.mxu0 0.0
      %8962 = vmatpush.msra.mxu0 0.0
      %8963 = vmatpush.msra.mxu0 0.0
      %8964 = vmatpush.msra.mxu0 0.0
      %8965 = vmatpush.msra.mxu0 0.0
      %8966 = vmatpush.msra.mxu0 0.0
      %8967 = vmatpush.msra.mxu0 0.0
      %8968 = vmatpush.msra.mxu0 %v8637
      %8969 = vmatpush.msra.mxu0 %v8634
      %8970 = vmatpush.msra.mxu0 %v8631
      %8971 = vmatpush.msra.mxu0 %v8628
      %8972 = vmatpush.msra.mxu0 %v8625
      %8973 = vmatpush.msra.mxu0 %v8622
      %8974 = vmatpush.msra.mxu0 %v8619
      %8975 = vmatpush.msra.mxu0 %v8616
      %8976 = vmatmul.f32.gmra.mxu0 %v8937
      %v8977 = vpop.f32.mrf.mxu0
      %v8978 = vadd.f32 0.0, %v8977
      %8979 = vmatmul.f32.gmra.mxu0 %v8940
      %v8980 = vpop.f32.mrf.mxu0
      %v8981 = vadd.f32 0.0, %v8980
      %8982 = vmatmul.f32.gmra.mxu0 %v8943
      %v8983 = vpop.f32.mrf.mxu0
      %v8984 = vadd.f32 0.0, %v8983
      %8985 = vmatmul.f32.gmra.mxu0 %v8946
      %v8986 = vpop.f32.mrf.mxu0
      %v8987 = vadd.f32 0.0, %v8986
      %8988 = vmatmul.f32.gmra.mxu0 %v8949
      %v8989 = vpop.f32.mrf.mxu0
      %v8990 = vadd.f32 0.0, %v8989
      %8991 = vmatmul.f32.gmra.mxu0 %v8952
      %v8992 = vpop.f32.mrf.mxu0
      %v8993 = vadd.f32 0.0, %v8992
      %8994 = vmatmul.f32.gmra.mxu0 %v8955
      %v8995 = vpop.f32.mrf.mxu0
      %v8996 = vadd.f32 0.0, %v8995
      %8997 = vmatmul.f32.gmra.mxu0 %v8958
      %v8998 = vpop.f32.mrf.mxu0
      %v8999 = vadd.f32 0.0, %v8998
      %9000 = vdwg.mxu0
      %v9001 = vld [vmem:[%s1479] sm:$0xff]
      %v9002 = vld [vmem:[%s1479 + $0x8] sm:$0xff]
      %v9003 = vld [vmem:[%s1479 + $0x10] sm:$0xff]
      %v9004 = vld [vmem:[%s1479 + $0x18] sm:$0xff]
      %v9006 = vsel %vm575, %v8978, 0
      %v9009 = vsel %vm575, %v8981, 0
      %v9012 = vsel %vm575, %v8984, 0
      %v9015 = vsel %vm575, %v8987, 0
      %v9018 = vsel %vm575, %v8990, 0
      %v9021 = vsel %vm575, %v8993, 0
      %v9024 = vsel %vm575, %v8996, 0
      %v9027 = vsel %vm575, %v8999, 0
      %9029 = vmatpush.msra.mxu0 0.0
      %9030 = vmatpush.msra.mxu0 0.0
      %9031 = vmatpush.msra.mxu0 0.0
      %9032 = vmatpush.msra.mxu0 0.0
      %9033 = vmatpush.msra.mxu0 0.0
      %9034 = vmatpush.msra.mxu0 0.0
      %9035 = vmatpush.msra.mxu0 0.0
      %9036 = vmatpush.msra.mxu0 0.0
      %9037 = vmatpush.msra.mxu0 0.0
      %9038 = vmatpush.msra.mxu0 0.0
      %9039 = vmatpush.msra.mxu0 0.0
      %9040 = vmatpush.msra.mxu0 0.0
      %9041 = vmatpush.msra.mxu0 %v9004
      %9042 = vmatpush.msra.mxu0 %v9003
      %9043 = vmatpush.msra.mxu0 %v9002
      %9044 = vmatpush.msra.mxu0 %v9001
      %9045 = vmatmul.f32.gmra.mxu0 %v9006
      %v9046 = vpop.f32.mrf.mxu0
      %v9047 = vadd.f32 0.0, %v9046
      %9048 = vmatmul.f32.gmra.mxu0 %v9009
      %v9049 = vpop.f32.mrf.mxu0
      %v9050 = vadd.f32 0.0, %v9049
      %9051 = vmatmul.f32.gmra.mxu0 %v9012
      %v9052 = vpop.f32.mrf.mxu0
      %v9053 = vadd.f32 0.0, %v9052
      %9054 = vmatmul.f32.gmra.mxu0 %v9015
      %v9055 = vpop.f32.mrf.mxu0
      %v9056 = vadd.f32 0.0, %v9055
      %9057 = vmatmul.f32.gmra.mxu0 %v9018
      %v9058 = vpop.f32.mrf.mxu0
      %v9059 = vadd.f32 0.0, %v9058
      %9060 = vmatmul.f32.gmra.mxu0 %v9021
      %v9061 = vpop.f32.mrf.mxu0
      %v9062 = vadd.f32 0.0, %v9061
      %9063 = vmatmul.f32.gmra.mxu0 %v9024
      %v9064 = vpop.f32.mrf.mxu0
      %v9065 = vadd.f32 0.0, %v9064
      %9066 = vmatmul.f32.gmra.mxu0 %v9027
      %v9067 = vpop.f32.mrf.mxu0
      %v9068 = vadd.f32 0.0, %v9067
      %9069 = vdwg.mxu0
      %v9071 = vsel %vm575, %v8429, 0
      %v9074 = vsel %vm575, %v8432, 0
      %v9077 = vsel %vm575, %v8435, 0
      %v9080 = vsel %vm575, %v8438, 0
      %v9083 = vsel %vm575, %v8441, 0
      %v9086 = vsel %vm575, %v8444, 0
      %v9089 = vsel %vm575, %v8447, 0
      %v9092 = vsel %vm575, %v8450, 0
      %9094 = vmatpush.msra.mxu0 0.0
      %9095 = vmatpush.msra.mxu0 0.0
      %9096 = vmatpush.msra.mxu0 0.0
      %9097 = vmatpush.msra.mxu0 0.0
      %9098 = vmatpush.msra.mxu0 0.0
      %9099 = vmatpush.msra.mxu0 0.0
      %9100 = vmatpush.msra.mxu0 0.0
      %9101 = vmatpush.msra.mxu0 0.0
      %9102 = vmatpush.msra.mxu0 0.0
      %9103 = vmatpush.msra.mxu0 0.0
      %9104 = vmatpush.msra.mxu0 0.0
      %9105 = vmatpush.msra.mxu0 0.0
      %9106 = vmatpush.msra.mxu0 %v8455
      %9107 = vmatpush.msra.mxu0 %v8454
      %9108 = vmatpush.msra.mxu0 %v8453
      %9109 = vmatpush.msra.mxu0 %v8452
      %9110 = vmatmul.f32.gmra.mxu0 %v9071
      %v9111 = vpop.f32.mrf.mxu0
      %v9112 = vadd.f32 %v9047, %v9111
      %9113 = vmatmul.f32.gmra.mxu0 %v9074
      %v9114 = vpop.f32.mrf.mxu0
      %v9115 = vadd.f32 %v9050, %v9114
      %9116 = vmatmul.f32.gmra.mxu0 %v9077
      %v9117 = vpop.f32.mrf.mxu0
      %v9118 = vadd.f32 %v9053, %v9117
      %9119 = vmatmul.f32.gmra.mxu0 %v9080
      %v9120 = vpop.f32.mrf.mxu0
      %v9121 = vadd.f32 %v9056, %v9120
      %9122 = vmatmul.f32.gmra.mxu0 %v9083
      %v9123 = vpop.f32.mrf.mxu0
      %v9124 = vadd.f32 %v9059, %v9123
      %9125 = vmatmul.f32.gmra.mxu0 %v9086
      %v9126 = vpop.f32.mrf.mxu0
      %v9127 = vadd.f32 %v9062, %v9126
      %9128 = vmatmul.f32.gmra.mxu0 %v9089
      %v9129 = vpop.f32.mrf.mxu0
      %v9130 = vadd.f32 %v9065, %v9129
      %9131 = vmatmul.f32.gmra.mxu0 %v9092
      %v9132 = vpop.f32.mrf.mxu0
      %v9133 = vadd.f32 %v9068, %v9132
      %9134 = vdwg.mxu0
      %v9135 = vld [vmem:[%s1614] sm:$0xff]
      %v9136 = vld [vmem:[%s1614 + $0x8] sm:$0xff]
      %v9137 = vld [vmem:[%s1614 + $0x10] sm:$0xff]
      %v9138 = vld [vmem:[%s1614 + $0x18] sm:$0xff]
      %v9139 = vld [vmem:[%s1614 + $0x20] sm:$0xff]
      %v9140 = vld [vmem:[%s1614 + $0x28] sm:$0xff]
      %v9141 = vld [vmem:[%s1614 + $0x30] sm:$0xff]
      %v9142 = vld [vmem:[%s1614 + $0x38] sm:$0xff]
      %v9143 = vld [vmem:[%s1614 + $0x40] sm:$0xff]
      %v9144 = vld [vmem:[%s1614 + $0x48] sm:$0xff]
      %v9145 = vld [vmem:[%s1614 + $0x50] sm:$0xff]
      %v9146 = vld [vmem:[%s1614 + $0x58] sm:$0xff]
      %v9147 = vld [vmem:[%s1614 + $0x60] sm:$0xff]
      %v9148 = vld [vmem:[%s1614 + $0x68] sm:$0xff]
      %v9149 = vld [vmem:[%s1614 + $0x70] sm:$0xff]
      %v9150 = vld [vmem:[%s1614 + $0x78] sm:$0xff]
      %v9151 = vld [vmem:[%s1631] sm:$0x1]
      %v9153 = vperm.slane %v9151, 0
      %9155 = vmatpush.msra.mxu0 %v9150
      %9156 = vmatpush.msra.mxu0 %v9149
      %9157 = vmatpush.msra.mxu0 %v9148
      %9158 = vmatpush.msra.mxu0 %v9147
      %9159 = vmatpush.msra.mxu0 %v9146
      %9160 = vmatpush.msra.mxu0 %v9145
      %9161 = vmatpush.msra.mxu0 %v9144
      %9162 = vmatpush.msra.mxu0 %v9143
      %9163 = vmatpush.msra.mxu0 %v9142
      %9164 = vmatpush.msra.mxu0 %v9141
      %9165 = vmatpush.msra.mxu0 %v9140
      %9166 = vmatpush.msra.mxu0 %v9139
      %9167 = vmatpush.msra.mxu0 %v9138
      %9168 = vmatpush.msra.mxu0 %v9137
      %9169 = vmatpush.msra.mxu0 %v9136
      %9170 = vmatpush.msra.mxu0 %v9135
      %9171 = vmatmul.f32.gmra.mxu0 %v7899
      %v9172 = vpop.f32.mrf.mxu0
      %v9173 = vadd.f32 %v9153, %v9172
      %9174 = vmatmul.f32.gmra.mxu0 %v7900
      %v9175 = vpop.f32.mrf.mxu0
      %v9176 = vadd.f32 %v9153, %v9175
      %9177 = vmatmul.f32.gmra.mxu0 %v7901
      %v9178 = vpop.f32.mrf.mxu0
      %v9179 = vadd.f32 %v9153, %v9178
      %9180 = vmatmul.f32.gmra.mxu0 %v7902
      %v9181 = vpop.f32.mrf.mxu0
      %v9182 = vadd.f32 %v9153, %v9181
      %9183 = vmatmul.f32.gmra.mxu0 %v7903
      %v9184 = vpop.f32.mrf.mxu0
      %v9185 = vadd.f32 %v9153, %v9184
      %9186 = vmatmul.f32.gmra.mxu0 %v7904
      %v9187 = vpop.f32.mrf.mxu0
      %v9188 = vadd.f32 %v9153, %v9187
      %9189 = vmatmul.f32.gmra.mxu0 %v7905
      %v9190 = vpop.f32.mrf.mxu0
      %v9191 = vadd.f32 %v9153, %v9190
      %9192 = vmatmul.f32.gmra.mxu0 %v7906
      %v9193 = vpop.f32.mrf.mxu0
      %v9194 = vadd.f32 %v9153, %v9193
      %9195 = vdwg.mxu0
      %v9196 = vld [vmem:[%s1677] sm:$0xff]
      %v9197 = vld [vmem:[%s1677 + $0x8] sm:$0xff]
      %v9198 = vld [vmem:[%s1677 + $0x10] sm:$0xff]
      %v9199 = vld [vmem:[%s1677 + $0x18] sm:$0xff]
      %v9200 = vld [vmem:[%s1677 + $0x20] sm:$0xff]
      %v9201 = vld [vmem:[%s1677 + $0x28] sm:$0xff]
      %v9202 = vld [vmem:[%s1677 + $0x30] sm:$0xff]
      %v9203 = vld [vmem:[%s1677 + $0x38] sm:$0xff]
      %v9204 = vld [vmem:[%s1677 + $0x40] sm:$0xff]
      %v9205 = vld [vmem:[%s1677 + $0x48] sm:$0xff]
      %v9206 = vld [vmem:[%s1677 + $0x50] sm:$0xff]
      %v9207 = vld [vmem:[%s1677 + $0x58] sm:$0xff]
      %v9208 = vld [vmem:[%s1677 + $0x60] sm:$0xff]
      %v9209 = vld [vmem:[%s1677 + $0x68] sm:$0xff]
      %v9210 = vld [vmem:[%s1677 + $0x70] sm:$0xff]
      %v9211 = vld [vmem:[%s1677 + $0x78] sm:$0xff]
      %v9212 = vld [vmem:[%s1694] sm:$0x1]
      %v9214 = vperm.slane %v9212, 0
      %9216 = vmatpush.msra.mxu0 %v9211
      %9217 = vmatpush.msra.mxu0 %v9210
      %9218 = vmatpush.msra.mxu0 %v9209
      %9219 = vmatpush.msra.mxu0 %v9208
      %9220 = vmatpush.msra.mxu0 %v9207
      %9221 = vmatpush.msra.mxu0 %v9206
      %9222 = vmatpush.msra.mxu0 %v9205
      %9223 = vmatpush.msra.mxu0 %v9204
      %9224 = vmatpush.msra.mxu0 %v9203
      %9225 = vmatpush.msra.mxu0 %v9202
      %9226 = vmatpush.msra.mxu0 %v9201
      %9227 = vmatpush.msra.mxu0 %v9200
      %9228 = vmatpush.msra.mxu0 %v9199
      %9229 = vmatpush.msra.mxu0 %v9198
      %9230 = vmatpush.msra.mxu0 %v9197
      %9231 = vmatpush.msra.mxu0 %v9196
      %9232 = vmatmul.f32.gmra.mxu0 %v7899
      %v9233 = vpop.f32.mrf.mxu0
      %v9234 = vadd.f32 %v9214, %v9233
      %9235 = vmatmul.f32.gmra.mxu0 %v7900
      %v9236 = vpop.f32.mrf.mxu0
      %v9237 = vadd.f32 %v9214, %v9236
      %9238 = vmatmul.f32.gmra.mxu0 %v7901
      %v9239 = vpop.f32.mrf.mxu0
      %v9240 = vadd.f32 %v9214, %v9239
      %9241 = vmatmul.f32.gmra.mxu0 %v7902
      %v9242 = vpop.f32.mrf.mxu0
      %v9243 = vadd.f32 %v9214, %v9242
      %9244 = vmatmul.f32.gmra.mxu0 %v7903
      %v9245 = vpop.f32.mrf.mxu0
      %v9246 = vadd.f32 %v9214, %v9245
      %9247 = vmatmul.f32.gmra.mxu0 %v7904
      %v9248 = vpop.f32.mrf.mxu0
      %v9249 = vadd.f32 %v9214, %v9248
      %9250 = vmatmul.f32.gmra.mxu0 %v7905
      %v9251 = vpop.f32.mrf.mxu0
      %v9252 = vadd.f32 %v9214, %v9251
      %9253 = vmatmul.f32.gmra.mxu0 %v7906
      %v9254 = vpop.f32.mrf.mxu0
      %v9255 = vadd.f32 %v9214, %v9254
      %9256 = vdwg.mxu0
      %v9257 = vld [vmem:[%s1740] sm:$0xff]
      %v9258 = vld [vmem:[%s1740 + $0x8] sm:$0xff]
      %v9259 = vld [vmem:[%s1740 + $0x10] sm:$0xff]
      %v9260 = vld [vmem:[%s1740 + $0x18] sm:$0xff]
      %v9261 = vld [vmem:[%s1740 + $0x20] sm:$0xff]
      %v9262 = vld [vmem:[%s1740 + $0x28] sm:$0xff]
      %v9263 = vld [vmem:[%s1740 + $0x30] sm:$0xff]
      %v9264 = vld [vmem:[%s1740 + $0x38] sm:$0xff]
      %v9265 = vld [vmem:[%s1740 + $0x40] sm:$0xff]
      %v9266 = vld [vmem:[%s1740 + $0x48] sm:$0xff]
      %v9267 = vld [vmem:[%s1740 + $0x50] sm:$0xff]
      %v9268 = vld [vmem:[%s1740 + $0x58] sm:$0xff]
      %v9269 = vld [vmem:[%s1740 + $0x60] sm:$0xff]
      %v9270 = vld [vmem:[%s1740 + $0x68] sm:$0xff]
      %v9271 = vld [vmem:[%s1740 + $0x70] sm:$0xff]
      %v9272 = vld [vmem:[%s1740 + $0x78] sm:$0xff]
      %v9273 = vld [vmem:[%s1757] sm:$0x1]
      %v9275 = vperm.slane %v9273, 0
      %9277 = vmatpush.msra.mxu0 %v9272
      %9278 = vmatpush.msra.mxu0 %v9271
      %9279 = vmatpush.msra.mxu0 %v9270
      %9280 = vmatpush.msra.mxu0 %v9269
      %9281 = vmatpush.msra.mxu0 %v9268
      %9282 = vmatpush.msra.mxu0 %v9267
      %9283 = vmatpush.msra.mxu0 %v9266
      %9284 = vmatpush.msra.mxu0 %v9265
      %9285 = vmatpush.msra.mxu0 %v9264
      %9286 = vmatpush.msra.mxu0 %v9263
      %9287 = vmatpush.msra.mxu0 %v9262
      %9288 = vmatpush.msra.mxu0 %v9261
      %9289 = vmatpush.msra.mxu0 %v9260
      %9290 = vmatpush.msra.mxu0 %v9259
      %9291 = vmatpush.msra.mxu0 %v9258
      %9292 = vmatpush.msra.mxu0 %v9257
      %9293 = vmatmul.f32.gmra.mxu0 %v7899
      %v9294 = vpop.f32.mrf.mxu0
      %v9295 = vadd.f32 %v9275, %v9294
      %9296 = vmatmul.f32.gmra.mxu0 %v7900
      %v9297 = vpop.f32.mrf.mxu0
      %v9298 = vadd.f32 %v9275, %v9297
      %9299 = vmatmul.f32.gmra.mxu0 %v7901
      %v9300 = vpop.f32.mrf.mxu0
      %v9301 = vadd.f32 %v9275, %v9300
      %9302 = vmatmul.f32.gmra.mxu0 %v7902
      %v9303 = vpop.f32.mrf.mxu0
      %v9304 = vadd.f32 %v9275, %v9303
      %9305 = vmatmul.f32.gmra.mxu0 %v7903
      %v9306 = vpop.f32.mrf.mxu0
      %v9307 = vadd.f32 %v9275, %v9306
      %9308 = vmatmul.f32.gmra.mxu0 %v7904
      %v9309 = vpop.f32.mrf.mxu0
      %v9310 = vadd.f32 %v9275, %v9309
      %9311 = vmatmul.f32.gmra.mxu0 %v7905
      %v9312 = vpop.f32.mrf.mxu0
      %v9313 = vadd.f32 %v9275, %v9312
      %9314 = vmatmul.f32.gmra.mxu0 %v7906
      %v9315 = vpop.f32.mrf.mxu0
      %v9316 = vadd.f32 %v9275, %v9315
      %9317 = vdwg.mxu0
      %v9318 = vmul.f32 %v9173, 0.17677669
      %v9319 = vmul.f32 %v9176, 0.17677669
      %v9320 = vmul.f32 %v9179, 0.17677669
      %v9321 = vmul.f32 %v9182, 0.17677669
      %v9322 = vmul.f32 %v9185, 0.17677669
      %v9323 = vmul.f32 %v9188, 0.17677669
      %v9324 = vmul.f32 %v9191, 0.17677669
      %v9325 = vmul.f32 %v9194, 0.17677669
      %v9326 = vld [vmem:[%s1811] sm:$0xff]
      %v9327 = vld [vmem:[%s1811 + $0x8] sm:$0xff]
      %v9328 = vld [vmem:[%s1811 + $0x10] sm:$0xff]
      %v9329 = vld [vmem:[%s1811 + $0x18] sm:$0xff]
      %v9330 = vld [vmem:[%s1811 + $0x20] sm:$0xff]
      %v9331 = vld [vmem:[%s1811 + $0x28] sm:$0xff]
      %v9332 = vld [vmem:[%s1811 + $0x30] sm:$0xff]
      %v9333 = vld [vmem:[%s1811 + $0x38] sm:$0xff]
      %v9335 = vsel %vm575, %v9318, 0
      %v9338 = vsel %vm575, %v9319, 0
      %v9341 = vsel %vm575, %v9320, 0
      %v9344 = vsel %vm575, %v9321, 0
      %v9347 = vsel %vm575, %v9322, 0
      %v9350 = vsel %vm575, %v9323, 0
      %v9353 = vsel %vm575, %v9324, 0
      %v9356 = vsel %vm575, %v9325, 0
      %v9359 = vsel %vm575, %v9234, 0
      %v9362 = vsel %vm575, %v9237, 0
      %v9365 = vsel %vm575, %v9240, 0
      %v9368 = vsel %vm575, %v9243, 0
      %v9371 = vsel %vm575, %v9246, 0
      %v9374 = vsel %vm575, %v9249, 0
      %v9377 = vsel %vm575, %v9252, 0
      %v9380 = vsel %vm575, %v9255, 0
      %9382 = vmatpush.xpose.msra.mxu0 0.0
      %9383 = vmatpush.xpose.msra.mxu0 0.0
      %9384 = vmatpush.xpose.msra.mxu0 0.0
      %9385 = vmatpush.xpose.msra.mxu0 0.0
      %9386 = vmatpush.xpose.msra.mxu0 0.0
      %9387 = vmatpush.xpose.msra.mxu0 0.0
      %9388 = vmatpush.xpose.msra.mxu0 0.0
      %9389 = vmatpush.xpose.msra.mxu0 0.0
      %9390 = vmatpush.xpose.msra.mxu0 %v9380
      %9391 = vmatpush.xpose.msra.mxu0 %v9377
      %9392 = vmatpush.xpose.msra.mxu0 %v9374
      %9393 = vmatpush.xpose.msra.mxu0 %v9371
      %9394 = vmatpush.xpose.msra.mxu0 %v9368
      %9395 = vmatpush.xpose.msra.mxu0 %v9365
      %9396 = vmatpush.xpose.msra.mxu0 %v9362
      %9397 = vmatpush.xpose.msra.mxu0 %v9359
      %9398 = vmatmul.f32.gmra.mxu0 %v9335
      %v9399 = vpop.f32.mrf.mxu0
      %v9400 = vadd.f32 %v9326, %v9399
      %9401 = vmatmul.f32.gmra.mxu0 %v9338
      %v9402 = vpop.f32.mrf.mxu0
      %v9403 = vadd.f32 %v9327, %v9402
      %9404 = vmatmul.f32.gmra.mxu0 %v9341
      %v9405 = vpop.f32.mrf.mxu0
      %v9406 = vadd.f32 %v9328, %v9405
      %9407 = vmatmul.f32.gmra.mxu0 %v9344
      %v9408 = vpop.f32.mrf.mxu0
      %v9409 = vadd.f32 %v9329, %v9408
      %9410 = vmatmul.f32.gmra.mxu0 %v9347
      %v9411 = vpop.f32.mrf.mxu0
      %v9412 = vadd.f32 %v9330, %v9411
      %9413 = vmatmul.f32.gmra.mxu0 %v9350
      %v9414 = vpop.f32.mrf.mxu0
      %v9415 = vadd.f32 %v9331, %v9414
      %9416 = vmatmul.f32.gmra.mxu0 %v9353
      %v9417 = vpop.f32.mrf.mxu0
      %v9418 = vadd.f32 %v9332, %v9417
      %9419 = vmatmul.f32.gmra.mxu0 %v9356
      %v9420 = vpop.f32.mrf.mxu0
      %v9421 = vadd.f32 %v9333, %v9420
      %9422 = vdwg.mxu0
      %v9423 = vsel %vm665, %v9400, -inf
      %9424 = vmax.xlane.f32.xlu0 %v9423
      %v9425 = vpop.xlane.xlu0 %9424
      %v9426 = vsel %vm665, %v9403, -inf
      %9427 = vmax.xlane.f32.xlu0 %v9426
      %v9428 = vpop.xlane.xlu0 %9427
      %v9429 = vsel %vm665, %v9406, -inf
      %9430 = vmax.xlane.f32.xlu0 %v9429
      %v9431 = vpop.xlane.xlu0 %9430
      %v9432 = vsel %vm665, %v9409, -inf
      %9433 = vmax.xlane.f32.xlu0 %v9432
      %v9434 = vpop.xlane.xlu0 %9433
      %v9435 = vsel %vm665, %v9412, -inf
      %9436 = vmax.xlane.f32.xlu0 %v9435
      %v9437 = vpop.xlane.xlu0 %9436
      %v9438 = vsel %vm665, %v9415, -inf
      %9439 = vmax.xlane.f32.xlu0 %v9438
      %v9440 = vpop.xlane.xlu0 %9439
      %v9441 = vsel %vm665, %v9418, -inf
      %9442 = vmax.xlane.f32.xlu0 %v9441
      %v9443 = vpop.xlane.xlu0 %9442
      %v9444 = vsel %vm665, %v9421, -inf
      %9445 = vmax.xlane.f32.xlu0 %v9444
      %v9446 = vpop.xlane.xlu0 %9445
      %v9447 = vsub.f32 %v9400, %v9425
      %v9448 = vsub.f32 %v9403, %v9428
      %v9449 = vsub.f32 %v9406, %v9431
      %v9450 = vsub.f32 %v9409, %v9434
      %v9451 = vsub.f32 %v9412, %v9437
      %v9452 = vsub.f32 %v9415, %v9440
      %v9453 = vsub.f32 %v9418, %v9443
      %v9454 = vsub.f32 %v9421, %v9446
      %v9455 = vmul.f32 %v9447, 1.442695
      %v9456 = vpow.pop %v9455
      %v9457 = vmul.f32 %v9448, 1.442695
      %v9458 = vpow.pop %v9457
      %v9459 = vmul.f32 %v9449, 1.442695
      %v9460 = vpow.pop %v9459
      %v9461 = vmul.f32 %v9450, 1.442695
      %v9462 = vpow.pop %v9461
      %v9463 = vmul.f32 %v9451, 1.442695
      %v9464 = vpow.pop %v9463
      %v9465 = vmul.f32 %v9452, 1.442695
      %v9466 = vpow.pop %v9465
      %v9467 = vmul.f32 %v9453, 1.442695
      %v9468 = vpow.pop %v9467
      %v9469 = vmul.f32 %v9454, 1.442695
      %v9470 = vpow.pop %v9469
      %v9471 = vsel %vm665, %v9456, 0.0
      %9472 = vadd.xlane.f32.xlu0 %v9471
      %v9473 = vpop.xlane.xlu0 %9472
      %v9474 = vsel %vm665, %v9458, 0.0
      %9475 = vadd.xlane.f32.xlu0 %v9474
      %v9476 = vpop.xlane.xlu0 %9475
      %v9477 = vsel %vm665, %v9460, 0.0
      %9478 = vadd.xlane.f32.xlu0 %v9477
      %v9479 = vpop.xlane.xlu0 %9478
      %v9480 = vsel %vm665, %v9462, 0.0
      %9481 = vadd.xlane.f32.xlu0 %v9480
      %v9482 = vpop.xlane.xlu0 %9481
      %v9483 = vsel %vm665, %v9464, 0.0
      %9484 = vadd.xlane.f32.xlu0 %v9483
      %v9485 = vpop.xlane.xlu0 %9484
      %v9486 = vsel %vm665, %v9466, 0.0
      %9487 = vadd.xlane.f32.xlu0 %v9486
      %v9488 = vpop.xlane.xlu0 %9487
      %v9489 = vsel %vm665, %v9468, 0.0
      %9490 = vadd.xlane.f32.xlu0 %v9489
      %v9491 = vpop.xlane.xlu0 %9490
      %v9492 = vsel %vm665, %v9470, 0.0
      %9493 = vadd.xlane.f32.xlu0 %v9492
      %v9494 = vpop.xlane.xlu0 %9493
      %v9495 = vrcp.pop %v9473
      %v9496 = vmul.f32 %v9473, %v9495
      %v9497 = vsub.f32 1.0, %v9496
      %v9498 = vmul.f32 %v9495, %v9497
      %v9499 = vadd.f32 %v9495, %v9498
      %vm9500 = vweird.f32 %v9473
      %vm9501 = vweird.f32 %v9495
      %vm9502 = vmor %vm9500, %vm9501
      %v9503 = vsel %vm9502, %v9495, %v9499
      %v9504 = vand.u32 2147483647, %v9473
      %vm9505 = vcmp.eq.f32.partialorder %v9504, 8.507059e+37
      %v9506 = vand.u32 %v9473, 2147483648
      %v9507 = vor.u32 1.1754944e-38, %v9506
      %v9508 = vsel %vm9505, %v9507, %v9503
      %v9509 = vmul.f32 %v9456, %v9508
      %v9510 = vrcp.pop %v9476
      %v9511 = vmul.f32 %v9476, %v9510
      %v9512 = vsub.f32 1.0, %v9511
      %v9513 = vmul.f32 %v9510, %v9512
      %v9514 = vadd.f32 %v9510, %v9513
      %vm9515 = vweird.f32 %v9476
      %vm9516 = vweird.f32 %v9510
      %vm9517 = vmor %vm9515, %vm9516
      %v9518 = vsel %vm9517, %v9510, %v9514
      %v9519 = vand.u32 2147483647, %v9476
      %vm9520 = vcmp.eq.f32.partialorder %v9519, 8.507059e+37
      %v9521 = vand.u32 %v9476, 2147483648
      %v9522 = vor.u32 1.1754944e-38, %v9521
      %v9523 = vsel %vm9520, %v9522, %v9518
      %v9524 = vmul.f32 %v9458, %v9523
      %v9525 = vrcp.pop %v9479
      %v9526 = vmul.f32 %v9479, %v9525
      %v9527 = vsub.f32 1.0, %v9526
      %v9528 = vmul.f32 %v9525, %v9527
      %v9529 = vadd.f32 %v9525, %v9528
      %vm9530 = vweird.f32 %v9479
      %vm9531 = vweird.f32 %v9525
      %vm9532 = vmor %vm9530, %vm9531
      %v9533 = vsel %vm9532, %v9525, %v9529
      %v9534 = vand.u32 2147483647, %v9479
      %vm9535 = vcmp.eq.f32.partialorder %v9534, 8.507059e+37
      %v9536 = vand.u32 %v9479, 2147483648
      %v9537 = vor.u32 1.1754944e-38, %v9536
      %v9538 = vsel %vm9535, %v9537, %v9533
      %v9539 = vmul.f32 %v9460, %v9538
      %v9540 = vrcp.pop %v9482
      %v9541 = vmul.f32 %v9482, %v9540
      %v9542 = vsub.f32 1.0, %v9541
      %v9543 = vmul.f32 %v9540, %v9542
      %v9544 = vadd.f32 %v9540, %v9543
      %vm9545 = vweird.f32 %v9482
      %vm9546 = vweird.f32 %v9540
      %vm9547 = vmor %vm9545, %vm9546
      %v9548 = vsel %vm9547, %v9540, %v9544
      %v9549 = vand.u32 2147483647, %v9482
      %vm9550 = vcmp.eq.f32.partialorder %v9549, 8.507059e+37
      %v9551 = vand.u32 %v9482, 2147483648
      %v9552 = vor.u32 1.1754944e-38, %v9551
      %v9553 = vsel %vm9550, %v9552, %v9548
      %v9554 = vmul.f32 %v9462, %v9553
      %v9555 = vrcp.pop %v9485
      %v9556 = vmul.f32 %v9485, %v9555
      %v9557 = vsub.f32 1.0, %v9556
      %v9558 = vmul.f32 %v9555, %v9557
      %v9559 = vadd.f32 %v9555, %v9558
      %vm9560 = vweird.f32 %v9485
      %vm9561 = vweird.f32 %v9555
      %vm9562 = vmor %vm9560, %vm9561
      %v9563 = vsel %vm9562, %v9555, %v9559
      %v9564 = vand.u32 2147483647, %v9485
      %vm9565 = vcmp.eq.f32.partialorder %v9564, 8.507059e+37
      %v9566 = vand.u32 %v9485, 2147483648
      %v9567 = vor.u32 1.1754944e-38, %v9566
      %v9568 = vsel %vm9565, %v9567, %v9563
      %v9569 = vmul.f32 %v9464, %v9568
      %v9570 = vrcp.pop %v9488
      %v9571 = vmul.f32 %v9488, %v9570
      %v9572 = vsub.f32 1.0, %v9571
      %v9573 = vmul.f32 %v9570, %v9572
      %v9574 = vadd.f32 %v9570, %v9573
      %vm9575 = vweird.f32 %v9488
      %vm9576 = vweird.f32 %v9570
      %vm9577 = vmor %vm9575, %vm9576
      %v9578 = vsel %vm9577, %v9570, %v9574
      %v9579 = vand.u32 2147483647, %v9488
      %vm9580 = vcmp.eq.f32.partialorder %v9579, 8.507059e+37
      %v9581 = vand.u32 %v9488, 2147483648
      %v9582 = vor.u32 1.1754944e-38, %v9581
      %v9583 = vsel %vm9580, %v9582, %v9578
      %v9584 = vmul.f32 %v9466, %v9583
      %v9585 = vrcp.pop %v9491
      %v9586 = vmul.f32 %v9491, %v9585
      %v9587 = vsub.f32 1.0, %v9586
      %v9588 = vmul.f32 %v9585, %v9587
      %v9589 = vadd.f32 %v9585, %v9588
      %vm9590 = vweird.f32 %v9491
      %vm9591 = vweird.f32 %v9585
      %vm9592 = vmor %vm9590, %vm9591
      %v9593 = vsel %vm9592, %v9585, %v9589
      %v9594 = vand.u32 2147483647, %v9491
      %vm9595 = vcmp.eq.f32.partialorder %v9594, 8.507059e+37
      %v9596 = vand.u32 %v9491, 2147483648
      %v9597 = vor.u32 1.1754944e-38, %v9596
      %v9598 = vsel %vm9595, %v9597, %v9593
      %v9599 = vmul.f32 %v9468, %v9598
      %v9600 = vrcp.pop %v9494
      %v9601 = vmul.f32 %v9494, %v9600
      %v9602 = vsub.f32 1.0, %v9601
      %v9603 = vmul.f32 %v9600, %v9602
      %v9604 = vadd.f32 %v9600, %v9603
      %vm9605 = vweird.f32 %v9494
      %vm9606 = vweird.f32 %v9600
      %vm9607 = vmor %vm9605, %vm9606
      %v9608 = vsel %vm9607, %v9600, %v9604
      %v9609 = vand.u32 2147483647, %v9494
      %vm9610 = vcmp.eq.f32.partialorder %v9609, 8.507059e+37
      %v9611 = vand.u32 %v9494, 2147483648
      %v9612 = vor.u32 1.1754944e-38, %v9611
      %v9613 = vsel %vm9610, %v9612, %v9608
      %v9614 = vmul.f32 %v9470, %v9613
      %v9616 = vsel %vm665, %v9509, 0
      %v9619 = vsel %vm665, %v9524, 0
      %v9622 = vsel %vm665, %v9539, 0
      %v9625 = vsel %vm665, %v9554, 0
      %v9628 = vsel %vm665, %v9569, 0
      %v9631 = vsel %vm665, %v9584, 0
      %v9634 = vsel %vm665, %v9599, 0
      %v9637 = vsel %vm665, %v9614, 0
      %9639 = vmatpush.msra.mxu0 0.0
      %9640 = vmatpush.msra.mxu0 0.0
      %9641 = vmatpush.msra.mxu0 0.0
      %9642 = vmatpush.msra.mxu0 0.0
      %9643 = vmatpush.msra.mxu0 0.0
      %9644 = vmatpush.msra.mxu0 0.0
      %9645 = vmatpush.msra.mxu0 0.0
      %9646 = vmatpush.msra.mxu0 0.0
      %9647 = vmatpush.msra.mxu0 %v9316
      %9648 = vmatpush.msra.mxu0 %v9313
      %9649 = vmatpush.msra.mxu0 %v9310
      %9650 = vmatpush.msra.mxu0 %v9307
      %9651 = vmatpush.msra.mxu0 %v9304
      %9652 = vmatpush.msra.mxu0 %v9301
      %9653 = vmatpush.msra.mxu0 %v9298
      %9654 = vmatpush.msra.mxu0 %v9295
      %9655 = vmatmul.f32.gmra.mxu0 %v9616
      %v9656 = vpop.f32.mrf.mxu0
      %v9657 = vadd.f32 0.0, %v9656
      %9658 = vmatmul.f32.gmra.mxu0 %v9619
      %v9659 = vpop.f32.mrf.mxu0
      %v9660 = vadd.f32 0.0, %v9659
      %9661 = vmatmul.f32.gmra.mxu0 %v9622
      %v9662 = vpop.f32.mrf.mxu0
      %v9663 = vadd.f32 0.0, %v9662
      %9664 = vmatmul.f32.gmra.mxu0 %v9625
      %v9665 = vpop.f32.mrf.mxu0
      %v9666 = vadd.f32 0.0, %v9665
      %9667 = vmatmul.f32.gmra.mxu0 %v9628
      %v9668 = vpop.f32.mrf.mxu0
      %v9669 = vadd.f32 0.0, %v9668
      %9670 = vmatmul.f32.gmra.mxu0 %v9631
      %v9671 = vpop.f32.mrf.mxu0
      %v9672 = vadd.f32 0.0, %v9671
      %9673 = vmatmul.f32.gmra.mxu0 %v9634
      %v9674 = vpop.f32.mrf.mxu0
      %v9675 = vadd.f32 0.0, %v9674
      %9676 = vmatmul.f32.gmra.mxu0 %v9637
      %v9677 = vpop.f32.mrf.mxu0
      %v9678 = vadd.f32 0.0, %v9677
      %9679 = vdwg.mxu0
      %v9680 = vld [vmem:[%s2166] sm:$0xff]
      %v9681 = vld [vmem:[%s2166 + $0x8] sm:$0xff]
      %v9682 = vld [vmem:[%s2166 + $0x10] sm:$0xff]
      %v9683 = vld [vmem:[%s2166 + $0x18] sm:$0xff]
      %v9685 = vsel %vm575, %v9657, 0
      %v9688 = vsel %vm575, %v9660, 0
      %v9691 = vsel %vm575, %v9663, 0
      %v9694 = vsel %vm575, %v9666, 0
      %v9697 = vsel %vm575, %v9669, 0
      %v9700 = vsel %vm575, %v9672, 0
      %v9703 = vsel %vm575, %v9675, 0
      %v9706 = vsel %vm575, %v9678, 0
      %9708 = vmatpush.msra.mxu0 0.0
      %9709 = vmatpush.msra.mxu0 0.0
      %9710 = vmatpush.msra.mxu0 0.0
      %9711 = vmatpush.msra.mxu0 0.0
      %9712 = vmatpush.msra.mxu0 0.0
      %9713 = vmatpush.msra.mxu0 0.0
      %9714 = vmatpush.msra.mxu0 0.0
      %9715 = vmatpush.msra.mxu0 0.0
      %9716 = vmatpush.msra.mxu0 0.0
      %9717 = vmatpush.msra.mxu0 0.0
      %9718 = vmatpush.msra.mxu0 0.0
      %9719 = vmatpush.msra.mxu0 0.0
      %9720 = vmatpush.msra.mxu0 %v9683
      %9721 = vmatpush.msra.mxu0 %v9682
      %9722 = vmatpush.msra.mxu0 %v9681
      %9723 = vmatpush.msra.mxu0 %v9680
      %9724 = vmatmul.f32.gmra.mxu0 %v9685
      %v9725 = vpop.f32.mrf.mxu0
      %v9726 = vadd.f32 0.0, %v9725
      %9727 = vmatmul.f32.gmra.mxu0 %v9688
      %v9728 = vpop.f32.mrf.mxu0
      %v9729 = vadd.f32 0.0, %v9728
      %9730 = vmatmul.f32.gmra.mxu0 %v9691
      %v9731 = vpop.f32.mrf.mxu0
      %v9732 = vadd.f32 0.0, %v9731
      %9733 = vmatmul.f32.gmra.mxu0 %v9694
      %v9734 = vpop.f32.mrf.mxu0
      %v9735 = vadd.f32 0.0, %v9734
      %9736 = vmatmul.f32.gmra.mxu0 %v9697
      %v9737 = vpop.f32.mrf.mxu0
      %v9738 = vadd.f32 0.0, %v9737
      %9739 = vmatmul.f32.gmra.mxu0 %v9700
      %v9740 = vpop.f32.mrf.mxu0
      %v9741 = vadd.f32 0.0, %v9740
      %9742 = vmatmul.f32.gmra.mxu0 %v9703
      %v9743 = vpop.f32.mrf.mxu0
      %v9744 = vadd.f32 0.0, %v9743
      %9745 = vmatmul.f32.gmra.mxu0 %v9706
      %v9746 = vpop.f32.mrf.mxu0
      %v9747 = vadd.f32 0.0, %v9746
      %9748 = vdwg.mxu0
      %v9749 = vadd.f32 %v9112, %v9726
      %v9750 = vadd.f32 %v9115, %v9729
      %v9751 = vadd.f32 %v9118, %v9732
      %v9752 = vadd.f32 %v9121, %v9735
      %v9753 = vadd.f32 %v9124, %v9738
      %v9754 = vadd.f32 %v9127, %v9741
      %v9755 = vadd.f32 %v9130, %v9744
      %v9756 = vadd.f32 %v9133, %v9747
      %v9757 = vld [vmem:[%s2244] sm:$0xff]
      %v9758 = vld [vmem:[%s2244 + $0x8] sm:$0xff]
      %v9759 = vld [vmem:[%s2244 + $0x10] sm:$0xff]
      %v9760 = vld [vmem:[%s2244 + $0x18] sm:$0xff]
      %v9761 = vld [vmem:[%s2244 + $0x20] sm:$0xff]
      %v9762 = vld [vmem:[%s2244 + $0x28] sm:$0xff]
      %v9763 = vld [vmem:[%s2244 + $0x30] sm:$0xff]
      %v9764 = vld [vmem:[%s2244 + $0x38] sm:$0xff]
      %v9765 = vld [vmem:[%s2244 + $0x40] sm:$0xff]
      %v9766 = vld [vmem:[%s2244 + $0x48] sm:$0xff]
      %v9767 = vld [vmem:[%s2244 + $0x50] sm:$0xff]
      %v9768 = vld [vmem:[%s2244 + $0x58] sm:$0xff]
      %v9769 = vld [vmem:[%s2244 + $0x60] sm:$0xff]
      %v9770 = vld [vmem:[%s2244 + $0x68] sm:$0xff]
      %v9771 = vld [vmem:[%s2244 + $0x70] sm:$0xff]
      %v9772 = vld [vmem:[%s2244 + $0x78] sm:$0xff]
      %v9773 = vld [vmem:[%s2261] sm:$0x1]
      %v9775 = vperm.slane %v9773, 0
      %9777 = vmatpush.msra.mxu0 %v9772
      %9778 = vmatpush.msra.mxu0 %v9771
      %9779 = vmatpush.msra.mxu0 %v9770
      %9780 = vmatpush.msra.mxu0 %v9769
      %9781 = vmatpush.msra.mxu0 %v9768
      %9782 = vmatpush.msra.mxu0 %v9767
      %9783 = vmatpush.msra.mxu0 %v9766
      %9784 = vmatpush.msra.mxu0 %v9765
      %9785 = vmatpush.msra.mxu0 %v9764
      %9786 = vmatpush.msra.mxu0 %v9763
      %9787 = vmatpush.msra.mxu0 %v9762
      %9788 = vmatpush.msra.mxu0 %v9761
      %9789 = vmatpush.msra.mxu0 %v9760
      %9790 = vmatpush.msra.mxu0 %v9759
      %9791 = vmatpush.msra.mxu0 %v9758
      %9792 = vmatpush.msra.mxu0 %v9757
      %9793 = vmatmul.f32.gmra.mxu0 %v7899
      %v9794 = vpop.f32.mrf.mxu0
      %v9795 = vadd.f32 %v9775, %v9794
      %9796 = vmatmul.f32.gmra.mxu0 %v7900
      %v9797 = vpop.f32.mrf.mxu0
      %v9798 = vadd.f32 %v9775, %v9797
      %9799 = vmatmul.f32.gmra.mxu0 %v7901
      %v9800 = vpop.f32.mrf.mxu0
      %v9801 = vadd.f32 %v9775, %v9800
      %9802 = vmatmul.f32.gmra.mxu0 %v7902
      %v9803 = vpop.f32.mrf.mxu0
      %v9804 = vadd.f32 %v9775, %v9803
      %9805 = vmatmul.f32.gmra.mxu0 %v7903
      %v9806 = vpop.f32.mrf.mxu0
      %v9807 = vadd.f32 %v9775, %v9806
      %9808 = vmatmul.f32.gmra.mxu0 %v7904
      %v9809 = vpop.f32.mrf.mxu0
      %v9810 = vadd.f32 %v9775, %v9809
      %9811 = vmatmul.f32.gmra.mxu0 %v7905
      %v9812 = vpop.f32.mrf.mxu0
      %v9813 = vadd.f32 %v9775, %v9812
      %9814 = vmatmul.f32.gmra.mxu0 %v7906
      %v9815 = vpop.f32.mrf.mxu0
      %v9816 = vadd.f32 %v9775, %v9815
      %9817 = vdwg.mxu0
      %v9818 = vld [vmem:[%s2307] sm:$0xff]
      %v9819 = vld [vmem:[%s2307 + $0x8] sm:$0xff]
      %v9820 = vld [vmem:[%s2307 + $0x10] sm:$0xff]
      %v9821 = vld [vmem:[%s2307 + $0x18] sm:$0xff]
      %v9822 = vld [vmem:[%s2307 + $0x20] sm:$0xff]
      %v9823 = vld [vmem:[%s2307 + $0x28] sm:$0xff]
      %v9824 = vld [vmem:[%s2307 + $0x30] sm:$0xff]
      %v9825 = vld [vmem:[%s2307 + $0x38] sm:$0xff]
      %v9826 = vld [vmem:[%s2307 + $0x40] sm:$0xff]
      %v9827 = vld [vmem:[%s2307 + $0x48] sm:$0xff]
      %v9828 = vld [vmem:[%s2307 + $0x50] sm:$0xff]
      %v9829 = vld [vmem:[%s2307 + $0x58] sm:$0xff]
      %v9830 = vld [vmem:[%s2307 + $0x60] sm:$0xff]
      %v9831 = vld [vmem:[%s2307 + $0x68] sm:$0xff]
      %v9832 = vld [vmem:[%s2307 + $0x70] sm:$0xff]
      %v9833 = vld [vmem:[%s2307 + $0x78] sm:$0xff]
      %v9834 = vld [vmem:[%s2324] sm:$0x1]
      %v9836 = vperm.slane %v9834, 0
      %9838 = vmatpush.msra.mxu0 %v9833
      %9839 = vmatpush.msra.mxu0 %v9832
      %9840 = vmatpush.msra.mxu0 %v9831
      %9841 = vmatpush.msra.mxu0 %v9830
      %9842 = vmatpush.msra.mxu0 %v9829
      %9843 = vmatpush.msra.mxu0 %v9828
      %9844 = vmatpush.msra.mxu0 %v9827
      %9845 = vmatpush.msra.mxu0 %v9826
      %9846 = vmatpush.msra.mxu0 %v9825
      %9847 = vmatpush.msra.mxu0 %v9824
      %9848 = vmatpush.msra.mxu0 %v9823
      %9849 = vmatpush.msra.mxu0 %v9822
      %9850 = vmatpush.msra.mxu0 %v9821
      %9851 = vmatpush.msra.mxu0 %v9820
      %9852 = vmatpush.msra.mxu0 %v9819
      %9853 = vmatpush.msra.mxu0 %v9818
      %9854 = vmatmul.f32.gmra.mxu0 %v7899
      %v9855 = vpop.f32.mrf.mxu0
      %v9856 = vadd.f32 %v9836, %v9855
      %9857 = vmatmul.f32.gmra.mxu0 %v7900
      %v9858 = vpop.f32.mrf.mxu0
      %v9859 = vadd.f32 %v9836, %v9858
      %9860 = vmatmul.f32.gmra.mxu0 %v7901
      %v9861 = vpop.f32.mrf.mxu0
      %v9862 = vadd.f32 %v9836, %v9861
      %9863 = vmatmul.f32.gmra.mxu0 %v7902
      %v9864 = vpop.f32.mrf.mxu0
      %v9865 = vadd.f32 %v9836, %v9864
      %9866 = vmatmul.f32.gmra.mxu0 %v7903
      %v9867 = vpop.f32.mrf.mxu0
      %v9868 = vadd.f32 %v9836, %v9867
      %9869 = vmatmul.f32.gmra.mxu0 %v7904
      %v9870 = vpop.f32.mrf.mxu0
      %v9871 = vadd.f32 %v9836, %v9870
      %9872 = vmatmul.f32.gmra.mxu0 %v7905
      %v9873 = vpop.f32.mrf.mxu0
      %v9874 = vadd.f32 %v9836, %v9873
      %9875 = vmatmul.f32.gmra.mxu0 %v7906
      %v9876 = vpop.f32.mrf.mxu0
      %v9877 = vadd.f32 %v9836, %v9876
      %9878 = vdwg.mxu0
      %v9879 = vld [vmem:[%s2370] sm:$0xff]
      %v9880 = vld [vmem:[%s2370 + $0x8] sm:$0xff]
      %v9881 = vld [vmem:[%s2370 + $0x10] sm:$0xff]
      %v9882 = vld [vmem:[%s2370 + $0x18] sm:$0xff]
      %v9883 = vld [vmem:[%s2370 + $0x20] sm:$0xff]
      %v9884 = vld [vmem:[%s2370 + $0x28] sm:$0xff]
      %v9885 = vld [vmem:[%s2370 + $0x30] sm:$0xff]
      %v9886 = vld [vmem:[%s2370 + $0x38] sm:$0xff]
      %v9887 = vld [vmem:[%s2370 + $0x40] sm:$0xff]
      %v9888 = vld [vmem:[%s2370 + $0x48] sm:$0xff]
      %v9889 = vld [vmem:[%s2370 + $0x50] sm:$0xff]
      %v9890 = vld [vmem:[%s2370 + $0x58] sm:$0xff]
      %v9891 = vld [vmem:[%s2370 + $0x60] sm:$0xff]
      %v9892 = vld [vmem:[%s2370 + $0x68] sm:$0xff]
      %v9893 = vld [vmem:[%s2370 + $0x70] sm:$0xff]
      %v9894 = vld [vmem:[%s2370 + $0x78] sm:$0xff]
      %v9895 = vld [vmem:[%s2387] sm:$0x1]
      %v9897 = vperm.slane %v9895, 0
      %9899 = vmatpush.msra.mxu0 %v9894
      %9900 = vmatpush.msra.mxu0 %v9893
      %9901 = vmatpush.msra.mxu0 %v9892
      %9902 = vmatpush.msra.mxu0 %v9891
      %9903 = vmatpush.msra.mxu0 %v9890
      %9904 = vmatpush.msra.mxu0 %v9889
      %9905 = vmatpush.msra.mxu0 %v9888
      %9906 = vmatpush.msra.mxu0 %v9887
      %9907 = vmatpush.msra.mxu0 %v9886
      %9908 = vmatpush.msra.mxu0 %v9885
      %9909 = vmatpush.msra.mxu0 %v9884
      %9910 = vmatpush.msra.mxu0 %v9883
      %9911 = vmatpush.msra.mxu0 %v9882
      %9912 = vmatpush.msra.mxu0 %v9881
      %9913 = vmatpush.msra.mxu0 %v9880
      %9914 = vmatpush.msra.mxu0 %v9879
      %9915 = vmatmul.f32.gmra.mxu0 %v7899
      %v9916 = vpop.f32.mrf.mxu0
      %v9917 = vadd.f32 %v9897, %v9916
      %9918 = vmatmul.f32.gmra.mxu0 %v7900
      %v9919 = vpop.f32.mrf.mxu0
      %v9920 = vadd.f32 %v9897, %v9919
      %9921 = vmatmul.f32.gmra.mxu0 %v7901
      %v9922 = vpop.f32.mrf.mxu0
      %v9923 = vadd.f32 %v9897, %v9922
      %9924 = vmatmul.f32.gmra.mxu0 %v7902
      %v9925 = vpop.f32.mrf.mxu0
      %v9926 = vadd.f32 %v9897, %v9925
      %9927 = vmatmul.f32.gmra.mxu0 %v7903
      %v9928 = vpop.f32.mrf.mxu0
      %v9929 = vadd.f32 %v9897, %v9928
      %9930 = vmatmul.f32.gmra.mxu0 %v7904
      %v9931 = vpop.f32.mrf.mxu0
      %v9932 = vadd.f32 %v9897, %v9931
      %9933 = vmatmul.f32.gmra.mxu0 %v7905
      %v9934 = vpop.f32.mrf.mxu0
      %v9935 = vadd.f32 %v9897, %v9934
      %9936 = vmatmul.f32.gmra.mxu0 %v7906
      %v9937 = vpop.f32.mrf.mxu0
      %v9938 = vadd.f32 %v9897, %v9937
      %9939 = vdwg.mxu0
      %v9940 = vmul.f32 %v9795, 0.17677669
      %v9941 = vmul.f32 %v9798, 0.17677669
      %v9942 = vmul.f32 %v9801, 0.17677669
      %v9943 = vmul.f32 %v9804, 0.17677669
      %v9944 = vmul.f32 %v9807, 0.17677669
      %v9945 = vmul.f32 %v9810, 0.17677669
      %v9946 = vmul.f32 %v9813, 0.17677669
      %v9947 = vmul.f32 %v9816, 0.17677669
      %v9948 = vld [vmem:[%s2441] sm:$0xff]
      %v9949 = vld [vmem:[%s2441 + $0x8] sm:$0xff]
      %v9950 = vld [vmem:[%s2441 + $0x10] sm:$0xff]
      %v9951 = vld [vmem:[%s2441 + $0x18] sm:$0xff]
      %v9952 = vld [vmem:[%s2441 + $0x20] sm:$0xff]
      %v9953 = vld [vmem:[%s2441 + $0x28] sm:$0xff]
      %v9954 = vld [vmem:[%s2441 + $0x30] sm:$0xff]
      %v9955 = vld [vmem:[%s2441 + $0x38] sm:$0xff]
      %v9957 = vsel %vm575, %v9940, 0
      %v9960 = vsel %vm575, %v9941, 0
      %v9963 = vsel %vm575, %v9942, 0
      %v9966 = vsel %vm575, %v9943, 0
      %v9969 = vsel %vm575, %v9944, 0
      %v9972 = vsel %vm575, %v9945, 0
      %v9975 = vsel %vm575, %v9946, 0
      %v9978 = vsel %vm575, %v9947, 0
      %v9981 = vsel %vm575, %v9856, 0
      %v9984 = vsel %vm575, %v9859, 0
      %v9987 = vsel %vm575, %v9862, 0
      %v9990 = vsel %vm575, %v9865, 0
      %v9993 = vsel %vm575, %v9868, 0
      %v9996 = vsel %vm575, %v9871, 0
      %v9999 = vsel %vm575, %v9874, 0
      %v10002 = vsel %vm575, %v9877, 0
      %10004 = vmatpush.xpose.msra.mxu0 0.0
      %10005 = vmatpush.xpose.msra.mxu0 0.0
      %10006 = vmatpush.xpose.msra.mxu0 0.0
      %10007 = vmatpush.xpose.msra.mxu0 0.0
      %10008 = vmatpush.xpose.msra.mxu0 0.0
      %10009 = vmatpush.xpose.msra.mxu0 0.0
      %10010 = vmatpush.xpose.msra.mxu0 0.0
      %10011 = vmatpush.xpose.msra.mxu0 0.0
      %10012 = vmatpush.xpose.msra.mxu0 %v10002
      %10013 = vmatpush.xpose.msra.mxu0 %v9999
      %10014 = vmatpush.xpose.msra.mxu0 %v9996
      %10015 = vmatpush.xpose.msra.mxu0 %v9993
      %10016 = vmatpush.xpose.msra.mxu0 %v9990
      %10017 = vmatpush.xpose.msra.mxu0 %v9987
      %10018 = vmatpush.xpose.msra.mxu0 %v9984
      %10019 = vmatpush.xpose.msra.mxu0 %v9981
      %10020 = vmatmul.f32.gmra.mxu0 %v9957
      %v10021 = vpop.f32.mrf.mxu0
      %v10022 = vadd.f32 %v9948, %v10021
      %10023 = vmatmul.f32.gmra.mxu0 %v9960
      %v10024 = vpop.f32.mrf.mxu0
      %v10025 = vadd.f32 %v9949, %v10024
      %10026 = vmatmul.f32.gmra.mxu0 %v9963
      %v10027 = vpop.f32.mrf.mxu0
      %v10028 = vadd.f32 %v9950, %v10027
      %10029 = vmatmul.f32.gmra.mxu0 %v9966
      %v10030 = vpop.f32.mrf.mxu0
      %v10031 = vadd.f32 %v9951, %v10030
      %10032 = vmatmul.f32.gmra.mxu0 %v9969
      %v10033 = vpop.f32.mrf.mxu0
      %v10034 = vadd.f32 %v9952, %v10033
      %10035 = vmatmul.f32.gmra.mxu0 %v9972
      %v10036 = vpop.f32.mrf.mxu0
      %v10037 = vadd.f32 %v9953, %v10036
      %10038 = vmatmul.f32.gmra.mxu0 %v9975
      %v10039 = vpop.f32.mrf.mxu0
      %v10040 = vadd.f32 %v9954, %v10039
      %10041 = vmatmul.f32.gmra.mxu0 %v9978
      %v10042 = vpop.f32.mrf.mxu0
      %v10043 = vadd.f32 %v9955, %v10042
      %10044 = vdwg.mxu0
      %v10045 = vsel %vm665, %v10022, -inf
      %10046 = vmax.xlane.f32.xlu0 %v10045
      %v10047 = vpop.xlane.xlu0 %10046
      %v10048 = vsel %vm665, %v10025, -inf
      %10049 = vmax.xlane.f32.xlu0 %v10048
      %v10050 = vpop.xlane.xlu0 %10049
      %v10051 = vsel %vm665, %v10028, -inf
      %10052 = vmax.xlane.f32.xlu0 %v10051
      %v10053 = vpop.xlane.xlu0 %10052
      %v10054 = vsel %vm665, %v10031, -inf
      %10055 = vmax.xlane.f32.xlu0 %v10054
      %v10056 = vpop.xlane.xlu0 %10055
      %v10057 = vsel %vm665, %v10034, -inf
      %10058 = vmax.xlane.f32.xlu0 %v10057
      %v10059 = vpop.xlane.xlu0 %10058
      %v10060 = vsel %vm665, %v10037, -inf
      %10061 = vmax.xlane.f32.xlu0 %v10060
      %v10062 = vpop.xlane.xlu0 %10061
      %v10063 = vsel %vm665, %v10040, -inf
      %10064 = vmax.xlane.f32.xlu0 %v10063
      %v10065 = vpop.xlane.xlu0 %10064
      %v10066 = vsel %vm665, %v10043, -inf
      %10067 = vmax.xlane.f32.xlu0 %v10066
      %v10068 = vpop.xlane.xlu0 %10067
      %v10069 = vsub.f32 %v10022, %v10047
      %v10070 = vsub.f32 %v10025, %v10050
      %v10071 = vsub.f32 %v10028, %v10053
      %v10072 = vsub.f32 %v10031, %v10056
      %v10073 = vsub.f32 %v10034, %v10059
      %v10074 = vsub.f32 %v10037, %v10062
      %v10075 = vsub.f32 %v10040, %v10065
      %v10076 = vsub.f32 %v10043, %v10068
      %v10077 = vmul.f32 %v10069, 1.442695
      %v10078 = vpow.pop %v10077
      %v10079 = vmul.f32 %v10070, 1.442695
      %v10080 = vpow.pop %v10079
      %v10081 = vmul.f32 %v10071, 1.442695
      %v10082 = vpow.pop %v10081
      %v10083 = vmul.f32 %v10072, 1.442695
      %v10084 = vpow.pop %v10083
      %v10085 = vmul.f32 %v10073, 1.442695
      %v10086 = vpow.pop %v10085
      %v10087 = vmul.f32 %v10074, 1.442695
      %v10088 = vpow.pop %v10087
      %v10089 = vmul.f32 %v10075, 1.442695
      %v10090 = vpow.pop %v10089
      %v10091 = vmul.f32 %v10076, 1.442695
      %v10092 = vpow.pop %v10091
      %v10093 = vsel %vm665, %v10078, 0.0
      %10094 = vadd.xlane.f32.xlu0 %v10093
      %v10095 = vpop.xlane.xlu0 %10094
      %v10096 = vsel %vm665, %v10080, 0.0
      %10097 = vadd.xlane.f32.xlu0 %v10096
      %v10098 = vpop.xlane.xlu0 %10097
      %v10099 = vsel %vm665, %v10082, 0.0
      %10100 = vadd.xlane.f32.xlu0 %v10099
      %v10101 = vpop.xlane.xlu0 %10100
      %v10102 = vsel %vm665, %v10084, 0.0
      %10103 = vadd.xlane.f32.xlu0 %v10102
      %v10104 = vpop.xlane.xlu0 %10103
      %v10105 = vsel %vm665, %v10086, 0.0
      %10106 = vadd.xlane.f32.xlu0 %v10105
      %v10107 = vpop.xlane.xlu0 %10106
      %v10108 = vsel %vm665, %v10088, 0.0
      %10109 = vadd.xlane.f32.xlu0 %v10108
      %v10110 = vpop.xlane.xlu0 %10109
      %v10111 = vsel %vm665, %v10090, 0.0
      %10112 = vadd.xlane.f32.xlu0 %v10111
      %v10113 = vpop.xlane.xlu0 %10112
      %v10114 = vsel %vm665, %v10092, 0.0
      %10115 = vadd.xlane.f32.xlu0 %v10114
      %v10116 = vpop.xlane.xlu0 %10115
      %v10117 = vrcp.pop %v10095
      %v10118 = vmul.f32 %v10095, %v10117
      %v10119 = vsub.f32 1.0, %v10118
      %v10120 = vmul.f32 %v10117, %v10119
      %v10121 = vadd.f32 %v10117, %v10120
      %vm10122 = vweird.f32 %v10095
      %vm10123 = vweird.f32 %v10117
      %vm10124 = vmor %vm10122, %vm10123
      %v10125 = vsel %vm10124, %v10117, %v10121
      %v10126 = vand.u32 2147483647, %v10095
      %vm10127 = vcmp.eq.f32.partialorder %v10126, 8.507059e+37
      %v10128 = vand.u32 %v10095, 2147483648
      %v10129 = vor.u32 1.1754944e-38, %v10128
      %v10130 = vsel %vm10127, %v10129, %v10125
      %v10131 = vmul.f32 %v10078, %v10130
      %v10132 = vrcp.pop %v10098
      %v10133 = vmul.f32 %v10098, %v10132
      %v10134 = vsub.f32 1.0, %v10133
      %v10135 = vmul.f32 %v10132, %v10134
      %v10136 = vadd.f32 %v10132, %v10135
      %vm10137 = vweird.f32 %v10098
      %vm10138 = vweird.f32 %v10132
      %vm10139 = vmor %vm10137, %vm10138
      %v10140 = vsel %vm10139, %v10132, %v10136
      %v10141 = vand.u32 2147483647, %v10098
      %vm10142 = vcmp.eq.f32.partialorder %v10141, 8.507059e+37
      %v10143 = vand.u32 %v10098, 2147483648
      %v10144 = vor.u32 1.1754944e-38, %v10143
      %v10145 = vsel %vm10142, %v10144, %v10140
      %v10146 = vmul.f32 %v10080, %v10145
      %v10147 = vrcp.pop %v10101
      %v10148 = vmul.f32 %v10101, %v10147
      %v10149 = vsub.f32 1.0, %v10148
      %v10150 = vmul.f32 %v10147, %v10149
      %v10151 = vadd.f32 %v10147, %v10150
      %vm10152 = vweird.f32 %v10101
      %vm10153 = vweird.f32 %v10147
      %vm10154 = vmor %vm10152, %vm10153
      %v10155 = vsel %vm10154, %v10147, %v10151
      %v10156 = vand.u32 2147483647, %v10101
      %vm10157 = vcmp.eq.f32.partialorder %v10156, 8.507059e+37
      %v10158 = vand.u32 %v10101, 2147483648
      %v10159 = vor.u32 1.1754944e-38, %v10158
      %v10160 = vsel %vm10157, %v10159, %v10155
      %v10161 = vmul.f32 %v10082, %v10160
      %v10162 = vrcp.pop %v10104
      %v10163 = vmul.f32 %v10104, %v10162
      %v10164 = vsub.f32 1.0, %v10163
      %v10165 = vmul.f32 %v10162, %v10164
      %v10166 = vadd.f32 %v10162, %v10165
      %vm10167 = vweird.f32 %v10104
      %vm10168 = vweird.f32 %v10162
      %vm10169 = vmor %vm10167, %vm10168
      %v10170 = vsel %vm10169, %v10162, %v10166
      %v10171 = vand.u32 2147483647, %v10104
      %vm10172 = vcmp.eq.f32.partialorder %v10171, 8.507059e+37
      %v10173 = vand.u32 %v10104, 2147483648
      %v10174 = vor.u32 1.1754944e-38, %v10173
      %v10175 = vsel %vm10172, %v10174, %v10170
      %v10176 = vmul.f32 %v10084, %v10175
      %v10177 = vrcp.pop %v10107
      %v10178 = vmul.f32 %v10107, %v10177
      %v10179 = vsub.f32 1.0, %v10178
      %v10180 = vmul.f32 %v10177, %v10179
      %v10181 = vadd.f32 %v10177, %v10180
      %vm10182 = vweird.f32 %v10107
      %vm10183 = vweird.f32 %v10177
      %vm10184 = vmor %vm10182, %vm10183
      %v10185 = vsel %vm10184, %v10177, %v10181
      %v10186 = vand.u32 2147483647, %v10107
      %vm10187 = vcmp.eq.f32.partialorder %v10186, 8.507059e+37
      %v10188 = vand.u32 %v10107, 2147483648
      %v10189 = vor.u32 1.1754944e-38, %v10188
      %v10190 = vsel %vm10187, %v10189, %v10185
      %v10191 = vmul.f32 %v10086, %v10190
      %v10192 = vrcp.pop %v10110
      %v10193 = vmul.f32 %v10110, %v10192
      %v10194 = vsub.f32 1.0, %v10193
      %v10195 = vmul.f32 %v10192, %v10194
      %v10196 = vadd.f32 %v10192, %v10195
      %vm10197 = vweird.f32 %v10110
      %vm10198 = vweird.f32 %v10192
      %vm10199 = vmor %vm10197, %vm10198
      %v10200 = vsel %vm10199, %v10192, %v10196
      %v10201 = vand.u32 2147483647, %v10110
      %vm10202 = vcmp.eq.f32.partialorder %v10201, 8.507059e+37
      %v10203 = vand.u32 %v10110, 2147483648
      %v10204 = vor.u32 1.1754944e-38, %v10203
      %v10205 = vsel %vm10202, %v10204, %v10200
      %v10206 = vmul.f32 %v10088, %v10205
      %v10207 = vrcp.pop %v10113
      %v10208 = vmul.f32 %v10113, %v10207
      %v10209 = vsub.f32 1.0, %v10208
      %v10210 = vmul.f32 %v10207, %v10209
      %v10211 = vadd.f32 %v10207, %v10210
      %vm10212 = vweird.f32 %v10113
      %vm10213 = vweird.f32 %v10207
      %vm10214 = vmor %vm10212, %vm10213
      %v10215 = vsel %vm10214, %v10207, %v10211
      %v10216 = vand.u32 2147483647, %v10113
      %vm10217 = vcmp.eq.f32.partialorder %v10216, 8.507059e+37
      %v10218 = vand.u32 %v10113, 2147483648
      %v10219 = vor.u32 1.1754944e-38, %v10218
      %v10220 = vsel %vm10217, %v10219, %v10215
      %v10221 = vmul.f32 %v10090, %v10220
      %v10222 = vrcp.pop %v10116
      %v10223 = vmul.f32 %v10116, %v10222
      %v10224 = vsub.f32 1.0, %v10223
      %v10225 = vmul.f32 %v10222, %v10224
      %v10226 = vadd.f32 %v10222, %v10225
      %vm10227 = vweird.f32 %v10116
      %vm10228 = vweird.f32 %v10222
      %vm10229 = vmor %vm10227, %vm10228
      %v10230 = vsel %vm10229, %v10222, %v10226
      %v10231 = vand.u32 2147483647, %v10116
      %vm10232 = vcmp.eq.f32.partialorder %v10231, 8.507059e+37
      %v10233 = vand.u32 %v10116, 2147483648
      %v10234 = vor.u32 1.1754944e-38, %v10233
      %v10235 = vsel %vm10232, %v10234, %v10230
      %v10236 = vmul.f32 %v10092, %v10235
      %v10238 = vsel %vm665, %v10131, 0
      %v10241 = vsel %vm665, %v10146, 0
      %v10244 = vsel %vm665, %v10161, 0
      %v10247 = vsel %vm665, %v10176, 0
      %v10250 = vsel %vm665, %v10191, 0
      %v10253 = vsel %vm665, %v10206, 0
      %v10256 = vsel %vm665, %v10221, 0
      %v10259 = vsel %vm665, %v10236, 0
      %10261 = vmatpush.msra.mxu0 0.0
      %10262 = vmatpush.msra.mxu0 0.0
      %10263 = vmatpush.msra.mxu0 0.0
      %10264 = vmatpush.msra.mxu0 0.0
      %10265 = vmatpush.msra.mxu0 0.0
      %10266 = vmatpush.msra.mxu0 0.0
      %10267 = vmatpush.msra.mxu0 0.0
      %10268 = vmatpush.msra.mxu0 0.0
      %10269 = vmatpush.msra.mxu0 %v9938
      %10270 = vmatpush.msra.mxu0 %v9935
      %10271 = vmatpush.msra.mxu0 %v9932
      %10272 = vmatpush.msra.mxu0 %v9929
      %10273 = vmatpush.msra.mxu0 %v9926
      %10274 = vmatpush.msra.mxu0 %v9923
      %10275 = vmatpush.msra.mxu0 %v9920
      %10276 = vmatpush.msra.mxu0 %v9917
      %10277 = vmatmul.f32.gmra.mxu0 %v10238
      %v10278 = vpop.f32.mrf.mxu0
      %v10279 = vadd.f32 0.0, %v10278
      %10280 = vmatmul.f32.gmra.mxu0 %v10241
      %v10281 = vpop.f32.mrf.mxu0
      %v10282 = vadd.f32 0.0, %v10281
      %10283 = vmatmul.f32.gmra.mxu0 %v10244
      %v10284 = vpop.f32.mrf.mxu0
      %v10285 = vadd.f32 0.0, %v10284
      %10286 = vmatmul.f32.gmra.mxu0 %v10247
      %v10287 = vpop.f32.mrf.mxu0
      %v10288 = vadd.f32 0.0, %v10287
      %10289 = vmatmul.f32.gmra.mxu0 %v10250
      %v10290 = vpop.f32.mrf.mxu0
      %v10291 = vadd.f32 0.0, %v10290
      %10292 = vmatmul.f32.gmra.mxu0 %v10253
      %v10293 = vpop.f32.mrf.mxu0
      %v10294 = vadd.f32 0.0, %v10293
      %10295 = vmatmul.f32.gmra.mxu0 %v10256
      %v10296 = vpop.f32.mrf.mxu0
      %v10297 = vadd.f32 0.0, %v10296
      %10298 = vmatmul.f32.gmra.mxu0 %v10259
      %v10299 = vpop.f32.mrf.mxu0
      %v10300 = vadd.f32 0.0, %v10299
      %10301 = vdwg.mxu0
      %v10302 = vld [vmem:[%s2796] sm:$0xff]
      %v10303 = vld [vmem:[%s2796 + $0x8] sm:$0xff]
      %v10304 = vld [vmem:[%s2796 + $0x10] sm:$0xff]
      %v10305 = vld [vmem:[%s2796 + $0x18] sm:$0xff]
      %v10307 = vsel %vm575, %v10279, 0
      %v10310 = vsel %vm575, %v10282, 0
      %v10313 = vsel %vm575, %v10285, 0
      %v10316 = vsel %vm575, %v10288, 0
      %v10319 = vsel %vm575, %v10291, 0
      %v10322 = vsel %vm575, %v10294, 0
      %v10325 = vsel %vm575, %v10297, 0
      %v10328 = vsel %vm575, %v10300, 0
      %10330 = vmatpush.msra.mxu0 0.0
      %10331 = vmatpush.msra.mxu0 0.0
      %10332 = vmatpush.msra.mxu0 0.0
      %10333 = vmatpush.msra.mxu0 0.0
      %10334 = vmatpush.msra.mxu0 0.0
      %10335 = vmatpush.msra.mxu0 0.0
      %10336 = vmatpush.msra.mxu0 0.0
      %10337 = vmatpush.msra.mxu0 0.0
      %10338 = vmatpush.msra.mxu0 0.0
      %10339 = vmatpush.msra.mxu0 0.0
      %10340 = vmatpush.msra.mxu0 0.0
      %10341 = vmatpush.msra.mxu0 0.0
      %10342 = vmatpush.msra.mxu0 %v10305
      %10343 = vmatpush.msra.mxu0 %v10304
      %10344 = vmatpush.msra.mxu0 %v10303
      %10345 = vmatpush.msra.mxu0 %v10302
      %10346 = vmatmul.f32.gmra.mxu0 %v10307
      %v10347 = vpop.f32.mrf.mxu0
      %v10348 = vadd.f32 0.0, %v10347
      %10349 = vmatmul.f32.gmra.mxu0 %v10310
      %v10350 = vpop.f32.mrf.mxu0
      %v10351 = vadd.f32 0.0, %v10350
      %10352 = vmatmul.f32.gmra.mxu0 %v10313
      %v10353 = vpop.f32.mrf.mxu0
      %v10354 = vadd.f32 0.0, %v10353
      %10355 = vmatmul.f32.gmra.mxu0 %v10316
      %v10356 = vpop.f32.mrf.mxu0
      %v10357 = vadd.f32 0.0, %v10356
      %10358 = vmatmul.f32.gmra.mxu0 %v10319
      %v10359 = vpop.f32.mrf.mxu0
      %v10360 = vadd.f32 0.0, %v10359
      %10361 = vmatmul.f32.gmra.mxu0 %v10322
      %v10362 = vpop.f32.mrf.mxu0
      %v10363 = vadd.f32 0.0, %v10362
      %10364 = vmatmul.f32.gmra.mxu0 %v10325
      %v10365 = vpop.f32.mrf.mxu0
      %v10366 = vadd.f32 0.0, %v10365
      %10367 = vmatmul.f32.gmra.mxu0 %v10328
      %v10368 = vpop.f32.mrf.mxu0
      %v10369 = vadd.f32 0.0, %v10368
      %10370 = vdwg.mxu0
      %v10371 = vadd.f32 %v9749, %v10348
      %v10372 = vadd.f32 %v9750, %v10351
      %v10373 = vadd.f32 %v9751, %v10354
      %v10374 = vadd.f32 %v9752, %v10357
      %v10375 = vadd.f32 %v9753, %v10360
      %v10376 = vadd.f32 %v9754, %v10363
      %v10377 = vadd.f32 %v9755, %v10366
      %v10378 = vadd.f32 %v9756, %v10369
      %v10379 = vld [vmem:[%s9] sm:$0x1]
      %v10381 = vperm.slane %v10379, 0
      %v10383 = vadd.f32 %v10371, %v10381
      %v10384 = vadd.f32 %v10372, %v10381
      %v10385 = vadd.f32 %v10373, %v10381
      %v10386 = vadd.f32 %v10374, %v10381
      %v10387 = vadd.f32 %v10375, %v10381
      %v10388 = vadd.f32 %v10376, %v10381
      %v10389 = vadd.f32 %v10377, %v10381
      %v10390 = vadd.f32 %v10378, %v10381
      %s10391 = scalar_lea.vmem %s366, 192
      %10392 = vst [vmem:[%s10391] sm:$0xff] %v10383
      %10393 = vst [vmem:[%s10391 + $0x8] sm:$0xff] %v10384
      %10394 = vst [vmem:[%s10391 + $0x10] sm:$0xff] %v10385
      %10395 = vst [vmem:[%s10391 + $0x18] sm:$0xff] %v10386
      %10396 = vst [vmem:[%s10391 + $0x20] sm:$0xff] %v10387
      %10397 = vst [vmem:[%s10391 + $0x28] sm:$0xff] %v10388
      %10398 = vst [vmem:[%s10391 + $0x30] sm:$0xff] %v10389
      %10399 = vst [vmem:[%s10391 + $0x38] sm:$0xff] %v10390
      %s10400 = smul.u32 4, %s21
      %p10401 = scmp.lt.s32.totalorder %s10400, 7
      %s10402 = scalar_select %p10401, %s10400, 7
      %s10403 = smul.addr %s10402, 8
      %s10404 = smul.addr %s10403, 8
      %s10405 = scalar_lea.vmem %s10, %s10404
      // Predicated region
      $region61: #{swin_attn_block_forward.1} parent=59 // pred_check
        %p10406 = pneg %p254
      $region62: #{swin_attn_block_forward.1} parent=59 // pred_check_branch
        %10408 = sbr.rel (%p10406) target = $region64
      $region63: #{swin_attn_block_forward.1} parent=59 // pred_region
        %s10409 = smul.u32 4, %s21
      $region64: #{swin_attn_block_forward.1} parent=59 // pred_fallthru
        _
    $region60: #{swin_attn_block_forward.1} parent=5 // pred_fallthru
      _
    %p10410 = scmp.le.s32.totalorder 2, %s16
    // Predicated region
    $region65: #{swin_attn_block_forward.1} parent=5 // pred_check
      %p10411 = pneg %p10410
    $region66: #{swin_attn_block_forward.1} parent=5 // pred_check_branch
      %10413 = sbr.rel (%p10411) target = $region68
    $region67: #{swin_attn_block_forward.1} parent=5 // pred_region
      %s10414 = ssub.s32 %s16, 2
      // Predicated region
      $region69: #{swin_attn_block_forward.1} parent=67 // pred_check
        %p10415 = pneg %p260
      $region70: #{swin_attn_block_forward.1} parent=67 // pred_check_branch
        %10417 = sbr.rel (%p10415) target = $region72
      $region71: #{swin_attn_block_forward.1} parent=67 // pred_region
        %s10418 = smul.u32 4, %s22
        %p10419 = scmp.lt.s32.totalorder %s10418, 7
        %s10420 = scalar_select %p10419, %s10418, 7
        %s10421 = smul.addr %s10420, 8
        %s10422 = smul.addr %s10421, 8
        %s10423 = scalar_lea.vmem %s10, %s10422
      $region72: #{swin_attn_block_forward.1} parent=67 // pred_fallthru
        _
    $region68: #{swin_attn_block_forward.1} parent=5 // pred_fallthru
      _
  $region6: #{swin_attn_block_forward.1} parent=0 // loop_footer
    %s20 = sadd.s32 1, %s16
  $region7: #{swin_attn_block_forward.1} parent=0 // loop_footer_branch
    %15 = sbr.rel target = $region3
  $region8: #{swin_attn_block_forward.1} parent=0 // loop_exit
    _

</llo_original>
